<compile_context>
chip_gen: v5e
topology: v5e:2x2
jax: 0.10.0
libtpu: 0.0.40
codegen_flags: <defaults>
</compile_context>

<pallas_src>
import jax
import jax.numpy as jnp
from jax import lax
from jax.experimental import pallas as pl
from jax.experimental.pallas import tpu as pltpu

BN_EPS = 1e-5
LANE = 128
VMEM_LIMIT = 32 * 1024 * 1024  # explicit budget, valid on v5e/v6e/v7x


def _round_up(n, m):
    return ((n + m - 1) // m) * m


def _pick_h_tile(h):
    # Enough grid steps to pipeline / shard across TensorCores; halo overhead stays small.
    return 8 if (h % 8 == 0 and h > 8) else h


def _make_conv_stage_kernel(pre_norm: bool):
    """[optional folded-BN FMA + ReLU on the input] -> 3x3 conv (stride 1, zero pad 1)
    as ONE im2col MXU matmul -> bf16 raw output + per-tile BN partial statistics
    (per-channel mean and centered second moment) from the f32 accumulator."""

    def kernel(*refs):
        if pre_norm:
            (xm_ref, xt_ref, xb_ref, w_ref, sc_ref, bs_ref,
             raw_ref, mean_ref, m2_ref, xfull_ref, p_ref) = refs
        else:
            (xm_ref, xt_ref, xb_ref, w_ref,
             raw_ref, mean_ref, m2_ref, xfull_ref, p_ref) = refs

        TB, TH, W, Cin = xm_ref.shape
        KP, COUTP = w_ref.shape
        COUT = raw_ref.shape[-1]
        NTAP = 9

        h = pl.program_id(1)
        last_h = pl.num_programs(1) - 1

        def prep(v):
            v = v.astype(jnp.float32)
            if pre_norm:
                # Folded BatchNorm of the previous conv (one FMA), then ReLU.
                v = jnp.maximum(v * sc_ref[...] + bs_ref[...], 0.0)
            return v

        main = prep(xm_ref[...])
        # Halo rows: apply the BN/ReLU transform first, then zero rows that fall outside
        # the image (conv zero-padding pads the *activated* feature map).
        top = prep(xt_ref[...]) * (h > 0).astype(jnp.float32)
        bot = prep(xb_ref[...]) * (h < last_h).astype(jnp.float32)

        # Spatially padded tile in a bf16 VMEM scratch (fully rewritten every step, so
        # there is no cross-iteration state; only the tiny border columns are zeros).
        zcol = jnp.zeros((TB, TH + 2, 1, Cin), jnp.bfloat16)
        xfull_ref[:, :, 0:1, :] = zcol
        xfull_ref[:, :, W + 1:W + 2, :] = zcol
        xfull_ref[:, 0:1, 1:W + 1, :] = top.astype(jnp.bfloat16)
        xfull_ref[:, TH + 1:TH + 2, 1:W + 1, :] = bot.astype(jnp.bfloat16)
        xfull_ref[:, 1:TH + 1, 1:W + 1, :] = main.astype(jnp.bfloat16)

        # im2col: 9 shifted copies of the real (small) channel slice packed along the
        # lane axis -> one dense (M, KP) bf16 operand -> a single MXU matmul.
        for kh in range(3):
            for kw in range(3):
                t = kh * 3 + kw
                p_ref[:, :, :, t * Cin:(t + 1) * Cin] = (
                    xfull_ref[:, kh:kh + TH, kw:kw + W, :])
        if KP > NTAP * Cin:  # lane-padding tail of the contraction
            p_ref[:, :, :, NTAP * Cin:] = jnp.zeros(
                (TB, TH, W, KP - NTAP * Cin), jnp.bfloat16)

        m_rows = TB * TH * W
        acc = jnp.dot(p_ref[...].reshape(m_rows, KP), w_ref[...],
                      preferred_element_type=jnp.float32)         # (M, COUTP) f32

        # Raw conv output: bf16, un-padded channels (the dominant HBM traffic).
        raw_ref[...] = acc[:, :COUT].reshape(TB, TH, W, COUT).astype(raw_ref.dtype)

        # Per-tile BN partials from the f32 accumulator: centered, so the cross-tile
        # combine is Welford/Chan style (no E[x^2]-E[x]^2 cancellation).
        mean_t = jnp.sum(acc, axis=0, keepdims=True) * (1.0 / m_rows)
        m2_t = jnp.sum((acc - mean_t) ** 2, axis=0, keepdims=True)
        mean_ref[...] = mean_t.reshape(1, 1, 1, COUTP)
        m2_ref[...] = m2_t.reshape(1, 1, 1, COUTP)

    return kernel


def _conv_stats_stage(x, w_flat, out_channels, *, scale=None, bias=None,
                      n_tile=1, h_tile=None):
    """One conv stage as a (batch, row-block) gridded pallas_call.

    Returns (raw bf16 (N,H,W,out_channels), per-tile means, per-tile centered M2)."""
    N, H, W, Cin = x.shape
    KP, COUTP = w_flat.shape
    if h_tile is None:
        h_tile = _pick_h_tile(H)
    assert N % n_tile == 0 and H % h_tile == 0
    nb, nh = N // n_tile, H // h_tile
    TB, TH = n_tile, h_tile
    pre_norm = scale is not None

    in_specs = [
        # main block + 1-row top/bottom halos (clamped at the image border; masked
        # to zero inside the kernel).
        pl.BlockSpec((TB, TH, W, Cin), lambda i, h: (i, h, 0, 0)),
        pl.BlockSpec((TB, 1, W, Cin),
                     lambda i, h: (i, jnp.maximum(h * TH - 1, 0), 0, 0)),
        pl.BlockSpec((TB, 1, W, Cin),
                     lambda i, h: (i, jnp.minimum(h * TH + TH, H - 1), 0, 0)),
        # Constant block index -> the (small) weight stays VMEM-resident.
        pl.BlockSpec((KP, COUTP), lambda i, h: (0, 0)),
    ]
    inputs = [x, x, x, w_flat]
    if pre_norm:
        cspec = pl.BlockSpec((1, Cin), lambda i, h: (0, 0))
        in_specs += [cspec, cspec]
        inputs += [scale, bias]

    out_shape = (
        jax.ShapeDtypeStruct((N, H, W, out_channels), jnp.bfloat16),
        jax.ShapeDtypeStruct((nb, nh, 1, COUTP), jnp.float32),
        jax.ShapeDtypeStruct((nb, nh, 1, COUTP), jnp.float32),
    )
    out_specs = (
        pl.BlockSpec((TB, TH, W, out_channels), lambda i, h: (i, h, 0, 0)),
        pl.BlockSpec((1, 1, 1, COUTP), lambda i, h: (i, h, 0, 0)),
        pl.BlockSpec((1, 1, 1, COUTP), lambda i, h: (i, h, 0, 0)),
    )

    return pl.pallas_call(
        _make_conv_stage_kernel(pre_norm),
        grid=(nb, nh),
        in_specs=in_specs,
        out_specs=out_specs,
        out_shape=out_shape,
        scratch_shapes=[
            pltpu.VMEM((TB, TH + 2, W + 2, Cin), jnp.bfloat16),  # spatially padded tile
            pltpu.VMEM((TB, TH, W, KP), jnp.bfloat16),           # im2col patches
        ],
        compiler_params=pltpu.CompilerParams(
            dimension_semantics=("parallel", "parallel"),
            vmem_limit_bytes=VMEM_LIMIT),
    )(*inputs)


def _finalize_kernel(raw_ref, res_ref, sc_ref, bs_ref, out_ref):
    """Folded BatchNorm of conv2 (single FMA) + residual add, all un-padded."""
    y = raw_ref[...].astype(jnp.float32) * sc_ref[...] + bs_ref[...]
    out_ref[...] = (y + res_ref[...]).astype(out_ref.dtype)


def _finalize_stage(raw, res, scale, bias, *, n_tile=1, h_tile=None):
    N, H, W, C = raw.shape
    if h_tile is None:
        h_tile = _pick_h_tile(H)
    assert N % n_tile == 0 and H % h_tile == 0
    spec4 = pl.BlockSpec((n_tile, h_tile, W, C), lambda i, h: (i, h, 0, 0))
    cspec = pl.BlockSpec((1, C), lambda i, h: (0, 0))
    # TODO(synk): also fold the NHWC->NCHW transpose of the final output into this
    #             kernel (write (tB, C, th, W) blocks) to drop the trailing XLA pass.
    return pl.pallas_call(
        _finalize_kernel,
        grid=(N // n_tile, H // h_tile),
        in_specs=[spec4, spec4, cspec, cspec],
        out_specs=spec4,
        out_shape=jax.ShapeDtypeStruct((N, H, W, C), jnp.float32),
        compiler_params=pltpu.CompilerParams(
            dimension_semantics=("parallel", "parallel"),
            vmem_limit_bytes=VMEM_LIMIT),
    )(raw, res, scale, bias)


def _fold_bn(mean_t, m2_t, total_count, gamma, beta):
    """Exact Chan/Welford combine of per-tile (mean, centered M2) partials, then fold
    training-mode BatchNorm into one per-channel scale/bias."""
    C = gamma.shape[0]
    mt = mean_t[..., :C].reshape(-1, C)
    m2 = m2_t[..., :C].reshape(-1, C)
    tiles = mt.shape[0]
    per_tile = total_count // tiles
    mean = jnp.mean(mt, axis=0)                       # equal per-tile counts
    m2_tot = jnp.sum(m2, axis=0) + per_tile * jnp.sum((mt - mean) ** 2, axis=0)
    var = m2_tot / total_count                        # biased (training-mode) variance
    scale = gamma * lax.rsqrt(var + BN_EPS)
    bias = beta - mean * scale
    return scale.reshape(1, C), bias.reshape(1, C)


def init_basic_block_params(key, inplanes, planes):
    """Deterministic synthetic parameters. PyTorch conv weights are (Cout, Cin, KH, KW);
    stored here as (KH, KW, Cin, Cout). BatchNorm2d default init: gamma=1, beta=0."""
    k1, k2 = jax.random.split(key, 2)
    w1_torch = 0.1 * jax.random.normal(k1, (planes, inplanes, 3, 3), jnp.float32)
    w2_torch = 0.1 * jax.random.normal(k2, (planes, planes, 3, 3), jnp.float32)
    return {
        "w1": jnp.transpose(w1_torch, (2, 3, 1, 0)),
        "gamma1": jnp.ones((planes,), jnp.float32),
        "beta1": jnp.zeros((planes,), jnp.float32),
        "w2": jnp.transpose(w2_torch, (2, 3, 1, 0)),
        "gamma2": jnp.ones((planes,), jnp.float32),
        "beta2": jnp.zeros((planes,), jnp.float32),
    }


def _flatten_weight(w):
    """(KH, KW, Cin, Cout) -> im2col layout, padded to (round_up(9*Cin,128),
    round_up(Cout,128)), bf16."""
    kh, kw, cin, cout = w.shape
    k = kh * kw * cin
    kp, coutp = _round_up(k, LANE), _round_up(cout, LANE)
    wf = jnp.pad(w.reshape(k, cout), ((0, kp - k), (0, coutp - cout)))
    return wf.astype(jnp.bfloat16)


@jax.jit
def basic_block_forward(x_nchw, params):
    """BasicBlock forward (3x3 convs, stride=1, pad=1, dilation=groups=1, bias=False,
    BatchNorm2d in training mode, downsample=None). NCHW in/out, NHWC inside."""
    N, C, H, W = x_nchw.shape
    planes = params["gamma1"].shape[0]
    assert planes == C, "residual add requires inplanes == planes (downsample=None)"
    count = N * H * W

    x_nhwc = jnp.transpose(x_nchw, (0, 2, 3, 1)).astype(jnp.float32)
    x_bf16 = x_nhwc.astype(jnp.bfloat16)          # conv1 operand (bf16 MXU inputs)

    w1_flat = _flatten_weight(params["w1"])
    w2_flat = _flatten_weight(params["w2"])

    # Stage 1: conv1 + per-tile BN1 partial statistics.
    raw1, mean1, m21 = _conv_stats_stage(x_bf16, w1_flat, planes)
    scale1, bias1 = _fold_bn(mean1, m21, count, params["gamma1"], params["beta1"])
    # Stage 2: BN1 (folded FMA) + ReLU applied in-VMEM, then conv2 + BN2 partials.
    raw2, mean2, m22 = _conv_stats_stage(raw1, w2_flat, planes,
                                         scale=scale1, bias=bias1)
    scale2, bias2 = _fold_bn(mean2, m22, count, params["gamma2"], params["beta2"])
    # Stage 3: BN2 (folded FMA) + residual add on un-padded tensors.
    out_nhwc = _finalize_stage(raw2, x_nhwc, scale2, bias2)

    return jnp.transpose(out_nhwc, (0, 3, 1, 2))  # NHWC -> NCHW


def _reference_forward(x_nchw, params):
    """Pure-JAX reference mirroring the kernel's precision path: bf16 conv operands with
    f32 accumulation, bf16 storage of the two raw conv outputs, BN statistics taken from
    the f32 conv outputs (training-mode, biased variance)."""
    def conv(x, w):
        return lax.conv_general_dilated(
            x.astype(jnp.bfloat16), w.astype(jnp.bfloat16),
            window_strides=(1, 1), padding=((1, 1), (1, 1)),
            dimension_numbers=("NHWC", "HWIO", "NHWC"),
            preferred_element_type=jnp.float32)

    def fold(y, gamma, beta):
        mean = jnp.mean(y, axis=(0, 1, 2))
        var = jnp.mean((y - mean) ** 2, axis=(0, 1, 2))
        scale = gamma * lax.rsqrt(var + BN_EPS)
        return scale, beta - mean * scale

    x = jnp.transpose(x_nchw, (0, 2, 3, 1)).astype(jnp.float32)
    y1 = conv(x, params["w1"])
    s1, b1 = fold(y1, params["gamma1"], params["beta1"])
    h = jax.nn.relu(y1.astype(jnp.bfloat16).astype(jnp.float32) * s1 + b1)
    y2 = conv(h, params["w2"])
    s2, b2 = fold(y2, params["gamma2"], params["beta2"])
    out = y2.astype(jnp.bfloat16).astype(jnp.float32) * s2 + b2 + x
    return jnp.transpose(out, (0, 3, 1, 2))


if __name__ == "__main__":
    key = jax.random.PRNGKey(0)
    kx, kp = jax.random.split(key)

    N, C, H, W = 2, 8, 16, 16        # inplanes == planes (stride=1, downsample=None)
    x = jax.random.normal(kx, (N, C, H, W), jnp.float32)
    params = init_basic_block_params(kp, inplanes=C, planes=C)

    out = jax.block_until_ready(basic_block_forward(x, params))
    ref = _reference_forward(x, params)

    assert out.shape == (N, C, H, W)
    err = float(jnp.max(jnp.abs(out - ref)))
    # bf16 matmul operands / bf16 raw storage -> allow a few bf16 ulps of divergence.
    assert err < 5e-3, f"mismatch vs reference: max abs err = {err}"

    print("KERNEL_OK")
</pallas_src>

<mosaic_0001>
module attributes {stable_mosaic.version = 11 : i64} {
  func.func @kernel(%arg0: i32, %arg1: i32, %arg2: memref<1x8x16x8xbf16, #tpu.memory_space<vmem>>, %arg3: memref<1x1x16x8xbf16, #tpu.memory_space<vmem>>, %arg4: memref<1x1x16x8xbf16, #tpu.memory_space<vmem>>, %arg5: memref<128x128xbf16, #tpu.memory_space<vmem>>, %arg6: memref<1x8xf32, #tpu.memory_space<vmem>>, %arg7: memref<1x8xf32, #tpu.memory_space<vmem>>, %arg8: memref<1x8x16x8xbf16, #tpu.memory_space<vmem>>, %arg9: memref<1x1x1x128xf32, #tpu.memory_space<vmem>>, %arg10: memref<1x1x1x128xf32, #tpu.memory_space<vmem>>, %arg11: memref<1x10x18x8xbf16, #tpu.memory_space<vmem>>, %arg12: memref<1x8x16x128xbf16, #tpu.memory_space<vmem>>) attributes {dimension_semantics = [#tpu.dimension_semantics<parallel>, #tpu.dimension_semantics<parallel>], iteration_bounds = array<i64: 2, 2>, scalar_prefetch = 0 : i64, scratch_operands = 2 : i64, tpu.core_type = #tpu.core_type<tc>, window_params = [{transform_indices = @transform_0, window_bounds = array<i64: 1, 8, 16, 8>}, {transform_indices = @transform_1, window_bounds = array<i64: 1, 1, 16, 8>}, {transform_indices = @transform_2, window_bounds = array<i64: 1, 1, 16, 8>}, {pipeline_mode = #tpu.pipeline_mode<synchronous>, transform_indices = @transform_3, window_bounds = array<i64: 128, 128>}, {pipeline_mode = #tpu.pipeline_mode<synchronous>, transform_indices = @transform_4, window_bounds = array<i64: 1, 8>}, {pipeline_mode = #tpu.pipeline_mode<synchronous>, transform_indices = @transform_5, window_bounds = array<i64: 1, 8>}, {transform_indices = @transform_6, window_bounds = array<i64: 1, 8, 16, 8>}, {transform_indices = @transform_7, window_bounds = array<i64: 1, 1, 1, 128>}, {transform_indices = @transform_8, window_bounds = array<i64: 1, 1, 1, 128>}]} {
    %c0 = arith.constant 0 : index
    %c0_0 = arith.constant 0 : index
    %c0_1 = arith.constant 0 : index
    %c0_2 = arith.constant 0 : index
    %0 = vector.load %arg2[%c0, %c0_0, %c0_1, %c0_2] : memref<1x8x16x8xbf16, #tpu.memory_space<vmem>>, vector<1x8x16x8xbf16>
    %1 = arith.extf %0 : vector<1x8x16x8xbf16> to vector<1x8x16x8xf32>
    %c0_3 = arith.constant 0 : index
    %c0_4 = arith.constant 0 : index
    %2 = vector.load %arg6[%c0_3, %c0_4] : memref<1x8xf32, #tpu.memory_space<vmem>>, vector<1x8xf32>
    %3 = vector.shape_cast %2 : vector<1x8xf32> to vector<1x1x1x8xf32>
    %4 = vector.broadcast %3 : vector<1x1x1x8xf32> to vector<1x8x16x8xf32>
    %5 = arith.mulf %1, %4 : vector<1x8x16x8xf32>
    %c0_5 = arith.constant 0 : index
    %c0_6 = arith.constant 0 : index
    %6 = vector.load %arg7[%c0_5, %c0_6] : memref<1x8xf32, #tpu.memory_space<vmem>>, vector<1x8xf32>
    %7 = vector.shape_cast %6 : vector<1x8xf32> to vector<1x1x1x8xf32>
    %8 = vector.broadcast %7 : vector<1x1x1x8xf32> to vector<1x8x16x8xf32>
    %9 = arith.addf %5, %8 : vector<1x8x16x8xf32>
    %cst = arith.constant 0.000000e+00 : f32
    %10 = vector.broadcast %cst : f32 to vector<1x8x16x8xf32>
    %11 = arith.maximumf %9, %10 : vector<1x8x16x8xf32>
    %c0_7 = arith.constant 0 : index
    %c0_8 = arith.constant 0 : index
    %c0_9 = arith.constant 0 : index
    %c0_10 = arith.constant 0 : index
    %12 = vector.load %arg3[%c0_7, %c0_8, %c0_9, %c0_10] : memref<1x1x16x8xbf16, #tpu.memory_space<vmem>>, vector<1x1x16x8xbf16>
    %13 = arith.extf %12 : vector<1x1x16x8xbf16> to vector<1x1x16x8xf32>
    %c0_11 = arith.constant 0 : index
    %c0_12 = arith.constant 0 : index
    %14 = vector.load %arg6[%c0_11, %c0_12] : memref<1x8xf32, #tpu.memory_space<vmem>>, vector<1x8xf32>
    %15 = vector.shape_cast %14 : vector<1x8xf32> to vector<1x1x1x8xf32>
    %16 = vector.broadcast %15 : vector<1x1x1x8xf32> to vector<1x1x16x8xf32>
    %17 = arith.mulf %13, %16 : vector<1x1x16x8xf32>
    %c0_13 = arith.constant 0 : index
    %c0_14 = arith.constant 0 : index
    %18 = vector.load %arg7[%c0_13, %c0_14] : memref<1x8xf32, #tpu.memory_space<vmem>>, vector<1x8xf32>
    %19 = vector.shape_cast %18 : vector<1x8xf32> to vector<1x1x1x8xf32>
    %20 = vector.broadcast %19 : vector<1x1x1x8xf32> to vector<1x1x16x8xf32>
    %21 = arith.addf %17, %20 : vector<1x1x16x8xf32>
    %cst_15 = arith.constant 0.000000e+00 : f32
    %22 = vector.broadcast %cst_15 : f32 to vector<1x1x16x8xf32>
    %23 = arith.maximumf %21, %22 : vector<1x1x16x8xf32>
    %c0_i32 = arith.constant 0 : i32
    %24 = arith.cmpi sgt, %arg1, %c0_i32 : i32
    %25 = arith.extui %24 : i1 to i32
    %26 = arith.sitofp %25 : i32 to f32
    %27 = vector.broadcast %26 : f32 to vector<1x1x16x8xf32>
    %28 = arith.mulf %23, %27 : vector<1x1x16x8xf32>
    %c0_16 = arith.constant 0 : index
    %c0_17 = arith.constant 0 : index
    %c0_18 = arith.constant 0 : index
    %c0_19 = arith.constant 0 : index
    %29 = vector.load %arg4[%c0_16, %c0_17, %c0_18, %c0_19] : memref<1x1x16x8xbf16, #tpu.memory_space<vmem>>, vector<1x1x16x8xbf16>
    %30 = arith.extf %29 : vector<1x1x16x8xbf16> to vector<1x1x16x8xf32>
    %c0_20 = arith.constant 0 : index
    %c0_21 = arith.constant 0 : index
    %31 = vector.load %arg6[%c0_20, %c0_21] : memref<1x8xf32, #tpu.memory_space<vmem>>, vector<1x8xf32>
    %32 = vector.shape_cast %31 : vector<1x8xf32> to vector<1x1x1x8xf32>
    %33 = vector.broadcast %32 : vector<1x1x1x8xf32> to vector<1x1x16x8xf32>
    %34 = arith.mulf %30, %33 : vector<1x1x16x8xf32>
    %c0_22 = arith.constant 0 : index
    %c0_23 = arith.constant 0 : index
    %35 = vector.load %arg7[%c0_22, %c0_23] : memref<1x8xf32, #tpu.memory_space<vmem>>, vector<1x8xf32>
    %36 = vector.shape_cast %35 : vector<1x8xf32> to vector<1x1x1x8xf32>
    %37 = vector.broadcast %36 : vector<1x1x1x8xf32> to vector<1x1x16x8xf32>
    %38 = arith.addf %34, %37 : vector<1x1x16x8xf32>
    %cst_24 = arith.constant 0.000000e+00 : f32
    %39 = vector.broadcast %cst_24 : f32 to vector<1x1x16x8xf32>
    %40 = arith.maximumf %38, %39 : vector<1x1x16x8xf32>
    %c1_i32 = arith.constant 1 : i32
    %41 = arith.cmpi slt, %arg1, %c1_i32 : i32
    %42 = arith.extui %41 : i1 to i32
    %43 = arith.sitofp %42 : i32 to f32
    %44 = vector.broadcast %43 : f32 to vector<1x1x16x8xf32>
    %45 = arith.mulf %40, %44 : vector<1x1x16x8xf32>
    %cst_25 = arith.constant 0.000000e+00 : bf16
    %46 = vector.broadcast %cst_25 : bf16 to vector<1x10x1x8xbf16>
    %c0_26 = arith.constant 0 : index
    %c0_27 = arith.constant 0 : index
    %c0_28 = arith.constant 0 : index
    %c0_29 = arith.constant 0 : index
    %47 = vector.load %arg11[%c0_26, %c0_27, %c0_28, %c0_29] : memref<1x10x18x8xbf16, #tpu.memory_space<vmem>>, vector<1x10x1x8xbf16>
    tpu.vector_store %arg11[%c0_26, %c0_27, %c0_28, %c0_29], %46 {strides = array<i32>} : memref<1x10x18x8xbf16, #tpu.memory_space<vmem>>, vector<1x10x1x8xbf16>,
    %c0_30 = arith.constant 0 : index
    %c0_31 = arith.constant 0 : index
    %c17 = arith.constant 17 : index
    %c0_32 = arith.constant 0 : index
    %48 = vector.load %arg11[%c0_30, %c0_31, %c17, %c0_32] : memref<1x10x18x8xbf16, #tpu.memory_space<vmem>>, vector<1x10x1x8xbf16>
    tpu.vector_store %arg11[%c0_30, %c0_31, %c17, %c0_32], %46 {strides = array<i32>} : memref<1x10x18x8xbf16, #tpu.memory_space<vmem>>, vector<1x10x1x8xbf16>,
    %49 = arith.truncf %28 : vector<1x1x16x8xf32> to vector<1x1x16x8xbf16>
    %c0_33 = arith.constant 0 : index
    %c0_34 = arith.constant 0 : index
    %c1 = arith.constant 1 : index
    %c0_35 = arith.constant 0 : index
    %50 = vector.load %arg11[%c0_33, %c0_34, %c1, %c0_35] : memref<1x10x18x8xbf16, #tpu.memory_space<vmem>>, vector<1x1x16x8xbf16>
    tpu.vector_store %arg11[%c0_33, %c0_34, %c1, %c0_35], %49 {strides = array<i32>} : memref<1x10x18x8xbf16, #tpu.memory_space<vmem>>, vector<1x1x16x8xbf16>,
    %51 = arith.truncf %45 : vector<1x1x16x8xf32> to vector<1x1x16x8xbf16>
    %c0_36 = arith.constant 0 : index
    %c9 = arith.constant 9 : index
    %c1_37 = arith.constant 1 : index
    %c0_38 = arith.constant 0 : index
    %52 = vector.load %arg11[%c0_36, %c9, %c1_37, %c0_38] : memref<1x10x18x8xbf16, #tpu.memory_space<vmem>>, vector<1x1x16x8xbf16>
    tpu.vector_store %arg11[%c0_36, %c9, %c1_37, %c0_38], %51 {strides = array<i32>} : memref<1x10x18x8xbf16, #tpu.memory_space<vmem>>, vector<1x1x16x8xbf16>,
    %53 = arith.truncf %11 : vector<1x8x16x8xf32> to vector<1x8x16x8xbf16>
    %c0_39 = arith.constant 0 : index
    %c1_40 = arith.constant 1 : index
    %c1_41 = arith.constant 1 : index
    %c0_42 = arith.constant 0 : index
    %54 = vector.load %arg11[%c0_39, %c1_40, %c1_41, %c0_42] : memref<1x10x18x8xbf16, #tpu.memory_space<vmem>>, vector<1x8x16x8xbf16>
    tpu.vector_store %arg11[%c0_39, %c1_40, %c1_41, %c0_42], %53 {strides = array<i32>} : memref<1x10x18x8xbf16, #tpu.memory_space<vmem>>, vector<1x8x16x8xbf16>,
    %c0_43 = arith.constant 0 : index
    %c0_44 = arith.constant 0 : index
    %c0_45 = arith.constant 0 : index
    %c0_46 = arith.constant 0 : index
    %55 = vector.load %arg11[%c0_43, %c0_44, %c0_45, %c0_46] : memref<1x10x18x8xbf16, #tpu.memory_space<vmem>>, vector<1x8x16x8xbf16>
    %c0_47 = arith.constant 0 : index
    %c0_48 = arith.constant 0 : index
    %c0_49 = arith.constant 0 : index
    %c0_50 = arith.constant 0 : index
    %56 = vector.load %arg12[%c0_47, %c0_48, %c0_49, %c0_50] : memref<1x8x16x128xbf16, #tpu.memory_space<vmem>>, vector<1x8x16x8xbf16>
    tpu.vector_store %arg12[%c0_47, %c0_48, %c0_49, %c0_50], %55 {strides = array<i32>} : memref<1x8x16x128xbf16, #tpu.memory_space<vmem>>, vector<1x8x16x8xbf16>,
    %c0_51 = arith.constant 0 : index
    %c0_52 = arith.constant 0 : index
    %c1_53 = arith.constant 1 : index
    %c0_54 = arith.constant 0 : index
    %57 = vector.load %arg11[%c0_51, %c0_52, %c1_53, %c0_54] : memref<1x10x18x8xbf16, #tpu.memory_space<vmem>>, vector<1x8x16x8xbf16>
    %c0_55 = arith.constant 0 : index
    %c0_56 = arith.constant 0 : index
    %c0_57 = arith.constant 0 : index
    %c8 = arith.constant 8 : index
    %58 = vector.load %arg12[%c0_55, %c0_56, %c0_57, %c8] : memref<1x8x16x128xbf16, #tpu.memory_space<vmem>>, vector<1x8x16x8xbf16>
    tpu.vector_store %arg12[%c0_55, %c0_56, %c0_57, %c8], %57 {strides = array<i32>} : memref<1x8x16x128xbf16, #tpu.memory_space<vmem>>, vector<1x8x16x8xbf16>,
    %c0_58 = arith.constant 0 : index
    %c0_59 = arith.constant 0 : index
    %c2 = arith.constant 2 : index
    %c0_60 = arith.constant 0 : index
    %59 = vector.load %arg11[%c0_58, %c0_59, %c2, %c0_60] : memref<1x10x18x8xbf16, #tpu.memory_space<vmem>>, vector<1x8x16x8xbf16>
    %c0_61 = arith.constant 0 : index
    %c0_62 = arith.constant 0 : index
    %c0_63 = arith.constant 0 : index
    %c16 = arith.constant 16 : index
    %60 = vector.load %arg12[%c0_61, %c0_62, %c0_63, %c16] : memref<1x8x16x128xbf16, #tpu.memory_space<vmem>>, vector<1x8x16x8xbf16>
    tpu.vector_store %arg12[%c0_61, %c0_62, %c0_63, %c16], %59 {strides = array<i32>} : memref<1x8x16x128xbf16, #tpu.memory_space<vmem>>, vector<1x8x16x8xbf16>,
    %c0_64 = arith.constant 0 : index
    %c1_65 = arith.constant 1 : index
    %c0_66 = arith.constant 0 : index
    %c0_67 = arith.constant 0 : index
    %61 = vector.load %arg11[%c0_64, %c1_65, %c0_66, %c0_67] : memref<1x10x18x8xbf16, #tpu.memory_space<vmem>>, vector<1x8x16x8xbf16>
    %c0_68 = arith.constant 0 : index
    %c0_69 = arith.constant 0 : index
    %c0_70 = arith.constant 0 : index
    %c24 = arith.constant 24 : index
    %62 = vector.load %arg12[%c0_68, %c0_69, %c0_70, %c24] : memref<1x8x16x128xbf16, #tpu.memory_space<vmem>>, vector<1x8x16x8xbf16>
    tpu.vector_store %arg12[%c0_68, %c0_69, %c0_70, %c24], %61 {strides = array<i32>} : memref<1x8x16x128xbf16, #tpu.memory_space<vmem>>, vector<1x8x16x8xbf16>,
    %c0_71 = arith.constant 0 : index
    %c1_72 = arith.constant 1 : index
    %c1_73 = arith.constant 1 : index
    %c0_74 = arith.constant 0 : index
    %63 = vector.load %arg11[%c0_71, %c1_72, %c1_73, %c0_74] : memref<1x10x18x8xbf16, #tpu.memory_space<vmem>>, vector<1x8x16x8xbf16>
    %c0_75 = arith.constant 0 : index
    %c0_76 = arith.constant 0 : index
    %c0_77 = arith.constant 0 : index
    %c32 = arith.constant 32 : index
    %64 = vector.load %arg12[%c0_75, %c0_76, %c0_77, %c32] : memref<1x8x16x128xbf16, #tpu.memory_space<vmem>>, vector<1x8x16x8xbf16>
    tpu.vector_store %arg12[%c0_75, %c0_76, %c0_77, %c32], %63 {strides = array<i32>} : memref<1x8x16x128xbf16, #tpu.memory_space<vmem>>, vector<1x8x16x8xbf16>,
    %c0_78 = arith.constant 0 : index
    %c1_79 = arith.constant 1 : index
    %c2_80 = arith.constant 2 : index
    %c0_81 = arith.constant 0 : index
    %65 = vector.load %arg11[%c0_78, %c1_79, %c2_80, %c0_81] : memref<1x10x18x8xbf16, #tpu.memory_space<vmem>>, vector<1x8x16x8xbf16>
    %c0_82 = arith.constant 0 : index
    %c0_83 = arith.constant 0 : index
    %c0_84 = arith.constant 0 : index
    %c40 = arith.constant 40 : index
    %66 = vector.load %arg12[%c0_82, %c0_83, %c0_84, %c40] : memref<1x8x16x128xbf16, #tpu.memory_space<vmem>>, vector<1x8x16x8xbf16>
    tpu.vector_store %arg12[%c0_82, %c0_83, %c0_84, %c40], %65 {strides = array<i32>} : memref<1x8x16x128xbf16, #tpu.memory_space<vmem>>, vector<1x8x16x8xbf16>,
    %c0_85 = arith.constant 0 : index
    %c2_86 = arith.constant 2 : index
    %c0_87 = arith.constant 0 : index
    %c0_88 = arith.constant 0 : index
    %67 = vector.load %arg11[%c0_85, %c2_86, %c0_87, %c0_88] : memref<1x10x18x8xbf16, #tpu.memory_space<vmem>>, vector<1x8x16x8xbf16>
    %c0_89 = arith.constant 0 : index
    %c0_90 = arith.constant 0 : index
    %c0_91 = arith.constant 0 : index
    %c48 = arith.constant 48 : index
    %68 = vector.load %arg12[%c0_89, %c0_90, %c0_91, %c48] : memref<1x8x16x128xbf16, #tpu.memory_space<vmem>>, vector<1x8x16x8xbf16>
    tpu.vector_store %arg12[%c0_89, %c0_90, %c0_91, %c48], %67 {strides = array<i32>} : memref<1x8x16x128xbf16, #tpu.memory_space<vmem>>, vector<1x8x16x8xbf16>,
    %c0_92 = arith.constant 0 : index
    %c2_93 = arith.constant 2 : index
    %c1_94 = arith.constant 1 : index
    %c0_95 = arith.constant 0 : index
    %69 = vector.load %arg11[%c0_92, %c2_93, %c1_94, %c0_95] : memref<1x10x18x8xbf16, #tpu.memory_space<vmem>>, vector<1x8x16x8xbf16>
    %c0_96 = arith.constant 0 : index
    %c0_97 = arith.constant 0 : index
    %c0_98 = arith.constant 0 : index
    %c56 = arith.constant 56 : index
    %70 = vector.load %arg12[%c0_96, %c0_97, %c0_98, %c56] : memref<1x8x16x128xbf16, #tpu.memory_space<vmem>>, vector<1x8x16x8xbf16>
    tpu.vector_store %arg12[%c0_96, %c0_97, %c0_98, %c56], %69 {strides = array<i32>} : memref<1x8x16x128xbf16, #tpu.memory_space<vmem>>, vector<1x8x16x8xbf16>,
    %c0_99 = arith.constant 0 : index
    %c2_100 = arith.constant 2 : index
    %c2_101 = arith.constant 2 : index
    %c0_102 = arith.constant 0 : index
    %71 = vector.load %arg11[%c0_99, %c2_100, %c2_101, %c0_102] : memref<1x10x18x8xbf16, #tpu.memory_space<vmem>>, vector<1x8x16x8xbf16>
    %c0_103 = arith.constant 0 : index
    %c0_104 = arith.constant 0 : index
    %c0_105 = arith.constant 0 : index
    %c64 = arith.constant 64 : index
    %72 = vector.load %arg12[%c0_103, %c0_104, %c0_105, %c64] : memref<1x8x16x128xbf16, #tpu.memory_space<vmem>>, vector<1x8x16x8xbf16>
    tpu.vector_store %arg12[%c0_103, %c0_104, %c0_105, %c64], %71 {strides = array<i32>} : memref<1x8x16x128xbf16, #tpu.memory_space<vmem>>, vector<1x8x16x8xbf16>,
    %cst_106 = arith.constant 0.000000e+00 : bf16
    %73 = vector.broadcast %cst_106 : bf16 to vector<1x8x16x56xbf16>
    %c0_107 = arith.constant 0 : index
    %c0_108 = arith.constant 0 : index
    %c0_109 = arith.constant 0 : index
    %c72 = arith.constant 72 : index
    %74 = vector.load %arg12[%c0_107, %c0_108, %c0_109, %c72] : memref<1x8x16x128xbf16, #tpu.memory_space<vmem>>, vector<1x8x16x56xbf16>
    tpu.vector_store %arg12[%c0_107, %c0_108, %c0_109, %c72], %73 {strides = array<i32>} : memref<1x8x16x128xbf16, #tpu.memory_space<vmem>>, vector<1x8x16x56xbf16>,
    %c0_110 = arith.constant 0 : index
    %c0_111 = arith.constant 0 : index
    %c0_112 = arith.constant 0 : index
    %c0_113 = arith.constant 0 : index
    %75 = vector.load %arg12[%c0_110, %c0_111, %c0_112, %c0_113] : memref<1x8x16x128xbf16, #tpu.memory_space<vmem>>, vector<1x8x16x128xbf16>
    %76 = vector.shape_cast %75 : vector<1x8x16x128xbf16> to vector<128x128xbf16>
    %c0_114 = arith.constant 0 : index
    %c0_115 = arith.constant 0 : index
    %77 = vector.load %arg5[%c0_114, %c0_115] : memref<128x128xbf16, #tpu.memory_space<vmem>>, vector<128x128xbf16>
    %cst_116 = arith.constant dense<0.000000e+00> : vector<128x128xf32>
    %78 = tpu.matmul %76, %77, %cst_116 {dimension_numbers = #tpu.dot_dimension_numbers<[1], [0], [0], [1], [0, 0, 1, 1], [], []>} : vector<128x128xbf16>, vector<128x128xbf16>, vector<128x128xf32> -> vector<128x128xf32>
    %79 = vector.extract_strided_slice %78 {offsets = [0, 0], sizes = [128, 8], strides = [1, 1]} : vector<128x128xf32> to vector<128x8xf32>
    %80 = vector.shape_cast %79 : vector<128x8xf32> to vector<1x8x16x8xf32>
    %81 = arith.truncf %80 : vector<1x8x16x8xf32> to vector<1x8x16x8xbf16>
    %c0_117 = arith.constant 0 : index
    %c0_118 = arith.constant 0 : index
    %c0_119 = arith.constant 0 : index
    %c0_120 = arith.constant 0 : index
    %82 = vector.load %arg8[%c0_117, %c0_118, %c0_119, %c0_120] : memref<1x8x16x8xbf16, #tpu.memory_space<vmem>>, vector<1x8x16x8xbf16>
    tpu.vector_store %arg8[%c0_117, %c0_118, %c0_119, %c0_120], %81 {strides = array<i32>} : memref<1x8x16x8xbf16, #tpu.memory_space<vmem>>, vector<1x8x16x8xbf16>,
    %cst_121 = arith.constant dense<0.000000e+00> : vector<128xf32>
    %83 = vector.multi_reduction <add>, %78, %cst_121 [0] : vector<128x128xf32> to vector<128xf32>
    %84 = vector.shape_cast %83 : vector<128xf32> to vector<1x128xf32>
    %cst_122 = arith.constant 7.812500e-03 : f32
    %85 = vector.broadcast %cst_122 : f32 to vector<1x128xf32>
    %86 = arith.mulf %84, %85 : vector<1x128xf32>
    %87 = vector.broadcast %86 : vector<1x128xf32> to vector<128x128xf32>
    %88 = arith.subf %78, %87 : vector<128x128xf32>
    %89 = arith.mulf %88, %88 : vector<128x128xf32>
    %cst_123 = arith.constant dense<0.000000e+00> : vector<128xf32>
    %90 = vector.multi_reduction <add>, %89, %cst_123 [0] : vector<128x128xf32> to vector<128xf32>
    %91 = vector.shape_cast %90 : vector<128xf32> to vector<1x128xf32>
    %92 = vector.shape_cast %86 : vector<1x128xf32> to vector<1x1x1x128xf32>
    %c0_124 = arith.constant 0 : index
    %c0_125 = arith.constant 0 : index
    %c0_126 = arith.constant 0 : index
    %c0_127 = arith.constant 0 : index
    %93 = vector.load %arg9[%c0_124, %c0_125, %c0_126, %c0_127] : memref<1x1x1x128xf32, #tpu.memory_space<vmem>>, vector<1x1x1x128xf32>
    tpu.vector_store %arg9[%c0_124, %c0_125, %c0_126, %c0_127], %92 {strides = array<i32>} : memref<1x1x1x128xf32, #tpu.memory_space<vmem>>, vector<1x1x1x128xf32>,
    %94 = vector.shape_cast %91 : vector<1x128xf32> to vector<1x1x1x128xf32>
    %c0_128 = arith.constant 0 : index
    %c0_129 = arith.constant 0 : index
    %c0_130 = arith.constant 0 : index
    %c0_131 = arith.constant 0 : index
    %95 = vector.load %arg10[%c0_128, %c0_129, %c0_130, %c0_131] : memref<1x1x1x128xf32, #tpu.memory_space<vmem>>, vector<1x1x1x128xf32>
    tpu.vector_store %arg10[%c0_128, %c0_129, %c0_130, %c0_131], %94 {strides = array<i32>} : memref<1x1x1x128xf32, #tpu.memory_space<vmem>>, vector<1x1x1x128xf32>,
    return
  }
  func.func @transform_0(%arg0: i32, %arg1: i32) -> (i32, i32, i32, i32) {
    %c0_i32 = arith.constant 0 : i32
    %c0_i32_0 = arith.constant 0 : i32
    %c0_i32_1 = arith.constant 0 : i32
    return %arg0, %arg1, %c0_i32, %c0_i32_0 : i32, i32, i32, i32
  }
  func.func @transform_1(%arg0: i32, %arg1: i32) -> (i32, i32, i32, i32) {
    %c8_i32 = arith.constant 8 : i32
    %0 = arith.muli %arg1, %c8_i32 : i32
    %c1_i32 = arith.constant 1 : i32
    %1 = arith.subi %0, %c1_i32 : i32
    %c0_i32 = arith.constant 0 : i32
    %2 = arith.maxsi %1, %c0_i32 : i32
    %c0_i32_0 = arith.constant 0 : i32
    %c0_i32_1 = arith.constant 0 : i32
    %c0_i32_2 = arith.constant 0 : i32
    return %arg0, %2, %c0_i32_0, %c0_i32_1 : i32, i32, i32, i32
  }
  func.func @transform_2(%arg0: i32, %arg1: i32) -> (i32, i32, i32, i32) {
    %c8_i32 = arith.constant 8 : i32
    %0 = arith.muli %arg1, %c8_i32 : i32
    %c8_i32_0 = arith.constant 8 : i32
    %1 = arith.addi %0, %c8_i32_0 : i32
    %c15_i32 = arith.constant 15 : i32
    %2 = arith.minsi %1, %c15_i32 : i32
    %c0_i32 = arith.constant 0 : i32
    %c0_i32_1 = arith.constant 0 : i32
    %c0_i32_2 = arith.constant 0 : i32
    return %arg0, %2, %c0_i32, %c0_i32_1 : i32, i32, i32, i32
  }
  func.func @transform_3(%arg0: i32, %arg1: i32) -> (i32, i32) {
    %c0_i32 = arith.constant 0 : i32
    %c0_i32_0 = arith.constant 0 : i32
    %c0_i32_1 = arith.constant 0 : i32
    return %c0_i32, %c0_i32_0 : i32, i32
  }
  func.func @transform_4(%arg0: i32, %arg1: i32) -> (i32, i32) {
    %c0_i32 = arith.constant 0 : i32
    %c0_i32_0 = arith.constant 0 : i32
    %c0_i32_1 = arith.constant 0 : i32
    return %c0_i32, %c0_i32_0 : i32, i32
  }
  func.func @transform_5(%arg0: i32, %arg1: i32) -> (i32, i32) {
    %c0_i32 = arith.constant 0 : i32
    %c0_i32_0 = arith.constant 0 : i32
    %c0_i32_1 = arith.constant 0 : i32
    return %c0_i32, %c0_i32_0 : i32, i32
  }
  func.func @transform_6(%arg0: i32, %arg1: i32) -> (i32, i32, i32, i32) {
    %c0_i32 = arith.constant 0 : i32
    %c0_i32_0 = arith.constant 0 : i32
    %c0_i32_1 = arith.constant 0 : i32
    return %arg0, %arg1, %c0_i32, %c0_i32_0 : i32, i32, i32, i32
  }
  func.func @transform_7(%arg0: i32, %arg1: i32) -> (i32, i32, i32, i32) {
    %c0_i32 = arith.constant 0 : i32
    %c0_i32_0 = arith.constant 0 : i32
    %c0_i32_1 = arith.constant 0 : i32
    return %arg0, %arg1, %c0_i32, %c0_i32_0 : i32, i32, i32, i32
  }
  func.func @transform_8(%arg0: i32, %arg1: i32) -> (i32, i32, i32, i32) {
    %c0_i32 = arith.constant 0 : i32
    %c0_i32_0 = arith.constant 0 : i32
    %c0_i32_1 = arith.constant 0 : i32
    return %arg0, %arg1, %c0_i32, %c0_i32_0 : i32, i32, i32, i32
  }
}

module attributes {stable_mosaic.version = 11 : i64} {
  func.func @_finalize_kernel(%arg0: i32, %arg1: i32, %arg2: memref<1x8x16x8xbf16, #tpu.memory_space<vmem>>, %arg3: memref<1x8x16x8xf32, #tpu.memory_space<vmem>>, %arg4: memref<1x8xf32, #tpu.memory_space<vmem>>, %arg5: memref<1x8xf32, #tpu.memory_space<vmem>>, %arg6: memref<1x8x16x8xf32, #tpu.memory_space<vmem>>) attributes {dimension_semantics = [#tpu.dimension_semantics<parallel>, #tpu.dimension_semantics<parallel>], iteration_bounds = array<i64: 2, 2>, scalar_prefetch = 0 : i64, scratch_operands = 0 : i64, tpu.core_type = #tpu.core_type<tc>, window_params = [{transform_indices = @transform_0, window_bounds = array<i64: 1, 8, 16, 8>}, {transform_indices = @transform_1, window_bounds = array<i64: 1, 8, 16, 8>}, {pipeline_mode = #tpu.pipeline_mode<synchronous>, transform_indices = @transform_2, window_bounds = array<i64: 1, 8>}, {pipeline_mode = #tpu.pipeline_mode<synchronous>, transform_indices = @transform_3, window_bounds = array<i64: 1, 8>}, {transform_indices = @transform_4, window_bounds = array<i64: 1, 8, 16, 8>}]} {
    %c0 = arith.constant 0 : index
    %c0_0 = arith.constant 0 : index
    %c0_1 = arith.constant 0 : index
    %c0_2 = arith.constant 0 : index
    %0 = vector.load %arg2[%c0, %c0_0, %c0_1, %c0_2] : memref<1x8x16x8xbf16, #tpu.memory_space<vmem>>, vector<1x8x16x8xbf16>
    %1 = arith.extf %0 : vector<1x8x16x8xbf16> to vector<1x8x16x8xf32>
    %c0_3 = arith.constant 0 : index
    %c0_4 = arith.constant 0 : index
    %2 = vector.load %arg4[%c0_3, %c0_4] : memref<1x8xf32, #tpu.memory_space<vmem>>, vector<1x8xf32>
    %3 = vector.shape_cast %2 : vector<1x8xf32> to vector<1x1x1x8xf32>
    %4 = vector.broadcast %3 : vector<1x1x1x8xf32> to vector<1x8x16x8xf32>
    %5 = arith.mulf %1, %4 : vector<1x8x16x8xf32>
    %c0_5 = arith.constant 0 : index
    %c0_6 = arith.constant 0 : index
    %6 = vector.load %arg5[%c0_5, %c0_6] : memref<1x8xf32, #tpu.memory_space<vmem>>, vector<1x8xf32>
    %7 = vector.shape_cast %6 : vector<1x8xf32> to vector<1x1x1x8xf32>
    %8 = vector.broadcast %7 : vector<1x1x1x8xf32> to vector<1x8x16x8xf32>
    %9 = arith.addf %5, %8 : vector<1x8x16x8xf32>
    %c0_7 = arith.constant 0 : index
    %c0_8 = arith.constant 0 : index
    %c0_9 = arith.constant 0 : index
    %c0_10 = arith.constant 0 : index
    %10 = vector.load %arg3[%c0_7, %c0_8, %c0_9, %c0_10] : memref<1x8x16x8xf32, #tpu.memory_space<vmem>>, vector<1x8x16x8xf32>
    %11 = arith.addf %9, %10 : vector<1x8x16x8xf32>
    %c0_11 = arith.constant 0 : index
    %c0_12 = arith.constant 0 : index
    %c0_13 = arith.constant 0 : index
    %c0_14 = arith.constant 0 : index
    %12 = vector.load %arg6[%c0_11, %c0_12, %c0_13, %c0_14] : memref<1x8x16x8xf32, #tpu.memory_space<vmem>>, vector<1x8x16x8xf32>
    tpu.vector_store %arg6[%c0_11, %c0_12, %c0_13, %c0_14], %11 {strides = array<i32>} : memref<1x8x16x8xf32, #tpu.memory_space<vmem>>, vector<1x8x16x8xf32>,
    return
  }
  func.func @transform_0(%arg0: i32, %arg1: i32) -> (i32, i32, i32, i32) {
    %c0_i32 = arith.constant 0 : i32
    %c0_i32_0 = arith.constant 0 : i32
    %c0_i32_1 = arith.constant 0 : i32
    return %arg0, %arg1, %c0_i32, %c0_i32_0 : i32, i32, i32, i32
  }
  func.func @transform_1(%arg0: i32, %arg1: i32) -> (i32, i32, i32, i32) {
    %c0_i32 = arith.constant 0 : i32
    %c0_i32_0 = arith.constant 0 : i32
    %c0_i32_1 = arith.constant 0 : i32
    return %arg0, %arg1, %c0_i32, %c0_i32_0 : i32, i32, i32, i32
  }
  func.func @transform_2(%arg0: i32, %arg1: i32) -> (i32, i32) {
    %c0_i32 = arith.constant 0 : i32
    %c0_i32_0 = arith.constant 0 : i32
    %c0_i32_1 = arith.constant 0 : i32
    return %c0_i32, %c0_i32_0 : i32, i32
  }
  func.func @transform_3(%arg0: i32, %arg1: i32) -> (i32, i32) {
    %c0_i32 = arith.constant 0 : i32
    %c0_i32_0 = arith.constant 0 : i32
    %c0_i32_1 = arith.constant 0 : i32
    return %c0_i32, %c0_i32_0 : i32, i32
  }
  func.func @transform_4(%arg0: i32, %arg1: i32) -> (i32, i32, i32, i32) {
    %c0_i32 = arith.constant 0 : i32
    %c0_i32_0 = arith.constant 0 : i32
    %c0_i32_1 = arith.constant 0 : i32
    return %arg0, %arg1, %c0_i32, %c0_i32_0 : i32, i32, i32, i32
  }
}

module attributes {stable_mosaic.version = 11 : i64} {
  func.func @kernel(%arg0: i32, %arg1: i32, %arg2: memref<1x8x16x8xbf16, #tpu.memory_space<vmem>>, %arg3: memref<1x1x16x8xbf16, #tpu.memory_space<vmem>>, %arg4: memref<1x1x16x8xbf16, #tpu.memory_space<vmem>>, %arg5: memref<128x128xbf16, #tpu.memory_space<vmem>>, %arg6: memref<1x8x16x8xbf16, #tpu.memory_space<vmem>>, %arg7: memref<1x1x1x128xf32, #tpu.memory_space<vmem>>, %arg8: memref<1x1x1x128xf32, #tpu.memory_space<vmem>>, %arg9: memref<1x10x18x8xbf16, #tpu.memory_space<vmem>>, %arg10: memref<1x8x16x128xbf16, #tpu.memory_space<vmem>>) attributes {dimension_semantics = [#tpu.dimension_semantics<parallel>, #tpu.dimension_semantics<parallel>], iteration_bounds = array<i64: 2, 2>, scalar_prefetch = 0 : i64, scratch_operands = 2 : i64, tpu.core_type = #tpu.core_type<tc>, window_params = [{transform_indices = @transform_0, window_bounds = array<i64: 1, 8, 16, 8>}, {transform_indices = @transform_1, window_bounds = array<i64: 1, 1, 16, 8>}, {transform_indices = @transform_2, window_bounds = array<i64: 1, 1, 16, 8>}, {pipeline_mode = #tpu.pipeline_mode<synchronous>, transform_indices = @transform_3, window_bounds = array<i64: 128, 128>}, {transform_indices = @transform_4, window_bounds = array<i64: 1, 8, 16, 8>}, {transform_indices = @transform_5, window_bounds = array<i64: 1, 1, 1, 128>}, {transform_indices = @transform_6, window_bounds = array<i64: 1, 1, 1, 128>}]} {
    %c0 = arith.constant 0 : index
    %c0_0 = arith.constant 0 : index
    %c0_1 = arith.constant 0 : index
    %c0_2 = arith.constant 0 : index
    %0 = vector.load %arg2[%c0, %c0_0, %c0_1, %c0_2] : memref<1x8x16x8xbf16, #tpu.memory_space<vmem>>, vector<1x8x16x8xbf16>
    %1 = arith.extf %0 : vector<1x8x16x8xbf16> to vector<1x8x16x8xf32>
    %c0_3 = arith.constant 0 : index
    %c0_4 = arith.constant 0 : index
    %c0_5 = arith.constant 0 : index
    %c0_6 = arith.constant 0 : index
    %2 = vector.load %arg3[%c0_3, %c0_4, %c0_5, %c0_6] : memref<1x1x16x8xbf16, #tpu.memory_space<vmem>>, vector<1x1x16x8xbf16>
    %3 = arith.extf %2 : vector<1x1x16x8xbf16> to vector<1x1x16x8xf32>
    %c0_i32 = arith.constant 0 : i32
    %4 = arith.cmpi sgt, %arg1, %c0_i32 : i32
    %5 = arith.extui %4 : i1 to i32
    %6 = arith.sitofp %5 : i32 to f32
    %7 = vector.broadcast %6 : f32 to vector<1x1x16x8xf32>
    %8 = arith.mulf %3, %7 : vector<1x1x16x8xf32>
    %c0_7 = arith.constant 0 : index
    %c0_8 = arith.constant 0 : index
    %c0_9 = arith.constant 0 : index
    %c0_10 = arith.constant 0 : index
    %9 = vector.load %arg4[%c0_7, %c0_8, %c0_9, %c0_10] : memref<1x1x16x8xbf16, #tpu.memory_space<vmem>>, vector<1x1x16x8xbf16>
    %10 = arith.extf %9 : vector<1x1x16x8xbf16> to vector<1x1x16x8xf32>
    %c1_i32 = arith.constant 1 : i32
    %11 = arith.cmpi slt, %arg1, %c1_i32 : i32
    %12 = arith.extui %11 : i1 to i32
    %13 = arith.sitofp %12 : i32 to f32
    %14 = vector.broadcast %13 : f32 to vector<1x1x16x8xf32>
    %15 = arith.mulf %10, %14 : vector<1x1x16x8xf32>
    %cst = arith.constant 0.000000e+00 : bf16
    %16 = vector.broadcast %cst : bf16 to vector<1x10x1x8xbf16>
    %c0_11 = arith.constant 0 : index
    %c0_12 = arith.constant 0 : index
    %c0_13 = arith.constant 0 : index
    %c0_14 = arith.constant 0 : index
    %17 = vector.load %arg9[%c0_11, %c0_12, %c0_13, %c0_14] : memref<1x10x18x8xbf16, #tpu.memory_space<vmem>>, vector<1x10x1x8xbf16>
    tpu.vector_store %arg9[%c0_11, %c0_12, %c0_13, %c0_14], %16 {strides = array<i32>} : memref<1x10x18x8xbf16, #tpu.memory_space<vmem>>, vector<1x10x1x8xbf16>,
    %c0_15 = arith.constant 0 : index
    %c0_16 = arith.constant 0 : index
    %c17 = arith.constant 17 : index
    %c0_17 = arith.constant 0 : index
    %18 = vector.load %arg9[%c0_15, %c0_16, %c17, %c0_17] : memref<1x10x18x8xbf16, #tpu.memory_space<vmem>>, vector<1x10x1x8xbf16>
    tpu.vector_store %arg9[%c0_15, %c0_16, %c17, %c0_17], %16 {strides = array<i32>} : memref<1x10x18x8xbf16, #tpu.memory_space<vmem>>, vector<1x10x1x8xbf16>,
    %19 = arith.truncf %8 : vector<1x1x16x8xf32> to vector<1x1x16x8xbf16>
    %c0_18 = arith.constant 0 : index
    %c0_19 = arith.constant 0 : index
    %c1 = arith.constant 1 : index
    %c0_20 = arith.constant 0 : index
    %20 = vector.load %arg9[%c0_18, %c0_19, %c1, %c0_20] : memref<1x10x18x8xbf16, #tpu.memory_space<vmem>>, vector<1x1x16x8xbf16>
    tpu.vector_store %arg9[%c0_18, %c0_19, %c1, %c0_20], %19 {strides = array<i32>} : memref<1x10x18x8xbf16, #tpu.memory_space<vmem>>, vector<1x1x16x8xbf16>,
    %21 = arith.truncf %15 : vector<1x1x16x8xf32> to vector<1x1x16x8xbf16>
    %c0_21 = arith.constant 0 : index
    %c9 = arith.constant 9 : index
    %c1_22 = arith.constant 1 : index
    %c0_23 = arith.constant 0 : index
    %22 = vector.load %arg9[%c0_21, %c9, %c1_22, %c0_23] : memref<1x10x18x8xbf16, #tpu.memory_space<vmem>>, vector<1x1x16x8xbf16>
    tpu.vector_store %arg9[%c0_21, %c9, %c1_22, %c0_23], %21 {strides = array<i32>} : memref<1x10x18x8xbf16, #tpu.memory_space<vmem>>, vector<1x1x16x8xbf16>,
    %23 = arith.truncf %1 : vector<1x8x16x8xf32> to vector<1x8x16x8xbf16>
    %c0_24 = arith.constant 0 : index
    %c1_25 = arith.constant 1 : index
    %c1_26 = arith.constant 1 : index
    %c0_27 = arith.constant 0 : index
    %24 = vector.load %arg9[%c0_24, %c1_25, %c1_26, %c0_27] : memref<1x10x18x8xbf16, #tpu.memory_space<vmem>>, vector<1x8x16x8xbf16>
    tpu.vector_store %arg9[%c0_24, %c1_25, %c1_26, %c0_27], %23 {strides = array<i32>} : memref<1x10x18x8xbf16, #tpu.memory_space<vmem>>, vector<1x8x16x8xbf16>,
    %c0_28 = arith.constant 0 : index
    %c0_29 = arith.constant 0 : index
    %c0_30 = arith.constant 0 : index
    %c0_31 = arith.constant 0 : index
    %25 = vector.load %arg9[%c0_28, %c0_29, %c0_30, %c0_31] : memref<1x10x18x8xbf16, #tpu.memory_space<vmem>>, vector<1x8x16x8xbf16>
    %c0_32 = arith.constant 0 : index
    %c0_33 = arith.constant 0 : index
    %c0_34 = arith.constant 0 : index
    %c0_35 = arith.constant 0 : index
    %26 = vector.load %arg10[%c0_32, %c0_33, %c0_34, %c0_35] : memref<1x8x16x128xbf16, #tpu.memory_space<vmem>>, vector<1x8x16x8xbf16>
    tpu.vector_store %arg10[%c0_32, %c0_33, %c0_34, %c0_35], %25 {strides = array<i32>} : memref<1x8x16x128xbf16, #tpu.memory_space<vmem>>, vector<1x8x16x8xbf16>,
    %c0_36 = arith.constant 0 : index
    %c0_37 = arith.constant 0 : index
    %c1_38 = arith.constant 1 : index
    %c0_39 = arith.constant 0 : index
    %27 = vector.load %arg9[%c0_36, %c0_37, %c1_38, %c0_39] : memref<1x10x18x8xbf16, #tpu.memory_space<vmem>>, vector<1x8x16x8xbf16>
    %c0_40 = arith.constant 0 : index
    %c0_41 = arith.constant 0 : index
    %c0_42 = arith.constant 0 : index
    %c8 = arith.constant 8 : index
    %28 = vector.load %arg10[%c0_40, %c0_41, %c0_42, %c8] : memref<1x8x16x128xbf16, #tpu.memory_space<vmem>>, vector<1x8x16x8xbf16>
    tpu.vector_store %arg10[%c0_40, %c0_41, %c0_42, %c8], %27 {strides = array<i32>} : memref<1x8x16x128xbf16, #tpu.memory_space<vmem>>, vector<1x8x16x8xbf16>,
    %c0_43 = arith.constant 0 : index
    %c0_44 = arith.constant 0 : index
    %c2 = arith.constant 2 : index
    %c0_45 = arith.constant 0 : index
    %29 = vector.load %arg9[%c0_43, %c0_44, %c2, %c0_45] : memref<1x10x18x8xbf16, #tpu.memory_space<vmem>>, vector<1x8x16x8xbf16>
    %c0_46 = arith.constant 0 : index
    %c0_47 = arith.constant 0 : index
    %c0_48 = arith.constant 0 : index
    %c16 = arith.constant 16 : index
    %30 = vector.load %arg10[%c0_46, %c0_47, %c0_48, %c16] : memref<1x8x16x128xbf16, #tpu.memory_space<vmem>>, vector<1x8x16x8xbf16>
    tpu.vector_store %arg10[%c0_46, %c0_47, %c0_48, %c16], %29 {strides = array<i32>} : memref<1x8x16x128xbf16, #tpu.memory_space<vmem>>, vector<1x8x16x8xbf16>,
    %c0_49 = arith.constant 0 : index
    %c1_50 = arith.constant 1 : index
    %c0_51 = arith.constant 0 : index
    %c0_52 = arith.constant 0 : index
    %31 = vector.load %arg9[%c0_49, %c1_50, %c0_51, %c0_52] : memref<1x10x18x8xbf16, #tpu.memory_space<vmem>>, vector<1x8x16x8xbf16>
    %c0_53 = arith.constant 0 : index
    %c0_54 = arith.constant 0 : index
    %c0_55 = arith.constant 0 : index
    %c24 = arith.constant 24 : index
    %32 = vector.load %arg10[%c0_53, %c0_54, %c0_55, %c24] : memref<1x8x16x128xbf16, #tpu.memory_space<vmem>>, vector<1x8x16x8xbf16>
    tpu.vector_store %arg10[%c0_53, %c0_54, %c0_55, %c24], %31 {strides = array<i32>} : memref<1x8x16x128xbf16, #tpu.memory_space<vmem>>, vector<1x8x16x8xbf16>,
    %c0_56 = arith.constant 0 : index
    %c1_57 = arith.constant 1 : index
    %c1_58 = arith.constant 1 : index
    %c0_59 = arith.constant 0 : index
    %33 = vector.load %arg9[%c0_56, %c1_57, %c1_58, %c0_59] : memref<1x10x18x8xbf16, #tpu.memory_space<vmem>>, vector<1x8x16x8xbf16>
    %c0_60 = arith.constant 0 : index
    %c0_61 = arith.constant 0 : index
    %c0_62 = arith.constant 0 : index
    %c32 = arith.constant 32 : index
    %34 = vector.load %arg10[%c0_60, %c0_61, %c0_62, %c32] : memref<1x8x16x128xbf16, #tpu.memory_space<vmem>>, vector<1x8x16x8xbf16>
    tpu.vector_store %arg10[%c0_60, %c0_61, %c0_62, %c32], %33 {strides = array<i32>} : memref<1x8x16x128xbf16, #tpu.memory_space<vmem>>, vector<1x8x16x8xbf16>,
    %c0_63 = arith.constant 0 : index
    %c1_64 = arith.constant 1 : index
    %c2_65 = arith.constant 2 : index
    %c0_66 = arith.constant 0 : index
    %35 = vector.load %arg9[%c0_63, %c1_64, %c2_65, %c0_66] : memref<1x10x18x8xbf16, #tpu.memory_space<vmem>>, vector<1x8x16x8xbf16>
    %c0_67 = arith.constant 0 : index
    %c0_68 = arith.constant 0 : index
    %c0_69 = arith.constant 0 : index
    %c40 = arith.constant 40 : index
    %36 = vector.load %arg10[%c0_67, %c0_68, %c0_69, %c40] : memref<1x8x16x128xbf16, #tpu.memory_space<vmem>>, vector<1x8x16x8xbf16>
    tpu.vector_store %arg10[%c0_67, %c0_68, %c0_69, %c40], %35 {strides = array<i32>} : memref<1x8x16x128xbf16, #tpu.memory_space<vmem>>, vector<1x8x16x8xbf16>,
    %c0_70 = arith.constant 0 : index
    %c2_71 = arith.constant 2 : index
    %c0_72 = arith.constant 0 : index
    %c0_73 = arith.constant 0 : index
    %37 = vector.load %arg9[%c0_70, %c2_71, %c0_72, %c0_73] : memref<1x10x18x8xbf16, #tpu.memory_space<vmem>>, vector<1x8x16x8xbf16>
    %c0_74 = arith.constant 0 : index
    %c0_75 = arith.constant 0 : index
    %c0_76 = arith.constant 0 : index
    %c48 = arith.constant 48 : index
    %38 = vector.load %arg10[%c0_74, %c0_75, %c0_76, %c48] : memref<1x8x16x128xbf16, #tpu.memory_space<vmem>>, vector<1x8x16x8xbf16>
    tpu.vector_store %arg10[%c0_74, %c0_75, %c0_76, %c48], %37 {strides = array<i32>} : memref<1x8x16x128xbf16, #tpu.memory_space<vmem>>, vector<1x8x16x8xbf16>,
    %c0_77 = arith.constant 0 : index
    %c2_78 = arith.constant 2 : index
    %c1_79 = arith.constant 1 : index
    %c0_80 = arith.constant 0 : index
    %39 = vector.load %arg9[%c0_77, %c2_78, %c1_79, %c0_80] : memref<1x10x18x8xbf16, #tpu.memory_space<vmem>>, vector<1x8x16x8xbf16>
    %c0_81 = arith.constant 0 : index
    %c0_82 = arith.constant 0 : index
    %c0_83 = arith.constant 0 : index
    %c56 = arith.constant 56 : index
    %40 = vector.load %arg10[%c0_81, %c0_82, %c0_83, %c56] : memref<1x8x16x128xbf16, #tpu.memory_space<vmem>>, vector<1x8x16x8xbf16>
    tpu.vector_store %arg10[%c0_81, %c0_82, %c0_83, %c56], %39 {strides = array<i32>} : memref<1x8x16x128xbf16, #tpu.memory_space<vmem>>, vector<1x8x16x8xbf16>,
    %c0_84 = arith.constant 0 : index
    %c2_85 = arith.constant 2 : index
    %c2_86 = arith.constant 2 : index
    %c0_87 = arith.constant 0 : index
    %41 = vector.load %arg9[%c0_84, %c2_85, %c2_86, %c0_87] : memref<1x10x18x8xbf16, #tpu.memory_space<vmem>>, vector<1x8x16x8xbf16>
    %c0_88 = arith.constant 0 : index
    %c0_89 = arith.constant 0 : index
    %c0_90 = arith.constant 0 : index
    %c64 = arith.constant 64 : index
    %42 = vector.load %arg10[%c0_88, %c0_89, %c0_90, %c64] : memref<1x8x16x128xbf16, #tpu.memory_space<vmem>>, vector<1x8x16x8xbf16>
    tpu.vector_store %arg10[%c0_88, %c0_89, %c0_90, %c64], %41 {strides = array<i32>} : memref<1x8x16x128xbf16, #tpu.memory_space<vmem>>, vector<1x8x16x8xbf16>,
    %cst_91 = arith.constant 0.000000e+00 : bf16
    %43 = vector.broadcast %cst_91 : bf16 to vector<1x8x16x56xbf16>
    %c0_92 = arith.constant 0 : index
    %c0_93 = arith.constant 0 : index
    %c0_94 = arith.constant 0 : index
    %c72 = arith.constant 72 : index
    %44 = vector.load %arg10[%c0_92, %c0_93, %c0_94, %c72] : memref<1x8x16x128xbf16, #tpu.memory_space<vmem>>, vector<1x8x16x56xbf16>
    tpu.vector_store %arg10[%c0_92, %c0_93, %c0_94, %c72], %43 {strides = array<i32>} : memref<1x8x16x128xbf16, #tpu.memory_space<vmem>>, vector<1x8x16x56xbf16>,
    %c0_95 = arith.constant 0 : index
    %c0_96 = arith.constant 0 : index
    %c0_97 = arith.constant 0 : index
    %c0_98 = arith.constant 0 : index
    %45 = vector.load %arg10[%c0_95, %c0_96, %c0_97, %c0_98] : memref<1x8x16x128xbf16, #tpu.memory_space<vmem>>, vector<1x8x16x128xbf16>
    %46 = vector.shape_cast %45 : vector<1x8x16x128xbf16> to vector<128x128xbf16>
    %c0_99 = arith.constant 0 : index
    %c0_100 = arith.constant 0 : index
    %47 = vector.load %arg5[%c0_99, %c0_100] : memref<128x128xbf16, #tpu.memory_space<vmem>>, vector<128x128xbf16>
    %cst_101 = arith.constant dense<0.000000e+00> : vector<128x128xf32>
    %48 = tpu.matmul %46, %47, %cst_101 {dimension_numbers = #tpu.dot_dimension_numbers<[1], [0], [0], [1], [0, 0, 1, 1], [], []>} : vector<128x128xbf16>, vector<128x128xbf16>, vector<128x128xf32> -> vector<128x128xf32>
    %49 = vector.extract_strided_slice %48 {offsets = [0, 0], sizes = [128, 8], strides = [1, 1]} : vector<128x128xf32> to vector<128x8xf32>
    %50 = vector.shape_cast %49 : vector<128x8xf32> to vector<1x8x16x8xf32>
    %51 = arith.truncf %50 : vector<1x8x16x8xf32> to vector<1x8x16x8xbf16>
    %c0_102 = arith.constant 0 : index
    %c0_103 = arith.constant 0 : index
    %c0_104 = arith.constant 0 : index
    %c0_105 = arith.constant 0 : index
    %52 = vector.load %arg6[%c0_102, %c0_103, %c0_104, %c0_105] : memref<1x8x16x8xbf16, #tpu.memory_space<vmem>>, vector<1x8x16x8xbf16>
    tpu.vector_store %arg6[%c0_102, %c0_103, %c0_104, %c0_105], %51 {strides = array<i32>} : memref<1x8x16x8xbf16, #tpu.memory_space<vmem>>, vector<1x8x16x8xbf16>,
    %cst_106 = arith.constant dense<0.000000e+00> : vector<128xf32>
    %53 = vector.multi_reduction <add>, %48, %cst_106 [0] : vector<128x128xf32> to vector<128xf32>
    %54 = vector.shape_cast %53 : vector<128xf32> to vector<1x128xf32>
    %cst_107 = arith.constant 7.812500e-03 : f32
    %55 = vector.broadcast %cst_107 : f32 to vector<1x128xf32>
    %56 = arith.mulf %54, %55 : vector<1x128xf32>
    %57 = vector.broadcast %56 : vector<1x128xf32> to vector<128x128xf32>
    %58 = arith.subf %48, %57 : vector<128x128xf32>
    %59 = arith.mulf %58, %58 : vector<128x128xf32>
    %cst_108 = arith.constant dense<0.000000e+00> : vector<128xf32>
    %60 = vector.multi_reduction <add>, %59, %cst_108 [0] : vector<128x128xf32> to vector<128xf32>
    %61 = vector.shape_cast %60 : vector<128xf32> to vector<1x128xf32>
    %62 = vector.shape_cast %56 : vector<1x128xf32> to vector<1x1x1x128xf32>
    %c0_109 = arith.constant 0 : index
    %c0_110 = arith.constant 0 : index
    %c0_111 = arith.constant 0 : index
    %c0_112 = arith.constant 0 : index
    %63 = vector.load %arg7[%c0_109, %c0_110, %c0_111, %c0_112] : memref<1x1x1x128xf32, #tpu.memory_space<vmem>>, vector<1x1x1x128xf32>
    tpu.vector_store %arg7[%c0_109, %c0_110, %c0_111, %c0_112], %62 {strides = array<i32>} : memref<1x1x1x128xf32, #tpu.memory_space<vmem>>, vector<1x1x1x128xf32>,
    %64 = vector.shape_cast %61 : vector<1x128xf32> to vector<1x1x1x128xf32>
    %c0_113 = arith.constant 0 : index
    %c0_114 = arith.constant 0 : index
    %c0_115 = arith.constant 0 : index
    %c0_116 = arith.constant 0 : index
    %65 = vector.load %arg8[%c0_113, %c0_114, %c0_115, %c0_116] : memref<1x1x1x128xf32, #tpu.memory_space<vmem>>, vector<1x1x1x128xf32>
    tpu.vector_store %arg8[%c0_113, %c0_114, %c0_115, %c0_116], %64 {strides = array<i32>} : memref<1x1x1x128xf32, #tpu.memory_space<vmem>>, vector<1x1x1x128xf32>,
    return
  }
  func.func @transform_0(%arg0: i32, %arg1: i32) -> (i32, i32, i32, i32) {
    %c0_i32 = arith.constant 0 : i32
    %c0_i32_0 = arith.constant 0 : i32
    %c0_i32_1 = arith.constant 0 : i32
    return %arg0, %arg1, %c0_i32, %c0_i32_0 : i32, i32, i32, i32
  }
  func.func @transform_1(%arg0: i32, %arg1: i32) -> (i32, i32, i32, i32) {
    %c8_i32 = arith.constant 8 : i32
    %0 = arith.muli %arg1, %c8_i32 : i32
    %c1_i32 = arith.constant 1 : i32
    %1 = arith.subi %0, %c1_i32 : i32
    %c0_i32 = arith.constant 0 : i32
    %2 = arith.maxsi %1, %c0_i32 : i32
    %c0_i32_0 = arith.constant 0 : i32
    %c0_i32_1 = arith.constant 0 : i32
    %c0_i32_2 = arith.constant 0 : i32
    return %arg0, %2, %c0_i32_0, %c0_i32_1 : i32, i32, i32, i32
  }
  func.func @transform_2(%arg0: i32, %arg1: i32) -> (i32, i32, i32, i32) {
    %c8_i32 = arith.constant 8 : i32
    %0 = arith.muli %arg1, %c8_i32 : i32
    %c8_i32_0 = arith.constant 8 : i32
    %1 = arith.addi %0, %c8_i32_0 : i32
    %c15_i32 = arith.constant 15 : i32
    %2 = arith.minsi %1, %c15_i32 : i32
    %c0_i32 = arith.constant 0 : i32
    %c0_i32_1 = arith.constant 0 : i32
    %c0_i32_2 = arith.constant 0 : i32
    return %arg0, %2, %c0_i32, %c0_i32_1 : i32, i32, i32, i32
  }
  func.func @transform_3(%arg0: i32, %arg1: i32) -> (i32, i32) {
    %c0_i32 = arith.constant 0 : i32
    %c0_i32_0 = arith.constant 0 : i32
    %c0_i32_1 = arith.constant 0 : i32
    return %c0_i32, %c0_i32_0 : i32, i32
  }
  func.func @transform_4(%arg0: i32, %arg1: i32) -> (i32, i32, i32, i32) {
    %c0_i32 = arith.constant 0 : i32
    %c0_i32_0 = arith.constant 0 : i32
    %c0_i32_1 = arith.constant 0 : i32
    return %arg0, %arg1, %c0_i32, %c0_i32_0 : i32, i32, i32, i32
  }
  func.func @transform_5(%arg0: i32, %arg1: i32) -> (i32, i32, i32, i32) {
    %c0_i32 = arith.constant 0 : i32
    %c0_i32_0 = arith.constant 0 : i32
    %c0_i32_1 = arith.constant 0 : i32
    return %arg0, %arg1, %c0_i32, %c0_i32_0 : i32, i32, i32, i32
  }
  func.func @transform_6(%arg0: i32, %arg1: i32) -> (i32, i32, i32, i32) {
    %c0_i32 = arith.constant 0 : i32
    %c0_i32_0 = arith.constant 0 : i32
    %c0_i32_1 = arith.constant 0 : i32
    return %arg0, %arg1, %c0_i32, %c0_i32_0 : i32, i32, i32, i32
  }
}

</mosaic_0001>

<llo_original>
// kernel: basic_block_forward.5
$region0: #{basic_block_forward.5}
  #allocation0 [shape = 'u32[]', space=smem, size = 0x4, offset = 0x4, fixed_abs, tag = 'smem constant byte address 0x4 - core index']
  #allocation1 [shape = 'u32[72,128]{1,0:T(1,128)}', space=vmem, size = 0x9000, scoped, tag = 'internal scratch']
  %s0 = inlined_call_operand.vmem [shape: bf16[2,16,16,8], index: 0, kind: input, shape index: {}]
  %s1 = inlined_call_operand.vmem [shape: f32[2,16,16,8], index: 1, kind: input, shape index: {}]
  %s2 = inlined_call_operand.vmem [shape: f32[1,8], index: 2, kind: input, shape index: {}]
  %s3 = inlined_call_operand.vmem [shape: f32[1,8], index: 3, kind: input, shape index: {}]
  %s4 = inlined_call_operand.vmem [shape: f32[2,16,16,8], index: 4, kind: output, shape index: {}]
  %s5 = sld [smem:[#allocation0]]
  $region49: #{basic_block_forward.5} parent=0
    _
  %s7 = ssub.s32 1, %s5
  %s8 = scalar_select 0, %s7, %s5
  loop: start=0, step=1, limit=6
  $region2: #{basic_block_forward.5} parent=0 // loop_pre_header
    _
  $region3: #{basic_block_forward.5} parent=0 // loop_header
    %s10 = sphi 0, %s14
    %p11 = scmp.ge.s32.totalorder %s10, 6
    %s17 = sphi 0, %s29
    %s18 = sphi 0, %s25
    %s19 = sphi 0, %s17
    %s20 = sphi 0, %s18
    %s21 = sphi 0, %s19
    %s22 = sphi 0, %s20
    %s34 = sphi 0, %s36
    %s37 = sphi 0, %s34
    %s38 = sphi 0, %s37
    %s54 = sphi 0, %s38
    %s62 = sphi 0, %s64
    %s65 = sphi 0, %s62
    %s66 = sphi 0, %s65
    %s82 = sphi 0, %s66
    %s86 = sphi 0, %s86
    %s88 = sphi 0, %s86
    %s89 = sphi 0, %s88
    %s103 = sphi 0, %s89
    %s107 = sphi 0, %s107
    %s109 = sphi 0, %s107
    %s110 = sphi 0, %s109
    %s124 = sphi 0, %s110
    %s132 = sphi 0, %s134
    %s135 = sphi 0, %s132
    %s136 = sphi 0, %s135
    %s152 = sphi 0, %s136
  $region4: #{basic_block_forward.5} parent=0 // loop_header_branch
    %13 = sbr.rel (%p11) target = $region8
  $region5: #{basic_block_forward.5} parent=0 // loop_body
    %s15 = ssub.s32 %s10, 1
    %s16 = ssub.s32 %s10, 2
    %s23 = sadd.s32 1, %s18
    %p24 = scmp.ge.s32.totalorder %s23, 2
    %s25 = scalar_select %p24, 0, %s23
    %s26 = sadd.s32 1, %s17
    %s27 = scalar_select %p24, %s26, %s17
    %p28 = scmp.ge.s32.totalorder %s27, 2
    %s29 = scalar_select %p28, 0, %s27
    %s30 = ssub.s32 %s17, %s29
    %s31 = ssub.s32 %s18, %s25
    %s32 = sor.u32 %s30, %s31
    %p33 = scmp.eq.s32.totalorder %s32, 0
    %s35 = sadd.s32 %s34, 1
    %s36 = scalar_select %p33, %s34, %s35
    %p39 = pneg %p33
    %p40 = scmp.eq.s32.totalorder %s10, 3
    %p41 = por %p39, %p40
    %p42 = scmp.ne.s32.totalorder %s34, %s37
    %p43 = scmp.eq.s32.totalorder %s10, 0
    %p44 = por %p42, %p43
    %p45 = scmp.ne.s32.totalorder %s34, %s37
    %p46 = scmp.eq.s32.totalorder %s15, 3
    %p47 = por %p45, %p46
    %p48 = scmp.ne.s32.totalorder %s37, %s38
    %p49 = scmp.eq.s32.totalorder %s15, 0
    %p50 = por %p48, %p49
    %p51 = scmp.ne.s32.totalorder %s37, %s38
    %p52 = scmp.eq.s32.totalorder %s16, 3
    %p53 = por %p51, %p52
    %p55 = scmp.ne.s32.totalorder %s38, %s54
    %p56 = scmp.eq.s32.totalorder %s16, 0
    %p57 = por %p55, %p56
    %s58 = ssub.s32 %s17, %s29
    %s59 = ssub.s32 %s18, %s25
    %s60 = sor.u32 %s58, %s59
    %p61 = scmp.eq.s32.totalorder %s60, 0
    %s63 = sadd.s32 %s62, 1
    %s64 = scalar_select %p61, %s62, %s63
    %p67 = pneg %p61
    %p68 = scmp.eq.s32.totalorder %s10, 3
    %p69 = por %p67, %p68
    %p70 = scmp.ne.s32.totalorder %s62, %s65
    %p71 = scmp.eq.s32.totalorder %s10, 0
    %p72 = por %p70, %p71
    %p73 = scmp.ne.s32.totalorder %s62, %s65
    %p74 = scmp.eq.s32.totalorder %s15, 3
    %p75 = por %p73, %p74
    %p76 = scmp.ne.s32.totalorder %s65, %s66
    %p77 = scmp.eq.s32.totalorder %s15, 0
    %p78 = por %p76, %p77
    %p79 = scmp.ne.s32.totalorder %s65, %s66
    %p80 = scmp.eq.s32.totalorder %s16, 3
    %p81 = por %p79, %p80
    %p83 = scmp.ne.s32.totalorder %s66, %s82
    %p84 = scmp.eq.s32.totalorder %s16, 0
    %p85 = por %p83, %p84
    %s87 = sadd.s32 %s86, 1
    %p90 = scmp.eq.s32.totalorder %s10, 3
    %p91 = scmp.ne.s32.totalorder %s86, %s88
    %p92 = scmp.eq.s32.totalorder %s10, 0
    %p93 = por %p91, %p92
    %p94 = scmp.ne.s32.totalorder %s86, %s88
    %p95 = scmp.eq.s32.totalorder %s15, 3
    %p96 = por %p94, %p95
    %p97 = scmp.ne.s32.totalorder %s88, %s89
    %p98 = scmp.eq.s32.totalorder %s15, 0
    %p99 = por %p97, %p98
    %p100 = scmp.ne.s32.totalorder %s88, %s89
    %p101 = scmp.eq.s32.totalorder %s16, 3
    %p102 = por %p100, %p101
    %p104 = scmp.ne.s32.totalorder %s89, %s103
    %p105 = scmp.eq.s32.totalorder %s16, 0
    %p106 = por %p104, %p105
    %s108 = sadd.s32 %s107, 1
    %p111 = scmp.eq.s32.totalorder %s10, 3
    %p112 = scmp.ne.s32.totalorder %s107, %s109
    %p113 = scmp.eq.s32.totalorder %s10, 0
    %p114 = por %p112, %p113
    %p115 = scmp.ne.s32.totalorder %s107, %s109
    %p116 = scmp.eq.s32.totalorder %s15, 3
    %p117 = por %p115, %p116
    %p118 = scmp.ne.s32.totalorder %s109, %s110
    %p119 = scmp.eq.s32.totalorder %s15, 0
    %p120 = por %p118, %p119
    %p121 = scmp.ne.s32.totalorder %s109, %s110
    %p122 = scmp.eq.s32.totalorder %s16, 3
    %p123 = por %p121, %p122
    %p125 = scmp.ne.s32.totalorder %s110, %s124
    %p126 = scmp.eq.s32.totalorder %s16, 0
    %p127 = por %p125, %p126
    %s128 = ssub.s32 %s17, %s29
    %s129 = ssub.s32 %s18, %s25
    %s130 = sor.u32 %s128, %s129
    %p131 = scmp.eq.s32.totalorder %s130, 0
    %s133 = sadd.s32 %s132, 1
    %s134 = scalar_select %p131, %s132, %s133
    %p137 = pneg %p131
    %p138 = scmp.eq.s32.totalorder %s10, 3
    %p139 = por %p137, %p138
    %p140 = scmp.ne.s32.totalorder %s132, %s135
    %p141 = scmp.eq.s32.totalorder %s10, 0
    %p142 = por %p140, %p141
    %p143 = scmp.ne.s32.totalorder %s132, %s135
    %p144 = scmp.eq.s32.totalorder %s15, 3
    %p145 = por %p143, %p144
    %p146 = scmp.ne.s32.totalorder %s135, %s136
    %p147 = scmp.eq.s32.totalorder %s15, 0
    %p148 = por %p146, %p147
    %p149 = scmp.ne.s32.totalorder %s135, %s136
    %p150 = scmp.eq.s32.totalorder %s16, 3
    %p151 = por %p149, %p150
    %p153 = scmp.ne.s32.totalorder %s136, %s152
    %p154 = scmp.eq.s32.totalorder %s16, 0
    %p155 = por %p153, %p154
    %p156 = scmp.le.s32.totalorder 1, %s10
    %p157 = scmp.lt.s32.totalorder %s10, 5
    %p158 = pnand %p156, %p157
    %p159 = pneg %p158
    // Predicated region
    $region9: #{basic_block_forward.5} parent=5 // pred_check
      _
    $region10: #{basic_block_forward.5} parent=5 // pred_check_branch
      %161 = sbr.rel (%p158) target = $region12
    $region11: #{basic_block_forward.5} parent=5 // pred_region
      %s162 = ssub.s32 %s10, 1
      // Predicated region
      $region13: #{basic_block_forward.5} parent=11 // pred_check
        %p163 = pneg %p99
      $region14: #{basic_block_forward.5} parent=11 // pred_check_branch
        %165 = sbr.rel (%p163) target = $region16
      $region15: #{basic_block_forward.5} parent=11 // pred_region
        _
      $region16: #{basic_block_forward.5} parent=11 // pred_fallthru
        _
      // Predicated region
      $region17: #{basic_block_forward.5} parent=11 // pred_check
        %p166 = pneg %p120
      $region18: #{basic_block_forward.5} parent=11 // pred_check_branch
        %168 = sbr.rel (%p166) target = $region20
      $region19: #{basic_block_forward.5} parent=11 // pred_region
        _
      $region20: #{basic_block_forward.5} parent=11 // pred_fallthru
        _
    $region12: #{basic_block_forward.5} parent=5 // pred_fallthru
      _
    %p169 = scmp.lt.s32.totalorder %s10, 4
    // Predicated region
    $region21: #{basic_block_forward.5} parent=5 // pred_check
      %p170 = pneg %p169
    $region22: #{basic_block_forward.5} parent=5 // pred_check_branch
      %172 = sbr.rel (%p170) target = $region24
    $region23: #{basic_block_forward.5} parent=5 // pred_region
      // Predicated region
      $region25: #{basic_block_forward.5} parent=23 // pred_check
        %p173 = pneg %p44
      $region26: #{basic_block_forward.5} parent=23 // pred_check_branch
        %175 = sbr.rel (%p173) target = $region28
      $region27: #{basic_block_forward.5} parent=23 // pred_region
        %s176 = smul.u32 8, %s18
        %p177 = scmp.lt.s32.totalorder %s17, 1
        %s178 = scalar_select %p177, %s17, 1
        %p179 = scmp.lt.s32.totalorder %s176, 15
        %s180 = scalar_select %p179, %s176, 15
        %s181 = smul.addr %s180, 2
        %s182 = smul.addr %s178, 32
        %s183 = sadd.s32 %s181, %s182
        %s184 = smul.addr %s183, 4
        %s185 = scalar_lea.vmem %s0, %s184
        %s186 = smul.u32 8, %s18
      $region28: #{basic_block_forward.5} parent=23 // pred_fallthru
        _
      // Predicated region
      $region29: #{basic_block_forward.5} parent=23 // pred_check
        %p187 = pneg %p72
      $region30: #{basic_block_forward.5} parent=23 // pred_check_branch
        %189 = sbr.rel (%p187) target = $region32
      $region31: #{basic_block_forward.5} parent=23 // pred_region
        %s190 = smul.u32 8, %s18
        %p191 = scmp.lt.s32.totalorder %s17, 1
        %s192 = scalar_select %p191, %s17, 1
        %p193 = scmp.lt.s32.totalorder %s190, 15
        %s194 = scalar_select %p193, %s190, 15
        %s195 = smul.addr %s194, 2
        %s196 = smul.addr %s192, 32
        %s197 = sadd.s32 %s195, %s196
        %s198 = smul.addr %s197, 8
        %s199 = scalar_lea.vmem %s1, %s198
        %s200 = smul.u32 8, %s18
      $region32: #{basic_block_forward.5} parent=23 // pred_fallthru
        _
    $region24: #{basic_block_forward.5} parent=5 // pred_fallthru
      _
    %p201 = scmp.le.s32.totalorder 1, %s10
    %p202 = scmp.lt.s32.totalorder %s10, 5
    %p203 = pnand %p201, %p202
    %p204 = pneg %p203
    // Predicated region
    $region33: #{basic_block_forward.5} parent=5 // pred_check
      _
    $region34: #{basic_block_forward.5} parent=5 // pred_check_branch
      %206 = sbr.rel (%p203) target = $region36
    $region35: #{basic_block_forward.5} parent=5 // pred_region
      %s207 = ssub.s32 %s10, 1
      %s208 = smul.u32 8, %s20
      %p209 = scmp.lt.s32.totalorder %s19, 1
      %s210 = scalar_select %p209, %s19, 1
      %p211 = scmp.lt.s32.totalorder %s208, 15
      %s212 = scalar_select %p211, %s208, 15
      %s213 = smul.addr %s212, 2
      %s214 = smul.addr %s210, 32
      %s215 = sadd.s32 %s213, %s214
      %s216 = smul.addr %s215, 4
      %s217 = scalar_lea.vmem %s0, %s216
      %p218 = pneg %p50
      %p219 = pneg %p47
      %s220 = smul.u32 8, %s20
      %p221 = scmp.lt.s32.totalorder %s19, 1
      %s222 = scalar_select %p221, %s19, 1
      %p223 = scmp.lt.s32.totalorder %s220, 15
      %s224 = scalar_select %p223, %s220, 15
      %s225 = smul.addr %s224, 2
      %s226 = smul.addr %s222, 32
      %s227 = sadd.s32 %s225, %s226
      %s228 = smul.addr %s227, 8
      %s229 = scalar_lea.vmem %s1, %s228
      %p230 = pneg %p78
      %p231 = pneg %p75
      %p232 = pneg %p99
      %p233 = pneg %p96
      %p234 = pneg %p120
      %p235 = pneg %p117
      %p236 = pneg %p148
      %p237 = pneg %p145
      %s238 = smul.u32 8, %s20
      %p239 = scmp.lt.s32.totalorder %s19, 1
      %s240 = scalar_select %p239, %s19, 1
      %p241 = scmp.lt.s32.totalorder %s238, 15
      %s242 = scalar_select %p241, %s238, 15
      %s243 = smul.addr %s242, 2
      %s244 = smul.addr %s240, 32
      %s245 = sadd.s32 %s243, %s244
      %s246 = smul.addr %s245, 8
      %s247 = scalar_lea.vmem %s4, %s246
      %s248 = smul.u32 8, %s20
      %p249 = scmp.lt.s32.totalorder %s19, 1
      %s250 = scalar_select %p249, %s19, 1
      %p251 = scmp.lt.s32.totalorder %s248, 15
      %s252 = scalar_select %p251, %s248, 15
      %s253 = smul.addr %s252, 2
      %s254 = smul.addr %s250, 32
      %s255 = sadd.s32 %s253, %s254
      %s256 = smul.addr %s255, 4
      %s257 = scalar_lea.vmem %s0, %s256
      %s258 = smul.u32 8, %s20
      %s259 = smul.u32 8, %s20
      %p260 = scmp.lt.s32.totalorder %s19, 1
      %s261 = scalar_select %p260, %s19, 1
      %p262 = scmp.lt.s32.totalorder %s259, 15
      %s263 = scalar_select %p262, %s259, 15
      %s264 = smul.addr %s263, 2
      %s265 = smul.addr %s261, 32
      %s266 = sadd.s32 %s264, %s265
      %s267 = smul.addr %s266, 8
      %s268 = scalar_lea.vmem %s1, %s267
      %s269 = smul.u32 8, %s20
      %s270 = smul.u32 8, %s20
      %p271 = scmp.lt.s32.totalorder %s19, 1
      %s272 = scalar_select %p271, %s19, 1
      %p273 = scmp.lt.s32.totalorder %s270, 15
      %s274 = scalar_select %p273, %s270, 15
      %s275 = smul.addr %s274, 2
      %s276 = smul.addr %s272, 32
      %s277 = sadd.s32 %s275, %s276
      %s278 = smul.addr %s277, 8
      %s279 = scalar_lea.vmem %s4, %s278
      %s280 = smul.u32 8, %s20
      %v281 = vld [vmem:[%s257] sm:$0xf]
      %v282 = vld [vmem:[%s257 + $0x4] sm:$0xf]
      %v283 = vld [vmem:[%s257 + $0x8] sm:$0xf]
      %v284 = vld [vmem:[%s257 + $0xc] sm:$0xf]
      %v285 = vld [vmem:[%s257 + $0x10] sm:$0xf]
      %v286 = vld [vmem:[%s257 + $0x14] sm:$0xf]
      %v287 = vld [vmem:[%s257 + $0x18] sm:$0xf]
      %v288 = vld [vmem:[%s257 + $0x1c] sm:$0xf]
      %v289 = vld [vmem:[%s257 + $0x20] sm:$0xf]
      %v290 = vld [vmem:[%s257 + $0x24] sm:$0xf]
      %v291 = vld [vmem:[%s257 + $0x28] sm:$0xf]
      %v292 = vld [vmem:[%s257 + $0x2c] sm:$0xf]
      %v293 = vld [vmem:[%s257 + $0x30] sm:$0xf]
      %v294 = vld [vmem:[%s257 + $0x34] sm:$0xf]
      %v295 = vld [vmem:[%s257 + $0x38] sm:$0xf]
      %v296 = vld [vmem:[%s257 + $0x3c] sm:$0xf]
      %v297 = vunpack.c.l.bf16 %v281
      %v298 = vunpack.c.l.bf16 %v282
      %v299 = vunpack.c.l.bf16 %v283
      %v300 = vunpack.c.l.bf16 %v284
      %v301 = vunpack.c.l.bf16 %v285
      %v302 = vunpack.c.l.bf16 %v286
      %v303 = vunpack.c.l.bf16 %v287
      %v304 = vunpack.c.l.bf16 %v288
      %v305 = vunpack.c.l.bf16 %v289
      %v306 = vunpack.c.l.bf16 %v290
      %v307 = vunpack.c.l.bf16 %v291
      %v308 = vunpack.c.l.bf16 %v292
      %v309 = vunpack.c.l.bf16 %v293
      %v310 = vunpack.c.l.bf16 %v294
      %v311 = vunpack.c.l.bf16 %v295
      %v312 = vunpack.c.l.bf16 %v296
      %v313 = vld [vmem:[%s2] sm:$0x1]
      %v315 = vperm.slane %v313, 0
      %v317 = vmul.f32 %v297, %v315
      %v318 = vmul.f32 %v298, %v315
      %v319 = vmul.f32 %v299, %v315
      %v320 = vmul.f32 %v300, %v315
      %v321 = vmul.f32 %v301, %v315
      %v322 = vmul.f32 %v302, %v315
      %v323 = vmul.f32 %v303, %v315
      %v324 = vmul.f32 %v304, %v315
      %v325 = vmul.f32 %v305, %v315
      %v326 = vmul.f32 %v306, %v315
      %v327 = vmul.f32 %v307, %v315
      %v328 = vmul.f32 %v308, %v315
      %v329 = vmul.f32 %v309, %v315
      %v330 = vmul.f32 %v310, %v315
      %v331 = vmul.f32 %v311, %v315
      %v332 = vmul.f32 %v312, %v315
      %v333 = vld [vmem:[%s3] sm:$0x1]
      %v335 = vperm.slane %v333, 0
      %v337 = vadd.f32 %v317, %v335
      %v338 = vadd.f32 %v318, %v335
      %v339 = vadd.f32 %v319, %v335
      %v340 = vadd.f32 %v320, %v335
      %v341 = vadd.f32 %v321, %v335
      %v342 = vadd.f32 %v322, %v335
      %v343 = vadd.f32 %v323, %v335
      %v344 = vadd.f32 %v324, %v335
      %v345 = vadd.f32 %v325, %v335
      %v346 = vadd.f32 %v326, %v335
      %v347 = vadd.f32 %v327, %v335
      %v348 = vadd.f32 %v328, %v335
      %v349 = vadd.f32 %v329, %v335
      %v350 = vadd.f32 %v330, %v335
      %v351 = vadd.f32 %v331, %v335
      %v352 = vadd.f32 %v332, %v335
      %v353 = vld [vmem:[%s268] sm:$0xff]
      %v354 = vld [vmem:[%s268 + $0x8] sm:$0xff]
      %v355 = vld [vmem:[%s268 + $0x10] sm:$0xff]
      %v356 = vld [vmem:[%s268 + $0x18] sm:$0xff]
      %v357 = vld [vmem:[%s268 + $0x20] sm:$0xff]
      %v358 = vld [vmem:[%s268 + $0x28] sm:$0xff]
      %v359 = vld [vmem:[%s268 + $0x30] sm:$0xff]
      %v360 = vld [vmem:[%s268 + $0x38] sm:$0xff]
      %v361 = vld [vmem:[%s268 + $0x40] sm:$0xff]
      %v362 = vld [vmem:[%s268 + $0x48] sm:$0xff]
      %v363 = vld [vmem:[%s268 + $0x50] sm:$0xff]
      %v364 = vld [vmem:[%s268 + $0x58] sm:$0xff]
      %v365 = vld [vmem:[%s268 + $0x60] sm:$0xff]
      %v366 = vld [vmem:[%s268 + $0x68] sm:$0xff]
      %v367 = vld [vmem:[%s268 + $0x70] sm:$0xff]
      %v368 = vld [vmem:[%s268 + $0x78] sm:$0xff]
      %v369 = vadd.f32 %v337, %v353
      %v370 = vadd.f32 %v338, %v354
      %v371 = vadd.f32 %v339, %v355
      %v372 = vadd.f32 %v340, %v356
      %v373 = vadd.f32 %v341, %v357
      %v374 = vadd.f32 %v342, %v358
      %v375 = vadd.f32 %v343, %v359
      %v376 = vadd.f32 %v344, %v360
      %v377 = vadd.f32 %v345, %v361
      %v378 = vadd.f32 %v346, %v362
      %v379 = vadd.f32 %v347, %v363
      %v380 = vadd.f32 %v348, %v364
      %v381 = vadd.f32 %v349, %v365
      %v382 = vadd.f32 %v350, %v366
      %v383 = vadd.f32 %v351, %v367
      %v384 = vadd.f32 %v352, %v368
      %vm385 = vcmask 64512
      %386 = vst.msk [vmem:[%s279] sm:$0xff] %vm385, %v369
      %387 = vst.msk [vmem:[%s279 + $0x8] sm:$0xff] %vm385, %v370
      %388 = vst.msk [vmem:[%s279 + $0x10] sm:$0xff] %vm385, %v371
      %389 = vst.msk [vmem:[%s279 + $0x18] sm:$0xff] %vm385, %v372
      %390 = vst.msk [vmem:[%s279 + $0x20] sm:$0xff] %vm385, %v373
      %391 = vst.msk [vmem:[%s279 + $0x28] sm:$0xff] %vm385, %v374
      %392 = vst.msk [vmem:[%s279 + $0x30] sm:$0xff] %vm385, %v375
      %393 = vst.msk [vmem:[%s279 + $0x38] sm:$0xff] %vm385, %v376
      %394 = vst.msk [vmem:[%s279 + $0x40] sm:$0xff] %vm385, %v377
      %395 = vst.msk [vmem:[%s279 + $0x48] sm:$0xff] %vm385, %v378
      %396 = vst.msk [vmem:[%s279 + $0x50] sm:$0xff] %vm385, %v379
      %397 = vst.msk [vmem:[%s279 + $0x58] sm:$0xff] %vm385, %v380
      %398 = vst.msk [vmem:[%s279 + $0x60] sm:$0xff] %vm385, %v381
      %399 = vst.msk [vmem:[%s279 + $0x68] sm:$0xff] %vm385, %v382
      %400 = vst.msk [vmem:[%s279 + $0x70] sm:$0xff] %vm385, %v383
      %401 = vst.msk [vmem:[%s279 + $0x78] sm:$0xff] %vm385, %v384
      %s402 = smul.u32 8, %s20
      %p403 = scmp.lt.s32.totalorder %s19, 1
      %s404 = scalar_select %p403, %s19, 1
      %p405 = scmp.lt.s32.totalorder %s402, 15
      %s406 = scalar_select %p405, %s402, 15
      %s407 = smul.addr %s406, 2
      %s408 = smul.addr %s404, 32
      %s409 = sadd.s32 %s407, %s408
      %s410 = smul.addr %s409, 8
      %s411 = scalar_lea.vmem %s4, %s410
      // Predicated region
      $region37: #{basic_block_forward.5} parent=35 // pred_check
        %p412 = pneg %p145
      $region38: #{basic_block_forward.5} parent=35 // pred_check_branch
        %414 = sbr.rel (%p412) target = $region40
      $region39: #{basic_block_forward.5} parent=35 // pred_region
        %s415 = smul.u32 8, %s20
      $region40: #{basic_block_forward.5} parent=35 // pred_fallthru
        _
    $region36: #{basic_block_forward.5} parent=5 // pred_fallthru
      _
    %p416 = scmp.le.s32.totalorder 2, %s10
    // Predicated region
    $region41: #{basic_block_forward.5} parent=5 // pred_check
      %p417 = pneg %p416
    $region42: #{basic_block_forward.5} parent=5 // pred_check_branch
      %419 = sbr.rel (%p417) target = $region44
    $region43: #{basic_block_forward.5} parent=5 // pred_region
      %s420 = ssub.s32 %s10, 2
      // Predicated region
      $region45: #{basic_block_forward.5} parent=43 // pred_check
        %p421 = pneg %p151
      $region46: #{basic_block_forward.5} parent=43 // pred_check_branch
        %423 = sbr.rel (%p421) target = $region48
      $region47: #{basic_block_forward.5} parent=43 // pred_region
        %s424 = smul.u32 8, %s22
        %p425 = scmp.lt.s32.totalorder %s21, 1
        %s426 = scalar_select %p425, %s21, 1
        %p427 = scmp.lt.s32.totalorder %s424, 15
        %s428 = scalar_select %p427, %s424, 15
        %s429 = smul.addr %s428, 2
        %s430 = smul.addr %s426, 32
        %s431 = sadd.s32 %s429, %s430
        %s432 = smul.addr %s431, 8
        %s433 = scalar_lea.vmem %s4, %s432
      $region48: #{basic_block_forward.5} parent=43 // pred_fallthru
        _
    $region44: #{basic_block_forward.5} parent=5 // pred_fallthru
      _
  $region6: #{basic_block_forward.5} parent=0 // loop_footer
    %s14 = sadd.s32 1, %s10
  $region7: #{basic_block_forward.5} parent=0 // loop_footer_branch
    %9 = sbr.rel target = $region3
  $region8: #{basic_block_forward.5} parent=0 // loop_exit
    _

// kernel: basic_block_forward.4
$region0: #{basic_block_forward.4}
  #allocation0 [shape = 'u32[]', space=smem, size = 0x4, offset = 0x4, fixed_abs, tag = 'smem constant byte address 0x4 - core index']
  #allocation1 [shape = 'u32[72,128]{1,0:T(1,128)}', space=vmem, size = 0x9000, scoped, tag = 'internal scratch']
  #allocation2 [shape = 'bf16[1,10,18,8]{3,2,1,0:T(8,128)(2,1)}', space=vmem, size = 0xf000, scoped, tag = 'scratch operand']
  #allocation3 [shape = 'bf16[1,8,16,128]{3,2,1,0:T(8,128)(2,1)}', space=vmem, size = 0x8000, scoped, tag = 'scratch operand']
  %s0 = inlined_call_operand.vmem [shape: bf16[2,16,16,8], index: 0, kind: input, shape index: {}, may-alias: {0,1,2}]
  %s1 = inlined_call_operand.vmem [shape: bf16[2,16,16,8], index: 1, kind: input, shape index: {}, may-alias: {0,1,2}]
  %s2 = inlined_call_operand.vmem [shape: bf16[2,16,16,8], index: 2, kind: input, shape index: {}, may-alias: {0,1,2}]
  %s3 = inlined_call_operand.vmem [shape: bf16[128,128], index: 3, kind: input, shape index: {}]
  %s4 = inlined_call_operand.vmem [shape: f32[1,8], index: 4, kind: input, shape index: {}]
  %s5 = inlined_call_operand.vmem [shape: f32[1,8], index: 5, kind: input, shape index: {}]
  %s6 = inlined_call_operand.vmem [shape: bf16[2,16,16,8], index: 6, kind: output, shape index: {0}]
  %s7 = inlined_call_operand.vmem [shape: f32[2,2,1,128], index: 7, kind: output, shape index: {1}]
  %s8 = inlined_call_operand.vmem [shape: f32[2,2,1,128], index: 8, kind: output, shape index: {2}]
  %9 = xla_tuple %s6, %s7, %s8
  %s10 = sld [smem:[#allocation0]]
  $region73: #{basic_block_forward.4} parent=0
    _
  %s12 = ssub.s32 1, %s10
  %s13 = scalar_select 0, %s12, %s10
  loop: start=0, step=1, limit=6
  $region2: #{basic_block_forward.4} parent=0 // loop_pre_header
    _
  $region3: #{basic_block_forward.4} parent=0 // loop_header
    %s15 = sphi 0, %s19
    %p16 = scmp.ge.s32.totalorder %s15, 6
    %s22 = sphi 0, %s34
    %s23 = sphi 0, %s30
    %s24 = sphi 0, %s22
    %s25 = sphi 0, %s23
    %s26 = sphi 0, %s24
    %s27 = sphi 0, %s25
    %s39 = sphi 0, %s41
    %s42 = sphi 0, %s39
    %s43 = sphi 0, %s42
    %s59 = sphi 0, %s43
    %s75 = sphi 0, %s77
    %s78 = sphi 0, %s75
    %s79 = sphi 0, %s78
    %s95 = sphi 0, %s79
    %s111 = sphi 0, %s113
    %s114 = sphi 0, %s111
    %s115 = sphi 0, %s114
    %s131 = sphi 0, %s115
    %s135 = sphi 0, %s135
    %s137 = sphi 0, %s135
    %s138 = sphi 0, %s137
    %s152 = sphi 0, %s138
    %s156 = sphi 0, %s156
    %s158 = sphi 0, %s156
    %s159 = sphi 0, %s158
    %s173 = sphi 0, %s159
    %s177 = sphi 0, %s177
    %s179 = sphi 0, %s177
    %s180 = sphi 0, %s179
    %s194 = sphi 0, %s180
    %s202 = sphi 0, %s204
    %s205 = sphi 0, %s202
    %s206 = sphi 0, %s205
    %s222 = sphi 0, %s206
    %s230 = sphi 0, %s232
    %s233 = sphi 0, %s230
    %s234 = sphi 0, %s233
    %s250 = sphi 0, %s234
    %s258 = sphi 0, %s260
    %s261 = sphi 0, %s258
    %s262 = sphi 0, %s261
    %s278 = sphi 0, %s262
  $region4: #{basic_block_forward.4} parent=0 // loop_header_branch
    %18 = sbr.rel (%p16) target = $region8
  $region5: #{basic_block_forward.4} parent=0 // loop_body
    %s20 = ssub.s32 %s15, 1
    %s21 = ssub.s32 %s15, 2
    %s28 = sadd.s32 1, %s23
    %p29 = scmp.ge.s32.totalorder %s28, 2
    %s30 = scalar_select %p29, 0, %s28
    %s31 = sadd.s32 1, %s22
    %s32 = scalar_select %p29, %s31, %s22
    %p33 = scmp.ge.s32.totalorder %s32, 2
    %s34 = scalar_select %p33, 0, %s32
    %s35 = ssub.s32 %s22, %s34
    %s36 = ssub.s32 %s23, %s30
    %s37 = sor.u32 %s35, %s36
    %p38 = scmp.eq.s32.totalorder %s37, 0
    %s40 = sadd.s32 %s39, 1
    %s41 = scalar_select %p38, %s39, %s40
    %p44 = pneg %p38
    %p45 = scmp.eq.s32.totalorder %s15, 3
    %p46 = por %p44, %p45
    %p47 = scmp.ne.s32.totalorder %s39, %s42
    %p48 = scmp.eq.s32.totalorder %s15, 0
    %p49 = por %p47, %p48
    %p50 = scmp.ne.s32.totalorder %s39, %s42
    %p51 = scmp.eq.s32.totalorder %s20, 3
    %p52 = por %p50, %p51
    %p53 = scmp.ne.s32.totalorder %s42, %s43
    %p54 = scmp.eq.s32.totalorder %s20, 0
    %p55 = por %p53, %p54
    %p56 = scmp.ne.s32.totalorder %s42, %s43
    %p57 = scmp.eq.s32.totalorder %s21, 3
    %p58 = por %p56, %p57
    %p60 = scmp.ne.s32.totalorder %s43, %s59
    %p61 = scmp.eq.s32.totalorder %s21, 0
    %p62 = por %p60, %p61
    %s63 = smul.u32 %s23, 8
    %s64 = ssub.s32 %s63, 1
    %p65 = scmp.gt.s32.totalorder %s64, 0
    %s66 = scalar_select %p65, %s64, 0
    %s67 = smul.u32 %s30, 8
    %s68 = ssub.s32 %s67, 1
    %p69 = scmp.gt.s32.totalorder %s68, 0
    %s70 = scalar_select %p69, %s68, 0
    %s71 = ssub.s32 %s22, %s34
    %s72 = ssub.s32 %s66, %s70
    %s73 = sor.u32 %s71, %s72
    %p74 = scmp.eq.s32.totalorder %s73, 0
    %s76 = sadd.s32 %s75, 1
    %s77 = scalar_select %p74, %s75, %s76
    %p80 = pneg %p74
    %p81 = scmp.eq.s32.totalorder %s15, 3
    %p82 = por %p80, %p81
    %p83 = scmp.ne.s32.totalorder %s75, %s78
    %p84 = scmp.eq.s32.totalorder %s15, 0
    %p85 = por %p83, %p84
    %p86 = scmp.ne.s32.totalorder %s75, %s78
    %p87 = scmp.eq.s32.totalorder %s20, 3
    %p88 = por %p86, %p87
    %p89 = scmp.ne.s32.totalorder %s78, %s79
    %p90 = scmp.eq.s32.totalorder %s20, 0
    %p91 = por %p89, %p90
    %p92 = scmp.ne.s32.totalorder %s78, %s79
    %p93 = scmp.eq.s32.totalorder %s21, 3
    %p94 = por %p92, %p93
    %p96 = scmp.ne.s32.totalorder %s79, %s95
    %p97 = scmp.eq.s32.totalorder %s21, 0
    %p98 = por %p96, %p97
    %s99 = smul.u32 %s23, 8
    %s100 = sadd.s32 %s99, 8
    %p101 = scmp.lt.s32.totalorder %s100, 15
    %s102 = scalar_select %p101, %s100, 15
    %s103 = smul.u32 %s30, 8
    %s104 = sadd.s32 %s103, 8
    %p105 = scmp.lt.s32.totalorder %s104, 15
    %s106 = scalar_select %p105, %s104, 15
    %s107 = ssub.s32 %s22, %s34
    %s108 = ssub.s32 %s102, %s106
    %s109 = sor.u32 %s107, %s108
    %p110 = scmp.eq.s32.totalorder %s109, 0
    %s112 = sadd.s32 %s111, 1
    %s113 = scalar_select %p110, %s111, %s112
    %p116 = pneg %p110
    %p117 = scmp.eq.s32.totalorder %s15, 3
    %p118 = por %p116, %p117
    %p119 = scmp.ne.s32.totalorder %s111, %s114
    %p120 = scmp.eq.s32.totalorder %s15, 0
    %p121 = por %p119, %p120
    %p122 = scmp.ne.s32.totalorder %s111, %s114
    %p123 = scmp.eq.s32.totalorder %s20, 3
    %p124 = por %p122, %p123
    %p125 = scmp.ne.s32.totalorder %s114, %s115
    %p126 = scmp.eq.s32.totalorder %s20, 0
    %p127 = por %p125, %p126
    %p128 = scmp.ne.s32.totalorder %s114, %s115
    %p129 = scmp.eq.s32.totalorder %s21, 3
    %p130 = por %p128, %p129
    %p132 = scmp.ne.s32.totalorder %s115, %s131
    %p133 = scmp.eq.s32.totalorder %s21, 0
    %p134 = por %p132, %p133
    %s136 = sadd.s32 %s135, 1
    %p139 = scmp.eq.s32.totalorder %s15, 3
    %p140 = scmp.ne.s32.totalorder %s135, %s137
    %p141 = scmp.eq.s32.totalorder %s15, 0
    %p142 = por %p140, %p141
    %p143 = scmp.ne.s32.totalorder %s135, %s137
    %p144 = scmp.eq.s32.totalorder %s20, 3
    %p145 = por %p143, %p144
    %p146 = scmp.ne.s32.totalorder %s137, %s138
    %p147 = scmp.eq.s32.totalorder %s20, 0
    %p148 = por %p146, %p147
    %p149 = scmp.ne.s32.totalorder %s137, %s138
    %p150 = scmp.eq.s32.totalorder %s21, 3
    %p151 = por %p149, %p150
    %p153 = scmp.ne.s32.totalorder %s138, %s152
    %p154 = scmp.eq.s32.totalorder %s21, 0
    %p155 = por %p153, %p154
    %s157 = sadd.s32 %s156, 1
    %p160 = scmp.eq.s32.totalorder %s15, 3
    %p161 = scmp.ne.s32.totalorder %s156, %s158
    %p162 = scmp.eq.s32.totalorder %s15, 0
    %p163 = por %p161, %p162
    %p164 = scmp.ne.s32.totalorder %s156, %s158
    %p165 = scmp.eq.s32.totalorder %s20, 3
    %p166 = por %p164, %p165
    %p167 = scmp.ne.s32.totalorder %s158, %s159
    %p168 = scmp.eq.s32.totalorder %s20, 0
    %p169 = por %p167, %p168
    %p170 = scmp.ne.s32.totalorder %s158, %s159
    %p171 = scmp.eq.s32.totalorder %s21, 3
    %p172 = por %p170, %p171
    %p174 = scmp.ne.s32.totalorder %s159, %s173
    %p175 = scmp.eq.s32.totalorder %s21, 0
    %p176 = por %p174, %p175
    %s178 = sadd.s32 %s177, 1
    %p181 = scmp.eq.s32.totalorder %s15, 3
    %p182 = scmp.ne.s32.totalorder %s177, %s179
    %p183 = scmp.eq.s32.totalorder %s15, 0
    %p184 = por %p182, %p183
    %p185 = scmp.ne.s32.totalorder %s177, %s179
    %p186 = scmp.eq.s32.totalorder %s20, 3
    %p187 = por %p185, %p186
    %p188 = scmp.ne.s32.totalorder %s179, %s180
    %p189 = scmp.eq.s32.totalorder %s20, 0
    %p190 = por %p188, %p189
    %p191 = scmp.ne.s32.totalorder %s179, %s180
    %p192 = scmp.eq.s32.totalorder %s21, 3
    %p193 = por %p191, %p192
    %p195 = scmp.ne.s32.totalorder %s180, %s194
    %p196 = scmp.eq.s32.totalorder %s21, 0
    %p197 = por %p195, %p196
    %s198 = ssub.s32 %s22, %s34
    %s199 = ssub.s32 %s23, %s30
    %s200 = sor.u32 %s198, %s199
    %p201 = scmp.eq.s32.totalorder %s200, 0
    %s203 = sadd.s32 %s202, 1
    %s204 = scalar_select %p201, %s202, %s203
    %p207 = pneg %p201
    %p208 = scmp.eq.s32.totalorder %s15, 3
    %p209 = por %p207, %p208
    %p210 = scmp.ne.s32.totalorder %s202, %s205
    %p211 = scmp.eq.s32.totalorder %s15, 0
    %p212 = por %p210, %p211
    %p213 = scmp.ne.s32.totalorder %s202, %s205
    %p214 = scmp.eq.s32.totalorder %s20, 3
    %p215 = por %p213, %p214
    %p216 = scmp.ne.s32.totalorder %s205, %s206
    %p217 = scmp.eq.s32.totalorder %s20, 0
    %p218 = por %p216, %p217
    %p219 = scmp.ne.s32.totalorder %s205, %s206
    %p220 = scmp.eq.s32.totalorder %s21, 3
    %p221 = por %p219, %p220
    %p223 = scmp.ne.s32.totalorder %s206, %s222
    %p224 = scmp.eq.s32.totalorder %s21, 0
    %p225 = por %p223, %p224
    %s226 = ssub.s32 %s22, %s34
    %s227 = ssub.s32 %s23, %s30
    %s228 = sor.u32 %s226, %s227
    %p229 = scmp.eq.s32.totalorder %s228, 0
    %s231 = sadd.s32 %s230, 1
    %s232 = scalar_select %p229, %s230, %s231
    %p235 = pneg %p229
    %p236 = scmp.eq.s32.totalorder %s15, 3
    %p237 = por %p235, %p236
    %p238 = scmp.ne.s32.totalorder %s230, %s233
    %p239 = scmp.eq.s32.totalorder %s15, 0
    %p240 = por %p238, %p239
    %p241 = scmp.ne.s32.totalorder %s230, %s233
    %p242 = scmp.eq.s32.totalorder %s20, 3
    %p243 = por %p241, %p242
    %p244 = scmp.ne.s32.totalorder %s233, %s234
    %p245 = scmp.eq.s32.totalorder %s20, 0
    %p246 = por %p244, %p245
    %p247 = scmp.ne.s32.totalorder %s233, %s234
    %p248 = scmp.eq.s32.totalorder %s21, 3
    %p249 = por %p247, %p248
    %p251 = scmp.ne.s32.totalorder %s234, %s250
    %p252 = scmp.eq.s32.totalorder %s21, 0
    %p253 = por %p251, %p252
    %s254 = ssub.s32 %s22, %s34
    %s255 = ssub.s32 %s23, %s30
    %s256 = sor.u32 %s254, %s255
    %p257 = scmp.eq.s32.totalorder %s256, 0
    %s259 = sadd.s32 %s258, 1
    %s260 = scalar_select %p257, %s258, %s259
    %p263 = pneg %p257
    %p264 = scmp.eq.s32.totalorder %s15, 3
    %p265 = por %p263, %p264
    %p266 = scmp.ne.s32.totalorder %s258, %s261
    %p267 = scmp.eq.s32.totalorder %s15, 0
    %p268 = por %p266, %p267
    %p269 = scmp.ne.s32.totalorder %s258, %s261
    %p270 = scmp.eq.s32.totalorder %s20, 3
    %p271 = por %p269, %p270
    %p272 = scmp.ne.s32.totalorder %s261, %s262
    %p273 = scmp.eq.s32.totalorder %s20, 0
    %p274 = por %p272, %p273
    %p275 = scmp.ne.s32.totalorder %s261, %s262
    %p276 = scmp.eq.s32.totalorder %s21, 3
    %p277 = por %p275, %p276
    %p279 = scmp.ne.s32.totalorder %s262, %s278
    %p280 = scmp.eq.s32.totalorder %s21, 0
    %p281 = por %p279, %p280
    %p282 = scmp.le.s32.totalorder 1, %s15
    %p283 = scmp.lt.s32.totalorder %s15, 5
    %p284 = pnand %p282, %p283
    %p285 = pneg %p284
    // Predicated region
    $region9: #{basic_block_forward.4} parent=5 // pred_check
      _
    $region10: #{basic_block_forward.4} parent=5 // pred_check_branch
      %287 = sbr.rel (%p284) target = $region12
    $region11: #{basic_block_forward.4} parent=5 // pred_region
      %s288 = ssub.s32 %s15, 1
      // Predicated region
      $region13: #{basic_block_forward.4} parent=11 // pred_check
        %p289 = pneg %p148
      $region14: #{basic_block_forward.4} parent=11 // pred_check_branch
        %291 = sbr.rel (%p289) target = $region16
      $region15: #{basic_block_forward.4} parent=11 // pred_region
        _
      $region16: #{basic_block_forward.4} parent=11 // pred_fallthru
        _
      // Predicated region
      $region17: #{basic_block_forward.4} parent=11 // pred_check
        %p292 = pneg %p169
      $region18: #{basic_block_forward.4} parent=11 // pred_check_branch
        %294 = sbr.rel (%p292) target = $region20
      $region19: #{basic_block_forward.4} parent=11 // pred_region
        _
      $region20: #{basic_block_forward.4} parent=11 // pred_fallthru
        _
      // Predicated region
      $region21: #{basic_block_forward.4} parent=11 // pred_check
        %p295 = pneg %p190
      $region22: #{basic_block_forward.4} parent=11 // pred_check_branch
        %297 = sbr.rel (%p295) target = $region24
      $region23: #{basic_block_forward.4} parent=11 // pred_region
        _
      $region24: #{basic_block_forward.4} parent=11 // pred_fallthru
        _
    $region12: #{basic_block_forward.4} parent=5 // pred_fallthru
      _
    %p298 = scmp.lt.s32.totalorder %s15, 4
    // Predicated region
    $region25: #{basic_block_forward.4} parent=5 // pred_check
      %p299 = pneg %p298
    $region26: #{basic_block_forward.4} parent=5 // pred_check_branch
      %301 = sbr.rel (%p299) target = $region28
    $region27: #{basic_block_forward.4} parent=5 // pred_region
      // Predicated region
      $region29: #{basic_block_forward.4} parent=27 // pred_check
        %p302 = pneg %p49
      $region30: #{basic_block_forward.4} parent=27 // pred_check_branch
        %304 = sbr.rel (%p302) target = $region32
      $region31: #{basic_block_forward.4} parent=27 // pred_region
        %s305 = smul.u32 8, %s23
        %p306 = scmp.lt.s32.totalorder %s22, 1
        %s307 = scalar_select %p306, %s22, 1
        %p308 = scmp.lt.s32.totalorder %s305, 15
        %s309 = scalar_select %p308, %s305, 15
        %s310 = smul.addr %s309, 2
        %s311 = smul.addr %s307, 32
        %s312 = sadd.s32 %s310, %s311
        %s313 = smul.addr %s312, 4
        %s314 = scalar_lea.vmem %s0, %s313
        %s315 = smul.u32 8, %s23
      $region32: #{basic_block_forward.4} parent=27 // pred_fallthru
        _
      // Predicated region
      $region33: #{basic_block_forward.4} parent=27 // pred_check
        %p316 = pneg %p85
      $region34: #{basic_block_forward.4} parent=27 // pred_check_branch
        %318 = sbr.rel (%p316) target = $region36
      $region35: #{basic_block_forward.4} parent=27 // pred_region
        %s319 = smul.u32 %s23, 8
        %s320 = ssub.s32 %s319, 1
        %p321 = scmp.gt.s32.totalorder %s320, 0
        %s322 = scalar_select %p321, %s320, 0
        %p323 = scmp.lt.s32.totalorder %s22, 1
        %s324 = scalar_select %p323, %s22, 1
        %p325 = scmp.lt.s32.totalorder %s322, 15
        %s326 = scalar_select %p325, %s322, 15
        %s327 = smul.addr %s326, 2
        %s328 = smul.addr %s324, 32
        %s329 = sadd.s32 %s327, %s328
        %s330 = smul.addr %s329, 4
        %s331 = scalar_lea.vmem %s1, %s330
        %s332 = smul.u32 %s23, 8
        %s333 = ssub.s32 %s332, 1
        %p334 = scmp.gt.s32.totalorder %s333, 0
        %s335 = scalar_select %p334, %s333, 0
      $region36: #{basic_block_forward.4} parent=27 // pred_fallthru
        _
      // Predicated region
      $region37: #{basic_block_forward.4} parent=27 // pred_check
        %p336 = pneg %p121
      $region38: #{basic_block_forward.4} parent=27 // pred_check_branch
        %338 = sbr.rel (%p336) target = $region40
      $region39: #{basic_block_forward.4} parent=27 // pred_region
        %s339 = smul.u32 %s23, 8
        %s340 = sadd.s32 %s339, 8
        %p341 = scmp.lt.s32.totalorder %s340, 15
        %s342 = scalar_select %p341, %s340, 15
        %p343 = scmp.lt.s32.totalorder %s22, 1
        %s344 = scalar_select %p343, %s22, 1
        %p345 = scmp.lt.s32.totalorder %s342, 15
        %s346 = scalar_select %p345, %s342, 15
        %s347 = smul.addr %s346, 2
        %s348 = smul.addr %s344, 32
        %s349 = sadd.s32 %s347, %s348
        %s350 = smul.addr %s349, 4
        %s351 = scalar_lea.vmem %s2, %s350
        %s352 = smul.u32 %s23, 8
        %s353 = sadd.s32 %s352, 8
        %p354 = scmp.lt.s32.totalorder %s353, 15
        %s355 = scalar_select %p354, %s353, 15
      $region40: #{basic_block_forward.4} parent=27 // pred_fallthru
        _
    $region28: #{basic_block_forward.4} parent=5 // pred_fallthru
      _
    %p356 = scmp.le.s32.totalorder 1, %s15
    %p357 = scmp.lt.s32.totalorder %s15, 5
    %p358 = pnand %p356, %p357
    %p359 = pneg %p358
    // Predicated region
    $region41: #{basic_block_forward.4} parent=5 // pred_check
      _
    $region42: #{basic_block_forward.4} parent=5 // pred_check_branch
      %361 = sbr.rel (%p358) target = $region44
    $region43: #{basic_block_forward.4} parent=5 // pred_region
      %s362 = ssub.s32 %s15, 1
      %s363 = smul.u32 8, %s25
      %p364 = scmp.lt.s32.totalorder %s24, 1
      %s365 = scalar_select %p364, %s24, 1
      %p366 = scmp.lt.s32.totalorder %s363, 15
      %s367 = scalar_select %p366, %s363, 15
      %s368 = smul.addr %s367, 2
      %s369 = smul.addr %s365, 32
      %s370 = sadd.s32 %s368, %s369
      %s371 = smul.addr %s370, 4
      %s372 = scalar_lea.vmem %s0, %s371
      %p373 = pneg %p55
      %p374 = pneg %p52
      %s375 = smul.u32 %s25, 8
      %s376 = ssub.s32 %s375, 1
      %p377 = scmp.gt.s32.totalorder %s376, 0
      %s378 = scalar_select %p377, %s376, 0
      %p379 = scmp.lt.s32.totalorder %s24, 1
      %s380 = scalar_select %p379, %s24, 1
      %p381 = scmp.lt.s32.totalorder %s378, 15
      %s382 = scalar_select %p381, %s378, 15
      %s383 = smul.addr %s382, 2
      %s384 = smul.addr %s380, 32
      %s385 = sadd.s32 %s383, %s384
      %s386 = smul.addr %s385, 4
      %s387 = scalar_lea.vmem %s1, %s386
      %p388 = pneg %p91
      %p389 = pneg %p88
      %s390 = smul.u32 %s25, 8
      %s391 = sadd.s32 %s390, 8
      %p392 = scmp.lt.s32.totalorder %s391, 15
      %s393 = scalar_select %p392, %s391, 15
      %p394 = scmp.lt.s32.totalorder %s24, 1
      %s395 = scalar_select %p394, %s24, 1
      %p396 = scmp.lt.s32.totalorder %s393, 15
      %s397 = scalar_select %p396, %s393, 15
      %s398 = smul.addr %s397, 2
      %s399 = smul.addr %s395, 32
      %s400 = sadd.s32 %s398, %s399
      %s401 = smul.addr %s400, 4
      %s402 = scalar_lea.vmem %s2, %s401
      %p403 = pneg %p127
      %p404 = pneg %p124
      %p405 = pneg %p148
      %p406 = pneg %p145
      %p407 = pneg %p169
      %p408 = pneg %p166
      %p409 = pneg %p190
      %p410 = pneg %p187
      %p411 = pneg %p218
      %p412 = pneg %p215
      %s413 = smul.u32 8, %s25
      %p414 = scmp.lt.s32.totalorder %s24, 1
      %s415 = scalar_select %p414, %s24, 1
      %p416 = scmp.lt.s32.totalorder %s413, 15
      %s417 = scalar_select %p416, %s413, 15
      %s418 = smul.addr %s417, 2
      %s419 = smul.addr %s415, 32
      %s420 = sadd.s32 %s418, %s419
      %s421 = smul.addr %s420, 4
      %s422 = scalar_lea.vmem %s6, %s421
      %p423 = pneg %p246
      %p424 = pneg %p243
      %p425 = scmp.lt.s32.totalorder %s24, 1
      %s426 = scalar_select %p425, %s24, 1
      %p427 = scmp.lt.s32.totalorder %s25, 1
      %s428 = scalar_select %p427, %s25, 1
      %s429 = smul.addr %s426, 2
      %s430 = sadd.s32 %s428, %s429
      %s431 = scalar_lea.vmem %s7, %s430
      %p432 = pneg %p274
      %p433 = pneg %p271
      %p434 = scmp.lt.s32.totalorder %s24, 1
      %s435 = scalar_select %p434, %s24, 1
      %p436 = scmp.lt.s32.totalorder %s25, 1
      %s437 = scalar_select %p436, %s25, 1
      %s438 = smul.addr %s435, 2
      %s439 = sadd.s32 %s437, %s438
      %s440 = scalar_lea.vmem %s8, %s439
      %s441 = smul.u32 8, %s25
      %p442 = scmp.lt.s32.totalorder %s24, 1
      %s443 = scalar_select %p442, %s24, 1
      %p444 = scmp.lt.s32.totalorder %s441, 15
      %s445 = scalar_select %p444, %s441, 15
      %s446 = smul.addr %s445, 2
      %s447 = smul.addr %s443, 32
      %s448 = sadd.s32 %s446, %s447
      %s449 = smul.addr %s448, 4
      %s450 = scalar_lea.vmem %s0, %s449
      %s451 = smul.u32 8, %s25
      %s452 = smul.u32 %s25, 8
      %s453 = ssub.s32 %s452, 1
      %p454 = scmp.gt.s32.totalorder %s453, 0
      %s455 = scalar_select %p454, %s453, 0
      %p456 = scmp.lt.s32.totalorder %s24, 1
      %s457 = scalar_select %p456, %s24, 1
      %p458 = scmp.lt.s32.totalorder %s455, 15
      %s459 = scalar_select %p458, %s455, 15
      %s460 = smul.addr %s459, 2
      %s461 = smul.addr %s457, 32
      %s462 = sadd.s32 %s460, %s461
      %s463 = smul.addr %s462, 4
      %s464 = scalar_lea.vmem %s1, %s463
      %s465 = smul.u32 %s25, 8
      %s466 = ssub.s32 %s465, 1
      %p467 = scmp.gt.s32.totalorder %s466, 0
      %s468 = scalar_select %p467, %s466, 0
      %s469 = smul.u32 %s25, 8
      %s470 = sadd.s32 %s469, 8
      %p471 = scmp.lt.s32.totalorder %s470, 15
      %s472 = scalar_select %p471, %s470, 15
      %p473 = scmp.lt.s32.totalorder %s24, 1
      %s474 = scalar_select %p473, %s24, 1
      %p475 = scmp.lt.s32.totalorder %s472, 15
      %s476 = scalar_select %p475, %s472, 15
      %s477 = smul.addr %s476, 2
      %s478 = smul.addr %s474, 32
      %s479 = sadd.s32 %s477, %s478
      %s480 = smul.addr %s479, 4
      %s481 = scalar_lea.vmem %s2, %s480
      %s482 = smul.u32 %s25, 8
      %s483 = sadd.s32 %s482, 8
      %p484 = scmp.lt.s32.totalorder %s483, 15
      %s485 = scalar_select %p484, %s483, 15
      %s486 = smul.u32 8, %s25
      %p487 = scmp.lt.s32.totalorder %s24, 1
      %s488 = scalar_select %p487, %s24, 1
      %p489 = scmp.lt.s32.totalorder %s486, 15
      %s490 = scalar_select %p489, %s486, 15
      %s491 = smul.addr %s490, 2
      %s492 = smul.addr %s488, 32
      %s493 = sadd.s32 %s491, %s492
      %s494 = smul.addr %s493, 4
      %s495 = scalar_lea.vmem %s6, %s494
      %s496 = smul.u32 8, %s25
      %p497 = scmp.lt.s32.totalorder %s24, 1
      %s498 = scalar_select %p497, %s24, 1
      %p499 = scmp.lt.s32.totalorder %s25, 1
      %s500 = scalar_select %p499, %s25, 1
      %s501 = smul.addr %s498, 2
      %s502 = sadd.s32 %s500, %s501
      %s503 = scalar_lea.vmem %s7, %s502
      %p504 = scmp.lt.s32.totalorder %s24, 1
      %s505 = scalar_select %p504, %s24, 1
      %p506 = scmp.lt.s32.totalorder %s25, 1
      %s507 = scalar_select %p506, %s25, 1
      %s508 = smul.addr %s505, 2
      %s509 = sadd.s32 %s507, %s508
      %s510 = scalar_lea.vmem %s8, %s509
      %v512 = vld [vmem:[%s450] sm:$0xf]
      %v513 = vld [vmem:[%s450 + $0x4] sm:$0xf]
      %v514 = vld [vmem:[%s450 + $0x8] sm:$0xf]
      %v515 = vld [vmem:[%s450 + $0xc] sm:$0xf]
      %v516 = vld [vmem:[%s450 + $0x10] sm:$0xf]
      %v517 = vld [vmem:[%s450 + $0x14] sm:$0xf]
      %v518 = vld [vmem:[%s450 + $0x18] sm:$0xf]
      %v519 = vld [vmem:[%s450 + $0x1c] sm:$0xf]
      %v520 = vld [vmem:[%s450 + $0x20] sm:$0xf]
      %v521 = vld [vmem:[%s450 + $0x24] sm:$0xf]
      %v522 = vld [vmem:[%s450 + $0x28] sm:$0xf]
      %v523 = vld [vmem:[%s450 + $0x2c] sm:$0xf]
      %v524 = vld [vmem:[%s450 + $0x30] sm:$0xf]
      %v525 = vld [vmem:[%s450 + $0x34] sm:$0xf]
      %v526 = vld [vmem:[%s450 + $0x38] sm:$0xf]
      %v527 = vld [vmem:[%s450 + $0x3c] sm:$0xf]
      %v528 = vunpack.c.l.bf16 %v512
      %v529 = vunpack.c.l.bf16 %v513
      %v530 = vunpack.c.l.bf16 %v514
      %v531 = vunpack.c.l.bf16 %v515
      %v532 = vunpack.c.l.bf16 %v516
      %v533 = vunpack.c.l.bf16 %v517
      %v534 = vunpack.c.l.bf16 %v518
      %v535 = vunpack.c.l.bf16 %v519
      %v536 = vunpack.c.l.bf16 %v520
      %v537 = vunpack.c.l.bf16 %v521
      %v538 = vunpack.c.l.bf16 %v522
      %v539 = vunpack.c.l.bf16 %v523
      %v540 = vunpack.c.l.bf16 %v524
      %v541 = vunpack.c.l.bf16 %v525
      %v542 = vunpack.c.l.bf16 %v526
      %v543 = vunpack.c.l.bf16 %v527
      %v544 = vld [vmem:[%s4] sm:$0x1]
      %v546 = vperm.slane %v544, 0
      %v548 = vmul.f32 %v528, %v546
      %v549 = vmul.f32 %v529, %v546
      %v550 = vmul.f32 %v530, %v546
      %v551 = vmul.f32 %v531, %v546
      %v552 = vmul.f32 %v532, %v546
      %v553 = vmul.f32 %v533, %v546
      %v554 = vmul.f32 %v534, %v546
      %v555 = vmul.f32 %v535, %v546
      %v556 = vmul.f32 %v536, %v546
      %v557 = vmul.f32 %v537, %v546
      %v558 = vmul.f32 %v538, %v546
      %v559 = vmul.f32 %v539, %v546
      %v560 = vmul.f32 %v540, %v546
      %v561 = vmul.f32 %v541, %v546
      %v562 = vmul.f32 %v542, %v546
      %v563 = vmul.f32 %v543, %v546
      %v564 = vld [vmem:[%s5] sm:$0x1]
      %v566 = vperm.slane %v564, 0
      %v568 = vadd.f32 %v548, %v566
      %v569 = vadd.f32 %v549, %v566
      %v570 = vadd.f32 %v550, %v566
      %v571 = vadd.f32 %v551, %v566
      %v572 = vadd.f32 %v552, %v566
      %v573 = vadd.f32 %v553, %v566
      %v574 = vadd.f32 %v554, %v566
      %v575 = vadd.f32 %v555, %v566
      %v576 = vadd.f32 %v556, %v566
      %v577 = vadd.f32 %v557, %v566
      %v578 = vadd.f32 %v558, %v566
      %v579 = vadd.f32 %v559, %v566
      %v580 = vadd.f32 %v560, %v566
      %v581 = vadd.f32 %v561, %v566
      %v582 = vadd.f32 %v562, %v566
      %v583 = vadd.f32 %v563, %v566
      %v584 = vmax.f32 %v568, 0.0
      %v585 = vmax.f32 %v569, 0.0
      %v586 = vmax.f32 %v570, 0.0
      %v587 = vmax.f32 %v571, 0.0
      %v588 = vmax.f32 %v572, 0.0
      %v589 = vmax.f32 %v573, 0.0
      %v590 = vmax.f32 %v574, 0.0
      %v591 = vmax.f32 %v575, 0.0
      %v592 = vmax.f32 %v576, 0.0
      %v593 = vmax.f32 %v577, 0.0
      %v594 = vmax.f32 %v578, 0.0
      %v595 = vmax.f32 %v579, 0.0
      %v596 = vmax.f32 %v580, 0.0
      %v597 = vmax.f32 %v581, 0.0
      %v598 = vmax.f32 %v582, 0.0
      %v599 = vmax.f32 %v583, 0.0
      %v600 = vld [vmem:[%s464] sm:$0xf]
      %v601 = vld [vmem:[%s464 + $0x4] sm:$0xf]
      %v602 = vunpack.c.l.bf16 %v600
      %v603 = vunpack.c.l.bf16 %v601
      %v604 = vmul.f32 %v602, %v546
      %v605 = vmul.f32 %v603, %v546
      %v606 = vadd.f32 %v604, %v566
      %v607 = vadd.f32 %v605, %v566
      %v608 = vmax.f32 %v606, 0.0
      %v609 = vmax.f32 %v607, 0.0
      %p610 = scmp.gt.s32.totalorder %s25, 0
      %s611 = scalar_select %p610, 1, 0
      %s612 = scvt.s32.f32 %s611
      %v613 = vstv %s612
      %v614 = vmul.f32 %v608, %v613
      %v615 = vmul.f32 %v609, %v613
      %v616 = vld [vmem:[%s481] sm:$0xf]
      %v617 = vld [vmem:[%s481 + $0x4] sm:$0xf]
      %v618 = vunpack.c.l.bf16 %v616
      %v619 = vunpack.c.l.bf16 %v617
      %v620 = vmul.f32 %v618, %v546
      %v621 = vmul.f32 %v619, %v546
      %v622 = vadd.f32 %v620, %v566
      %v623 = vadd.f32 %v621, %v566
      %v624 = vmax.f32 %v622, 0.0
      %v625 = vmax.f32 %v623, 0.0
      %p626 = scmp.lt.s32.totalorder %s25, 1
      %s627 = scalar_select %p626, 1, 0
      %s628 = scvt.s32.f32 %s627
      %v629 = vstv %s628
      %v630 = vmul.f32 %v624, %v629
      %v631 = vmul.f32 %v625, %v629
      %vm632 = vcmask 57344
      %vm633 = vsmask.f32 256
      %vm634 = vmand %vm632, %vm633
      %v635 = vld [vmem:[#allocation2] sm:$0x1]
      %v636 = vsel %vm634, 0, %v635
      %637 = vst [vmem:[#allocation2] sm:$0x1] %v636
      %v638 = vld [vmem:[#allocation2 + $0xc] sm:$0x1]
      %v639 = vsel %vm634, 0, %v638
      %640 = vst [vmem:[#allocation2 + $0xc] sm:$0x1] %v639
      %v641 = vld [vmem:[#allocation2 + $0x18] sm:$0x1]
      %v642 = vsel %vm634, 0, %v641
      %643 = vst [vmem:[#allocation2 + $0x18] sm:$0x1] %v642
      %v644 = vld [vmem:[#allocation2 + $0x24] sm:$0x1]
      %v645 = vsel %vm634, 0, %v644
      %646 = vst [vmem:[#allocation2 + $0x24] sm:$0x1] %v645
      %v647 = vld [vmem:[#allocation2 + $0x30] sm:$0x1]
      %v648 = vsel %vm634, 0, %v647
      %649 = vst [vmem:[#allocation2 + $0x30] sm:$0x1] %v648
      %v650 = vld [vmem:[#allocation2 + $0x3c] sm:$0x1]
      %v651 = vsel %vm634, 0, %v650
      %652 = vst [vmem:[#allocation2 + $0x3c] sm:$0x1] %v651
      %v653 = vld [vmem:[#allocation2 + $0x48] sm:$0x1]
      %v654 = vsel %vm634, 0, %v653
      %655 = vst [vmem:[#allocation2 + $0x48] sm:$0x1] %v654
      %v656 = vld [vmem:[#allocation2 + $0x54] sm:$0x1]
      %v657 = vsel %vm634, 0, %v656
      %658 = vst [vmem:[#allocation2 + $0x54] sm:$0x1] %v657
      %v659 = vld [vmem:[#allocation2 + $0x60] sm:$0x1]
      %v660 = vsel %vm634, 0, %v659
      %661 = vst [vmem:[#allocation2 + $0x60] sm:$0x1] %v660
      %v662 = vld [vmem:[#allocation2 + $0x6c] sm:$0x1]
      %v663 = vsel %vm634, 0, %v662
      %664 = vst [vmem:[#allocation2 + $0x6c] sm:$0x1] %v663
      %vm665 = vsmask.f32 7938
      %vm666 = vmand %vm632, %vm665
      %v667 = vld [vmem:[#allocation2 + $0x8] sm:$0x1]
      %v668 = vsel %vm666, 0, %v667
      %669 = vst [vmem:[#allocation2 + $0x8] sm:$0x1] %v668
      %v670 = vld [vmem:[#allocation2 + $0x14] sm:$0x1]
      %v671 = vsel %vm666, 0, %v670
      %672 = vst [vmem:[#allocation2 + $0x14] sm:$0x1] %v671
      %v673 = vld [vmem:[#allocation2 + $0x20] sm:$0x1]
      %v674 = vsel %vm666, 0, %v673
      %675 = vst [vmem:[#allocation2 + $0x20] sm:$0x1] %v674
      %v676 = vld [vmem:[#allocation2 + $0x2c] sm:$0x1]
      %v677 = vsel %vm666, 0, %v676
      %678 = vst [vmem:[#allocation2 + $0x2c] sm:$0x1] %v677
      %v679 = vld [vmem:[#allocation2 + $0x38] sm:$0x1]
      %v680 = vsel %vm666, 0, %v679
      %681 = vst [vmem:[#allocation2 + $0x38] sm:$0x1] %v680
      %v682 = vld [vmem:[#allocation2 + $0x44] sm:$0x1]
      %v683 = vsel %vm666, 0, %v682
      %684 = vst [vmem:[#allocation2 + $0x44] sm:$0x1] %v683
      %v685 = vld [vmem:[#allocation2 + $0x50] sm:$0x1]
      %v686 = vsel %vm666, 0, %v685
      %687 = vst [vmem:[#allocation2 + $0x50] sm:$0x1] %v686
      %v688 = vld [vmem:[#allocation2 + $0x5c] sm:$0x1]
      %v689 = vsel %vm666, 0, %v688
      %690 = vst [vmem:[#allocation2 + $0x5c] sm:$0x1] %v689
      %v691 = vld [vmem:[#allocation2 + $0x68] sm:$0x1]
      %v692 = vsel %vm666, 0, %v691
      %693 = vst [vmem:[#allocation2 + $0x68] sm:$0x1] %v692
      %v694 = vld [vmem:[#allocation2 + $0x74] sm:$0x1]
      %v695 = vsel %vm666, 0, %v694
      %696 = vst [vmem:[#allocation2 + $0x74] sm:$0x1] %v695
      %v697 = vpack.c.bf16 %v614, %v614
      %v698 = vpack.c.bf16 %v615, %v615
      %vm699 = vsmask.f32 4368
      %vm700 = vmor %vm633, %vm699
      %v702 = vshrl.u32 %v697, 16
      %v704 = vrot.slane %v702, 7
      %v705 = vshll.u32 %v697, 16
      %v707 = vor.u32 %v704, %v705
      %v708 = vrot.slane %v704, 4
      %v710 = vshrl.u32 %v698, 16
      %v712 = vrot.slane %v710, 7
      %v713 = vshll.u32 %v698, 16
      %v715 = vor.u32 %v712, %v713
      %v716 = vsel %vm700, %v708, %v715
      %v717 = vrot.slane %v712, 4
      %vm721 = vcmask 60416
      %vm722 = vmand %vm721, %vm665
      %v723 = vld [vmem:[#allocation2] sm:$0xf]
      %v724 = vsel %vm722, %v707, %v723
      %725 = vst [vmem:[#allocation2] sm:$0xf] %v724
      %vm726 = vcmask 60416
      %727 = vst.msk [vmem:[#allocation2 + $0x4] sm:$0xf] %vm726, %v716
      %v728 = vld [vmem:[#allocation2 + $0x8] sm:$0x1]
      %v729 = vsel %vm634, %v717, %v728
      %730 = vst [vmem:[#allocation2 + $0x8] sm:$0x1] %v729
      %v731 = vpack.c.bf16 %v630, %v630
      %v732 = vpack.c.bf16 %v631, %v631
      %v734 = vshrl.u32 %v731, 16
      %v736 = vrot.slane %v734, 7
      %v737 = vshll.u32 %v731, 16
      %v739 = vor.u32 %v736, %v737
      %v740 = vrot.slane %v736, 4
      %v742 = vshrl.u32 %v732, 16
      %v744 = vrot.slane %v742, 7
      %v745 = vshll.u32 %v732, 16
      %v747 = vor.u32 %v744, %v745
      %v748 = vsel %vm700, %v740, %v747
      %v749 = vrot.slane %v744, 4
      %s753 = scalar_lea.vmem [#allocation2], 108
      %v754 = vld [vmem:[%s753] sm:$0xf]
      %v755 = vsel %vm722, %v739, %v754
      %756 = vst [vmem:[%s753] sm:$0xf] %v755
      %757 = vst.msk [vmem:[%s753 + $0x4] sm:$0xf] %vm726, %v748
      %v758 = vld [vmem:[%s753 + $0x8] sm:$0x1]
      %v759 = vsel %vm634, %v749, %v758
      %760 = vst [vmem:[%s753 + $0x8] sm:$0x1] %v759
      %v761 = vpack.c.bf16 %v584, %v584
      %v762 = vpack.c.bf16 %v585, %v585
      %v763 = vpack.c.bf16 %v586, %v586
      %v764 = vpack.c.bf16 %v587, %v587
      %v765 = vpack.c.bf16 %v588, %v588
      %v766 = vpack.c.bf16 %v589, %v589
      %v767 = vpack.c.bf16 %v590, %v590
      %v768 = vpack.c.bf16 %v591, %v591
      %v769 = vpack.c.bf16 %v592, %v592
      %v770 = vpack.c.bf16 %v593, %v593
      %v771 = vpack.c.bf16 %v594, %v594
      %v772 = vpack.c.bf16 %v595, %v595
      %v773 = vpack.c.bf16 %v596, %v596
      %v774 = vpack.c.bf16 %v597, %v597
      %v775 = vpack.c.bf16 %v598, %v598
      %v776 = vpack.c.bf16 %v599, %v599
      %v778 = vshrl.u32 %v761, 16
      %v780 = vrot.slane %v778, 7
      %v781 = vshll.u32 %v761, 16
      %v783 = vor.u32 %v780, %v781
      %v784 = vrot.slane %v780, 4
      %v786 = vshrl.u32 %v762, 16
      %v788 = vrot.slane %v786, 7
      %v789 = vshll.u32 %v762, 16
      %v791 = vor.u32 %v788, %v789
      %v792 = vsel %vm700, %v784, %v791
      %v793 = vrot.slane %v788, 4
      %v795 = vshrl.u32 %v763, 16
      %v797 = vrot.slane %v795, 7
      %v798 = vshll.u32 %v763, 16
      %v800 = vor.u32 %v797, %v798
      %v801 = vrot.slane %v797, 4
      %v803 = vshrl.u32 %v764, 16
      %v805 = vrot.slane %v803, 7
      %v806 = vshll.u32 %v764, 16
      %v808 = vor.u32 %v805, %v806
      %v809 = vsel %vm700, %v801, %v808
      %v810 = vrot.slane %v805, 4
      %v812 = vshrl.u32 %v765, 16
      %v814 = vrot.slane %v812, 7
      %v815 = vshll.u32 %v765, 16
      %v817 = vor.u32 %v814, %v815
      %v818 = vrot.slane %v814, 4
      %v820 = vshrl.u32 %v766, 16
      %v822 = vrot.slane %v820, 7
      %v823 = vshll.u32 %v766, 16
      %v825 = vor.u32 %v822, %v823
      %v826 = vsel %vm700, %v818, %v825
      %v827 = vrot.slane %v822, 4
      %v829 = vshrl.u32 %v767, 16
      %v831 = vrot.slane %v829, 7
      %v832 = vshll.u32 %v767, 16
      %v834 = vor.u32 %v831, %v832
      %v835 = vrot.slane %v831, 4
      %v837 = vshrl.u32 %v768, 16
      %v839 = vrot.slane %v837, 7
      %v840 = vshll.u32 %v768, 16
      %v842 = vor.u32 %v839, %v840
      %v843 = vsel %vm700, %v835, %v842
      %v844 = vrot.slane %v839, 4
      %v846 = vshrl.u32 %v769, 16
      %v848 = vrot.slane %v846, 7
      %v849 = vshll.u32 %v769, 16
      %v851 = vor.u32 %v848, %v849
      %v852 = vrot.slane %v848, 4
      %v854 = vshrl.u32 %v770, 16
      %v856 = vrot.slane %v854, 7
      %v857 = vshll.u32 %v770, 16
      %v859 = vor.u32 %v856, %v857
      %v860 = vsel %vm700, %v852, %v859
      %v861 = vrot.slane %v856, 4
      %v863 = vshrl.u32 %v771, 16
      %v865 = vrot.slane %v863, 7
      %v866 = vshll.u32 %v771, 16
      %v868 = vor.u32 %v865, %v866
      %v869 = vrot.slane %v865, 4
      %v871 = vshrl.u32 %v772, 16
      %v873 = vrot.slane %v871, 7
      %v874 = vshll.u32 %v772, 16
      %v876 = vor.u32 %v873, %v874
      %v877 = vsel %vm700, %v869, %v876
      %v878 = vrot.slane %v873, 4
      %v880 = vshrl.u32 %v773, 16
      %v882 = vrot.slane %v880, 7
      %v883 = vshll.u32 %v773, 16
      %v885 = vor.u32 %v882, %v883
      %v886 = vrot.slane %v882, 4
      %v888 = vshrl.u32 %v774, 16
      %v890 = vrot.slane %v888, 7
      %v891 = vshll.u32 %v774, 16
      %v893 = vor.u32 %v890, %v891
      %v894 = vsel %vm700, %v886, %v893
      %v895 = vrot.slane %v890, 4
      %v897 = vshrl.u32 %v775, 16
      %v899 = vrot.slane %v897, 7
      %v900 = vshll.u32 %v775, 16
      %v902 = vor.u32 %v899, %v900
      %v903 = vrot.slane %v899, 4
      %v905 = vshrl.u32 %v776, 16
      %v907 = vrot.slane %v905, 7
      %v908 = vshll.u32 %v776, 16
      %v910 = vor.u32 %v907, %v908
      %v911 = vsel %vm700, %v903, %v910
      %v912 = vrot.slane %v907, 4
      %s937 = scalar_lea.vmem [#allocation2], 12
      %v938 = vld [vmem:[%s937] sm:$0xf]
      %v939 = vsel %vm722, %v783, %v938
      %940 = vst [vmem:[%s937] sm:$0xf] %v939
      %941 = vst.msk [vmem:[%s937 + $0x4] sm:$0xf] %vm726, %v792
      %v942 = vld [vmem:[%s937 + $0x8] sm:$0x1]
      %v943 = vsel %vm634, %v793, %v942
      %944 = vst [vmem:[%s937 + $0x8] sm:$0x1] %v943
      %v945 = vld [vmem:[%s937 + $0xc] sm:$0xf]
      %v946 = vsel %vm722, %v800, %v945
      %947 = vst [vmem:[%s937 + $0xc] sm:$0xf] %v946
      %948 = vst.msk [vmem:[%s937 + $0x10] sm:$0xf] %vm726, %v809
      %v949 = vld [vmem:[%s937 + $0x14] sm:$0x1]
      %v950 = vsel %vm634, %v810, %v949
      %951 = vst [vmem:[%s937 + $0x14] sm:$0x1] %v950
      %v952 = vld [vmem:[%s937 + $0x18] sm:$0xf]
      %v953 = vsel %vm722, %v817, %v952
      %954 = vst [vmem:[%s937 + $0x18] sm:$0xf] %v953
      %955 = vst.msk [vmem:[%s937 + $0x1c] sm:$0xf] %vm726, %v826
      %v956 = vld [vmem:[%s937 + $0x20] sm:$0x1]
      %v957 = vsel %vm634, %v827, %v956
      %958 = vst [vmem:[%s937 + $0x20] sm:$0x1] %v957
      %v959 = vld [vmem:[%s937 + $0x24] sm:$0xf]
      %v960 = vsel %vm722, %v834, %v959
      %961 = vst [vmem:[%s937 + $0x24] sm:$0xf] %v960
      %962 = vst.msk [vmem:[%s937 + $0x28] sm:$0xf] %vm726, %v843
      %v963 = vld [vmem:[%s937 + $0x2c] sm:$0x1]
      %v964 = vsel %vm634, %v844, %v963
      %965 = vst [vmem:[%s937 + $0x2c] sm:$0x1] %v964
      %v966 = vld [vmem:[%s937 + $0x30] sm:$0xf]
      %v967 = vsel %vm722, %v851, %v966
      %968 = vst [vmem:[%s937 + $0x30] sm:$0xf] %v967
      %969 = vst.msk [vmem:[%s937 + $0x34] sm:$0xf] %vm726, %v860
      %v970 = vld [vmem:[%s937 + $0x38] sm:$0x1]
      %v971 = vsel %vm634, %v861, %v970
      %972 = vst [vmem:[%s937 + $0x38] sm:$0x1] %v971
      %v973 = vld [vmem:[%s937 + $0x3c] sm:$0xf]
      %v974 = vsel %vm722, %v868, %v973
      %975 = vst [vmem:[%s937 + $0x3c] sm:$0xf] %v974
      %976 = vst.msk [vmem:[%s937 + $0x40] sm:$0xf] %vm726, %v877
      %v977 = vld [vmem:[%s937 + $0x44] sm:$0x1]
      %v978 = vsel %vm634, %v878, %v977
      %979 = vst [vmem:[%s937 + $0x44] sm:$0x1] %v978
      %v980 = vld [vmem:[%s937 + $0x48] sm:$0xf]
      %v981 = vsel %vm722, %v885, %v980
      %982 = vst [vmem:[%s937 + $0x48] sm:$0xf] %v981
      %983 = vst.msk [vmem:[%s937 + $0x4c] sm:$0xf] %vm726, %v894
      %v984 = vld [vmem:[%s937 + $0x50] sm:$0x1]
      %v985 = vsel %vm634, %v895, %v984
      %986 = vst [vmem:[%s937 + $0x50] sm:$0x1] %v985
      %v987 = vld [vmem:[%s937 + $0x54] sm:$0xf]
      %v988 = vsel %vm722, %v902, %v987
      %989 = vst [vmem:[%s937 + $0x54] sm:$0xf] %v988
      %990 = vst.msk [vmem:[%s937 + $0x58] sm:$0xf] %vm726, %v911
      %v991 = vld [vmem:[%s937 + $0x5c] sm:$0x1]
      %v992 = vsel %vm634, %v912, %v991
      %993 = vst [vmem:[%s937 + $0x5c] sm:$0x1] %v992
      %v994 = vld [vmem:[#allocation2] sm:$0xf]
      %v995 = vld [vmem:[#allocation2 + $0x4] sm:$0xf]
      %v996 = vld [vmem:[#allocation2 + $0xc] sm:$0xf]
      %v997 = vld [vmem:[#allocation2 + $0x10] sm:$0xf]
      %v998 = vld [vmem:[#allocation2 + $0x18] sm:$0xf]
      %v999 = vld [vmem:[#allocation2 + $0x1c] sm:$0xf]
      %v1000 = vld [vmem:[#allocation2 + $0x24] sm:$0xf]
      %v1001 = vld [vmem:[#allocation2 + $0x28] sm:$0xf]
      %v1002 = vld [vmem:[#allocation2 + $0x30] sm:$0xf]
      %v1003 = vld [vmem:[#allocation2 + $0x34] sm:$0xf]
      %v1004 = vld [vmem:[#allocation2 + $0x3c] sm:$0xf]
      %v1005 = vld [vmem:[#allocation2 + $0x40] sm:$0xf]
      %v1006 = vld [vmem:[#allocation2 + $0x48] sm:$0xf]
      %v1007 = vld [vmem:[#allocation2 + $0x4c] sm:$0xf]
      %v1008 = vld [vmem:[#allocation2 + $0x54] sm:$0xf]
      %v1009 = vld [vmem:[#allocation2 + $0x58] sm:$0xf]
      %1010 = vst.msk [vmem:[#allocation3] sm:$0xf] %vm726, %v994
      %1011 = vst.msk [vmem:[#allocation3 + $0x4] sm:$0xf] %vm726, %v995
      %1012 = vst.msk [vmem:[#allocation3 + $0x8] sm:$0xf] %vm726, %v996
      %1013 = vst.msk [vmem:[#allocation3 + $0xc] sm:$0xf] %vm726, %v997
      %1014 = vst.msk [vmem:[#allocation3 + $0x10] sm:$0xf] %vm726, %v998
      %1015 = vst.msk [vmem:[#allocation3 + $0x14] sm:$0xf] %vm726, %v999
      %1016 = vst.msk [vmem:[#allocation3 + $0x18] sm:$0xf] %vm726, %v1000
      %1017 = vst.msk [vmem:[#allocation3 + $0x1c] sm:$0xf] %vm726, %v1001
      %1018 = vst.msk [vmem:[#allocation3 + $0x20] sm:$0xf] %vm726, %v1002
      %1019 = vst.msk [vmem:[#allocation3 + $0x24] sm:$0xf] %vm726, %v1003
      %1020 = vst.msk [vmem:[#allocation3 + $0x28] sm:$0xf] %vm726, %v1004
      %1021 = vst.msk [vmem:[#allocation3 + $0x2c] sm:$0xf] %vm726, %v1005
      %1022 = vst.msk [vmem:[#allocation3 + $0x30] sm:$0xf] %vm726, %v1006
      %1023 = vst.msk [vmem:[#allocation3 + $0x34] sm:$0xf] %vm726, %v1007
      %1024 = vst.msk [vmem:[#allocation3 + $0x38] sm:$0xf] %vm726, %v1008
      %1025 = vst.msk [vmem:[#allocation3 + $0x3c] sm:$0xf] %vm726, %v1009
      %v1026 = vld [vmem:[#allocation2] sm:$0xf]
      %v1027 = vld [vmem:[#allocation2 + $0x4] sm:$0xf]
      %v1028 = vld [vmem:[#allocation2 + $0x8] sm:$0x1]
      %v1029 = vld [vmem:[#allocation2 + $0xc] sm:$0xf]
      %v1030 = vld [vmem:[#allocation2 + $0x10] sm:$0xf]
      %v1031 = vld [vmem:[#allocation2 + $0x14] sm:$0x1]
      %v1032 = vld [vmem:[#allocation2 + $0x18] sm:$0xf]
      %v1033 = vld [vmem:[#allocation2 + $0x1c] sm:$0xf]
      %v1034 = vld [vmem:[#allocation2 + $0x20] sm:$0x1]
      %v1035 = vld [vmem:[#allocation2 + $0x24] sm:$0xf]
      %v1036 = vld [vmem:[#allocation2 + $0x28] sm:$0xf]
      %v1037 = vld [vmem:[#allocation2 + $0x2c] sm:$0x1]
      %v1038 = vld [vmem:[#allocation2 + $0x30] sm:$0xf]
      %v1039 = vld [vmem:[#allocation2 + $0x34] sm:$0xf]
      %v1040 = vld [vmem:[#allocation2 + $0x38] sm:$0x1]
      %v1041 = vld [vmem:[#allocation2 + $0x3c] sm:$0xf]
      %v1042 = vld [vmem:[#allocation2 + $0x40] sm:$0xf]
      %v1043 = vld [vmem:[#allocation2 + $0x44] sm:$0x1]
      %v1044 = vld [vmem:[#allocation2 + $0x48] sm:$0xf]
      %v1045 = vld [vmem:[#allocation2 + $0x4c] sm:$0xf]
      %v1046 = vld [vmem:[#allocation2 + $0x50] sm:$0x1]
      %v1047 = vld [vmem:[#allocation2 + $0x54] sm:$0xf]
      %v1048 = vld [vmem:[#allocation2 + $0x58] sm:$0xf]
      %v1049 = vld [vmem:[#allocation2 + $0x5c] sm:$0x1]
      %vm1050 = vsmask.f32 3328
      %vm1051 = vsmask.f32 7440
      %vm1052 = vmor %vm1050, %vm1051
      %v1054 = vshrl.u32 %v1026, 16
      %v1056 = vrot.slane %v1054, 4
      %v1057 = vshll.u32 %v1026, 16
      %v1059 = vrot.slane %v1057, 5
      %v1060 = vor.u32 %v1056, %v1059
      %v1061 = vrot.slane %v1060, 4
      %v1063 = vshll.u32 %v1027, 16
      %v1065 = vrot.slane %v1063, 5
      %v1066 = vsel %vm1052, %v1061, %v1065
      %v1067 = vshrl.u32 %v1027, 16
      %v1069 = vrot.slane %v1067, 4
      %v1070 = vor.u32 %v1069, %v1065
      %v1071 = vrot.slane %v1070, 4
      %v1073 = vshll.u32 %v1028, 16
      %v1075 = vrot.slane %v1073, 5
      %v1076 = vsel %vm1052, %v1071, %v1075
      %v1078 = vshrl.u32 %v1029, 16
      %v1080 = vrot.slane %v1078, 4
      %v1081 = vshll.u32 %v1029, 16
      %v1083 = vrot.slane %v1081, 5
      %v1084 = vor.u32 %v1080, %v1083
      %v1085 = vrot.slane %v1084, 4
      %v1087 = vshll.u32 %v1030, 16
      %v1089 = vrot.slane %v1087, 5
      %v1090 = vsel %vm1052, %v1085, %v1089
      %v1091 = vshrl.u32 %v1030, 16
      %v1093 = vrot.slane %v1091, 4
      %v1094 = vor.u32 %v1093, %v1089
      %v1095 = vrot.slane %v1094, 4
      %v1097 = vshll.u32 %v1031, 16
      %v1099 = vrot.slane %v1097, 5
      %v1100 = vsel %vm1052, %v1095, %v1099
      %v1102 = vshrl.u32 %v1032, 16
      %v1104 = vrot.slane %v1102, 4
      %v1105 = vshll.u32 %v1032, 16
      %v1107 = vrot.slane %v1105, 5
      %v1108 = vor.u32 %v1104, %v1107
      %v1109 = vrot.slane %v1108, 4
      %v1111 = vshll.u32 %v1033, 16
      %v1113 = vrot.slane %v1111, 5
      %v1114 = vsel %vm1052, %v1109, %v1113
      %v1115 = vshrl.u32 %v1033, 16
      %v1117 = vrot.slane %v1115, 4
      %v1118 = vor.u32 %v1117, %v1113
      %v1119 = vrot.slane %v1118, 4
      %v1121 = vshll.u32 %v1034, 16
      %v1123 = vrot.slane %v1121, 5
      %v1124 = vsel %vm1052, %v1119, %v1123
      %v1126 = vshrl.u32 %v1035, 16
      %v1128 = vrot.slane %v1126, 4
      %v1129 = vshll.u32 %v1035, 16
      %v1131 = vrot.slane %v1129, 5
      %v1132 = vor.u32 %v1128, %v1131
      %v1133 = vrot.slane %v1132, 4
      %v1135 = vshll.u32 %v1036, 16
      %v1137 = vrot.slane %v1135, 5
      %v1138 = vsel %vm1052, %v1133, %v1137
      %v1139 = vshrl.u32 %v1036, 16
      %v1141 = vrot.slane %v1139, 4
      %v1142 = vor.u32 %v1141, %v1137
      %v1143 = vrot.slane %v1142, 4
      %v1145 = vshll.u32 %v1037, 16
      %v1147 = vrot.slane %v1145, 5
      %v1148 = vsel %vm1052, %v1143, %v1147
      %v1150 = vshrl.u32 %v1038, 16
      %v1152 = vrot.slane %v1150, 4
      %v1153 = vshll.u32 %v1038, 16
      %v1155 = vrot.slane %v1153, 5
      %v1156 = vor.u32 %v1152, %v1155
      %v1157 = vrot.slane %v1156, 4
      %v1159 = vshll.u32 %v1039, 16
      %v1161 = vrot.slane %v1159, 5
      %v1162 = vsel %vm1052, %v1157, %v1161
      %v1163 = vshrl.u32 %v1039, 16
      %v1165 = vrot.slane %v1163, 4
      %v1166 = vor.u32 %v1165, %v1161
      %v1167 = vrot.slane %v1166, 4
      %v1169 = vshll.u32 %v1040, 16
      %v1171 = vrot.slane %v1169, 5
      %v1172 = vsel %vm1052, %v1167, %v1171
      %v1174 = vshrl.u32 %v1041, 16
      %v1176 = vrot.slane %v1174, 4
      %v1177 = vshll.u32 %v1041, 16
      %v1179 = vrot.slane %v1177, 5
      %v1180 = vor.u32 %v1176, %v1179
      %v1181 = vrot.slane %v1180, 4
      %v1183 = vshll.u32 %v1042, 16
      %v1185 = vrot.slane %v1183, 5
      %v1186 = vsel %vm1052, %v1181, %v1185
      %v1187 = vshrl.u32 %v1042, 16
      %v1189 = vrot.slane %v1187, 4
      %v1190 = vor.u32 %v1189, %v1185
      %v1191 = vrot.slane %v1190, 4
      %v1193 = vshll.u32 %v1043, 16
      %v1195 = vrot.slane %v1193, 5
      %v1196 = vsel %vm1052, %v1191, %v1195
      %v1198 = vshrl.u32 %v1044, 16
      %v1200 = vrot.slane %v1198, 4
      %v1201 = vshll.u32 %v1044, 16
      %v1203 = vrot.slane %v1201, 5
      %v1204 = vor.u32 %v1200, %v1203
      %v1205 = vrot.slane %v1204, 4
      %v1207 = vshll.u32 %v1045, 16
      %v1209 = vrot.slane %v1207, 5
      %v1210 = vsel %vm1052, %v1205, %v1209
      %v1211 = vshrl.u32 %v1045, 16
      %v1213 = vrot.slane %v1211, 4
      %v1214 = vor.u32 %v1213, %v1209
      %v1215 = vrot.slane %v1214, 4
      %v1217 = vshll.u32 %v1046, 16
      %v1219 = vrot.slane %v1217, 5
      %v1220 = vsel %vm1052, %v1215, %v1219
      %v1222 = vshrl.u32 %v1047, 16
      %v1224 = vrot.slane %v1222, 4
      %v1225 = vshll.u32 %v1047, 16
      %v1227 = vrot.slane %v1225, 5
      %v1228 = vor.u32 %v1224, %v1227
      %v1229 = vrot.slane %v1228, 4
      %v1231 = vshll.u32 %v1048, 16
      %v1233 = vrot.slane %v1231, 5
      %v1234 = vsel %vm1052, %v1229, %v1233
      %v1235 = vshrl.u32 %v1048, 16
      %v1237 = vrot.slane %v1235, 4
      %v1238 = vor.u32 %v1237, %v1233
      %v1239 = vrot.slane %v1238, 4
      %v1241 = vshll.u32 %v1049, 16
      %v1243 = vrot.slane %v1241, 5
      %v1244 = vsel %vm1052, %v1239, %v1243
      %1245 = vrot.lane.b32.xlu0 %v1066, 8
      %v1246 = vpop.permute.xlu0 %1245
      %1247 = vrot.lane.b32.xlu0 %v1076, 8
      %v1248 = vpop.permute.xlu0 %1247
      %1249 = vrot.lane.b32.xlu0 %v1090, 8
      %v1250 = vpop.permute.xlu0 %1249
      %1251 = vrot.lane.b32.xlu0 %v1100, 8
      %v1252 = vpop.permute.xlu0 %1251
      %1253 = vrot.lane.b32.xlu0 %v1114, 8
      %v1254 = vpop.permute.xlu0 %1253
      %1255 = vrot.lane.b32.xlu0 %v1124, 8
      %v1256 = vpop.permute.xlu0 %1255
      %1257 = vrot.lane.b32.xlu0 %v1138, 8
      %v1258 = vpop.permute.xlu0 %1257
      %1259 = vrot.lane.b32.xlu0 %v1148, 8
      %v1260 = vpop.permute.xlu0 %1259
      %1261 = vrot.lane.b32.xlu0 %v1162, 8
      %v1262 = vpop.permute.xlu0 %1261
      %1263 = vrot.lane.b32.xlu0 %v1172, 8
      %v1264 = vpop.permute.xlu0 %1263
      %1265 = vrot.lane.b32.xlu0 %v1186, 8
      %v1266 = vpop.permute.xlu0 %1265
      %1267 = vrot.lane.b32.xlu0 %v1196, 8
      %v1268 = vpop.permute.xlu0 %1267
      %1269 = vrot.lane.b32.xlu0 %v1210, 8
      %v1270 = vpop.permute.xlu0 %1269
      %1271 = vrot.lane.b32.xlu0 %v1220, 8
      %v1272 = vpop.permute.xlu0 %1271
      %1273 = vrot.lane.b32.xlu0 %v1234, 8
      %v1274 = vpop.permute.xlu0 %1273
      %1275 = vrot.lane.b32.xlu0 %v1244, 8
      %v1276 = vpop.permute.xlu0 %1275
      %vm1293 = vcmask 126016
      %1294 = vst.msk [vmem:[#allocation3] sm:$0xf] %vm1293, %v1246
      %1295 = vst.msk [vmem:[#allocation3 + $0x4] sm:$0xf] %vm1293, %v1248
      %1296 = vst.msk [vmem:[#allocation3 + $0x8] sm:$0xf] %vm1293, %v1250
      %1297 = vst.msk [vmem:[#allocation3 + $0xc] sm:$0xf] %vm1293, %v1252
      %1298 = vst.msk [vmem:[#allocation3 + $0x10] sm:$0xf] %vm1293, %v1254
      %1299 = vst.msk [vmem:[#allocation3 + $0x14] sm:$0xf] %vm1293, %v1256
      %1300 = vst.msk [vmem:[#allocation3 + $0x18] sm:$0xf] %vm1293, %v1258
      %1301 = vst.msk [vmem:[#allocation3 + $0x1c] sm:$0xf] %vm1293, %v1260
      %1302 = vst.msk [vmem:[#allocation3 + $0x20] sm:$0xf] %vm1293, %v1262
      %1303 = vst.msk [vmem:[#allocation3 + $0x24] sm:$0xf] %vm1293, %v1264
      %1304 = vst.msk [vmem:[#allocation3 + $0x28] sm:$0xf] %vm1293, %v1266
      %1305 = vst.msk [vmem:[#allocation3 + $0x2c] sm:$0xf] %vm1293, %v1268
      %1306 = vst.msk [vmem:[#allocation3 + $0x30] sm:$0xf] %vm1293, %v1270
      %1307 = vst.msk [vmem:[#allocation3 + $0x34] sm:$0xf] %vm1293, %v1272
      %1308 = vst.msk [vmem:[#allocation3 + $0x38] sm:$0xf] %vm1293, %v1274
      %1309 = vst.msk [vmem:[#allocation3 + $0x3c] sm:$0xf] %vm1293, %v1276
      %v1310 = vld [vmem:[#allocation2] sm:$0xe]
      %v1311 = vld [vmem:[#allocation2 + $0x4] sm:$0xf]
      %v1312 = vld [vmem:[#allocation2 + $0x8] sm:$0x1]
      %v1313 = vld [vmem:[#allocation2 + $0xc] sm:$0xe]
      %v1314 = vld [vmem:[#allocation2 + $0x10] sm:$0xf]
      %v1315 = vld [vmem:[#allocation2 + $0x14] sm:$0x1]
      %v1316 = vld [vmem:[#allocation2 + $0x18] sm:$0xe]
      %v1317 = vld [vmem:[#allocation2 + $0x1c] sm:$0xf]
      %v1318 = vld [vmem:[#allocation2 + $0x20] sm:$0x1]
      %v1319 = vld [vmem:[#allocation2 + $0x24] sm:$0xe]
      %v1320 = vld [vmem:[#allocation2 + $0x28] sm:$0xf]
      %v1321 = vld [vmem:[#allocation2 + $0x2c] sm:$0x1]
      %v1322 = vld [vmem:[#allocation2 + $0x30] sm:$0xe]
      %v1323 = vld [vmem:[#allocation2 + $0x34] sm:$0xf]
      %v1324 = vld [vmem:[#allocation2 + $0x38] sm:$0x1]
      %v1325 = vld [vmem:[#allocation2 + $0x3c] sm:$0xe]
      %v1326 = vld [vmem:[#allocation2 + $0x40] sm:$0xf]
      %v1327 = vld [vmem:[#allocation2 + $0x44] sm:$0x1]
      %v1328 = vld [vmem:[#allocation2 + $0x48] sm:$0xe]
      %v1329 = vld [vmem:[#allocation2 + $0x4c] sm:$0xf]
      %v1330 = vld [vmem:[#allocation2 + $0x50] sm:$0x1]
      %v1331 = vld [vmem:[#allocation2 + $0x54] sm:$0xe]
      %v1332 = vld [vmem:[#allocation2 + $0x58] sm:$0xf]
      %v1333 = vld [vmem:[#allocation2 + $0x5c] sm:$0x1]
      %vm1358 = vcmask 1042432
      %vm1359 = vcmask 1046532
      %vm1360 = vmor %vm1358, %vm1359
      %v1361 = vrot.slane %v1310, 5
      %v1362 = vrot.slane %v1361, 4
      %v1363 = vrot.slane %v1311, 5
      %v1364 = vsel %vm1360, %v1362, %v1363
      %v1365 = vrot.slane %v1363, 4
      %v1366 = vrot.slane %v1312, 5
      %v1367 = vsel %vm1360, %v1365, %v1366
      %v1368 = vrot.slane %v1313, 5
      %v1369 = vrot.slane %v1368, 4
      %v1370 = vrot.slane %v1314, 5
      %v1371 = vsel %vm1360, %v1369, %v1370
      %v1372 = vrot.slane %v1370, 4
      %v1373 = vrot.slane %v1315, 5
      %v1374 = vsel %vm1360, %v1372, %v1373
      %v1375 = vrot.slane %v1316, 5
      %v1376 = vrot.slane %v1375, 4
      %v1377 = vrot.slane %v1317, 5
      %v1378 = vsel %vm1360, %v1376, %v1377
      %v1379 = vrot.slane %v1377, 4
      %v1380 = vrot.slane %v1318, 5
      %v1381 = vsel %vm1360, %v1379, %v1380
      %v1382 = vrot.slane %v1319, 5
      %v1383 = vrot.slane %v1382, 4
      %v1384 = vrot.slane %v1320, 5
      %v1385 = vsel %vm1360, %v1383, %v1384
      %v1386 = vrot.slane %v1384, 4
      %v1387 = vrot.slane %v1321, 5
      %v1388 = vsel %vm1360, %v1386, %v1387
      %v1389 = vrot.slane %v1322, 5
      %v1390 = vrot.slane %v1389, 4
      %v1391 = vrot.slane %v1323, 5
      %v1392 = vsel %vm1360, %v1390, %v1391
      %v1393 = vrot.slane %v1391, 4
      %v1394 = vrot.slane %v1324, 5
      %v1395 = vsel %vm1360, %v1393, %v1394
      %v1396 = vrot.slane %v1325, 5
      %v1397 = vrot.slane %v1396, 4
      %v1398 = vrot.slane %v1326, 5
      %v1399 = vsel %vm1360, %v1397, %v1398
      %v1400 = vrot.slane %v1398, 4
      %v1401 = vrot.slane %v1327, 5
      %v1402 = vsel %vm1360, %v1400, %v1401
      %v1403 = vrot.slane %v1328, 5
      %v1404 = vrot.slane %v1403, 4
      %v1405 = vrot.slane %v1329, 5
      %v1406 = vsel %vm1360, %v1404, %v1405
      %v1407 = vrot.slane %v1405, 4
      %v1408 = vrot.slane %v1330, 5
      %v1409 = vsel %vm1360, %v1407, %v1408
      %v1410 = vrot.slane %v1331, 5
      %v1411 = vrot.slane %v1410, 4
      %v1412 = vrot.slane %v1332, 5
      %v1413 = vsel %vm1360, %v1411, %v1412
      %v1414 = vrot.slane %v1412, 4
      %v1415 = vrot.slane %v1333, 5
      %v1416 = vsel %vm1360, %v1414, %v1415
      %1417 = vrot.lane.b32.xlu0 %v1364, 16
      %v1418 = vpop.permute.xlu0 %1417
      %1419 = vrot.lane.b32.xlu0 %v1367, 16
      %v1420 = vpop.permute.xlu0 %1419
      %1421 = vrot.lane.b32.xlu0 %v1371, 16
      %v1422 = vpop.permute.xlu0 %1421
      %1423 = vrot.lane.b32.xlu0 %v1374, 16
      %v1424 = vpop.permute.xlu0 %1423
      %1425 = vrot.lane.b32.xlu0 %v1378, 16
      %v1426 = vpop.permute.xlu0 %1425
      %1427 = vrot.lane.b32.xlu0 %v1381, 16
      %v1428 = vpop.permute.xlu0 %1427
      %1429 = vrot.lane.b32.xlu0 %v1385, 16
      %v1430 = vpop.permute.xlu0 %1429
      %1431 = vrot.lane.b32.xlu0 %v1388, 16
      %v1432 = vpop.permute.xlu0 %1431
      %1433 = vrot.lane.b32.xlu0 %v1392, 16
      %v1434 = vpop.permute.xlu0 %1433
      %1435 = vrot.lane.b32.xlu0 %v1395, 16
      %v1436 = vpop.permute.xlu0 %1435
      %1437 = vrot.lane.b32.xlu0 %v1399, 16
      %v1438 = vpop.permute.xlu0 %1437
      %1439 = vrot.lane.b32.xlu0 %v1402, 16
      %v1440 = vpop.permute.xlu0 %1439
      %1441 = vrot.lane.b32.xlu0 %v1406, 16
      %v1442 = vpop.permute.xlu0 %1441
      %1443 = vrot.lane.b32.xlu0 %v1409, 16
      %v1444 = vpop.permute.xlu0 %1443
      %1445 = vrot.lane.b32.xlu0 %v1413, 16
      %v1446 = vpop.permute.xlu0 %1445
      %1447 = vrot.lane.b32.xlu0 %v1416, 16
      %v1448 = vpop.permute.xlu0 %1447
      %vm1465 = vcmask 191616
      %1466 = vst.msk [vmem:[#allocation3] sm:$0xf] %vm1465, %v1418
      %1467 = vst.msk [vmem:[#allocation3 + $0x4] sm:$0xf] %vm1465, %v1420
      %1468 = vst.msk [vmem:[#allocation3 + $0x8] sm:$0xf] %vm1465, %v1422
      %1469 = vst.msk [vmem:[#allocation3 + $0xc] sm:$0xf] %vm1465, %v1424
      %1470 = vst.msk [vmem:[#allocation3 + $0x10] sm:$0xf] %vm1465, %v1426
      %1471 = vst.msk [vmem:[#allocation3 + $0x14] sm:$0xf] %vm1465, %v1428
      %1472 = vst.msk [vmem:[#allocation3 + $0x18] sm:$0xf] %vm1465, %v1430
      %1473 = vst.msk [vmem:[#allocation3 + $0x1c] sm:$0xf] %vm1465, %v1432
      %1474 = vst.msk [vmem:[#allocation3 + $0x20] sm:$0xf] %vm1465, %v1434
      %1475 = vst.msk [vmem:[#allocation3 + $0x24] sm:$0xf] %vm1465, %v1436
      %1476 = vst.msk [vmem:[#allocation3 + $0x28] sm:$0xf] %vm1465, %v1438
      %1477 = vst.msk [vmem:[#allocation3 + $0x2c] sm:$0xf] %vm1465, %v1440
      %1478 = vst.msk [vmem:[#allocation3 + $0x30] sm:$0xf] %vm1465, %v1442
      %1479 = vst.msk [vmem:[#allocation3 + $0x34] sm:$0xf] %vm1465, %v1444
      %1480 = vst.msk [vmem:[#allocation3 + $0x38] sm:$0xf] %vm1465, %v1446
      %1481 = vst.msk [vmem:[#allocation3 + $0x3c] sm:$0xf] %vm1465, %v1448
      %v1482 = vld [vmem:[%s937] sm:$0xf]
      %v1483 = vld [vmem:[%s937 + $0x4] sm:$0xf]
      %v1484 = vld [vmem:[%s937 + $0xc] sm:$0xf]
      %v1485 = vld [vmem:[%s937 + $0x10] sm:$0xf]
      %v1486 = vld [vmem:[%s937 + $0x18] sm:$0xf]
      %v1487 = vld [vmem:[%s937 + $0x1c] sm:$0xf]
      %v1488 = vld [vmem:[%s937 + $0x24] sm:$0xf]
      %v1489 = vld [vmem:[%s937 + $0x28] sm:$0xf]
      %v1490 = vld [vmem:[%s937 + $0x30] sm:$0xf]
      %v1491 = vld [vmem:[%s937 + $0x34] sm:$0xf]
      %v1492 = vld [vmem:[%s937 + $0x3c] sm:$0xf]
      %v1493 = vld [vmem:[%s937 + $0x40] sm:$0xf]
      %v1494 = vld [vmem:[%s937 + $0x48] sm:$0xf]
      %v1495 = vld [vmem:[%s937 + $0x4c] sm:$0xf]
      %v1496 = vld [vmem:[%s937 + $0x54] sm:$0xf]
      %v1497 = vld [vmem:[%s937 + $0x58] sm:$0xf]
      %1514 = vrot.lane.b32.xlu0 %v1482, 24
      %v1515 = vpop.permute.xlu0 %1514
      %1516 = vrot.lane.b32.xlu0 %v1483, 24
      %v1517 = vpop.permute.xlu0 %1516
      %1518 = vrot.lane.b32.xlu0 %v1484, 24
      %v1519 = vpop.permute.xlu0 %1518
      %1520 = vrot.lane.b32.xlu0 %v1485, 24
      %v1521 = vpop.permute.xlu0 %1520
      %1522 = vrot.lane.b32.xlu0 %v1486, 24
      %v1523 = vpop.permute.xlu0 %1522
      %1524 = vrot.lane.b32.xlu0 %v1487, 24
      %v1525 = vpop.permute.xlu0 %1524
      %1526 = vrot.lane.b32.xlu0 %v1488, 24
      %v1527 = vpop.permute.xlu0 %1526
      %1528 = vrot.lane.b32.xlu0 %v1489, 24
      %v1529 = vpop.permute.xlu0 %1528
      %1530 = vrot.lane.b32.xlu0 %v1490, 24
      %v1531 = vpop.permute.xlu0 %1530
      %1532 = vrot.lane.b32.xlu0 %v1491, 24
      %v1533 = vpop.permute.xlu0 %1532
      %1534 = vrot.lane.b32.xlu0 %v1492, 24
      %v1535 = vpop.permute.xlu0 %1534
      %1536 = vrot.lane.b32.xlu0 %v1493, 24
      %v1537 = vpop.permute.xlu0 %1536
      %1538 = vrot.lane.b32.xlu0 %v1494, 24
      %v1539 = vpop.permute.xlu0 %1538
      %1540 = vrot.lane.b32.xlu0 %v1495, 24
      %v1541 = vpop.permute.xlu0 %1540
      %1542 = vrot.lane.b32.xlu0 %v1496, 24
      %v1543 = vpop.permute.xlu0 %1542
      %1544 = vrot.lane.b32.xlu0 %v1497, 24
      %v1545 = vpop.permute.xlu0 %1544
      %vm1562 = vcmask 257216
      %1563 = vst.msk [vmem:[#allocation3] sm:$0xf] %vm1562, %v1515
      %1564 = vst.msk [vmem:[#allocation3 + $0x4] sm:$0xf] %vm1562, %v1517
      %1565 = vst.msk [vmem:[#allocation3 + $0x8] sm:$0xf] %vm1562, %v1519
      %1566 = vst.msk [vmem:[#allocation3 + $0xc] sm:$0xf] %vm1562, %v1521
      %1567 = vst.msk [vmem:[#allocation3 + $0x10] sm:$0xf] %vm1562, %v1523
      %1568 = vst.msk [vmem:[#allocation3 + $0x14] sm:$0xf] %vm1562, %v1525
      %1569 = vst.msk [vmem:[#allocation3 + $0x18] sm:$0xf] %vm1562, %v1527
      %1570 = vst.msk [vmem:[#allocation3 + $0x1c] sm:$0xf] %vm1562, %v1529
      %1571 = vst.msk [vmem:[#allocation3 + $0x20] sm:$0xf] %vm1562, %v1531
      %1572 = vst.msk [vmem:[#allocation3 + $0x24] sm:$0xf] %vm1562, %v1533
      %1573 = vst.msk [vmem:[#allocation3 + $0x28] sm:$0xf] %vm1562, %v1535
      %1574 = vst.msk [vmem:[#allocation3 + $0x2c] sm:$0xf] %vm1562, %v1537
      %1575 = vst.msk [vmem:[#allocation3 + $0x30] sm:$0xf] %vm1562, %v1539
      %1576 = vst.msk [vmem:[#allocation3 + $0x34] sm:$0xf] %vm1562, %v1541
      %1577 = vst.msk [vmem:[#allocation3 + $0x38] sm:$0xf] %vm1562, %v1543
      %1578 = vst.msk [vmem:[#allocation3 + $0x3c] sm:$0xf] %vm1562, %v1545
      %v1579 = vld [vmem:[%s937] sm:$0xf]
      %v1580 = vld [vmem:[%s937 + $0x4] sm:$0xf]
      %v1581 = vld [vmem:[%s937 + $0x8] sm:$0x1]
      %v1582 = vld [vmem:[%s937 + $0xc] sm:$0xf]
      %v1583 = vld [vmem:[%s937 + $0x10] sm:$0xf]
      %v1584 = vld [vmem:[%s937 + $0x14] sm:$0x1]
      %v1585 = vld [vmem:[%s937 + $0x18] sm:$0xf]
      %v1586 = vld [vmem:[%s937 + $0x1c] sm:$0xf]
      %v1587 = vld [vmem:[%s937 + $0x20] sm:$0x1]
      %v1588 = vld [vmem:[%s937 + $0x24] sm:$0xf]
      %v1589 = vld [vmem:[%s937 + $0x28] sm:$0xf]
      %v1590 = vld [vmem:[%s937 + $0x2c] sm:$0x1]
      %v1591 = vld [vmem:[%s937 + $0x30] sm:$0xf]
      %v1592 = vld [vmem:[%s937 + $0x34] sm:$0xf]
      %v1593 = vld [vmem:[%s937 + $0x38] sm:$0x1]
      %v1594 = vld [vmem:[%s937 + $0x3c] sm:$0xf]
      %v1595 = vld [vmem:[%s937 + $0x40] sm:$0xf]
      %v1596 = vld [vmem:[%s937 + $0x44] sm:$0x1]
      %v1597 = vld [vmem:[%s937 + $0x48] sm:$0xf]
      %v1598 = vld [vmem:[%s937 + $0x4c] sm:$0xf]
      %v1599 = vld [vmem:[%s937 + $0x50] sm:$0x1]
      %v1600 = vld [vmem:[%s937 + $0x54] sm:$0xf]
      %v1601 = vld [vmem:[%s937 + $0x58] sm:$0xf]
      %v1602 = vld [vmem:[%s937 + $0x5c] sm:$0x1]
      %v1604 = vshrl.u32 %v1579, 16
      %v1606 = vrot.slane %v1604, 4
      %v1607 = vshll.u32 %v1579, 16
      %v1609 = vrot.slane %v1607, 5
      %v1610 = vor.u32 %v1606, %v1609
      %v1611 = vrot.slane %v1610, 4
      %v1613 = vshll.u32 %v1580, 16
      %v1615 = vrot.slane %v1613, 5
      %v1616 = vsel %vm1052, %v1611, %v1615
      %v1617 = vshrl.u32 %v1580, 16
      %v1619 = vrot.slane %v1617, 4
      %v1620 = vor.u32 %v1619, %v1615
      %v1621 = vrot.slane %v1620, 4
      %v1623 = vshll.u32 %v1581, 16
      %v1625 = vrot.slane %v1623, 5
      %v1626 = vsel %vm1052, %v1621, %v1625
      %v1628 = vshrl.u32 %v1582, 16
      %v1630 = vrot.slane %v1628, 4
      %v1631 = vshll.u32 %v1582, 16
      %v1633 = vrot.slane %v1631, 5
      %v1634 = vor.u32 %v1630, %v1633
      %v1635 = vrot.slane %v1634, 4
      %v1637 = vshll.u32 %v1583, 16
      %v1639 = vrot.slane %v1637, 5
      %v1640 = vsel %vm1052, %v1635, %v1639
      %v1641 = vshrl.u32 %v1583, 16
      %v1643 = vrot.slane %v1641, 4
      %v1644 = vor.u32 %v1643, %v1639
      %v1645 = vrot.slane %v1644, 4
      %v1647 = vshll.u32 %v1584, 16
      %v1649 = vrot.slane %v1647, 5
      %v1650 = vsel %vm1052, %v1645, %v1649
      %v1652 = vshrl.u32 %v1585, 16
      %v1654 = vrot.slane %v1652, 4
      %v1655 = vshll.u32 %v1585, 16
      %v1657 = vrot.slane %v1655, 5
      %v1658 = vor.u32 %v1654, %v1657
      %v1659 = vrot.slane %v1658, 4
      %v1661 = vshll.u32 %v1586, 16
      %v1663 = vrot.slane %v1661, 5
      %v1664 = vsel %vm1052, %v1659, %v1663
      %v1665 = vshrl.u32 %v1586, 16
      %v1667 = vrot.slane %v1665, 4
      %v1668 = vor.u32 %v1667, %v1663
      %v1669 = vrot.slane %v1668, 4
      %v1671 = vshll.u32 %v1587, 16
      %v1673 = vrot.slane %v1671, 5
      %v1674 = vsel %vm1052, %v1669, %v1673
      %v1676 = vshrl.u32 %v1588, 16
      %v1678 = vrot.slane %v1676, 4
      %v1679 = vshll.u32 %v1588, 16
      %v1681 = vrot.slane %v1679, 5
      %v1682 = vor.u32 %v1678, %v1681
      %v1683 = vrot.slane %v1682, 4
      %v1685 = vshll.u32 %v1589, 16
      %v1687 = vrot.slane %v1685, 5
      %v1688 = vsel %vm1052, %v1683, %v1687
      %v1689 = vshrl.u32 %v1589, 16
      %v1691 = vrot.slane %v1689, 4
      %v1692 = vor.u32 %v1691, %v1687
      %v1693 = vrot.slane %v1692, 4
      %v1695 = vshll.u32 %v1590, 16
      %v1697 = vrot.slane %v1695, 5
      %v1698 = vsel %vm1052, %v1693, %v1697
      %v1700 = vshrl.u32 %v1591, 16
      %v1702 = vrot.slane %v1700, 4
      %v1703 = vshll.u32 %v1591, 16
      %v1705 = vrot.slane %v1703, 5
      %v1706 = vor.u32 %v1702, %v1705
      %v1707 = vrot.slane %v1706, 4
      %v1709 = vshll.u32 %v1592, 16
      %v1711 = vrot.slane %v1709, 5
      %v1712 = vsel %vm1052, %v1707, %v1711
      %v1713 = vshrl.u32 %v1592, 16
      %v1715 = vrot.slane %v1713, 4
      %v1716 = vor.u32 %v1715, %v1711
      %v1717 = vrot.slane %v1716, 4
      %v1719 = vshll.u32 %v1593, 16
      %v1721 = vrot.slane %v1719, 5
      %v1722 = vsel %vm1052, %v1717, %v1721
      %v1724 = vshrl.u32 %v1594, 16
      %v1726 = vrot.slane %v1724, 4
      %v1727 = vshll.u32 %v1594, 16
      %v1729 = vrot.slane %v1727, 5
      %v1730 = vor.u32 %v1726, %v1729
      %v1731 = vrot.slane %v1730, 4
      %v1733 = vshll.u32 %v1595, 16
      %v1735 = vrot.slane %v1733, 5
      %v1736 = vsel %vm1052, %v1731, %v1735
      %v1737 = vshrl.u32 %v1595, 16
      %v1739 = vrot.slane %v1737, 4
      %v1740 = vor.u32 %v1739, %v1735
      %v1741 = vrot.slane %v1740, 4
      %v1743 = vshll.u32 %v1596, 16
      %v1745 = vrot.slane %v1743, 5
      %v1746 = vsel %vm1052, %v1741, %v1745
      %v1748 = vshrl.u32 %v1597, 16
      %v1750 = vrot.slane %v1748, 4
      %v1751 = vshll.u32 %v1597, 16
      %v1753 = vrot.slane %v1751, 5
      %v1754 = vor.u32 %v1750, %v1753
      %v1755 = vrot.slane %v1754, 4
      %v1757 = vshll.u32 %v1598, 16
      %v1759 = vrot.slane %v1757, 5
      %v1760 = vsel %vm1052, %v1755, %v1759
      %v1761 = vshrl.u32 %v1598, 16
      %v1763 = vrot.slane %v1761, 4
      %v1764 = vor.u32 %v1763, %v1759
      %v1765 = vrot.slane %v1764, 4
      %v1767 = vshll.u32 %v1599, 16
      %v1769 = vrot.slane %v1767, 5
      %v1770 = vsel %vm1052, %v1765, %v1769
      %v1772 = vshrl.u32 %v1600, 16
      %v1774 = vrot.slane %v1772, 4
      %v1775 = vshll.u32 %v1600, 16
      %v1777 = vrot.slane %v1775, 5
      %v1778 = vor.u32 %v1774, %v1777
      %v1779 = vrot.slane %v1778, 4
      %v1781 = vshll.u32 %v1601, 16
      %v1783 = vrot.slane %v1781, 5
      %v1784 = vsel %vm1052, %v1779, %v1783
      %v1785 = vshrl.u32 %v1601, 16
      %v1787 = vrot.slane %v1785, 4
      %v1788 = vor.u32 %v1787, %v1783
      %v1789 = vrot.slane %v1788, 4
      %v1791 = vshll.u32 %v1602, 16
      %v1793 = vrot.slane %v1791, 5
      %v1794 = vsel %vm1052, %v1789, %v1793
      %1795 = vrot.lane.b32.xlu0 %v1616, 32
      %v1796 = vpop.permute.xlu0 %1795
      %1797 = vrot.lane.b32.xlu0 %v1626, 32
      %v1798 = vpop.permute.xlu0 %1797
      %1799 = vrot.lane.b32.xlu0 %v1640, 32
      %v1800 = vpop.permute.xlu0 %1799
      %1801 = vrot.lane.b32.xlu0 %v1650, 32
      %v1802 = vpop.permute.xlu0 %1801
      %1803 = vrot.lane.b32.xlu0 %v1664, 32
      %v1804 = vpop.permute.xlu0 %1803
      %1805 = vrot.lane.b32.xlu0 %v1674, 32
      %v1806 = vpop.permute.xlu0 %1805
      %1807 = vrot.lane.b32.xlu0 %v1688, 32
      %v1808 = vpop.permute.xlu0 %1807
      %1809 = vrot.lane.b32.xlu0 %v1698, 32
      %v1810 = vpop.permute.xlu0 %1809
      %1811 = vrot.lane.b32.xlu0 %v1712, 32
      %v1812 = vpop.permute.xlu0 %1811
      %1813 = vrot.lane.b32.xlu0 %v1722, 32
      %v1814 = vpop.permute.xlu0 %1813
      %1815 = vrot.lane.b32.xlu0 %v1736, 32
      %v1816 = vpop.permute.xlu0 %1815
      %1817 = vrot.lane.b32.xlu0 %v1746, 32
      %v1818 = vpop.permute.xlu0 %1817
      %1819 = vrot.lane.b32.xlu0 %v1760, 32
      %v1820 = vpop.permute.xlu0 %1819
      %1821 = vrot.lane.b32.xlu0 %v1770, 32
      %v1822 = vpop.permute.xlu0 %1821
      %1823 = vrot.lane.b32.xlu0 %v1784, 32
      %v1824 = vpop.permute.xlu0 %1823
      %1825 = vrot.lane.b32.xlu0 %v1794, 32
      %v1826 = vpop.permute.xlu0 %1825
      %vm1843 = vcmask 322816
      %1844 = vst.msk [vmem:[#allocation3] sm:$0xf] %vm1843, %v1796
      %1845 = vst.msk [vmem:[#allocation3 + $0x4] sm:$0xf] %vm1843, %v1798
      %1846 = vst.msk [vmem:[#allocation3 + $0x8] sm:$0xf] %vm1843, %v1800
      %1847 = vst.msk [vmem:[#allocation3 + $0xc] sm:$0xf] %vm1843, %v1802
      %1848 = vst.msk [vmem:[#allocation3 + $0x10] sm:$0xf] %vm1843, %v1804
      %1849 = vst.msk [vmem:[#allocation3 + $0x14] sm:$0xf] %vm1843, %v1806
      %1850 = vst.msk [vmem:[#allocation3 + $0x18] sm:$0xf] %vm1843, %v1808
      %1851 = vst.msk [vmem:[#allocation3 + $0x1c] sm:$0xf] %vm1843, %v1810
      %1852 = vst.msk [vmem:[#allocation3 + $0x20] sm:$0xf] %vm1843, %v1812
      %1853 = vst.msk [vmem:[#allocation3 + $0x24] sm:$0xf] %vm1843, %v1814
      %1854 = vst.msk [vmem:[#allocation3 + $0x28] sm:$0xf] %vm1843, %v1816
      %1855 = vst.msk [vmem:[#allocation3 + $0x2c] sm:$0xf] %vm1843, %v1818
      %1856 = vst.msk [vmem:[#allocation3 + $0x30] sm:$0xf] %vm1843, %v1820
      %1857 = vst.msk [vmem:[#allocation3 + $0x34] sm:$0xf] %vm1843, %v1822
      %1858 = vst.msk [vmem:[#allocation3 + $0x38] sm:$0xf] %vm1843, %v1824
      %1859 = vst.msk [vmem:[#allocation3 + $0x3c] sm:$0xf] %vm1843, %v1826
      %v1860 = vld [vmem:[%s937] sm:$0xe]
      %v1861 = vld [vmem:[%s937 + $0x4] sm:$0xf]
      %v1862 = vld [vmem:[%s937 + $0x8] sm:$0x1]
      %v1863 = vld [vmem:[%s937 + $0xc] sm:$0xe]
      %v1864 = vld [vmem:[%s937 + $0x10] sm:$0xf]
      %v1865 = vld [vmem:[%s937 + $0x14] sm:$0x1]
      %v1866 = vld [vmem:[%s937 + $0x18] sm:$0xe]
      %v1867 = vld [vmem:[%s937 + $0x1c] sm:$0xf]
      %v1868 = vld [vmem:[%s937 + $0x20] sm:$0x1]
      %v1869 = vld [vmem:[%s937 + $0x24] sm:$0xe]
      %v1870 = vld [vmem:[%s937 + $0x28] sm:$0xf]
      %v1871 = vld [vmem:[%s937 + $0x2c] sm:$0x1]
      %v1872 = vld [vmem:[%s937 + $0x30] sm:$0xe]
      %v1873 = vld [vmem:[%s937 + $0x34] sm:$0xf]
      %v1874 = vld [vmem:[%s937 + $0x38] sm:$0x1]
      %v1875 = vld [vmem:[%s937 + $0x3c] sm:$0xe]
      %v1876 = vld [vmem:[%s937 + $0x40] sm:$0xf]
      %v1877 = vld [vmem:[%s937 + $0x44] sm:$0x1]
      %v1878 = vld [vmem:[%s937 + $0x48] sm:$0xe]
      %v1879 = vld [vmem:[%s937 + $0x4c] sm:$0xf]
      %v1880 = vld [vmem:[%s937 + $0x50] sm:$0x1]
      %v1881 = vld [vmem:[%s937 + $0x54] sm:$0xe]
      %v1882 = vld [vmem:[%s937 + $0x58] sm:$0xf]
      %v1883 = vld [vmem:[%s937 + $0x5c] sm:$0x1]
      %v1908 = vrot.slane %v1860, 5
      %v1909 = vrot.slane %v1908, 4
      %v1910 = vrot.slane %v1861, 5
      %v1911 = vsel %vm1360, %v1909, %v1910
      %v1912 = vrot.slane %v1910, 4
      %v1913 = vrot.slane %v1862, 5
      %v1914 = vsel %vm1360, %v1912, %v1913
      %v1915 = vrot.slane %v1863, 5
      %v1916 = vrot.slane %v1915, 4
      %v1917 = vrot.slane %v1864, 5
      %v1918 = vsel %vm1360, %v1916, %v1917
      %v1919 = vrot.slane %v1917, 4
      %v1920 = vrot.slane %v1865, 5
      %v1921 = vsel %vm1360, %v1919, %v1920
      %v1922 = vrot.slane %v1866, 5
      %v1923 = vrot.slane %v1922, 4
      %v1924 = vrot.slane %v1867, 5
      %v1925 = vsel %vm1360, %v1923, %v1924
      %v1926 = vrot.slane %v1924, 4
      %v1927 = vrot.slane %v1868, 5
      %v1928 = vsel %vm1360, %v1926, %v1927
      %v1929 = vrot.slane %v1869, 5
      %v1930 = vrot.slane %v1929, 4
      %v1931 = vrot.slane %v1870, 5
      %v1932 = vsel %vm1360, %v1930, %v1931
      %v1933 = vrot.slane %v1931, 4
      %v1934 = vrot.slane %v1871, 5
      %v1935 = vsel %vm1360, %v1933, %v1934
      %v1936 = vrot.slane %v1872, 5
      %v1937 = vrot.slane %v1936, 4
      %v1938 = vrot.slane %v1873, 5
      %v1939 = vsel %vm1360, %v1937, %v1938
      %v1940 = vrot.slane %v1938, 4
      %v1941 = vrot.slane %v1874, 5
      %v1942 = vsel %vm1360, %v1940, %v1941
      %v1943 = vrot.slane %v1875, 5
      %v1944 = vrot.slane %v1943, 4
      %v1945 = vrot.slane %v1876, 5
      %v1946 = vsel %vm1360, %v1944, %v1945
      %v1947 = vrot.slane %v1945, 4
      %v1948 = vrot.slane %v1877, 5
      %v1949 = vsel %vm1360, %v1947, %v1948
      %v1950 = vrot.slane %v1878, 5
      %v1951 = vrot.slane %v1950, 4
      %v1952 = vrot.slane %v1879, 5
      %v1953 = vsel %vm1360, %v1951, %v1952
      %v1954 = vrot.slane %v1952, 4
      %v1955 = vrot.slane %v1880, 5
      %v1956 = vsel %vm1360, %v1954, %v1955
      %v1957 = vrot.slane %v1881, 5
      %v1958 = vrot.slane %v1957, 4
      %v1959 = vrot.slane %v1882, 5
      %v1960 = vsel %vm1360, %v1958, %v1959
      %v1961 = vrot.slane %v1959, 4
      %v1962 = vrot.slane %v1883, 5
      %v1963 = vsel %vm1360, %v1961, %v1962
      %1964 = vrot.lane.b32.xlu0 %v1911, 40
      %v1965 = vpop.permute.xlu0 %1964
      %1966 = vrot.lane.b32.xlu0 %v1914, 40
      %v1967 = vpop.permute.xlu0 %1966
      %1968 = vrot.lane.b32.xlu0 %v1918, 40
      %v1969 = vpop.permute.xlu0 %1968
      %1970 = vrot.lane.b32.xlu0 %v1921, 40
      %v1971 = vpop.permute.xlu0 %1970
      %1972 = vrot.lane.b32.xlu0 %v1925, 40
      %v1973 = vpop.permute.xlu0 %1972
      %1974 = vrot.lane.b32.xlu0 %v1928, 40
      %v1975 = vpop.permute.xlu0 %1974
      %1976 = vrot.lane.b32.xlu0 %v1932, 40
      %v1977 = vpop.permute.xlu0 %1976
      %1978 = vrot.lane.b32.xlu0 %v1935, 40
      %v1979 = vpop.permute.xlu0 %1978
      %1980 = vrot.lane.b32.xlu0 %v1939, 40
      %v1981 = vpop.permute.xlu0 %1980
      %1982 = vrot.lane.b32.xlu0 %v1942, 40
      %v1983 = vpop.permute.xlu0 %1982
      %1984 = vrot.lane.b32.xlu0 %v1946, 40
      %v1985 = vpop.permute.xlu0 %1984
      %1986 = vrot.lane.b32.xlu0 %v1949, 40
      %v1987 = vpop.permute.xlu0 %1986
      %1988 = vrot.lane.b32.xlu0 %v1953, 40
      %v1989 = vpop.permute.xlu0 %1988
      %1990 = vrot.lane.b32.xlu0 %v1956, 40
      %v1991 = vpop.permute.xlu0 %1990
      %1992 = vrot.lane.b32.xlu0 %v1960, 40
      %v1993 = vpop.permute.xlu0 %1992
      %1994 = vrot.lane.b32.xlu0 %v1963, 40
      %v1995 = vpop.permute.xlu0 %1994
      %vm2012 = vcmask 388416
      %2013 = vst.msk [vmem:[#allocation3] sm:$0xf] %vm2012, %v1965
      %2014 = vst.msk [vmem:[#allocation3 + $0x4] sm:$0xf] %vm2012, %v1967
      %2015 = vst.msk [vmem:[#allocation3 + $0x8] sm:$0xf] %vm2012, %v1969
      %2016 = vst.msk [vmem:[#allocation3 + $0xc] sm:$0xf] %vm2012, %v1971
      %2017 = vst.msk [vmem:[#allocation3 + $0x10] sm:$0xf] %vm2012, %v1973
      %2018 = vst.msk [vmem:[#allocation3 + $0x14] sm:$0xf] %vm2012, %v1975
      %2019 = vst.msk [vmem:[#allocation3 + $0x18] sm:$0xf] %vm2012, %v1977
      %2020 = vst.msk [vmem:[#allocation3 + $0x1c] sm:$0xf] %vm2012, %v1979
      %2021 = vst.msk [vmem:[#allocation3 + $0x20] sm:$0xf] %vm2012, %v1981
      %2022 = vst.msk [vmem:[#allocation3 + $0x24] sm:$0xf] %vm2012, %v1983
      %2023 = vst.msk [vmem:[#allocation3 + $0x28] sm:$0xf] %vm2012, %v1985
      %2024 = vst.msk [vmem:[#allocation3 + $0x2c] sm:$0xf] %vm2012, %v1987
      %2025 = vst.msk [vmem:[#allocation3 + $0x30] sm:$0xf] %vm2012, %v1989
      %2026 = vst.msk [vmem:[#allocation3 + $0x34] sm:$0xf] %vm2012, %v1991
      %2027 = vst.msk [vmem:[#allocation3 + $0x38] sm:$0xf] %vm2012, %v1993
      %2028 = vst.msk [vmem:[#allocation3 + $0x3c] sm:$0xf] %vm2012, %v1995
      %s2029 = scalar_lea.vmem [#allocation2], 24
      %v2030 = vld [vmem:[%s2029] sm:$0xf]
      %v2031 = vld [vmem:[%s2029 + $0x4] sm:$0xf]
      %v2032 = vld [vmem:[%s2029 + $0xc] sm:$0xf]
      %v2033 = vld [vmem:[%s2029 + $0x10] sm:$0xf]
      %v2034 = vld [vmem:[%s2029 + $0x18] sm:$0xf]
      %v2035 = vld [vmem:[%s2029 + $0x1c] sm:$0xf]
      %v2036 = vld [vmem:[%s2029 + $0x24] sm:$0xf]
      %v2037 = vld [vmem:[%s2029 + $0x28] sm:$0xf]
      %v2038 = vld [vmem:[%s2029 + $0x30] sm:$0xf]
      %v2039 = vld [vmem:[%s2029 + $0x34] sm:$0xf]
      %v2040 = vld [vmem:[%s2029 + $0x3c] sm:$0xf]
      %v2041 = vld [vmem:[%s2029 + $0x40] sm:$0xf]
      %v2042 = vld [vmem:[%s2029 + $0x48] sm:$0xf]
      %v2043 = vld [vmem:[%s2029 + $0x4c] sm:$0xf]
      %v2044 = vld [vmem:[%s2029 + $0x54] sm:$0xf]
      %v2045 = vld [vmem:[%s2029 + $0x58] sm:$0xf]
      %2062 = vrot.lane.b32.xlu0 %v2030, 48
      %v2063 = vpop.permute.xlu0 %2062
      %2064 = vrot.lane.b32.xlu0 %v2031, 48
      %v2065 = vpop.permute.xlu0 %2064
      %2066 = vrot.lane.b32.xlu0 %v2032, 48
      %v2067 = vpop.permute.xlu0 %2066
      %2068 = vrot.lane.b32.xlu0 %v2033, 48
      %v2069 = vpop.permute.xlu0 %2068
      %2070 = vrot.lane.b32.xlu0 %v2034, 48
      %v2071 = vpop.permute.xlu0 %2070
      %2072 = vrot.lane.b32.xlu0 %v2035, 48
      %v2073 = vpop.permute.xlu0 %2072
      %2074 = vrot.lane.b32.xlu0 %v2036, 48
      %v2075 = vpop.permute.xlu0 %2074
      %2076 = vrot.lane.b32.xlu0 %v2037, 48
      %v2077 = vpop.permute.xlu0 %2076
      %2078 = vrot.lane.b32.xlu0 %v2038, 48
      %v2079 = vpop.permute.xlu0 %2078
      %2080 = vrot.lane.b32.xlu0 %v2039, 48
      %v2081 = vpop.permute.xlu0 %2080
      %2082 = vrot.lane.b32.xlu0 %v2040, 48
      %v2083 = vpop.permute.xlu0 %2082
      %2084 = vrot.lane.b32.xlu0 %v2041, 48
      %v2085 = vpop.permute.xlu0 %2084
      %2086 = vrot.lane.b32.xlu0 %v2042, 48
      %v2087 = vpop.permute.xlu0 %2086
      %2088 = vrot.lane.b32.xlu0 %v2043, 48
      %v2089 = vpop.permute.xlu0 %2088
      %2090 = vrot.lane.b32.xlu0 %v2044, 48
      %v2091 = vpop.permute.xlu0 %2090
      %2092 = vrot.lane.b32.xlu0 %v2045, 48
      %v2093 = vpop.permute.xlu0 %2092
      %vm2110 = vcmask 454016
      %2111 = vst.msk [vmem:[#allocation3] sm:$0xf] %vm2110, %v2063
      %2112 = vst.msk [vmem:[#allocation3 + $0x4] sm:$0xf] %vm2110, %v2065
      %2113 = vst.msk [vmem:[#allocation3 + $0x8] sm:$0xf] %vm2110, %v2067
      %2114 = vst.msk [vmem:[#allocation3 + $0xc] sm:$0xf] %vm2110, %v2069
      %2115 = vst.msk [vmem:[#allocation3 + $0x10] sm:$0xf] %vm2110, %v2071
      %2116 = vst.msk [vmem:[#allocation3 + $0x14] sm:$0xf] %vm2110, %v2073
      %2117 = vst.msk [vmem:[#allocation3 + $0x18] sm:$0xf] %vm2110, %v2075
      %2118 = vst.msk [vmem:[#allocation3 + $0x1c] sm:$0xf] %vm2110, %v2077
      %2119 = vst.msk [vmem:[#allocation3 + $0x20] sm:$0xf] %vm2110, %v2079
      %2120 = vst.msk [vmem:[#allocation3 + $0x24] sm:$0xf] %vm2110, %v2081
      %2121 = vst.msk [vmem:[#allocation3 + $0x28] sm:$0xf] %vm2110, %v2083
      %2122 = vst.msk [vmem:[#allocation3 + $0x2c] sm:$0xf] %vm2110, %v2085
      %2123 = vst.msk [vmem:[#allocation3 + $0x30] sm:$0xf] %vm2110, %v2087
      %2124 = vst.msk [vmem:[#allocation3 + $0x34] sm:$0xf] %vm2110, %v2089
      %2125 = vst.msk [vmem:[#allocation3 + $0x38] sm:$0xf] %vm2110, %v2091
      %2126 = vst.msk [vmem:[#allocation3 + $0x3c] sm:$0xf] %vm2110, %v2093
      %v2127 = vld [vmem:[%s2029] sm:$0xf]
      %v2128 = vld [vmem:[%s2029 + $0x4] sm:$0xf]
      %v2129 = vld [vmem:[%s2029 + $0x8] sm:$0x1]
      %v2130 = vld [vmem:[%s2029 + $0xc] sm:$0xf]
      %v2131 = vld [vmem:[%s2029 + $0x10] sm:$0xf]
      %v2132 = vld [vmem:[%s2029 + $0x14] sm:$0x1]
      %v2133 = vld [vmem:[%s2029 + $0x18] sm:$0xf]
      %v2134 = vld [vmem:[%s2029 + $0x1c] sm:$0xf]
      %v2135 = vld [vmem:[%s2029 + $0x20] sm:$0x1]
      %v2136 = vld [vmem:[%s2029 + $0x24] sm:$0xf]
      %v2137 = vld [vmem:[%s2029 + $0x28] sm:$0xf]
      %v2138 = vld [vmem:[%s2029 + $0x2c] sm:$0x1]
      %v2139 = vld [vmem:[%s2029 + $0x30] sm:$0xf]
      %v2140 = vld [vmem:[%s2029 + $0x34] sm:$0xf]
      %v2141 = vld [vmem:[%s2029 + $0x38] sm:$0x1]
      %v2142 = vld [vmem:[%s2029 + $0x3c] sm:$0xf]
      %v2143 = vld [vmem:[%s2029 + $0x40] sm:$0xf]
      %v2144 = vld [vmem:[%s2029 + $0x44] sm:$0x1]
      %v2145 = vld [vmem:[%s2029 + $0x48] sm:$0xf]
      %v2146 = vld [vmem:[%s2029 + $0x4c] sm:$0xf]
      %v2147 = vld [vmem:[%s2029 + $0x50] sm:$0x1]
      %v2148 = vld [vmem:[%s2029 + $0x54] sm:$0xf]
      %v2149 = vld [vmem:[%s2029 + $0x58] sm:$0xf]
      %v2150 = vld [vmem:[%s2029 + $0x5c] sm:$0x1]
      %v2152 = vshrl.u32 %v2127, 16
      %v2154 = vrot.slane %v2152, 4
      %v2155 = vshll.u32 %v2127, 16
      %v2157 = vrot.slane %v2155, 5
      %v2158 = vor.u32 %v2154, %v2157
      %v2159 = vrot.slane %v2158, 4
      %v2161 = vshll.u32 %v2128, 16
      %v2163 = vrot.slane %v2161, 5
      %v2164 = vsel %vm1052, %v2159, %v2163
      %v2165 = vshrl.u32 %v2128, 16
      %v2167 = vrot.slane %v2165, 4
      %v2168 = vor.u32 %v2167, %v2163
      %v2169 = vrot.slane %v2168, 4
      %v2171 = vshll.u32 %v2129, 16
      %v2173 = vrot.slane %v2171, 5
      %v2174 = vsel %vm1052, %v2169, %v2173
      %v2176 = vshrl.u32 %v2130, 16
      %v2178 = vrot.slane %v2176, 4
      %v2179 = vshll.u32 %v2130, 16
      %v2181 = vrot.slane %v2179, 5
      %v2182 = vor.u32 %v2178, %v2181
      %v2183 = vrot.slane %v2182, 4
      %v2185 = vshll.u32 %v2131, 16
      %v2187 = vrot.slane %v2185, 5
      %v2188 = vsel %vm1052, %v2183, %v2187
      %v2189 = vshrl.u32 %v2131, 16
      %v2191 = vrot.slane %v2189, 4
      %v2192 = vor.u32 %v2191, %v2187
      %v2193 = vrot.slane %v2192, 4
      %v2195 = vshll.u32 %v2132, 16
      %v2197 = vrot.slane %v2195, 5
      %v2198 = vsel %vm1052, %v2193, %v2197
      %v2200 = vshrl.u32 %v2133, 16
      %v2202 = vrot.slane %v2200, 4
      %v2203 = vshll.u32 %v2133, 16
      %v2205 = vrot.slane %v2203, 5
      %v2206 = vor.u32 %v2202, %v2205
      %v2207 = vrot.slane %v2206, 4
      %v2209 = vshll.u32 %v2134, 16
      %v2211 = vrot.slane %v2209, 5
      %v2212 = vsel %vm1052, %v2207, %v2211
      %v2213 = vshrl.u32 %v2134, 16
      %v2215 = vrot.slane %v2213, 4
      %v2216 = vor.u32 %v2215, %v2211
      %v2217 = vrot.slane %v2216, 4
      %v2219 = vshll.u32 %v2135, 16
      %v2221 = vrot.slane %v2219, 5
      %v2222 = vsel %vm1052, %v2217, %v2221
      %v2224 = vshrl.u32 %v2136, 16
      %v2226 = vrot.slane %v2224, 4
      %v2227 = vshll.u32 %v2136, 16
      %v2229 = vrot.slane %v2227, 5
      %v2230 = vor.u32 %v2226, %v2229
      %v2231 = vrot.slane %v2230, 4
      %v2233 = vshll.u32 %v2137, 16
      %v2235 = vrot.slane %v2233, 5
      %v2236 = vsel %vm1052, %v2231, %v2235
      %v2237 = vshrl.u32 %v2137, 16
      %v2239 = vrot.slane %v2237, 4
      %v2240 = vor.u32 %v2239, %v2235
      %v2241 = vrot.slane %v2240, 4
      %v2243 = vshll.u32 %v2138, 16
      %v2245 = vrot.slane %v2243, 5
      %v2246 = vsel %vm1052, %v2241, %v2245
      %v2248 = vshrl.u32 %v2139, 16
      %v2250 = vrot.slane %v2248, 4
      %v2251 = vshll.u32 %v2139, 16
      %v2253 = vrot.slane %v2251, 5
      %v2254 = vor.u32 %v2250, %v2253
      %v2255 = vrot.slane %v2254, 4
      %v2257 = vshll.u32 %v2140, 16
      %v2259 = vrot.slane %v2257, 5
      %v2260 = vsel %vm1052, %v2255, %v2259
      %v2261 = vshrl.u32 %v2140, 16
      %v2263 = vrot.slane %v2261, 4
      %v2264 = vor.u32 %v2263, %v2259
      %v2265 = vrot.slane %v2264, 4
      %v2267 = vshll.u32 %v2141, 16
      %v2269 = vrot.slane %v2267, 5
      %v2270 = vsel %vm1052, %v2265, %v2269
      %v2272 = vshrl.u32 %v2142, 16
      %v2274 = vrot.slane %v2272, 4
      %v2275 = vshll.u32 %v2142, 16
      %v2277 = vrot.slane %v2275, 5
      %v2278 = vor.u32 %v2274, %v2277
      %v2279 = vrot.slane %v2278, 4
      %v2281 = vshll.u32 %v2143, 16
      %v2283 = vrot.slane %v2281, 5
      %v2284 = vsel %vm1052, %v2279, %v2283
      %v2285 = vshrl.u32 %v2143, 16
      %v2287 = vrot.slane %v2285, 4
      %v2288 = vor.u32 %v2287, %v2283
      %v2289 = vrot.slane %v2288, 4
      %v2291 = vshll.u32 %v2144, 16
      %v2293 = vrot.slane %v2291, 5
      %v2294 = vsel %vm1052, %v2289, %v2293
      %v2296 = vshrl.u32 %v2145, 16
      %v2298 = vrot.slane %v2296, 4
      %v2299 = vshll.u32 %v2145, 16
      %v2301 = vrot.slane %v2299, 5
      %v2302 = vor.u32 %v2298, %v2301
      %v2303 = vrot.slane %v2302, 4
      %v2305 = vshll.u32 %v2146, 16
      %v2307 = vrot.slane %v2305, 5
      %v2308 = vsel %vm1052, %v2303, %v2307
      %v2309 = vshrl.u32 %v2146, 16
      %v2311 = vrot.slane %v2309, 4
      %v2312 = vor.u32 %v2311, %v2307
      %v2313 = vrot.slane %v2312, 4
      %v2315 = vshll.u32 %v2147, 16
      %v2317 = vrot.slane %v2315, 5
      %v2318 = vsel %vm1052, %v2313, %v2317
      %v2320 = vshrl.u32 %v2148, 16
      %v2322 = vrot.slane %v2320, 4
      %v2323 = vshll.u32 %v2148, 16
      %v2325 = vrot.slane %v2323, 5
      %v2326 = vor.u32 %v2322, %v2325
      %v2327 = vrot.slane %v2326, 4
      %v2329 = vshll.u32 %v2149, 16
      %v2331 = vrot.slane %v2329, 5
      %v2332 = vsel %vm1052, %v2327, %v2331
      %v2333 = vshrl.u32 %v2149, 16
      %v2335 = vrot.slane %v2333, 4
      %v2336 = vor.u32 %v2335, %v2331
      %v2337 = vrot.slane %v2336, 4
      %v2339 = vshll.u32 %v2150, 16
      %v2341 = vrot.slane %v2339, 5
      %v2342 = vsel %vm1052, %v2337, %v2341
      %2343 = vrot.lane.b32.xlu0 %v2164, 56
      %v2344 = vpop.permute.xlu0 %2343
      %2345 = vrot.lane.b32.xlu0 %v2174, 56
      %v2346 = vpop.permute.xlu0 %2345
      %2347 = vrot.lane.b32.xlu0 %v2188, 56
      %v2348 = vpop.permute.xlu0 %2347
      %2349 = vrot.lane.b32.xlu0 %v2198, 56
      %v2350 = vpop.permute.xlu0 %2349
      %2351 = vrot.lane.b32.xlu0 %v2212, 56
      %v2352 = vpop.permute.xlu0 %2351
      %2353 = vrot.lane.b32.xlu0 %v2222, 56
      %v2354 = vpop.permute.xlu0 %2353
      %2355 = vrot.lane.b32.xlu0 %v2236, 56
      %v2356 = vpop.permute.xlu0 %2355
      %2357 = vrot.lane.b32.xlu0 %v2246, 56
      %v2358 = vpop.permute.xlu0 %2357
      %2359 = vrot.lane.b32.xlu0 %v2260, 56
      %v2360 = vpop.permute.xlu0 %2359
      %2361 = vrot.lane.b32.xlu0 %v2270, 56
      %v2362 = vpop.permute.xlu0 %2361
      %2363 = vrot.lane.b32.xlu0 %v2284, 56
      %v2364 = vpop.permute.xlu0 %2363
      %2365 = vrot.lane.b32.xlu0 %v2294, 56
      %v2366 = vpop.permute.xlu0 %2365
      %2367 = vrot.lane.b32.xlu0 %v2308, 56
      %v2368 = vpop.permute.xlu0 %2367
      %2369 = vrot.lane.b32.xlu0 %v2318, 56
      %v2370 = vpop.permute.xlu0 %2369
      %2371 = vrot.lane.b32.xlu0 %v2332, 56
      %v2372 = vpop.permute.xlu0 %2371
      %2373 = vrot.lane.b32.xlu0 %v2342, 56
      %v2374 = vpop.permute.xlu0 %2373
      %vm2391 = vcmask 519616
      %2392 = vst.msk [vmem:[#allocation3] sm:$0xf] %vm2391, %v2344
      %2393 = vst.msk [vmem:[#allocation3 + $0x4] sm:$0xf] %vm2391, %v2346
      %2394 = vst.msk [vmem:[#allocation3 + $0x8] sm:$0xf] %vm2391, %v2348
      %2395 = vst.msk [vmem:[#allocation3 + $0xc] sm:$0xf] %vm2391, %v2350
      %2396 = vst.msk [vmem:[#allocation3 + $0x10] sm:$0xf] %vm2391, %v2352
      %2397 = vst.msk [vmem:[#allocation3 + $0x14] sm:$0xf] %vm2391, %v2354
      %2398 = vst.msk [vmem:[#allocation3 + $0x18] sm:$0xf] %vm2391, %v2356
      %2399 = vst.msk [vmem:[#allocation3 + $0x1c] sm:$0xf] %vm2391, %v2358
      %2400 = vst.msk [vmem:[#allocation3 + $0x20] sm:$0xf] %vm2391, %v2360
      %2401 = vst.msk [vmem:[#allocation3 + $0x24] sm:$0xf] %vm2391, %v2362
      %2402 = vst.msk [vmem:[#allocation3 + $0x28] sm:$0xf] %vm2391, %v2364
      %2403 = vst.msk [vmem:[#allocation3 + $0x2c] sm:$0xf] %vm2391, %v2366
      %2404 = vst.msk [vmem:[#allocation3 + $0x30] sm:$0xf] %vm2391, %v2368
      %2405 = vst.msk [vmem:[#allocation3 + $0x34] sm:$0xf] %vm2391, %v2370
      %2406 = vst.msk [vmem:[#allocation3 + $0x38] sm:$0xf] %vm2391, %v2372
      %2407 = vst.msk [vmem:[#allocation3 + $0x3c] sm:$0xf] %vm2391, %v2374
      %v2408 = vld [vmem:[%s2029] sm:$0xe]
      %v2409 = vld [vmem:[%s2029 + $0x4] sm:$0xf]
      %v2410 = vld [vmem:[%s2029 + $0x8] sm:$0x1]
      %v2411 = vld [vmem:[%s2029 + $0xc] sm:$0xe]
      %v2412 = vld [vmem:[%s2029 + $0x10] sm:$0xf]
      %v2413 = vld [vmem:[%s2029 + $0x14] sm:$0x1]
      %v2414 = vld [vmem:[%s2029 + $0x18] sm:$0xe]
      %v2415 = vld [vmem:[%s2029 + $0x1c] sm:$0xf]
      %v2416 = vld [vmem:[%s2029 + $0x20] sm:$0x1]
      %v2417 = vld [vmem:[%s2029 + $0x24] sm:$0xe]
      %v2418 = vld [vmem:[%s2029 + $0x28] sm:$0xf]
      %v2419 = vld [vmem:[%s2029 + $0x2c] sm:$0x1]
      %v2420 = vld [vmem:[%s2029 + $0x30] sm:$0xe]
      %v2421 = vld [vmem:[%s2029 + $0x34] sm:$0xf]
      %v2422 = vld [vmem:[%s2029 + $0x38] sm:$0x1]
      %v2423 = vld [vmem:[%s2029 + $0x3c] sm:$0xe]
      %v2424 = vld [vmem:[%s2029 + $0x40] sm:$0xf]
      %v2425 = vld [vmem:[%s2029 + $0x44] sm:$0x1]
      %v2426 = vld [vmem:[%s2029 + $0x48] sm:$0xe]
      %v2427 = vld [vmem:[%s2029 + $0x4c] sm:$0xf]
      %v2428 = vld [vmem:[%s2029 + $0x50] sm:$0x1]
      %v2429 = vld [vmem:[%s2029 + $0x54] sm:$0xe]
      %v2430 = vld [vmem:[%s2029 + $0x58] sm:$0xf]
      %v2431 = vld [vmem:[%s2029 + $0x5c] sm:$0x1]
      %v2456 = vrot.slane %v2408, 5
      %v2457 = vrot.slane %v2456, 4
      %v2458 = vrot.slane %v2409, 5
      %v2459 = vsel %vm1360, %v2457, %v2458
      %v2460 = vrot.slane %v2458, 4
      %v2461 = vrot.slane %v2410, 5
      %v2462 = vsel %vm1360, %v2460, %v2461
      %v2463 = vrot.slane %v2411, 5
      %v2464 = vrot.slane %v2463, 4
      %v2465 = vrot.slane %v2412, 5
      %v2466 = vsel %vm1360, %v2464, %v2465
      %v2467 = vrot.slane %v2465, 4
      %v2468 = vrot.slane %v2413, 5
      %v2469 = vsel %vm1360, %v2467, %v2468
      %v2470 = vrot.slane %v2414, 5
      %v2471 = vrot.slane %v2470, 4
      %v2472 = vrot.slane %v2415, 5
      %v2473 = vsel %vm1360, %v2471, %v2472
      %v2474 = vrot.slane %v2472, 4
      %v2475 = vrot.slane %v2416, 5
      %v2476 = vsel %vm1360, %v2474, %v2475
      %v2477 = vrot.slane %v2417, 5
      %v2478 = vrot.slane %v2477, 4
      %v2479 = vrot.slane %v2418, 5
      %v2480 = vsel %vm1360, %v2478, %v2479
      %v2481 = vrot.slane %v2479, 4
      %v2482 = vrot.slane %v2419, 5
      %v2483 = vsel %vm1360, %v2481, %v2482
      %v2484 = vrot.slane %v2420, 5
      %v2485 = vrot.slane %v2484, 4
      %v2486 = vrot.slane %v2421, 5
      %v2487 = vsel %vm1360, %v2485, %v2486
      %v2488 = vrot.slane %v2486, 4
      %v2489 = vrot.slane %v2422, 5
      %v2490 = vsel %vm1360, %v2488, %v2489
      %v2491 = vrot.slane %v2423, 5
      %v2492 = vrot.slane %v2491, 4
      %v2493 = vrot.slane %v2424, 5
      %v2494 = vsel %vm1360, %v2492, %v2493
      %v2495 = vrot.slane %v2493, 4
      %v2496 = vrot.slane %v2425, 5
      %v2497 = vsel %vm1360, %v2495, %v2496
      %v2498 = vrot.slane %v2426, 5
      %v2499 = vrot.slane %v2498, 4
      %v2500 = vrot.slane %v2427, 5
      %v2501 = vsel %vm1360, %v2499, %v2500
      %v2502 = vrot.slane %v2500, 4
      %v2503 = vrot.slane %v2428, 5
      %v2504 = vsel %vm1360, %v2502, %v2503
      %v2505 = vrot.slane %v2429, 5
      %v2506 = vrot.slane %v2505, 4
      %v2507 = vrot.slane %v2430, 5
      %v2508 = vsel %vm1360, %v2506, %v2507
      %v2509 = vrot.slane %v2507, 4
      %v2510 = vrot.slane %v2431, 5
      %v2511 = vsel %vm1360, %v2509, %v2510
      %2512 = vrot.lane.b32.xlu0 %v2459, 64
      %v2513 = vpop.permute.xlu0 %2512
      %2514 = vrot.lane.b32.xlu0 %v2462, 64
      %v2515 = vpop.permute.xlu0 %2514
      %2516 = vrot.lane.b32.xlu0 %v2466, 64
      %v2517 = vpop.permute.xlu0 %2516
      %2518 = vrot.lane.b32.xlu0 %v2469, 64
      %v2519 = vpop.permute.xlu0 %2518
      %2520 = vrot.lane.b32.xlu0 %v2473, 64
      %v2521 = vpop.permute.xlu0 %2520
      %2522 = vrot.lane.b32.xlu0 %v2476, 64
      %v2523 = vpop.permute.xlu0 %2522
      %2524 = vrot.lane.b32.xlu0 %v2480, 64
      %v2525 = vpop.permute.xlu0 %2524
      %2526 = vrot.lane.b32.xlu0 %v2483, 64
      %v2527 = vpop.permute.xlu0 %2526
      %2528 = vrot.lane.b32.xlu0 %v2487, 64
      %v2529 = vpop.permute.xlu0 %2528
      %2530 = vrot.lane.b32.xlu0 %v2490, 64
      %v2531 = vpop.permute.xlu0 %2530
      %2532 = vrot.lane.b32.xlu0 %v2494, 64
      %v2533 = vpop.permute.xlu0 %2532
      %2534 = vrot.lane.b32.xlu0 %v2497, 64
      %v2535 = vpop.permute.xlu0 %2534
      %2536 = vrot.lane.b32.xlu0 %v2501, 64
      %v2537 = vpop.permute.xlu0 %2536
      %2538 = vrot.lane.b32.xlu0 %v2504, 64
      %v2539 = vpop.permute.xlu0 %2538
      %2540 = vrot.lane.b32.xlu0 %v2508, 64
      %v2541 = vpop.permute.xlu0 %2540
      %2542 = vrot.lane.b32.xlu0 %v2511, 64
      %v2543 = vpop.permute.xlu0 %2542
      %vm2560 = vcmask 585216
      %2561 = vst.msk [vmem:[#allocation3] sm:$0xf] %vm2560, %v2513
      %2562 = vst.msk [vmem:[#allocation3 + $0x4] sm:$0xf] %vm2560, %v2515
      %2563 = vst.msk [vmem:[#allocation3 + $0x8] sm:$0xf] %vm2560, %v2517
      %2564 = vst.msk [vmem:[#allocation3 + $0xc] sm:$0xf] %vm2560, %v2519
      %2565 = vst.msk [vmem:[#allocation3 + $0x10] sm:$0xf] %vm2560, %v2521
      %2566 = vst.msk [vmem:[#allocation3 + $0x14] sm:$0xf] %vm2560, %v2523
      %2567 = vst.msk [vmem:[#allocation3 + $0x18] sm:$0xf] %vm2560, %v2525
      %2568 = vst.msk [vmem:[#allocation3 + $0x1c] sm:$0xf] %vm2560, %v2527
      %2569 = vst.msk [vmem:[#allocation3 + $0x20] sm:$0xf] %vm2560, %v2529
      %2570 = vst.msk [vmem:[#allocation3 + $0x24] sm:$0xf] %vm2560, %v2531
      %2571 = vst.msk [vmem:[#allocation3 + $0x28] sm:$0xf] %vm2560, %v2533
      %2572 = vst.msk [vmem:[#allocation3 + $0x2c] sm:$0xf] %vm2560, %v2535
      %2573 = vst.msk [vmem:[#allocation3 + $0x30] sm:$0xf] %vm2560, %v2537
      %2574 = vst.msk [vmem:[#allocation3 + $0x34] sm:$0xf] %vm2560, %v2539
      %2575 = vst.msk [vmem:[#allocation3 + $0x38] sm:$0xf] %vm2560, %v2541
      %2576 = vst.msk [vmem:[#allocation3 + $0x3c] sm:$0xf] %vm2560, %v2543
      %vm2577 = vcmask 1044032
      %2578 = vst.msk [vmem:[#allocation3] sm:$0xf] %vm2577, 0
      %2579 = vst.msk [vmem:[#allocation3 + $0x4] sm:$0xf] %vm2577, 0
      %2580 = vst.msk [vmem:[#allocation3 + $0x8] sm:$0xf] %vm2577, 0
      %2581 = vst.msk [vmem:[#allocation3 + $0xc] sm:$0xf] %vm2577, 0
      %2582 = vst.msk [vmem:[#allocation3 + $0x10] sm:$0xf] %vm2577, 0
      %2583 = vst.msk [vmem:[#allocation3 + $0x14] sm:$0xf] %vm2577, 0
      %2584 = vst.msk [vmem:[#allocation3 + $0x18] sm:$0xf] %vm2577, 0
      %2585 = vst.msk [vmem:[#allocation3 + $0x1c] sm:$0xf] %vm2577, 0
      %2586 = vst.msk [vmem:[#allocation3 + $0x20] sm:$0xf] %vm2577, 0
      %2587 = vst.msk [vmem:[#allocation3 + $0x24] sm:$0xf] %vm2577, 0
      %2588 = vst.msk [vmem:[#allocation3 + $0x28] sm:$0xf] %vm2577, 0
      %2589 = vst.msk [vmem:[#allocation3 + $0x2c] sm:$0xf] %vm2577, 0
      %2590 = vst.msk [vmem:[#allocation3 + $0x30] sm:$0xf] %vm2577, 0
      %2591 = vst.msk [vmem:[#allocation3 + $0x34] sm:$0xf] %vm2577, 0
      %2592 = vst.msk [vmem:[#allocation3 + $0x38] sm:$0xf] %vm2577, 0
      %2593 = vst.msk [vmem:[#allocation3 + $0x3c] sm:$0xf] %vm2577, 0
      %v2594 = vld [vmem:[#allocation3] sm:$0xf]
      %v2595 = vld [vmem:[#allocation3 + $0x4] sm:$0xf]
      %v2596 = vld [vmem:[#allocation3 + $0x8] sm:$0xf]
      %v2597 = vld [vmem:[#allocation3 + $0xc] sm:$0xf]
      %v2598 = vld [vmem:[#allocation3 + $0x10] sm:$0xf]
      %v2599 = vld [vmem:[#allocation3 + $0x14] sm:$0xf]
      %v2600 = vld [vmem:[#allocation3 + $0x18] sm:$0xf]
      %v2601 = vld [vmem:[#allocation3 + $0x1c] sm:$0xf]
      %v2602 = vld [vmem:[#allocation3 + $0x20] sm:$0xf]
      %v2603 = vld [vmem:[#allocation3 + $0x24] sm:$0xf]
      %v2604 = vld [vmem:[#allocation3 + $0x28] sm:$0xf]
      %v2605 = vld [vmem:[#allocation3 + $0x2c] sm:$0xf]
      %v2606 = vld [vmem:[#allocation3 + $0x30] sm:$0xf]
      %v2607 = vld [vmem:[#allocation3 + $0x34] sm:$0xf]
      %v2608 = vld [vmem:[#allocation3 + $0x38] sm:$0xf]
      %v2609 = vld [vmem:[#allocation3 + $0x3c] sm:$0xf]
      %v2610 = vld [vmem:[%s3] sm:$0xf]
      %v2611 = vld [vmem:[%s3 + $0x4] sm:$0xf]
      %v2612 = vld [vmem:[%s3 + $0x8] sm:$0xf]
      %v2613 = vld [vmem:[%s3 + $0xc] sm:$0xf]
      %v2614 = vld [vmem:[%s3 + $0x10] sm:$0xf]
      %v2615 = vld [vmem:[%s3 + $0x14] sm:$0xf]
      %v2616 = vld [vmem:[%s3 + $0x18] sm:$0xf]
      %v2617 = vld [vmem:[%s3 + $0x1c] sm:$0xf]
      %v2618 = vld [vmem:[%s3 + $0x20] sm:$0xf]
      %v2619 = vld [vmem:[%s3 + $0x24] sm:$0xf]
      %v2620 = vld [vmem:[%s3 + $0x28] sm:$0xf]
      %v2621 = vld [vmem:[%s3 + $0x2c] sm:$0xf]
      %v2622 = vld [vmem:[%s3 + $0x30] sm:$0xf]
      %v2623 = vld [vmem:[%s3 + $0x34] sm:$0xf]
      %v2624 = vld [vmem:[%s3 + $0x38] sm:$0xf]
      %v2625 = vld [vmem:[%s3 + $0x3c] sm:$0xf]
      %v2642 = vunpack.c.l.b16 %v2594
      %v2643 = vunpack.c.l.b16 %v2595
      %v2644 = vunpack.c.l.b16 %v2596
      %v2645 = vunpack.c.l.b16 %v2597
      %v2646 = vunpack.c.l.b16 %v2598
      %v2647 = vunpack.c.l.b16 %v2599
      %v2648 = vunpack.c.l.b16 %v2600
      %v2649 = vunpack.c.l.b16 %v2601
      %v2650 = vunpack.c.l.b16 %v2602
      %v2651 = vunpack.c.l.b16 %v2603
      %v2652 = vunpack.c.l.b16 %v2604
      %v2653 = vunpack.c.l.b16 %v2605
      %v2654 = vunpack.c.l.b16 %v2606
      %v2655 = vunpack.c.l.b16 %v2607
      %v2656 = vunpack.c.l.b16 %v2608
      %v2657 = vunpack.c.l.b16 %v2609
      %v2658 = vpack.c.b16 %v2643, %v2642
      %v2659 = vpack.c.b16 %v2645, %v2644
      %v2660 = vpack.c.b16 %v2647, %v2646
      %v2661 = vpack.c.b16 %v2649, %v2648
      %v2662 = vpack.c.b16 %v2651, %v2650
      %v2663 = vpack.c.b16 %v2653, %v2652
      %v2664 = vpack.c.b16 %v2655, %v2654
      %v2665 = vpack.c.b16 %v2657, %v2656
      %v2690 = vunpack.c.l.b16 %v2610
      %v2691 = vunpack.c.l.b16 %v2611
      %v2692 = vunpack.c.l.b16 %v2612
      %v2693 = vunpack.c.l.b16 %v2613
      %v2694 = vunpack.c.l.b16 %v2614
      %v2695 = vunpack.c.l.b16 %v2615
      %v2696 = vunpack.c.l.b16 %v2616
      %v2697 = vunpack.c.l.b16 %v2617
      %v2698 = vunpack.c.l.b16 %v2618
      %v2699 = vunpack.c.l.b16 %v2619
      %v2700 = vunpack.c.l.b16 %v2620
      %v2701 = vunpack.c.l.b16 %v2621
      %v2702 = vunpack.c.l.b16 %v2622
      %v2703 = vunpack.c.l.b16 %v2623
      %v2704 = vunpack.c.l.b16 %v2624
      %v2705 = vunpack.c.l.b16 %v2625
      %v2706 = vpack.c.b16 %v2691, %v2690
      %v2707 = vpack.c.b16 %v2693, %v2692
      %v2708 = vpack.c.b16 %v2695, %v2694
      %v2709 = vpack.c.b16 %v2697, %v2696
      %v2710 = vpack.c.b16 %v2699, %v2698
      %v2711 = vpack.c.b16 %v2701, %v2700
      %v2712 = vpack.c.b16 %v2703, %v2702
      %v2713 = vpack.c.b16 %v2705, %v2704
      %2722 = vmatpush.bf16.msra.mxu0 %v2713
      %2723 = vmatpush.bf16.msra.mxu0 %v2712
      %2724 = vmatpush.bf16.msra.mxu0 %v2711
      %2725 = vmatpush.bf16.msra.mxu0 %v2710
      %2726 = vmatpush.bf16.msra.mxu0 %v2709
      %2727 = vmatpush.bf16.msra.mxu0 %v2708
      %2728 = vmatpush.bf16.msra.mxu0 %v2707
      %2729 = vmatpush.bf16.msra.mxu0 %v2706
      %2730 = vmatmul.bf16.gmra.mxu0 %v2658
      %v2731 = vpop.f32.mrf.mxu0
      %v2732 = vadd.f32 0.0, %v2731
      %v2733 = vpop.f32.mrf.mxu0
      %v2734 = vadd.f32 0.0, %v2733
      %2735 = vmatmul.bf16.gmra.mxu0 %v2659
      %v2736 = vpop.f32.mrf.mxu0
      %v2737 = vadd.f32 0.0, %v2736
      %v2738 = vpop.f32.mrf.mxu0
      %v2739 = vadd.f32 0.0, %v2738
      %2740 = vmatmul.bf16.gmra.mxu0 %v2660
      %v2741 = vpop.f32.mrf.mxu0
      %v2742 = vadd.f32 0.0, %v2741
      %v2743 = vpop.f32.mrf.mxu0
      %v2744 = vadd.f32 0.0, %v2743
      %2745 = vmatmul.bf16.gmra.mxu0 %v2661
      %v2746 = vpop.f32.mrf.mxu0
      %v2747 = vadd.f32 0.0, %v2746
      %v2748 = vpop.f32.mrf.mxu0
      %v2749 = vadd.f32 0.0, %v2748
      %2750 = vmatmul.bf16.gmra.mxu0 %v2662
      %v2751 = vpop.f32.mrf.mxu0
      %v2752 = vadd.f32 0.0, %v2751
      %v2753 = vpop.f32.mrf.mxu0
      %v2754 = vadd.f32 0.0, %v2753
      %2755 = vmatmul.bf16.gmra.mxu0 %v2663
      %v2756 = vpop.f32.mrf.mxu0
      %v2757 = vadd.f32 0.0, %v2756
      %v2758 = vpop.f32.mrf.mxu0
      %v2759 = vadd.f32 0.0, %v2758
      %2760 = vmatmul.bf16.gmra.mxu0 %v2664
      %v2761 = vpop.f32.mrf.mxu0
      %v2762 = vadd.f32 0.0, %v2761
      %v2763 = vpop.f32.mrf.mxu0
      %v2764 = vadd.f32 0.0, %v2763
      %2765 = vmatmul.bf16.gmra.mxu0 %v2665
      %v2766 = vpop.f32.mrf.mxu0
      %v2767 = vadd.f32 0.0, %v2766
      %v2768 = vpop.f32.mrf.mxu0
      %v2769 = vadd.f32 0.0, %v2768
      %2770 = vdwg.mxu0
      %v2771 = vpack.c.bf16 %v2732, %v2732
      %v2772 = vpack.c.bf16 %v2734, %v2734
      %v2773 = vpack.c.bf16 %v2737, %v2737
      %v2774 = vpack.c.bf16 %v2739, %v2739
      %v2775 = vpack.c.bf16 %v2742, %v2742
      %v2776 = vpack.c.bf16 %v2744, %v2744
      %v2777 = vpack.c.bf16 %v2747, %v2747
      %v2778 = vpack.c.bf16 %v2749, %v2749
      %v2779 = vpack.c.bf16 %v2752, %v2752
      %v2780 = vpack.c.bf16 %v2754, %v2754
      %v2781 = vpack.c.bf16 %v2757, %v2757
      %v2782 = vpack.c.bf16 %v2759, %v2759
      %v2783 = vpack.c.bf16 %v2762, %v2762
      %v2784 = vpack.c.bf16 %v2764, %v2764
      %v2785 = vpack.c.bf16 %v2767, %v2767
      %v2786 = vpack.c.bf16 %v2769, %v2769
      %2787 = vst.msk [vmem:[%s495] sm:$0xf] %vm726, %v2771
      %2788 = vst.msk [vmem:[%s495 + $0x4] sm:$0xf] %vm726, %v2772
      %2789 = vst.msk [vmem:[%s495 + $0x8] sm:$0xf] %vm726, %v2773
      %2790 = vst.msk [vmem:[%s495 + $0xc] sm:$0xf] %vm726, %v2774
      %2791 = vst.msk [vmem:[%s495 + $0x10] sm:$0xf] %vm726, %v2775
      %2792 = vst.msk [vmem:[%s495 + $0x14] sm:$0xf] %vm726, %v2776
      %2793 = vst.msk [vmem:[%s495 + $0x18] sm:$0xf] %vm726, %v2777
      %2794 = vst.msk [vmem:[%s495 + $0x1c] sm:$0xf] %vm726, %v2778
      %2795 = vst.msk [vmem:[%s495 + $0x20] sm:$0xf] %vm726, %v2779
      %2796 = vst.msk [vmem:[%s495 + $0x24] sm:$0xf] %vm726, %v2780
      %2797 = vst.msk [vmem:[%s495 + $0x28] sm:$0xf] %vm726, %v2781
      %2798 = vst.msk [vmem:[%s495 + $0x2c] sm:$0xf] %vm726, %v2782
      %2799 = vst.msk [vmem:[%s495 + $0x30] sm:$0xf] %vm726, %v2783
      %2800 = vst.msk [vmem:[%s495 + $0x34] sm:$0xf] %vm726, %v2784
      %2801 = vst.msk [vmem:[%s495 + $0x38] sm:$0xf] %vm726, %v2785
      %2802 = vst.msk [vmem:[%s495 + $0x3c] sm:$0xf] %vm726, %v2786
      %v2803 = vadd.f32 %v2732, %v2734
      %v2804 = vadd.f32 %v2803, %v2737
      %v2805 = vadd.f32 %v2804, %v2739
      %v2806 = vadd.f32 %v2805, %v2742
      %v2807 = vadd.f32 %v2806, %v2744
      %v2808 = vadd.f32 %v2807, %v2747
      %v2809 = vadd.f32 %v2808, %v2749
      %v2810 = vadd.f32 %v2809, %v2752
      %v2811 = vadd.f32 %v2810, %v2754
      %v2812 = vadd.f32 %v2811, %v2757
      %v2813 = vadd.f32 %v2812, %v2759
      %v2814 = vadd.f32 %v2813, %v2762
      %v2815 = vadd.f32 %v2814, %v2764
      %v2816 = vadd.f32 %v2815, %v2767
      %v2817 = vadd.f32 %v2816, %v2769
      %v2818 = vrot.slane %v2817, 4
      %v2819 = vadd.f32 %v2817, %v2818
      %v2820 = vrot.slane %v2819, 2
      %v2821 = vadd.f32 %v2819, %v2820
      %v2822 = vrot.slane %v2821, 1
      %v2823 = vadd.f32 %v2821, %v2822
      %v2824 = vmul.f32 %v2823, 0.0078125
      %v2825 = vsub.f32 %v2732, %v2824
      %v2826 = vsub.f32 %v2734, %v2824
      %v2827 = vsub.f32 %v2737, %v2824
      %v2828 = vsub.f32 %v2739, %v2824
      %v2829 = vsub.f32 %v2742, %v2824
      %v2830 = vsub.f32 %v2744, %v2824
      %v2831 = vsub.f32 %v2747, %v2824
      %v2832 = vsub.f32 %v2749, %v2824
      %v2833 = vsub.f32 %v2752, %v2824
      %v2834 = vsub.f32 %v2754, %v2824
      %v2835 = vsub.f32 %v2757, %v2824
      %v2836 = vsub.f32 %v2759, %v2824
      %v2837 = vsub.f32 %v2762, %v2824
      %v2838 = vsub.f32 %v2764, %v2824
      %v2839 = vsub.f32 %v2767, %v2824
      %v2840 = vsub.f32 %v2769, %v2824
      %v2841 = vmul.f32 %v2825, %v2825
      %v2842 = vmul.f32 %v2826, %v2826
      %v2843 = vmul.f32 %v2827, %v2827
      %v2844 = vmul.f32 %v2828, %v2828
      %v2845 = vmul.f32 %v2829, %v2829
      %v2846 = vmul.f32 %v2830, %v2830
      %v2847 = vmul.f32 %v2831, %v2831
      %v2848 = vmul.f32 %v2832, %v2832
      %v2849 = vmul.f32 %v2833, %v2833
      %v2850 = vmul.f32 %v2834, %v2834
      %v2851 = vmul.f32 %v2835, %v2835
      %v2852 = vmul.f32 %v2836, %v2836
      %v2853 = vmul.f32 %v2837, %v2837
      %v2854 = vmul.f32 %v2838, %v2838
      %v2855 = vmul.f32 %v2839, %v2839
      %v2856 = vmul.f32 %v2840, %v2840
      %v2857 = vadd.f32 %v2841, %v2842
      %v2858 = vadd.f32 %v2857, %v2843
      %v2859 = vadd.f32 %v2858, %v2844
      %v2860 = vadd.f32 %v2859, %v2845
      %v2861 = vadd.f32 %v2860, %v2846
      %v2862 = vadd.f32 %v2861, %v2847
      %v2863 = vadd.f32 %v2862, %v2848
      %v2864 = vadd.f32 %v2863, %v2849
      %v2865 = vadd.f32 %v2864, %v2850
      %v2866 = vadd.f32 %v2865, %v2851
      %v2867 = vadd.f32 %v2866, %v2852
      %v2868 = vadd.f32 %v2867, %v2853
      %v2869 = vadd.f32 %v2868, %v2854
      %v2870 = vadd.f32 %v2869, %v2855
      %v2871 = vadd.f32 %v2870, %v2856
      %v2872 = vrot.slane %v2871, 4
      %v2873 = vadd.f32 %v2871, %v2872
      %v2874 = vrot.slane %v2873, 2
      %v2875 = vadd.f32 %v2873, %v2874
      %v2876 = vrot.slane %v2875, 1
      %v2877 = vadd.f32 %v2875, %v2876
      %2878 = vst [vmem:[%s503] sm:$0x1] %v2824
      %2879 = vst [vmem:[%s510] sm:$0x1] %v2877
      %s2880 = smul.u32 8, %s25
      %p2881 = scmp.lt.s32.totalorder %s24, 1
      %s2882 = scalar_select %p2881, %s24, 1
      %p2883 = scmp.lt.s32.totalorder %s2880, 15
      %s2884 = scalar_select %p2883, %s2880, 15
      %s2885 = smul.addr %s2884, 2
      %s2886 = smul.addr %s2882, 32
      %s2887 = sadd.s32 %s2885, %s2886
      %s2888 = smul.addr %s2887, 4
      %s2889 = scalar_lea.vmem %s6, %s2888
      %p2890 = scmp.lt.s32.totalorder %s24, 1
      %s2891 = scalar_select %p2890, %s24, 1
      %p2892 = scmp.lt.s32.totalorder %s25, 1
      %s2893 = scalar_select %p2892, %s25, 1
      %s2894 = smul.addr %s2891, 2
      %s2895 = sadd.s32 %s2893, %s2894
      %s2896 = scalar_lea.vmem %s7, %s2895
      %p2897 = scmp.lt.s32.totalorder %s24, 1
      %s2898 = scalar_select %p2897, %s24, 1
      %p2899 = scmp.lt.s32.totalorder %s25, 1
      %s2900 = scalar_select %p2899, %s25, 1
      %s2901 = smul.addr %s2898, 2
      %s2902 = sadd.s32 %s2900, %s2901
      %s2903 = scalar_lea.vmem %s8, %s2902
      // Predicated region
      $region45: #{basic_block_forward.4} parent=43 // pred_check
        %p2904 = pneg %p215
      $region46: #{basic_block_forward.4} parent=43 // pred_check_branch
        %2906 = sbr.rel (%p2904) target = $region48
      $region47: #{basic_block_forward.4} parent=43 // pred_region
        %s2907 = smul.u32 8, %s25
      $region48: #{basic_block_forward.4} parent=43 // pred_fallthru
        _
      // Predicated region
      $region49: #{basic_block_forward.4} parent=43 // pred_check
        %p2908 = pneg %p243
      $region50: #{basic_block_forward.4} parent=43 // pred_check_branch
        %2910 = sbr.rel (%p2908) target = $region52
      $region51: #{basic_block_forward.4} parent=43 // pred_region
        _
      $region52: #{basic_block_forward.4} parent=43 // pred_fallthru
        _
      // Predicated region
      $region53: #{basic_block_forward.4} parent=43 // pred_check
        %p2911 = pneg %p271
      $region54: #{basic_block_forward.4} parent=43 // pred_check_branch
        %2913 = sbr.rel (%p2911) target = $region56
      $region55: #{basic_block_forward.4} parent=43 // pred_region
        _
      $region56: #{basic_block_forward.4} parent=43 // pred_fallthru
        _
    $region44: #{basic_block_forward.4} parent=5 // pred_fallthru
      _
    %p2914 = scmp.le.s32.totalorder 2, %s15
    // Predicated region
    $region57: #{basic_block_forward.4} parent=5 // pred_check
      %p2915 = pneg %p2914
    $region58: #{basic_block_forward.4} parent=5 // pred_check_branch
      %2917 = sbr.rel (%p2915) target = $region60
    $region59: #{basic_block_forward.4} parent=5 // pred_region
      %s2918 = ssub.s32 %s15, 2
      // Predicated region
      $region61: #{basic_block_forward.4} parent=59 // pred_check
        %p2919 = pneg %p221
      $region62: #{basic_block_forward.4} parent=59 // pred_check_branch
        %2921 = sbr.rel (%p2919) target = $region64
      $region63: #{basic_block_forward.4} parent=59 // pred_region
        %s2922 = smul.u32 8, %s27
        %p2923 = scmp.lt.s32.totalorder %s26, 1
        %s2924 = scalar_select %p2923, %s26, 1
        %p2925 = scmp.lt.s32.totalorder %s2922, 15
        %s2926 = scalar_select %p2925, %s2922, 15
        %s2927 = smul.addr %s2926, 2
        %s2928 = smul.addr %s2924, 32
        %s2929 = sadd.s32 %s2927, %s2928
        %s2930 = smul.addr %s2929, 4
        %s2931 = scalar_lea.vmem %s6, %s2930
      $region64: #{basic_block_forward.4} parent=59 // pred_fallthru
        _
      // Predicated region
      $region65: #{basic_block_forward.4} parent=59 // pred_check
        %p2932 = pneg %p249
      $region66: #{basic_block_forward.4} parent=59 // pred_check_branch
        %2934 = sbr.rel (%p2932) target = $region68
      $region67: #{basic_block_forward.4} parent=59 // pred_region
        %p2935 = scmp.lt.s32.totalorder %s26, 1
        %s2936 = scalar_select %p2935, %s26, 1
        %p2937 = scmp.lt.s32.totalorder %s27, 1
        %s2938 = scalar_select %p2937, %s27, 1
        %s2939 = smul.addr %s2936, 2
        %s2940 = sadd.s32 %s2938, %s2939
        %s2941 = scalar_lea.vmem %s7, %s2940
      $region68: #{basic_block_forward.4} parent=59 // pred_fallthru
        _
      // Predicated region
      $region69: #{basic_block_forward.4} parent=59 // pred_check
        %p2942 = pneg %p277
      $region70: #{basic_block_forward.4} parent=59 // pred_check_branch
        %2944 = sbr.rel (%p2942) target = $region72
      $region71: #{basic_block_forward.4} parent=59 // pred_region
        %p2945 = scmp.lt.s32.totalorder %s26, 1
        %s2946 = scalar_select %p2945, %s26, 1
        %p2947 = scmp.lt.s32.totalorder %s27, 1
        %s2948 = scalar_select %p2947, %s27, 1
        %s2949 = smul.addr %s2946, 2
        %s2950 = sadd.s32 %s2948, %s2949
        %s2951 = scalar_lea.vmem %s8, %s2950
      $region72: #{basic_block_forward.4} parent=59 // pred_fallthru
        _
    $region60: #{basic_block_forward.4} parent=5 // pred_fallthru
      _
  $region6: #{basic_block_forward.4} parent=0 // loop_footer
    %s19 = sadd.s32 1, %s15
  $region7: #{basic_block_forward.4} parent=0 // loop_footer_branch
    %14 = sbr.rel target = $region3
  $region8: #{basic_block_forward.4} parent=0 // loop_exit
    _

// kernel: basic_block_forward.3
$region0: #{basic_block_forward.3}
  #allocation0 [shape = 'u32[]', space=smem, size = 0x4, offset = 0x4, fixed_abs, tag = 'smem constant byte address 0x4 - core index']
  #allocation1 [shape = 'u32[72,128]{1,0:T(1,128)}', space=vmem, size = 0x9000, scoped, tag = 'internal scratch']
  #allocation2 [shape = 'bf16[1,10,18,8]{3,2,1,0:T(8,128)(2,1)}', space=vmem, size = 0xf000, scoped, tag = 'scratch operand']
  #allocation3 [shape = 'bf16[1,8,16,128]{3,2,1,0:T(8,128)(2,1)}', space=vmem, size = 0x8000, scoped, tag = 'scratch operand']
  %s0 = inlined_call_operand.vmem [shape: bf16[2,16,16,8], index: 0, kind: input, shape index: {}, may-alias: {0,1,2}]
  %s1 = inlined_call_operand.vmem [shape: bf16[2,16,16,8], index: 1, kind: input, shape index: {}, may-alias: {0,1,2}]
  %s2 = inlined_call_operand.vmem [shape: bf16[2,16,16,8], index: 2, kind: input, shape index: {}, may-alias: {0,1,2}]
  %s3 = inlined_call_operand.vmem [shape: bf16[128,128], index: 3, kind: input, shape index: {}]
  %s4 = inlined_call_operand.vmem [shape: bf16[2,16,16,8], index: 4, kind: output, shape index: {0}]
  %s5 = inlined_call_operand.vmem [shape: f32[2,2,1,128], index: 5, kind: output, shape index: {1}]
  %s6 = inlined_call_operand.vmem [shape: f32[2,2,1,128], index: 6, kind: output, shape index: {2}]
  %7 = xla_tuple %s4, %s5, %s6
  %s8 = sld [smem:[#allocation0]]
  $region65: #{basic_block_forward.3} parent=0
    _
  %s10 = ssub.s32 1, %s8
  %s11 = scalar_select 0, %s10, %s8
  loop: start=0, step=1, limit=6
  $region2: #{basic_block_forward.3} parent=0 // loop_pre_header
    _
  $region3: #{basic_block_forward.3} parent=0 // loop_header
    %s13 = sphi 0, %s17
    %p14 = scmp.ge.s32.totalorder %s13, 6
    %s20 = sphi 0, %s32
    %s21 = sphi 0, %s28
    %s22 = sphi 0, %s20
    %s23 = sphi 0, %s21
    %s24 = sphi 0, %s22
    %s25 = sphi 0, %s23
    %s37 = sphi 0, %s39
    %s40 = sphi 0, %s37
    %s41 = sphi 0, %s40
    %s57 = sphi 0, %s41
    %s73 = sphi 0, %s75
    %s76 = sphi 0, %s73
    %s77 = sphi 0, %s76
    %s93 = sphi 0, %s77
    %s109 = sphi 0, %s111
    %s112 = sphi 0, %s109
    %s113 = sphi 0, %s112
    %s129 = sphi 0, %s113
    %s133 = sphi 0, %s133
    %s135 = sphi 0, %s133
    %s136 = sphi 0, %s135
    %s150 = sphi 0, %s136
    %s158 = sphi 0, %s160
    %s161 = sphi 0, %s158
    %s162 = sphi 0, %s161
    %s178 = sphi 0, %s162
    %s186 = sphi 0, %s188
    %s189 = sphi 0, %s186
    %s190 = sphi 0, %s189
    %s206 = sphi 0, %s190
    %s214 = sphi 0, %s216
    %s217 = sphi 0, %s214
    %s218 = sphi 0, %s217
    %s234 = sphi 0, %s218
  $region4: #{basic_block_forward.3} parent=0 // loop_header_branch
    %16 = sbr.rel (%p14) target = $region8
  $region5: #{basic_block_forward.3} parent=0 // loop_body
    %s18 = ssub.s32 %s13, 1
    %s19 = ssub.s32 %s13, 2
    %s26 = sadd.s32 1, %s21
    %p27 = scmp.ge.s32.totalorder %s26, 2
    %s28 = scalar_select %p27, 0, %s26
    %s29 = sadd.s32 1, %s20
    %s30 = scalar_select %p27, %s29, %s20
    %p31 = scmp.ge.s32.totalorder %s30, 2
    %s32 = scalar_select %p31, 0, %s30
    %s33 = ssub.s32 %s20, %s32
    %s34 = ssub.s32 %s21, %s28
    %s35 = sor.u32 %s33, %s34
    %p36 = scmp.eq.s32.totalorder %s35, 0
    %s38 = sadd.s32 %s37, 1
    %s39 = scalar_select %p36, %s37, %s38
    %p42 = pneg %p36
    %p43 = scmp.eq.s32.totalorder %s13, 3
    %p44 = por %p42, %p43
    %p45 = scmp.ne.s32.totalorder %s37, %s40
    %p46 = scmp.eq.s32.totalorder %s13, 0
    %p47 = por %p45, %p46
    %p48 = scmp.ne.s32.totalorder %s37, %s40
    %p49 = scmp.eq.s32.totalorder %s18, 3
    %p50 = por %p48, %p49
    %p51 = scmp.ne.s32.totalorder %s40, %s41
    %p52 = scmp.eq.s32.totalorder %s18, 0
    %p53 = por %p51, %p52
    %p54 = scmp.ne.s32.totalorder %s40, %s41
    %p55 = scmp.eq.s32.totalorder %s19, 3
    %p56 = por %p54, %p55
    %p58 = scmp.ne.s32.totalorder %s41, %s57
    %p59 = scmp.eq.s32.totalorder %s19, 0
    %p60 = por %p58, %p59
    %s61 = smul.u32 %s21, 8
    %s62 = ssub.s32 %s61, 1
    %p63 = scmp.gt.s32.totalorder %s62, 0
    %s64 = scalar_select %p63, %s62, 0
    %s65 = smul.u32 %s28, 8
    %s66 = ssub.s32 %s65, 1
    %p67 = scmp.gt.s32.totalorder %s66, 0
    %s68 = scalar_select %p67, %s66, 0
    %s69 = ssub.s32 %s20, %s32
    %s70 = ssub.s32 %s64, %s68
    %s71 = sor.u32 %s69, %s70
    %p72 = scmp.eq.s32.totalorder %s71, 0
    %s74 = sadd.s32 %s73, 1
    %s75 = scalar_select %p72, %s73, %s74
    %p78 = pneg %p72
    %p79 = scmp.eq.s32.totalorder %s13, 3
    %p80 = por %p78, %p79
    %p81 = scmp.ne.s32.totalorder %s73, %s76
    %p82 = scmp.eq.s32.totalorder %s13, 0
    %p83 = por %p81, %p82
    %p84 = scmp.ne.s32.totalorder %s73, %s76
    %p85 = scmp.eq.s32.totalorder %s18, 3
    %p86 = por %p84, %p85
    %p87 = scmp.ne.s32.totalorder %s76, %s77
    %p88 = scmp.eq.s32.totalorder %s18, 0
    %p89 = por %p87, %p88
    %p90 = scmp.ne.s32.totalorder %s76, %s77
    %p91 = scmp.eq.s32.totalorder %s19, 3
    %p92 = por %p90, %p91
    %p94 = scmp.ne.s32.totalorder %s77, %s93
    %p95 = scmp.eq.s32.totalorder %s19, 0
    %p96 = por %p94, %p95
    %s97 = smul.u32 %s21, 8
    %s98 = sadd.s32 %s97, 8
    %p99 = scmp.lt.s32.totalorder %s98, 15
    %s100 = scalar_select %p99, %s98, 15
    %s101 = smul.u32 %s28, 8
    %s102 = sadd.s32 %s101, 8
    %p103 = scmp.lt.s32.totalorder %s102, 15
    %s104 = scalar_select %p103, %s102, 15
    %s105 = ssub.s32 %s20, %s32
    %s106 = ssub.s32 %s100, %s104
    %s107 = sor.u32 %s105, %s106
    %p108 = scmp.eq.s32.totalorder %s107, 0
    %s110 = sadd.s32 %s109, 1
    %s111 = scalar_select %p108, %s109, %s110
    %p114 = pneg %p108
    %p115 = scmp.eq.s32.totalorder %s13, 3
    %p116 = por %p114, %p115
    %p117 = scmp.ne.s32.totalorder %s109, %s112
    %p118 = scmp.eq.s32.totalorder %s13, 0
    %p119 = por %p117, %p118
    %p120 = scmp.ne.s32.totalorder %s109, %s112
    %p121 = scmp.eq.s32.totalorder %s18, 3
    %p122 = por %p120, %p121
    %p123 = scmp.ne.s32.totalorder %s112, %s113
    %p124 = scmp.eq.s32.totalorder %s18, 0
    %p125 = por %p123, %p124
    %p126 = scmp.ne.s32.totalorder %s112, %s113
    %p127 = scmp.eq.s32.totalorder %s19, 3
    %p128 = por %p126, %p127
    %p130 = scmp.ne.s32.totalorder %s113, %s129
    %p131 = scmp.eq.s32.totalorder %s19, 0
    %p132 = por %p130, %p131
    %s134 = sadd.s32 %s133, 1
    %p137 = scmp.eq.s32.totalorder %s13, 3
    %p138 = scmp.ne.s32.totalorder %s133, %s135
    %p139 = scmp.eq.s32.totalorder %s13, 0
    %p140 = por %p138, %p139
    %p141 = scmp.ne.s32.totalorder %s133, %s135
    %p142 = scmp.eq.s32.totalorder %s18, 3
    %p143 = por %p141, %p142
    %p144 = scmp.ne.s32.totalorder %s135, %s136
    %p145 = scmp.eq.s32.totalorder %s18, 0
    %p146 = por %p144, %p145
    %p147 = scmp.ne.s32.totalorder %s135, %s136
    %p148 = scmp.eq.s32.totalorder %s19, 3
    %p149 = por %p147, %p148
    %p151 = scmp.ne.s32.totalorder %s136, %s150
    %p152 = scmp.eq.s32.totalorder %s19, 0
    %p153 = por %p151, %p152
    %s154 = ssub.s32 %s20, %s32
    %s155 = ssub.s32 %s21, %s28
    %s156 = sor.u32 %s154, %s155
    %p157 = scmp.eq.s32.totalorder %s156, 0
    %s159 = sadd.s32 %s158, 1
    %s160 = scalar_select %p157, %s158, %s159
    %p163 = pneg %p157
    %p164 = scmp.eq.s32.totalorder %s13, 3
    %p165 = por %p163, %p164
    %p166 = scmp.ne.s32.totalorder %s158, %s161
    %p167 = scmp.eq.s32.totalorder %s13, 0
    %p168 = por %p166, %p167
    %p169 = scmp.ne.s32.totalorder %s158, %s161
    %p170 = scmp.eq.s32.totalorder %s18, 3
    %p171 = por %p169, %p170
    %p172 = scmp.ne.s32.totalorder %s161, %s162
    %p173 = scmp.eq.s32.totalorder %s18, 0
    %p174 = por %p172, %p173
    %p175 = scmp.ne.s32.totalorder %s161, %s162
    %p176 = scmp.eq.s32.totalorder %s19, 3
    %p177 = por %p175, %p176
    %p179 = scmp.ne.s32.totalorder %s162, %s178
    %p180 = scmp.eq.s32.totalorder %s19, 0
    %p181 = por %p179, %p180
    %s182 = ssub.s32 %s20, %s32
    %s183 = ssub.s32 %s21, %s28
    %s184 = sor.u32 %s182, %s183
    %p185 = scmp.eq.s32.totalorder %s184, 0
    %s187 = sadd.s32 %s186, 1
    %s188 = scalar_select %p185, %s186, %s187
    %p191 = pneg %p185
    %p192 = scmp.eq.s32.totalorder %s13, 3
    %p193 = por %p191, %p192
    %p194 = scmp.ne.s32.totalorder %s186, %s189
    %p195 = scmp.eq.s32.totalorder %s13, 0
    %p196 = por %p194, %p195
    %p197 = scmp.ne.s32.totalorder %s186, %s189
    %p198 = scmp.eq.s32.totalorder %s18, 3
    %p199 = por %p197, %p198
    %p200 = scmp.ne.s32.totalorder %s189, %s190
    %p201 = scmp.eq.s32.totalorder %s18, 0
    %p202 = por %p200, %p201
    %p203 = scmp.ne.s32.totalorder %s189, %s190
    %p204 = scmp.eq.s32.totalorder %s19, 3
    %p205 = por %p203, %p204
    %p207 = scmp.ne.s32.totalorder %s190, %s206
    %p208 = scmp.eq.s32.totalorder %s19, 0
    %p209 = por %p207, %p208
    %s210 = ssub.s32 %s20, %s32
    %s211 = ssub.s32 %s21, %s28
    %s212 = sor.u32 %s210, %s211
    %p213 = scmp.eq.s32.totalorder %s212, 0
    %s215 = sadd.s32 %s214, 1
    %s216 = scalar_select %p213, %s214, %s215
    %p219 = pneg %p213
    %p220 = scmp.eq.s32.totalorder %s13, 3
    %p221 = por %p219, %p220
    %p222 = scmp.ne.s32.totalorder %s214, %s217
    %p223 = scmp.eq.s32.totalorder %s13, 0
    %p224 = por %p222, %p223
    %p225 = scmp.ne.s32.totalorder %s214, %s217
    %p226 = scmp.eq.s32.totalorder %s18, 3
    %p227 = por %p225, %p226
    %p228 = scmp.ne.s32.totalorder %s217, %s218
    %p229 = scmp.eq.s32.totalorder %s18, 0
    %p230 = por %p228, %p229
    %p231 = scmp.ne.s32.totalorder %s217, %s218
    %p232 = scmp.eq.s32.totalorder %s19, 3
    %p233 = por %p231, %p232
    %p235 = scmp.ne.s32.totalorder %s218, %s234
    %p236 = scmp.eq.s32.totalorder %s19, 0
    %p237 = por %p235, %p236
    %p238 = scmp.le.s32.totalorder 1, %s13
    %p239 = scmp.lt.s32.totalorder %s13, 5
    %p240 = pnand %p238, %p239
    %p241 = pneg %p240
    // Predicated region
    $region9: #{basic_block_forward.3} parent=5 // pred_check
      _
    $region10: #{basic_block_forward.3} parent=5 // pred_check_branch
      %243 = sbr.rel (%p240) target = $region12
    $region11: #{basic_block_forward.3} parent=5 // pred_region
      %s244 = ssub.s32 %s13, 1
      // Predicated region
      $region13: #{basic_block_forward.3} parent=11 // pred_check
        %p245 = pneg %p146
      $region14: #{basic_block_forward.3} parent=11 // pred_check_branch
        %247 = sbr.rel (%p245) target = $region16
      $region15: #{basic_block_forward.3} parent=11 // pred_region
        _
      $region16: #{basic_block_forward.3} parent=11 // pred_fallthru
        _
    $region12: #{basic_block_forward.3} parent=5 // pred_fallthru
      _
    %p248 = scmp.lt.s32.totalorder %s13, 4
    // Predicated region
    $region17: #{basic_block_forward.3} parent=5 // pred_check
      %p249 = pneg %p248
    $region18: #{basic_block_forward.3} parent=5 // pred_check_branch
      %251 = sbr.rel (%p249) target = $region20
    $region19: #{basic_block_forward.3} parent=5 // pred_region
      // Predicated region
      $region21: #{basic_block_forward.3} parent=19 // pred_check
        %p252 = pneg %p47
      $region22: #{basic_block_forward.3} parent=19 // pred_check_branch
        %254 = sbr.rel (%p252) target = $region24
      $region23: #{basic_block_forward.3} parent=19 // pred_region
        %s255 = smul.u32 8, %s21
        %p256 = scmp.lt.s32.totalorder %s20, 1
        %s257 = scalar_select %p256, %s20, 1
        %p258 = scmp.lt.s32.totalorder %s255, 15
        %s259 = scalar_select %p258, %s255, 15
        %s260 = smul.addr %s259, 2
        %s261 = smul.addr %s257, 32
        %s262 = sadd.s32 %s260, %s261
        %s263 = smul.addr %s262, 4
        %s264 = scalar_lea.vmem %s0, %s263
        %s265 = smul.u32 8, %s21
      $region24: #{basic_block_forward.3} parent=19 // pred_fallthru
        _
      // Predicated region
      $region25: #{basic_block_forward.3} parent=19 // pred_check
        %p266 = pneg %p83
      $region26: #{basic_block_forward.3} parent=19 // pred_check_branch
        %268 = sbr.rel (%p266) target = $region28
      $region27: #{basic_block_forward.3} parent=19 // pred_region
        %s269 = smul.u32 %s21, 8
        %s270 = ssub.s32 %s269, 1
        %p271 = scmp.gt.s32.totalorder %s270, 0
        %s272 = scalar_select %p271, %s270, 0
        %p273 = scmp.lt.s32.totalorder %s20, 1
        %s274 = scalar_select %p273, %s20, 1
        %p275 = scmp.lt.s32.totalorder %s272, 15
        %s276 = scalar_select %p275, %s272, 15
        %s277 = smul.addr %s276, 2
        %s278 = smul.addr %s274, 32
        %s279 = sadd.s32 %s277, %s278
        %s280 = smul.addr %s279, 4
        %s281 = scalar_lea.vmem %s1, %s280
        %s282 = smul.u32 %s21, 8
        %s283 = ssub.s32 %s282, 1
        %p284 = scmp.gt.s32.totalorder %s283, 0
        %s285 = scalar_select %p284, %s283, 0
      $region28: #{basic_block_forward.3} parent=19 // pred_fallthru
        _
      // Predicated region
      $region29: #{basic_block_forward.3} parent=19 // pred_check
        %p286 = pneg %p119
      $region30: #{basic_block_forward.3} parent=19 // pred_check_branch
        %288 = sbr.rel (%p286) target = $region32
      $region31: #{basic_block_forward.3} parent=19 // pred_region
        %s289 = smul.u32 %s21, 8
        %s290 = sadd.s32 %s289, 8
        %p291 = scmp.lt.s32.totalorder %s290, 15
        %s292 = scalar_select %p291, %s290, 15
        %p293 = scmp.lt.s32.totalorder %s20, 1
        %s294 = scalar_select %p293, %s20, 1
        %p295 = scmp.lt.s32.totalorder %s292, 15
        %s296 = scalar_select %p295, %s292, 15
        %s297 = smul.addr %s296, 2
        %s298 = smul.addr %s294, 32
        %s299 = sadd.s32 %s297, %s298
        %s300 = smul.addr %s299, 4
        %s301 = scalar_lea.vmem %s2, %s300
        %s302 = smul.u32 %s21, 8
        %s303 = sadd.s32 %s302, 8
        %p304 = scmp.lt.s32.totalorder %s303, 15
        %s305 = scalar_select %p304, %s303, 15
      $region32: #{basic_block_forward.3} parent=19 // pred_fallthru
        _
    $region20: #{basic_block_forward.3} parent=5 // pred_fallthru
      _
    %p306 = scmp.le.s32.totalorder 1, %s13
    %p307 = scmp.lt.s32.totalorder %s13, 5
    %p308 = pnand %p306, %p307
    %p309 = pneg %p308
    // Predicated region
    $region33: #{basic_block_forward.3} parent=5 // pred_check
      _
    $region34: #{basic_block_forward.3} parent=5 // pred_check_branch
      %311 = sbr.rel (%p308) target = $region36
    $region35: #{basic_block_forward.3} parent=5 // pred_region
      %s312 = ssub.s32 %s13, 1
      %s313 = smul.u32 8, %s23
      %p314 = scmp.lt.s32.totalorder %s22, 1
      %s315 = scalar_select %p314, %s22, 1
      %p316 = scmp.lt.s32.totalorder %s313, 15
      %s317 = scalar_select %p316, %s313, 15
      %s318 = smul.addr %s317, 2
      %s319 = smul.addr %s315, 32
      %s320 = sadd.s32 %s318, %s319
      %s321 = smul.addr %s320, 4
      %s322 = scalar_lea.vmem %s0, %s321
      %p323 = pneg %p53
      %p324 = pneg %p50
      %s325 = smul.u32 %s23, 8
      %s326 = ssub.s32 %s325, 1
      %p327 = scmp.gt.s32.totalorder %s326, 0
      %s328 = scalar_select %p327, %s326, 0
      %p329 = scmp.lt.s32.totalorder %s22, 1
      %s330 = scalar_select %p329, %s22, 1
      %p331 = scmp.lt.s32.totalorder %s328, 15
      %s332 = scalar_select %p331, %s328, 15
      %s333 = smul.addr %s332, 2
      %s334 = smul.addr %s330, 32
      %s335 = sadd.s32 %s333, %s334
      %s336 = smul.addr %s335, 4
      %s337 = scalar_lea.vmem %s1, %s336
      %p338 = pneg %p89
      %p339 = pneg %p86
      %s340 = smul.u32 %s23, 8
      %s341 = sadd.s32 %s340, 8
      %p342 = scmp.lt.s32.totalorder %s341, 15
      %s343 = scalar_select %p342, %s341, 15
      %p344 = scmp.lt.s32.totalorder %s22, 1
      %s345 = scalar_select %p344, %s22, 1
      %p346 = scmp.lt.s32.totalorder %s343, 15
      %s347 = scalar_select %p346, %s343, 15
      %s348 = smul.addr %s347, 2
      %s349 = smul.addr %s345, 32
      %s350 = sadd.s32 %s348, %s349
      %s351 = smul.addr %s350, 4
      %s352 = scalar_lea.vmem %s2, %s351
      %p353 = pneg %p125
      %p354 = pneg %p122
      %p355 = pneg %p146
      %p356 = pneg %p143
      %p357 = pneg %p174
      %p358 = pneg %p171
      %s359 = smul.u32 8, %s23
      %p360 = scmp.lt.s32.totalorder %s22, 1
      %s361 = scalar_select %p360, %s22, 1
      %p362 = scmp.lt.s32.totalorder %s359, 15
      %s363 = scalar_select %p362, %s359, 15
      %s364 = smul.addr %s363, 2
      %s365 = smul.addr %s361, 32
      %s366 = sadd.s32 %s364, %s365
      %s367 = smul.addr %s366, 4
      %s368 = scalar_lea.vmem %s4, %s367
      %p369 = pneg %p202
      %p370 = pneg %p199
      %p371 = scmp.lt.s32.totalorder %s22, 1
      %s372 = scalar_select %p371, %s22, 1
      %p373 = scmp.lt.s32.totalorder %s23, 1
      %s374 = scalar_select %p373, %s23, 1
      %s375 = smul.addr %s372, 2
      %s376 = sadd.s32 %s374, %s375
      %s377 = scalar_lea.vmem %s5, %s376
      %p378 = pneg %p230
      %p379 = pneg %p227
      %p380 = scmp.lt.s32.totalorder %s22, 1
      %s381 = scalar_select %p380, %s22, 1
      %p382 = scmp.lt.s32.totalorder %s23, 1
      %s383 = scalar_select %p382, %s23, 1
      %s384 = smul.addr %s381, 2
      %s385 = sadd.s32 %s383, %s384
      %s386 = scalar_lea.vmem %s6, %s385
      %s387 = smul.u32 8, %s23
      %p388 = scmp.lt.s32.totalorder %s22, 1
      %s389 = scalar_select %p388, %s22, 1
      %p390 = scmp.lt.s32.totalorder %s387, 15
      %s391 = scalar_select %p390, %s387, 15
      %s392 = smul.addr %s391, 2
      %s393 = smul.addr %s389, 32
      %s394 = sadd.s32 %s392, %s393
      %s395 = smul.addr %s394, 4
      %s396 = scalar_lea.vmem %s0, %s395
      %s397 = smul.u32 8, %s23
      %s398 = smul.u32 %s23, 8
      %s399 = ssub.s32 %s398, 1
      %p400 = scmp.gt.s32.totalorder %s399, 0
      %s401 = scalar_select %p400, %s399, 0
      %p402 = scmp.lt.s32.totalorder %s22, 1
      %s403 = scalar_select %p402, %s22, 1
      %p404 = scmp.lt.s32.totalorder %s401, 15
      %s405 = scalar_select %p404, %s401, 15
      %s406 = smul.addr %s405, 2
      %s407 = smul.addr %s403, 32
      %s408 = sadd.s32 %s406, %s407
      %s409 = smul.addr %s408, 4
      %s410 = scalar_lea.vmem %s1, %s409
      %s411 = smul.u32 %s23, 8
      %s412 = ssub.s32 %s411, 1
      %p413 = scmp.gt.s32.totalorder %s412, 0
      %s414 = scalar_select %p413, %s412, 0
      %s415 = smul.u32 %s23, 8
      %s416 = sadd.s32 %s415, 8
      %p417 = scmp.lt.s32.totalorder %s416, 15
      %s418 = scalar_select %p417, %s416, 15
      %p419 = scmp.lt.s32.totalorder %s22, 1
      %s420 = scalar_select %p419, %s22, 1
      %p421 = scmp.lt.s32.totalorder %s418, 15
      %s422 = scalar_select %p421, %s418, 15
      %s423 = smul.addr %s422, 2
      %s424 = smul.addr %s420, 32
      %s425 = sadd.s32 %s423, %s424
      %s426 = smul.addr %s425, 4
      %s427 = scalar_lea.vmem %s2, %s426
      %s428 = smul.u32 %s23, 8
      %s429 = sadd.s32 %s428, 8
      %p430 = scmp.lt.s32.totalorder %s429, 15
      %s431 = scalar_select %p430, %s429, 15
      %s432 = smul.u32 8, %s23
      %p433 = scmp.lt.s32.totalorder %s22, 1
      %s434 = scalar_select %p433, %s22, 1
      %p435 = scmp.lt.s32.totalorder %s432, 15
      %s436 = scalar_select %p435, %s432, 15
      %s437 = smul.addr %s436, 2
      %s438 = smul.addr %s434, 32
      %s439 = sadd.s32 %s437, %s438
      %s440 = smul.addr %s439, 4
      %s441 = scalar_lea.vmem %s4, %s440
      %s442 = smul.u32 8, %s23
      %p443 = scmp.lt.s32.totalorder %s22, 1
      %s444 = scalar_select %p443, %s22, 1
      %p445 = scmp.lt.s32.totalorder %s23, 1
      %s446 = scalar_select %p445, %s23, 1
      %s447 = smul.addr %s444, 2
      %s448 = sadd.s32 %s446, %s447
      %s449 = scalar_lea.vmem %s5, %s448
      %p450 = scmp.lt.s32.totalorder %s22, 1
      %s451 = scalar_select %p450, %s22, 1
      %p452 = scmp.lt.s32.totalorder %s23, 1
      %s453 = scalar_select %p452, %s23, 1
      %s454 = smul.addr %s451, 2
      %s455 = sadd.s32 %s453, %s454
      %s456 = scalar_lea.vmem %s6, %s455
      %v458 = vld [vmem:[%s396] sm:$0xf]
      %v459 = vld [vmem:[%s396 + $0x4] sm:$0xf]
      %v460 = vld [vmem:[%s396 + $0x8] sm:$0xf]
      %v461 = vld [vmem:[%s396 + $0xc] sm:$0xf]
      %v462 = vld [vmem:[%s396 + $0x10] sm:$0xf]
      %v463 = vld [vmem:[%s396 + $0x14] sm:$0xf]
      %v464 = vld [vmem:[%s396 + $0x18] sm:$0xf]
      %v465 = vld [vmem:[%s396 + $0x1c] sm:$0xf]
      %v466 = vld [vmem:[%s396 + $0x20] sm:$0xf]
      %v467 = vld [vmem:[%s396 + $0x24] sm:$0xf]
      %v468 = vld [vmem:[%s396 + $0x28] sm:$0xf]
      %v469 = vld [vmem:[%s396 + $0x2c] sm:$0xf]
      %v470 = vld [vmem:[%s396 + $0x30] sm:$0xf]
      %v471 = vld [vmem:[%s396 + $0x34] sm:$0xf]
      %v472 = vld [vmem:[%s396 + $0x38] sm:$0xf]
      %v473 = vld [vmem:[%s396 + $0x3c] sm:$0xf]
      %v474 = vld [vmem:[%s410] sm:$0xf]
      %v475 = vld [vmem:[%s410 + $0x4] sm:$0xf]
      %v476 = vunpack.c.l.bf16 %v474
      %v477 = vunpack.c.l.bf16 %v475
      %p478 = scmp.gt.s32.totalorder %s23, 0
      %s479 = scalar_select %p478, 1, 0
      %s480 = scvt.s32.f32 %s479
      %v481 = vstv %s480
      %v482 = vmul.f32 %v476, %v481
      %v483 = vmul.f32 %v477, %v481
      %v484 = vld [vmem:[%s427] sm:$0xf]
      %v485 = vld [vmem:[%s427 + $0x4] sm:$0xf]
      %v486 = vunpack.c.l.bf16 %v484
      %v487 = vunpack.c.l.bf16 %v485
      %p488 = scmp.lt.s32.totalorder %s23, 1
      %s489 = scalar_select %p488, 1, 0
      %s490 = scvt.s32.f32 %s489
      %v491 = vstv %s490
      %v492 = vmul.f32 %v486, %v491
      %v493 = vmul.f32 %v487, %v491
      %vm494 = vcmask 57344
      %vm495 = vsmask.f32 256
      %vm496 = vmand %vm494, %vm495
      %v497 = vld [vmem:[#allocation2] sm:$0x1]
      %v498 = vsel %vm496, 0, %v497
      %499 = vst [vmem:[#allocation2] sm:$0x1] %v498
      %v500 = vld [vmem:[#allocation2 + $0xc] sm:$0x1]
      %v501 = vsel %vm496, 0, %v500
      %502 = vst [vmem:[#allocation2 + $0xc] sm:$0x1] %v501
      %v503 = vld [vmem:[#allocation2 + $0x18] sm:$0x1]
      %v504 = vsel %vm496, 0, %v503
      %505 = vst [vmem:[#allocation2 + $0x18] sm:$0x1] %v504
      %v506 = vld [vmem:[#allocation2 + $0x24] sm:$0x1]
      %v507 = vsel %vm496, 0, %v506
      %508 = vst [vmem:[#allocation2 + $0x24] sm:$0x1] %v507
      %v509 = vld [vmem:[#allocation2 + $0x30] sm:$0x1]
      %v510 = vsel %vm496, 0, %v509
      %511 = vst [vmem:[#allocation2 + $0x30] sm:$0x1] %v510
      %v512 = vld [vmem:[#allocation2 + $0x3c] sm:$0x1]
      %v513 = vsel %vm496, 0, %v512
      %514 = vst [vmem:[#allocation2 + $0x3c] sm:$0x1] %v513
      %v515 = vld [vmem:[#allocation2 + $0x48] sm:$0x1]
      %v516 = vsel %vm496, 0, %v515
      %517 = vst [vmem:[#allocation2 + $0x48] sm:$0x1] %v516
      %v518 = vld [vmem:[#allocation2 + $0x54] sm:$0x1]
      %v519 = vsel %vm496, 0, %v518
      %520 = vst [vmem:[#allocation2 + $0x54] sm:$0x1] %v519
      %v521 = vld [vmem:[#allocation2 + $0x60] sm:$0x1]
      %v522 = vsel %vm496, 0, %v521
      %523 = vst [vmem:[#allocation2 + $0x60] sm:$0x1] %v522
      %v524 = vld [vmem:[#allocation2 + $0x6c] sm:$0x1]
      %v525 = vsel %vm496, 0, %v524
      %526 = vst [vmem:[#allocation2 + $0x6c] sm:$0x1] %v525
      %vm527 = vsmask.f32 7938
      %vm528 = vmand %vm494, %vm527
      %v529 = vld [vmem:[#allocation2 + $0x8] sm:$0x1]
      %v530 = vsel %vm528, 0, %v529
      %531 = vst [vmem:[#allocation2 + $0x8] sm:$0x1] %v530
      %v532 = vld [vmem:[#allocation2 + $0x14] sm:$0x1]
      %v533 = vsel %vm528, 0, %v532
      %534 = vst [vmem:[#allocation2 + $0x14] sm:$0x1] %v533
      %v535 = vld [vmem:[#allocation2 + $0x20] sm:$0x1]
      %v536 = vsel %vm528, 0, %v535
      %537 = vst [vmem:[#allocation2 + $0x20] sm:$0x1] %v536
      %v538 = vld [vmem:[#allocation2 + $0x2c] sm:$0x1]
      %v539 = vsel %vm528, 0, %v538
      %540 = vst [vmem:[#allocation2 + $0x2c] sm:$0x1] %v539
      %v541 = vld [vmem:[#allocation2 + $0x38] sm:$0x1]
      %v542 = vsel %vm528, 0, %v541
      %543 = vst [vmem:[#allocation2 + $0x38] sm:$0x1] %v542
      %v544 = vld [vmem:[#allocation2 + $0x44] sm:$0x1]
      %v545 = vsel %vm528, 0, %v544
      %546 = vst [vmem:[#allocation2 + $0x44] sm:$0x1] %v545
      %v547 = vld [vmem:[#allocation2 + $0x50] sm:$0x1]
      %v548 = vsel %vm528, 0, %v547
      %549 = vst [vmem:[#allocation2 + $0x50] sm:$0x1] %v548
      %v550 = vld [vmem:[#allocation2 + $0x5c] sm:$0x1]
      %v551 = vsel %vm528, 0, %v550
      %552 = vst [vmem:[#allocation2 + $0x5c] sm:$0x1] %v551
      %v553 = vld [vmem:[#allocation2 + $0x68] sm:$0x1]
      %v554 = vsel %vm528, 0, %v553
      %555 = vst [vmem:[#allocation2 + $0x68] sm:$0x1] %v554
      %v556 = vld [vmem:[#allocation2 + $0x74] sm:$0x1]
      %v557 = vsel %vm528, 0, %v556
      %558 = vst [vmem:[#allocation2 + $0x74] sm:$0x1] %v557
      %v559 = vpack.c.bf16 %v482, %v482
      %v560 = vpack.c.bf16 %v483, %v483
      %vm561 = vsmask.f32 4368
      %vm562 = vmor %vm495, %vm561
      %v564 = vshrl.u32 %v559, 16
      %v566 = vrot.slane %v564, 7
      %v567 = vshll.u32 %v559, 16
      %v569 = vor.u32 %v566, %v567
      %v570 = vrot.slane %v566, 4
      %v572 = vshrl.u32 %v560, 16
      %v574 = vrot.slane %v572, 7
      %v575 = vshll.u32 %v560, 16
      %v577 = vor.u32 %v574, %v575
      %v578 = vsel %vm562, %v570, %v577
      %v579 = vrot.slane %v574, 4
      %vm583 = vcmask 60416
      %vm584 = vmand %vm583, %vm527
      %v585 = vld [vmem:[#allocation2] sm:$0xf]
      %v586 = vsel %vm584, %v569, %v585
      %587 = vst [vmem:[#allocation2] sm:$0xf] %v586
      %vm588 = vcmask 60416
      %589 = vst.msk [vmem:[#allocation2 + $0x4] sm:$0xf] %vm588, %v578
      %v590 = vld [vmem:[#allocation2 + $0x8] sm:$0x1]
      %v591 = vsel %vm496, %v579, %v590
      %592 = vst [vmem:[#allocation2 + $0x8] sm:$0x1] %v591
      %v593 = vpack.c.bf16 %v492, %v492
      %v594 = vpack.c.bf16 %v493, %v493
      %v596 = vshrl.u32 %v593, 16
      %v598 = vrot.slane %v596, 7
      %v599 = vshll.u32 %v593, 16
      %v601 = vor.u32 %v598, %v599
      %v602 = vrot.slane %v598, 4
      %v604 = vshrl.u32 %v594, 16
      %v606 = vrot.slane %v604, 7
      %v607 = vshll.u32 %v594, 16
      %v609 = vor.u32 %v606, %v607
      %v610 = vsel %vm562, %v602, %v609
      %v611 = vrot.slane %v606, 4
      %s615 = scalar_lea.vmem [#allocation2], 108
      %v616 = vld [vmem:[%s615] sm:$0xf]
      %v617 = vsel %vm584, %v601, %v616
      %618 = vst [vmem:[%s615] sm:$0xf] %v617
      %619 = vst.msk [vmem:[%s615 + $0x4] sm:$0xf] %vm588, %v610
      %v620 = vld [vmem:[%s615 + $0x8] sm:$0x1]
      %v621 = vsel %vm496, %v611, %v620
      %622 = vst [vmem:[%s615 + $0x8] sm:$0x1] %v621
      %v624 = vshrl.u32 %v458, 16
      %v626 = vrot.slane %v624, 7
      %v627 = vshll.u32 %v458, 16
      %v629 = vor.u32 %v626, %v627
      %v630 = vrot.slane %v626, 4
      %v632 = vshrl.u32 %v459, 16
      %v634 = vrot.slane %v632, 7
      %v635 = vshll.u32 %v459, 16
      %v637 = vor.u32 %v634, %v635
      %v638 = vsel %vm562, %v630, %v637
      %v639 = vrot.slane %v634, 4
      %v641 = vshrl.u32 %v460, 16
      %v643 = vrot.slane %v641, 7
      %v644 = vshll.u32 %v460, 16
      %v646 = vor.u32 %v643, %v644
      %v647 = vrot.slane %v643, 4
      %v649 = vshrl.u32 %v461, 16
      %v651 = vrot.slane %v649, 7
      %v652 = vshll.u32 %v461, 16
      %v654 = vor.u32 %v651, %v652
      %v655 = vsel %vm562, %v647, %v654
      %v656 = vrot.slane %v651, 4
      %v658 = vshrl.u32 %v462, 16
      %v660 = vrot.slane %v658, 7
      %v661 = vshll.u32 %v462, 16
      %v663 = vor.u32 %v660, %v661
      %v664 = vrot.slane %v660, 4
      %v666 = vshrl.u32 %v463, 16
      %v668 = vrot.slane %v666, 7
      %v669 = vshll.u32 %v463, 16
      %v671 = vor.u32 %v668, %v669
      %v672 = vsel %vm562, %v664, %v671
      %v673 = vrot.slane %v668, 4
      %v675 = vshrl.u32 %v464, 16
      %v677 = vrot.slane %v675, 7
      %v678 = vshll.u32 %v464, 16
      %v680 = vor.u32 %v677, %v678
      %v681 = vrot.slane %v677, 4
      %v683 = vshrl.u32 %v465, 16
      %v685 = vrot.slane %v683, 7
      %v686 = vshll.u32 %v465, 16
      %v688 = vor.u32 %v685, %v686
      %v689 = vsel %vm562, %v681, %v688
      %v690 = vrot.slane %v685, 4
      %v692 = vshrl.u32 %v466, 16
      %v694 = vrot.slane %v692, 7
      %v695 = vshll.u32 %v466, 16
      %v697 = vor.u32 %v694, %v695
      %v698 = vrot.slane %v694, 4
      %v700 = vshrl.u32 %v467, 16
      %v702 = vrot.slane %v700, 7
      %v703 = vshll.u32 %v467, 16
      %v705 = vor.u32 %v702, %v703
      %v706 = vsel %vm562, %v698, %v705
      %v707 = vrot.slane %v702, 4
      %v709 = vshrl.u32 %v468, 16
      %v711 = vrot.slane %v709, 7
      %v712 = vshll.u32 %v468, 16
      %v714 = vor.u32 %v711, %v712
      %v715 = vrot.slane %v711, 4
      %v717 = vshrl.u32 %v469, 16
      %v719 = vrot.slane %v717, 7
      %v720 = vshll.u32 %v469, 16
      %v722 = vor.u32 %v719, %v720
      %v723 = vsel %vm562, %v715, %v722
      %v724 = vrot.slane %v719, 4
      %v726 = vshrl.u32 %v470, 16
      %v728 = vrot.slane %v726, 7
      %v729 = vshll.u32 %v470, 16
      %v731 = vor.u32 %v728, %v729
      %v732 = vrot.slane %v728, 4
      %v734 = vshrl.u32 %v471, 16
      %v736 = vrot.slane %v734, 7
      %v737 = vshll.u32 %v471, 16
      %v739 = vor.u32 %v736, %v737
      %v740 = vsel %vm562, %v732, %v739
      %v741 = vrot.slane %v736, 4
      %v743 = vshrl.u32 %v472, 16
      %v745 = vrot.slane %v743, 7
      %v746 = vshll.u32 %v472, 16
      %v748 = vor.u32 %v745, %v746
      %v749 = vrot.slane %v745, 4
      %v751 = vshrl.u32 %v473, 16
      %v753 = vrot.slane %v751, 7
      %v754 = vshll.u32 %v473, 16
      %v756 = vor.u32 %v753, %v754
      %v757 = vsel %vm562, %v749, %v756
      %v758 = vrot.slane %v753, 4
      %s783 = scalar_lea.vmem [#allocation2], 12
      %v784 = vld [vmem:[%s783] sm:$0xf]
      %v785 = vsel %vm584, %v629, %v784
      %786 = vst [vmem:[%s783] sm:$0xf] %v785
      %787 = vst.msk [vmem:[%s783 + $0x4] sm:$0xf] %vm588, %v638
      %v788 = vld [vmem:[%s783 + $0x8] sm:$0x1]
      %v789 = vsel %vm496, %v639, %v788
      %790 = vst [vmem:[%s783 + $0x8] sm:$0x1] %v789
      %v791 = vld [vmem:[%s783 + $0xc] sm:$0xf]
      %v792 = vsel %vm584, %v646, %v791
      %793 = vst [vmem:[%s783 + $0xc] sm:$0xf] %v792
      %794 = vst.msk [vmem:[%s783 + $0x10] sm:$0xf] %vm588, %v655
      %v795 = vld [vmem:[%s783 + $0x14] sm:$0x1]
      %v796 = vsel %vm496, %v656, %v795
      %797 = vst [vmem:[%s783 + $0x14] sm:$0x1] %v796
      %v798 = vld [vmem:[%s783 + $0x18] sm:$0xf]
      %v799 = vsel %vm584, %v663, %v798
      %800 = vst [vmem:[%s783 + $0x18] sm:$0xf] %v799
      %801 = vst.msk [vmem:[%s783 + $0x1c] sm:$0xf] %vm588, %v672
      %v802 = vld [vmem:[%s783 + $0x20] sm:$0x1]
      %v803 = vsel %vm496, %v673, %v802
      %804 = vst [vmem:[%s783 + $0x20] sm:$0x1] %v803
      %v805 = vld [vmem:[%s783 + $0x24] sm:$0xf]
      %v806 = vsel %vm584, %v680, %v805
      %807 = vst [vmem:[%s783 + $0x24] sm:$0xf] %v806
      %808 = vst.msk [vmem:[%s783 + $0x28] sm:$0xf] %vm588, %v689
      %v809 = vld [vmem:[%s783 + $0x2c] sm:$0x1]
      %v810 = vsel %vm496, %v690, %v809
      %811 = vst [vmem:[%s783 + $0x2c] sm:$0x1] %v810
      %v812 = vld [vmem:[%s783 + $0x30] sm:$0xf]
      %v813 = vsel %vm584, %v697, %v812
      %814 = vst [vmem:[%s783 + $0x30] sm:$0xf] %v813
      %815 = vst.msk [vmem:[%s783 + $0x34] sm:$0xf] %vm588, %v706
      %v816 = vld [vmem:[%s783 + $0x38] sm:$0x1]
      %v817 = vsel %vm496, %v707, %v816
      %818 = vst [vmem:[%s783 + $0x38] sm:$0x1] %v817
      %v819 = vld [vmem:[%s783 + $0x3c] sm:$0xf]
      %v820 = vsel %vm584, %v714, %v819
      %821 = vst [vmem:[%s783 + $0x3c] sm:$0xf] %v820
      %822 = vst.msk [vmem:[%s783 + $0x40] sm:$0xf] %vm588, %v723
      %v823 = vld [vmem:[%s783 + $0x44] sm:$0x1]
      %v824 = vsel %vm496, %v724, %v823
      %825 = vst [vmem:[%s783 + $0x44] sm:$0x1] %v824
      %v826 = vld [vmem:[%s783 + $0x48] sm:$0xf]
      %v827 = vsel %vm584, %v731, %v826
      %828 = vst [vmem:[%s783 + $0x48] sm:$0xf] %v827
      %829 = vst.msk [vmem:[%s783 + $0x4c] sm:$0xf] %vm588, %v740
      %v830 = vld [vmem:[%s783 + $0x50] sm:$0x1]
      %v831 = vsel %vm496, %v741, %v830
      %832 = vst [vmem:[%s783 + $0x50] sm:$0x1] %v831
      %v833 = vld [vmem:[%s783 + $0x54] sm:$0xf]
      %v834 = vsel %vm584, %v748, %v833
      %835 = vst [vmem:[%s783 + $0x54] sm:$0xf] %v834
      %836 = vst.msk [vmem:[%s783 + $0x58] sm:$0xf] %vm588, %v757
      %v837 = vld [vmem:[%s783 + $0x5c] sm:$0x1]
      %v838 = vsel %vm496, %v758, %v837
      %839 = vst [vmem:[%s783 + $0x5c] sm:$0x1] %v838
      %v840 = vld [vmem:[#allocation2] sm:$0xf]
      %v841 = vld [vmem:[#allocation2 + $0x4] sm:$0xf]
      %v842 = vld [vmem:[#allocation2 + $0xc] sm:$0xf]
      %v843 = vld [vmem:[#allocation2 + $0x10] sm:$0xf]
      %v844 = vld [vmem:[#allocation2 + $0x18] sm:$0xf]
      %v845 = vld [vmem:[#allocation2 + $0x1c] sm:$0xf]
      %v846 = vld [vmem:[#allocation2 + $0x24] sm:$0xf]
      %v847 = vld [vmem:[#allocation2 + $0x28] sm:$0xf]
      %v848 = vld [vmem:[#allocation2 + $0x30] sm:$0xf]
      %v849 = vld [vmem:[#allocation2 + $0x34] sm:$0xf]
      %v850 = vld [vmem:[#allocation2 + $0x3c] sm:$0xf]
      %v851 = vld [vmem:[#allocation2 + $0x40] sm:$0xf]
      %v852 = vld [vmem:[#allocation2 + $0x48] sm:$0xf]
      %v853 = vld [vmem:[#allocation2 + $0x4c] sm:$0xf]
      %v854 = vld [vmem:[#allocation2 + $0x54] sm:$0xf]
      %v855 = vld [vmem:[#allocation2 + $0x58] sm:$0xf]
      %856 = vst.msk [vmem:[#allocation3] sm:$0xf] %vm588, %v840
      %857 = vst.msk [vmem:[#allocation3 + $0x4] sm:$0xf] %vm588, %v841
      %858 = vst.msk [vmem:[#allocation3 + $0x8] sm:$0xf] %vm588, %v842
      %859 = vst.msk [vmem:[#allocation3 + $0xc] sm:$0xf] %vm588, %v843
      %860 = vst.msk [vmem:[#allocation3 + $0x10] sm:$0xf] %vm588, %v844
      %861 = vst.msk [vmem:[#allocation3 + $0x14] sm:$0xf] %vm588, %v845
      %862 = vst.msk [vmem:[#allocation3 + $0x18] sm:$0xf] %vm588, %v846
      %863 = vst.msk [vmem:[#allocation3 + $0x1c] sm:$0xf] %vm588, %v847
      %864 = vst.msk [vmem:[#allocation3 + $0x20] sm:$0xf] %vm588, %v848
      %865 = vst.msk [vmem:[#allocation3 + $0x24] sm:$0xf] %vm588, %v849
      %866 = vst.msk [vmem:[#allocation3 + $0x28] sm:$0xf] %vm588, %v850
      %867 = vst.msk [vmem:[#allocation3 + $0x2c] sm:$0xf] %vm588, %v851
      %868 = vst.msk [vmem:[#allocation3 + $0x30] sm:$0xf] %vm588, %v852
      %869 = vst.msk [vmem:[#allocation3 + $0x34] sm:$0xf] %vm588, %v853
      %870 = vst.msk [vmem:[#allocation3 + $0x38] sm:$0xf] %vm588, %v854
      %871 = vst.msk [vmem:[#allocation3 + $0x3c] sm:$0xf] %vm588, %v855
      %v872 = vld [vmem:[#allocation2] sm:$0xf]
      %v873 = vld [vmem:[#allocation2 + $0x4] sm:$0xf]
      %v874 = vld [vmem:[#allocation2 + $0x8] sm:$0x1]
      %v875 = vld [vmem:[#allocation2 + $0xc] sm:$0xf]
      %v876 = vld [vmem:[#allocation2 + $0x10] sm:$0xf]
      %v877 = vld [vmem:[#allocation2 + $0x14] sm:$0x1]
      %v878 = vld [vmem:[#allocation2 + $0x18] sm:$0xf]
      %v879 = vld [vmem:[#allocation2 + $0x1c] sm:$0xf]
      %v880 = vld [vmem:[#allocation2 + $0x20] sm:$0x1]
      %v881 = vld [vmem:[#allocation2 + $0x24] sm:$0xf]
      %v882 = vld [vmem:[#allocation2 + $0x28] sm:$0xf]
      %v883 = vld [vmem:[#allocation2 + $0x2c] sm:$0x1]
      %v884 = vld [vmem:[#allocation2 + $0x30] sm:$0xf]
      %v885 = vld [vmem:[#allocation2 + $0x34] sm:$0xf]
      %v886 = vld [vmem:[#allocation2 + $0x38] sm:$0x1]
      %v887 = vld [vmem:[#allocation2 + $0x3c] sm:$0xf]
      %v888 = vld [vmem:[#allocation2 + $0x40] sm:$0xf]
      %v889 = vld [vmem:[#allocation2 + $0x44] sm:$0x1]
      %v890 = vld [vmem:[#allocation2 + $0x48] sm:$0xf]
      %v891 = vld [vmem:[#allocation2 + $0x4c] sm:$0xf]
      %v892 = vld [vmem:[#allocation2 + $0x50] sm:$0x1]
      %v893 = vld [vmem:[#allocation2 + $0x54] sm:$0xf]
      %v894 = vld [vmem:[#allocation2 + $0x58] sm:$0xf]
      %v895 = vld [vmem:[#allocation2 + $0x5c] sm:$0x1]
      %vm896 = vsmask.f32 3328
      %vm897 = vsmask.f32 7440
      %vm898 = vmor %vm896, %vm897
      %v900 = vshrl.u32 %v872, 16
      %v902 = vrot.slane %v900, 4
      %v903 = vshll.u32 %v872, 16
      %v905 = vrot.slane %v903, 5
      %v906 = vor.u32 %v902, %v905
      %v907 = vrot.slane %v906, 4
      %v909 = vshll.u32 %v873, 16
      %v911 = vrot.slane %v909, 5
      %v912 = vsel %vm898, %v907, %v911
      %v913 = vshrl.u32 %v873, 16
      %v915 = vrot.slane %v913, 4
      %v916 = vor.u32 %v915, %v911
      %v917 = vrot.slane %v916, 4
      %v919 = vshll.u32 %v874, 16
      %v921 = vrot.slane %v919, 5
      %v922 = vsel %vm898, %v917, %v921
      %v924 = vshrl.u32 %v875, 16
      %v926 = vrot.slane %v924, 4
      %v927 = vshll.u32 %v875, 16
      %v929 = vrot.slane %v927, 5
      %v930 = vor.u32 %v926, %v929
      %v931 = vrot.slane %v930, 4
      %v933 = vshll.u32 %v876, 16
      %v935 = vrot.slane %v933, 5
      %v936 = vsel %vm898, %v931, %v935
      %v937 = vshrl.u32 %v876, 16
      %v939 = vrot.slane %v937, 4
      %v940 = vor.u32 %v939, %v935
      %v941 = vrot.slane %v940, 4
      %v943 = vshll.u32 %v877, 16
      %v945 = vrot.slane %v943, 5
      %v946 = vsel %vm898, %v941, %v945
      %v948 = vshrl.u32 %v878, 16
      %v950 = vrot.slane %v948, 4
      %v951 = vshll.u32 %v878, 16
      %v953 = vrot.slane %v951, 5
      %v954 = vor.u32 %v950, %v953
      %v955 = vrot.slane %v954, 4
      %v957 = vshll.u32 %v879, 16
      %v959 = vrot.slane %v957, 5
      %v960 = vsel %vm898, %v955, %v959
      %v961 = vshrl.u32 %v879, 16
      %v963 = vrot.slane %v961, 4
      %v964 = vor.u32 %v963, %v959
      %v965 = vrot.slane %v964, 4
      %v967 = vshll.u32 %v880, 16
      %v969 = vrot.slane %v967, 5
      %v970 = vsel %vm898, %v965, %v969
      %v972 = vshrl.u32 %v881, 16
      %v974 = vrot.slane %v972, 4
      %v975 = vshll.u32 %v881, 16
      %v977 = vrot.slane %v975, 5
      %v978 = vor.u32 %v974, %v977
      %v979 = vrot.slane %v978, 4
      %v981 = vshll.u32 %v882, 16
      %v983 = vrot.slane %v981, 5
      %v984 = vsel %vm898, %v979, %v983
      %v985 = vshrl.u32 %v882, 16
      %v987 = vrot.slane %v985, 4
      %v988 = vor.u32 %v987, %v983
      %v989 = vrot.slane %v988, 4
      %v991 = vshll.u32 %v883, 16
      %v993 = vrot.slane %v991, 5
      %v994 = vsel %vm898, %v989, %v993
      %v996 = vshrl.u32 %v884, 16
      %v998 = vrot.slane %v996, 4
      %v999 = vshll.u32 %v884, 16
      %v1001 = vrot.slane %v999, 5
      %v1002 = vor.u32 %v998, %v1001
      %v1003 = vrot.slane %v1002, 4
      %v1005 = vshll.u32 %v885, 16
      %v1007 = vrot.slane %v1005, 5
      %v1008 = vsel %vm898, %v1003, %v1007
      %v1009 = vshrl.u32 %v885, 16
      %v1011 = vrot.slane %v1009, 4
      %v1012 = vor.u32 %v1011, %v1007
      %v1013 = vrot.slane %v1012, 4
      %v1015 = vshll.u32 %v886, 16
      %v1017 = vrot.slane %v1015, 5
      %v1018 = vsel %vm898, %v1013, %v1017
      %v1020 = vshrl.u32 %v887, 16
      %v1022 = vrot.slane %v1020, 4
      %v1023 = vshll.u32 %v887, 16
      %v1025 = vrot.slane %v1023, 5
      %v1026 = vor.u32 %v1022, %v1025
      %v1027 = vrot.slane %v1026, 4
      %v1029 = vshll.u32 %v888, 16
      %v1031 = vrot.slane %v1029, 5
      %v1032 = vsel %vm898, %v1027, %v1031
      %v1033 = vshrl.u32 %v888, 16
      %v1035 = vrot.slane %v1033, 4
      %v1036 = vor.u32 %v1035, %v1031
      %v1037 = vrot.slane %v1036, 4
      %v1039 = vshll.u32 %v889, 16
      %v1041 = vrot.slane %v1039, 5
      %v1042 = vsel %vm898, %v1037, %v1041
      %v1044 = vshrl.u32 %v890, 16
      %v1046 = vrot.slane %v1044, 4
      %v1047 = vshll.u32 %v890, 16
      %v1049 = vrot.slane %v1047, 5
      %v1050 = vor.u32 %v1046, %v1049
      %v1051 = vrot.slane %v1050, 4
      %v1053 = vshll.u32 %v891, 16
      %v1055 = vrot.slane %v1053, 5
      %v1056 = vsel %vm898, %v1051, %v1055
      %v1057 = vshrl.u32 %v891, 16
      %v1059 = vrot.slane %v1057, 4
      %v1060 = vor.u32 %v1059, %v1055
      %v1061 = vrot.slane %v1060, 4
      %v1063 = vshll.u32 %v892, 16
      %v1065 = vrot.slane %v1063, 5
      %v1066 = vsel %vm898, %v1061, %v1065
      %v1068 = vshrl.u32 %v893, 16
      %v1070 = vrot.slane %v1068, 4
      %v1071 = vshll.u32 %v893, 16
      %v1073 = vrot.slane %v1071, 5
      %v1074 = vor.u32 %v1070, %v1073
      %v1075 = vrot.slane %v1074, 4
      %v1077 = vshll.u32 %v894, 16
      %v1079 = vrot.slane %v1077, 5
      %v1080 = vsel %vm898, %v1075, %v1079
      %v1081 = vshrl.u32 %v894, 16
      %v1083 = vrot.slane %v1081, 4
      %v1084 = vor.u32 %v1083, %v1079
      %v1085 = vrot.slane %v1084, 4
      %v1087 = vshll.u32 %v895, 16
      %v1089 = vrot.slane %v1087, 5
      %v1090 = vsel %vm898, %v1085, %v1089
      %1091 = vrot.lane.b32.xlu0 %v912, 8
      %v1092 = vpop.permute.xlu0 %1091
      %1093 = vrot.lane.b32.xlu0 %v922, 8
      %v1094 = vpop.permute.xlu0 %1093
      %1095 = vrot.lane.b32.xlu0 %v936, 8
      %v1096 = vpop.permute.xlu0 %1095
      %1097 = vrot.lane.b32.xlu0 %v946, 8
      %v1098 = vpop.permute.xlu0 %1097
      %1099 = vrot.lane.b32.xlu0 %v960, 8
      %v1100 = vpop.permute.xlu0 %1099
      %1101 = vrot.lane.b32.xlu0 %v970, 8
      %v1102 = vpop.permute.xlu0 %1101
      %1103 = vrot.lane.b32.xlu0 %v984, 8
      %v1104 = vpop.permute.xlu0 %1103
      %1105 = vrot.lane.b32.xlu0 %v994, 8
      %v1106 = vpop.permute.xlu0 %1105
      %1107 = vrot.lane.b32.xlu0 %v1008, 8
      %v1108 = vpop.permute.xlu0 %1107
      %1109 = vrot.lane.b32.xlu0 %v1018, 8
      %v1110 = vpop.permute.xlu0 %1109
      %1111 = vrot.lane.b32.xlu0 %v1032, 8
      %v1112 = vpop.permute.xlu0 %1111
      %1113 = vrot.lane.b32.xlu0 %v1042, 8
      %v1114 = vpop.permute.xlu0 %1113
      %1115 = vrot.lane.b32.xlu0 %v1056, 8
      %v1116 = vpop.permute.xlu0 %1115
      %1117 = vrot.lane.b32.xlu0 %v1066, 8
      %v1118 = vpop.permute.xlu0 %1117
      %1119 = vrot.lane.b32.xlu0 %v1080, 8
      %v1120 = vpop.permute.xlu0 %1119
      %1121 = vrot.lane.b32.xlu0 %v1090, 8
      %v1122 = vpop.permute.xlu0 %1121
      %vm1139 = vcmask 126016
      %1140 = vst.msk [vmem:[#allocation3] sm:$0xf] %vm1139, %v1092
      %1141 = vst.msk [vmem:[#allocation3 + $0x4] sm:$0xf] %vm1139, %v1094
      %1142 = vst.msk [vmem:[#allocation3 + $0x8] sm:$0xf] %vm1139, %v1096
      %1143 = vst.msk [vmem:[#allocation3 + $0xc] sm:$0xf] %vm1139, %v1098
      %1144 = vst.msk [vmem:[#allocation3 + $0x10] sm:$0xf] %vm1139, %v1100
      %1145 = vst.msk [vmem:[#allocation3 + $0x14] sm:$0xf] %vm1139, %v1102
      %1146 = vst.msk [vmem:[#allocation3 + $0x18] sm:$0xf] %vm1139, %v1104
      %1147 = vst.msk [vmem:[#allocation3 + $0x1c] sm:$0xf] %vm1139, %v1106
      %1148 = vst.msk [vmem:[#allocation3 + $0x20] sm:$0xf] %vm1139, %v1108
      %1149 = vst.msk [vmem:[#allocation3 + $0x24] sm:$0xf] %vm1139, %v1110
      %1150 = vst.msk [vmem:[#allocation3 + $0x28] sm:$0xf] %vm1139, %v1112
      %1151 = vst.msk [vmem:[#allocation3 + $0x2c] sm:$0xf] %vm1139, %v1114
      %1152 = vst.msk [vmem:[#allocation3 + $0x30] sm:$0xf] %vm1139, %v1116
      %1153 = vst.msk [vmem:[#allocation3 + $0x34] sm:$0xf] %vm1139, %v1118
      %1154 = vst.msk [vmem:[#allocation3 + $0x38] sm:$0xf] %vm1139, %v1120
      %1155 = vst.msk [vmem:[#allocation3 + $0x3c] sm:$0xf] %vm1139, %v1122
      %v1156 = vld [vmem:[#allocation2] sm:$0xe]
      %v1157 = vld [vmem:[#allocation2 + $0x4] sm:$0xf]
      %v1158 = vld [vmem:[#allocation2 + $0x8] sm:$0x1]
      %v1159 = vld [vmem:[#allocation2 + $0xc] sm:$0xe]
      %v1160 = vld [vmem:[#allocation2 + $0x10] sm:$0xf]
      %v1161 = vld [vmem:[#allocation2 + $0x14] sm:$0x1]
      %v1162 = vld [vmem:[#allocation2 + $0x18] sm:$0xe]
      %v1163 = vld [vmem:[#allocation2 + $0x1c] sm:$0xf]
      %v1164 = vld [vmem:[#allocation2 + $0x20] sm:$0x1]
      %v1165 = vld [vmem:[#allocation2 + $0x24] sm:$0xe]
      %v1166 = vld [vmem:[#allocation2 + $0x28] sm:$0xf]
      %v1167 = vld [vmem:[#allocation2 + $0x2c] sm:$0x1]
      %v1168 = vld [vmem:[#allocation2 + $0x30] sm:$0xe]
      %v1169 = vld [vmem:[#allocation2 + $0x34] sm:$0xf]
      %v1170 = vld [vmem:[#allocation2 + $0x38] sm:$0x1]
      %v1171 = vld [vmem:[#allocation2 + $0x3c] sm:$0xe]
      %v1172 = vld [vmem:[#allocation2 + $0x40] sm:$0xf]
      %v1173 = vld [vmem:[#allocation2 + $0x44] sm:$0x1]
      %v1174 = vld [vmem:[#allocation2 + $0x48] sm:$0xe]
      %v1175 = vld [vmem:[#allocation2 + $0x4c] sm:$0xf]
      %v1176 = vld [vmem:[#allocation2 + $0x50] sm:$0x1]
      %v1177 = vld [vmem:[#allocation2 + $0x54] sm:$0xe]
      %v1178 = vld [vmem:[#allocation2 + $0x58] sm:$0xf]
      %v1179 = vld [vmem:[#allocation2 + $0x5c] sm:$0x1]
      %vm1204 = vcmask 1042432
      %vm1205 = vcmask 1046532
      %vm1206 = vmor %vm1204, %vm1205
      %v1207 = vrot.slane %v1156, 5
      %v1208 = vrot.slane %v1207, 4
      %v1209 = vrot.slane %v1157, 5
      %v1210 = vsel %vm1206, %v1208, %v1209
      %v1211 = vrot.slane %v1209, 4
      %v1212 = vrot.slane %v1158, 5
      %v1213 = vsel %vm1206, %v1211, %v1212
      %v1214 = vrot.slane %v1159, 5
      %v1215 = vrot.slane %v1214, 4
      %v1216 = vrot.slane %v1160, 5
      %v1217 = vsel %vm1206, %v1215, %v1216
      %v1218 = vrot.slane %v1216, 4
      %v1219 = vrot.slane %v1161, 5
      %v1220 = vsel %vm1206, %v1218, %v1219
      %v1221 = vrot.slane %v1162, 5
      %v1222 = vrot.slane %v1221, 4
      %v1223 = vrot.slane %v1163, 5
      %v1224 = vsel %vm1206, %v1222, %v1223
      %v1225 = vrot.slane %v1223, 4
      %v1226 = vrot.slane %v1164, 5
      %v1227 = vsel %vm1206, %v1225, %v1226
      %v1228 = vrot.slane %v1165, 5
      %v1229 = vrot.slane %v1228, 4
      %v1230 = vrot.slane %v1166, 5
      %v1231 = vsel %vm1206, %v1229, %v1230
      %v1232 = vrot.slane %v1230, 4
      %v1233 = vrot.slane %v1167, 5
      %v1234 = vsel %vm1206, %v1232, %v1233
      %v1235 = vrot.slane %v1168, 5
      %v1236 = vrot.slane %v1235, 4
      %v1237 = vrot.slane %v1169, 5
      %v1238 = vsel %vm1206, %v1236, %v1237
      %v1239 = vrot.slane %v1237, 4
      %v1240 = vrot.slane %v1170, 5
      %v1241 = vsel %vm1206, %v1239, %v1240
      %v1242 = vrot.slane %v1171, 5
      %v1243 = vrot.slane %v1242, 4
      %v1244 = vrot.slane %v1172, 5
      %v1245 = vsel %vm1206, %v1243, %v1244
      %v1246 = vrot.slane %v1244, 4
      %v1247 = vrot.slane %v1173, 5
      %v1248 = vsel %vm1206, %v1246, %v1247
      %v1249 = vrot.slane %v1174, 5
      %v1250 = vrot.slane %v1249, 4
      %v1251 = vrot.slane %v1175, 5
      %v1252 = vsel %vm1206, %v1250, %v1251
      %v1253 = vrot.slane %v1251, 4
      %v1254 = vrot.slane %v1176, 5
      %v1255 = vsel %vm1206, %v1253, %v1254
      %v1256 = vrot.slane %v1177, 5
      %v1257 = vrot.slane %v1256, 4
      %v1258 = vrot.slane %v1178, 5
      %v1259 = vsel %vm1206, %v1257, %v1258
      %v1260 = vrot.slane %v1258, 4
      %v1261 = vrot.slane %v1179, 5
      %v1262 = vsel %vm1206, %v1260, %v1261
      %1263 = vrot.lane.b32.xlu0 %v1210, 16
      %v1264 = vpop.permute.xlu0 %1263
      %1265 = vrot.lane.b32.xlu0 %v1213, 16
      %v1266 = vpop.permute.xlu0 %1265
      %1267 = vrot.lane.b32.xlu0 %v1217, 16
      %v1268 = vpop.permute.xlu0 %1267
      %1269 = vrot.lane.b32.xlu0 %v1220, 16
      %v1270 = vpop.permute.xlu0 %1269
      %1271 = vrot.lane.b32.xlu0 %v1224, 16
      %v1272 = vpop.permute.xlu0 %1271
      %1273 = vrot.lane.b32.xlu0 %v1227, 16
      %v1274 = vpop.permute.xlu0 %1273
      %1275 = vrot.lane.b32.xlu0 %v1231, 16
      %v1276 = vpop.permute.xlu0 %1275
      %1277 = vrot.lane.b32.xlu0 %v1234, 16
      %v1278 = vpop.permute.xlu0 %1277
      %1279 = vrot.lane.b32.xlu0 %v1238, 16
      %v1280 = vpop.permute.xlu0 %1279
      %1281 = vrot.lane.b32.xlu0 %v1241, 16
      %v1282 = vpop.permute.xlu0 %1281
      %1283 = vrot.lane.b32.xlu0 %v1245, 16
      %v1284 = vpop.permute.xlu0 %1283
      %1285 = vrot.lane.b32.xlu0 %v1248, 16
      %v1286 = vpop.permute.xlu0 %1285
      %1287 = vrot.lane.b32.xlu0 %v1252, 16
      %v1288 = vpop.permute.xlu0 %1287
      %1289 = vrot.lane.b32.xlu0 %v1255, 16
      %v1290 = vpop.permute.xlu0 %1289
      %1291 = vrot.lane.b32.xlu0 %v1259, 16
      %v1292 = vpop.permute.xlu0 %1291
      %1293 = vrot.lane.b32.xlu0 %v1262, 16
      %v1294 = vpop.permute.xlu0 %1293
      %vm1311 = vcmask 191616
      %1312 = vst.msk [vmem:[#allocation3] sm:$0xf] %vm1311, %v1264
      %1313 = vst.msk [vmem:[#allocation3 + $0x4] sm:$0xf] %vm1311, %v1266
      %1314 = vst.msk [vmem:[#allocation3 + $0x8] sm:$0xf] %vm1311, %v1268
      %1315 = vst.msk [vmem:[#allocation3 + $0xc] sm:$0xf] %vm1311, %v1270
      %1316 = vst.msk [vmem:[#allocation3 + $0x10] sm:$0xf] %vm1311, %v1272
      %1317 = vst.msk [vmem:[#allocation3 + $0x14] sm:$0xf] %vm1311, %v1274
      %1318 = vst.msk [vmem:[#allocation3 + $0x18] sm:$0xf] %vm1311, %v1276
      %1319 = vst.msk [vmem:[#allocation3 + $0x1c] sm:$0xf] %vm1311, %v1278
      %1320 = vst.msk [vmem:[#allocation3 + $0x20] sm:$0xf] %vm1311, %v1280
      %1321 = vst.msk [vmem:[#allocation3 + $0x24] sm:$0xf] %vm1311, %v1282
      %1322 = vst.msk [vmem:[#allocation3 + $0x28] sm:$0xf] %vm1311, %v1284
      %1323 = vst.msk [vmem:[#allocation3 + $0x2c] sm:$0xf] %vm1311, %v1286
      %1324 = vst.msk [vmem:[#allocation3 + $0x30] sm:$0xf] %vm1311, %v1288
      %1325 = vst.msk [vmem:[#allocation3 + $0x34] sm:$0xf] %vm1311, %v1290
      %1326 = vst.msk [vmem:[#allocation3 + $0x38] sm:$0xf] %vm1311, %v1292
      %1327 = vst.msk [vmem:[#allocation3 + $0x3c] sm:$0xf] %vm1311, %v1294
      %v1328 = vld [vmem:[%s783] sm:$0xf]
      %v1329 = vld [vmem:[%s783 + $0x4] sm:$0xf]
      %v1330 = vld [vmem:[%s783 + $0xc] sm:$0xf]
      %v1331 = vld [vmem:[%s783 + $0x10] sm:$0xf]
      %v1332 = vld [vmem:[%s783 + $0x18] sm:$0xf]
      %v1333 = vld [vmem:[%s783 + $0x1c] sm:$0xf]
      %v1334 = vld [vmem:[%s783 + $0x24] sm:$0xf]
      %v1335 = vld [vmem:[%s783 + $0x28] sm:$0xf]
      %v1336 = vld [vmem:[%s783 + $0x30] sm:$0xf]
      %v1337 = vld [vmem:[%s783 + $0x34] sm:$0xf]
      %v1338 = vld [vmem:[%s783 + $0x3c] sm:$0xf]
      %v1339 = vld [vmem:[%s783 + $0x40] sm:$0xf]
      %v1340 = vld [vmem:[%s783 + $0x48] sm:$0xf]
      %v1341 = vld [vmem:[%s783 + $0x4c] sm:$0xf]
      %v1342 = vld [vmem:[%s783 + $0x54] sm:$0xf]
      %v1343 = vld [vmem:[%s783 + $0x58] sm:$0xf]
      %1360 = vrot.lane.b32.xlu0 %v1328, 24
      %v1361 = vpop.permute.xlu0 %1360
      %1362 = vrot.lane.b32.xlu0 %v1329, 24
      %v1363 = vpop.permute.xlu0 %1362
      %1364 = vrot.lane.b32.xlu0 %v1330, 24
      %v1365 = vpop.permute.xlu0 %1364
      %1366 = vrot.lane.b32.xlu0 %v1331, 24
      %v1367 = vpop.permute.xlu0 %1366
      %1368 = vrot.lane.b32.xlu0 %v1332, 24
      %v1369 = vpop.permute.xlu0 %1368
      %1370 = vrot.lane.b32.xlu0 %v1333, 24
      %v1371 = vpop.permute.xlu0 %1370
      %1372 = vrot.lane.b32.xlu0 %v1334, 24
      %v1373 = vpop.permute.xlu0 %1372
      %1374 = vrot.lane.b32.xlu0 %v1335, 24
      %v1375 = vpop.permute.xlu0 %1374
      %1376 = vrot.lane.b32.xlu0 %v1336, 24
      %v1377 = vpop.permute.xlu0 %1376
      %1378 = vrot.lane.b32.xlu0 %v1337, 24
      %v1379 = vpop.permute.xlu0 %1378
      %1380 = vrot.lane.b32.xlu0 %v1338, 24
      %v1381 = vpop.permute.xlu0 %1380
      %1382 = vrot.lane.b32.xlu0 %v1339, 24
      %v1383 = vpop.permute.xlu0 %1382
      %1384 = vrot.lane.b32.xlu0 %v1340, 24
      %v1385 = vpop.permute.xlu0 %1384
      %1386 = vrot.lane.b32.xlu0 %v1341, 24
      %v1387 = vpop.permute.xlu0 %1386
      %1388 = vrot.lane.b32.xlu0 %v1342, 24
      %v1389 = vpop.permute.xlu0 %1388
      %1390 = vrot.lane.b32.xlu0 %v1343, 24
      %v1391 = vpop.permute.xlu0 %1390
      %vm1408 = vcmask 257216
      %1409 = vst.msk [vmem:[#allocation3] sm:$0xf] %vm1408, %v1361
      %1410 = vst.msk [vmem:[#allocation3 + $0x4] sm:$0xf] %vm1408, %v1363
      %1411 = vst.msk [vmem:[#allocation3 + $0x8] sm:$0xf] %vm1408, %v1365
      %1412 = vst.msk [vmem:[#allocation3 + $0xc] sm:$0xf] %vm1408, %v1367
      %1413 = vst.msk [vmem:[#allocation3 + $0x10] sm:$0xf] %vm1408, %v1369
      %1414 = vst.msk [vmem:[#allocation3 + $0x14] sm:$0xf] %vm1408, %v1371
      %1415 = vst.msk [vmem:[#allocation3 + $0x18] sm:$0xf] %vm1408, %v1373
      %1416 = vst.msk [vmem:[#allocation3 + $0x1c] sm:$0xf] %vm1408, %v1375
      %1417 = vst.msk [vmem:[#allocation3 + $0x20] sm:$0xf] %vm1408, %v1377
      %1418 = vst.msk [vmem:[#allocation3 + $0x24] sm:$0xf] %vm1408, %v1379
      %1419 = vst.msk [vmem:[#allocation3 + $0x28] sm:$0xf] %vm1408, %v1381
      %1420 = vst.msk [vmem:[#allocation3 + $0x2c] sm:$0xf] %vm1408, %v1383
      %1421 = vst.msk [vmem:[#allocation3 + $0x30] sm:$0xf] %vm1408, %v1385
      %1422 = vst.msk [vmem:[#allocation3 + $0x34] sm:$0xf] %vm1408, %v1387
      %1423 = vst.msk [vmem:[#allocation3 + $0x38] sm:$0xf] %vm1408, %v1389
      %1424 = vst.msk [vmem:[#allocation3 + $0x3c] sm:$0xf] %vm1408, %v1391
      %v1425 = vld [vmem:[%s783] sm:$0xf]
      %v1426 = vld [vmem:[%s783 + $0x4] sm:$0xf]
      %v1427 = vld [vmem:[%s783 + $0x8] sm:$0x1]
      %v1428 = vld [vmem:[%s783 + $0xc] sm:$0xf]
      %v1429 = vld [vmem:[%s783 + $0x10] sm:$0xf]
      %v1430 = vld [vmem:[%s783 + $0x14] sm:$0x1]
      %v1431 = vld [vmem:[%s783 + $0x18] sm:$0xf]
      %v1432 = vld [vmem:[%s783 + $0x1c] sm:$0xf]
      %v1433 = vld [vmem:[%s783 + $0x20] sm:$0x1]
      %v1434 = vld [vmem:[%s783 + $0x24] sm:$0xf]
      %v1435 = vld [vmem:[%s783 + $0x28] sm:$0xf]
      %v1436 = vld [vmem:[%s783 + $0x2c] sm:$0x1]
      %v1437 = vld [vmem:[%s783 + $0x30] sm:$0xf]
      %v1438 = vld [vmem:[%s783 + $0x34] sm:$0xf]
      %v1439 = vld [vmem:[%s783 + $0x38] sm:$0x1]
      %v1440 = vld [vmem:[%s783 + $0x3c] sm:$0xf]
      %v1441 = vld [vmem:[%s783 + $0x40] sm:$0xf]
      %v1442 = vld [vmem:[%s783 + $0x44] sm:$0x1]
      %v1443 = vld [vmem:[%s783 + $0x48] sm:$0xf]
      %v1444 = vld [vmem:[%s783 + $0x4c] sm:$0xf]
      %v1445 = vld [vmem:[%s783 + $0x50] sm:$0x1]
      %v1446 = vld [vmem:[%s783 + $0x54] sm:$0xf]
      %v1447 = vld [vmem:[%s783 + $0x58] sm:$0xf]
      %v1448 = vld [vmem:[%s783 + $0x5c] sm:$0x1]
      %v1450 = vshrl.u32 %v1425, 16
      %v1452 = vrot.slane %v1450, 4
      %v1453 = vshll.u32 %v1425, 16
      %v1455 = vrot.slane %v1453, 5
      %v1456 = vor.u32 %v1452, %v1455
      %v1457 = vrot.slane %v1456, 4
      %v1459 = vshll.u32 %v1426, 16
      %v1461 = vrot.slane %v1459, 5
      %v1462 = vsel %vm898, %v1457, %v1461
      %v1463 = vshrl.u32 %v1426, 16
      %v1465 = vrot.slane %v1463, 4
      %v1466 = vor.u32 %v1465, %v1461
      %v1467 = vrot.slane %v1466, 4
      %v1469 = vshll.u32 %v1427, 16
      %v1471 = vrot.slane %v1469, 5
      %v1472 = vsel %vm898, %v1467, %v1471
      %v1474 = vshrl.u32 %v1428, 16
      %v1476 = vrot.slane %v1474, 4
      %v1477 = vshll.u32 %v1428, 16
      %v1479 = vrot.slane %v1477, 5
      %v1480 = vor.u32 %v1476, %v1479
      %v1481 = vrot.slane %v1480, 4
      %v1483 = vshll.u32 %v1429, 16
      %v1485 = vrot.slane %v1483, 5
      %v1486 = vsel %vm898, %v1481, %v1485
      %v1487 = vshrl.u32 %v1429, 16
      %v1489 = vrot.slane %v1487, 4
      %v1490 = vor.u32 %v1489, %v1485
      %v1491 = vrot.slane %v1490, 4
      %v1493 = vshll.u32 %v1430, 16
      %v1495 = vrot.slane %v1493, 5
      %v1496 = vsel %vm898, %v1491, %v1495
      %v1498 = vshrl.u32 %v1431, 16
      %v1500 = vrot.slane %v1498, 4
      %v1501 = vshll.u32 %v1431, 16
      %v1503 = vrot.slane %v1501, 5
      %v1504 = vor.u32 %v1500, %v1503
      %v1505 = vrot.slane %v1504, 4
      %v1507 = vshll.u32 %v1432, 16
      %v1509 = vrot.slane %v1507, 5
      %v1510 = vsel %vm898, %v1505, %v1509
      %v1511 = vshrl.u32 %v1432, 16
      %v1513 = vrot.slane %v1511, 4
      %v1514 = vor.u32 %v1513, %v1509
      %v1515 = vrot.slane %v1514, 4
      %v1517 = vshll.u32 %v1433, 16
      %v1519 = vrot.slane %v1517, 5
      %v1520 = vsel %vm898, %v1515, %v1519
      %v1522 = vshrl.u32 %v1434, 16
      %v1524 = vrot.slane %v1522, 4
      %v1525 = vshll.u32 %v1434, 16
      %v1527 = vrot.slane %v1525, 5
      %v1528 = vor.u32 %v1524, %v1527
      %v1529 = vrot.slane %v1528, 4
      %v1531 = vshll.u32 %v1435, 16
      %v1533 = vrot.slane %v1531, 5
      %v1534 = vsel %vm898, %v1529, %v1533
      %v1535 = vshrl.u32 %v1435, 16
      %v1537 = vrot.slane %v1535, 4
      %v1538 = vor.u32 %v1537, %v1533
      %v1539 = vrot.slane %v1538, 4
      %v1541 = vshll.u32 %v1436, 16
      %v1543 = vrot.slane %v1541, 5
      %v1544 = vsel %vm898, %v1539, %v1543
      %v1546 = vshrl.u32 %v1437, 16
      %v1548 = vrot.slane %v1546, 4
      %v1549 = vshll.u32 %v1437, 16
      %v1551 = vrot.slane %v1549, 5
      %v1552 = vor.u32 %v1548, %v1551
      %v1553 = vrot.slane %v1552, 4
      %v1555 = vshll.u32 %v1438, 16
      %v1557 = vrot.slane %v1555, 5
      %v1558 = vsel %vm898, %v1553, %v1557
      %v1559 = vshrl.u32 %v1438, 16
      %v1561 = vrot.slane %v1559, 4
      %v1562 = vor.u32 %v1561, %v1557
      %v1563 = vrot.slane %v1562, 4
      %v1565 = vshll.u32 %v1439, 16
      %v1567 = vrot.slane %v1565, 5
      %v1568 = vsel %vm898, %v1563, %v1567
      %v1570 = vshrl.u32 %v1440, 16
      %v1572 = vrot.slane %v1570, 4
      %v1573 = vshll.u32 %v1440, 16
      %v1575 = vrot.slane %v1573, 5
      %v1576 = vor.u32 %v1572, %v1575
      %v1577 = vrot.slane %v1576, 4
      %v1579 = vshll.u32 %v1441, 16
      %v1581 = vrot.slane %v1579, 5
      %v1582 = vsel %vm898, %v1577, %v1581
      %v1583 = vshrl.u32 %v1441, 16
      %v1585 = vrot.slane %v1583, 4
      %v1586 = vor.u32 %v1585, %v1581
      %v1587 = vrot.slane %v1586, 4
      %v1589 = vshll.u32 %v1442, 16
      %v1591 = vrot.slane %v1589, 5
      %v1592 = vsel %vm898, %v1587, %v1591
      %v1594 = vshrl.u32 %v1443, 16
      %v1596 = vrot.slane %v1594, 4
      %v1597 = vshll.u32 %v1443, 16
      %v1599 = vrot.slane %v1597, 5
      %v1600 = vor.u32 %v1596, %v1599
      %v1601 = vrot.slane %v1600, 4
      %v1603 = vshll.u32 %v1444, 16
      %v1605 = vrot.slane %v1603, 5
      %v1606 = vsel %vm898, %v1601, %v1605
      %v1607 = vshrl.u32 %v1444, 16
      %v1609 = vrot.slane %v1607, 4
      %v1610 = vor.u32 %v1609, %v1605
      %v1611 = vrot.slane %v1610, 4
      %v1613 = vshll.u32 %v1445, 16
      %v1615 = vrot.slane %v1613, 5
      %v1616 = vsel %vm898, %v1611, %v1615
      %v1618 = vshrl.u32 %v1446, 16
      %v1620 = vrot.slane %v1618, 4
      %v1621 = vshll.u32 %v1446, 16
      %v1623 = vrot.slane %v1621, 5
      %v1624 = vor.u32 %v1620, %v1623
      %v1625 = vrot.slane %v1624, 4
      %v1627 = vshll.u32 %v1447, 16
      %v1629 = vrot.slane %v1627, 5
      %v1630 = vsel %vm898, %v1625, %v1629
      %v1631 = vshrl.u32 %v1447, 16
      %v1633 = vrot.slane %v1631, 4
      %v1634 = vor.u32 %v1633, %v1629
      %v1635 = vrot.slane %v1634, 4
      %v1637 = vshll.u32 %v1448, 16
      %v1639 = vrot.slane %v1637, 5
      %v1640 = vsel %vm898, %v1635, %v1639
      %1641 = vrot.lane.b32.xlu0 %v1462, 32
      %v1642 = vpop.permute.xlu0 %1641
      %1643 = vrot.lane.b32.xlu0 %v1472, 32
      %v1644 = vpop.permute.xlu0 %1643
      %1645 = vrot.lane.b32.xlu0 %v1486, 32
      %v1646 = vpop.permute.xlu0 %1645
      %1647 = vrot.lane.b32.xlu0 %v1496, 32
      %v1648 = vpop.permute.xlu0 %1647
      %1649 = vrot.lane.b32.xlu0 %v1510, 32
      %v1650 = vpop.permute.xlu0 %1649
      %1651 = vrot.lane.b32.xlu0 %v1520, 32
      %v1652 = vpop.permute.xlu0 %1651
      %1653 = vrot.lane.b32.xlu0 %v1534, 32
      %v1654 = vpop.permute.xlu0 %1653
      %1655 = vrot.lane.b32.xlu0 %v1544, 32
      %v1656 = vpop.permute.xlu0 %1655
      %1657 = vrot.lane.b32.xlu0 %v1558, 32
      %v1658 = vpop.permute.xlu0 %1657
      %1659 = vrot.lane.b32.xlu0 %v1568, 32
      %v1660 = vpop.permute.xlu0 %1659
      %1661 = vrot.lane.b32.xlu0 %v1582, 32
      %v1662 = vpop.permute.xlu0 %1661
      %1663 = vrot.lane.b32.xlu0 %v1592, 32
      %v1664 = vpop.permute.xlu0 %1663
      %1665 = vrot.lane.b32.xlu0 %v1606, 32
      %v1666 = vpop.permute.xlu0 %1665
      %1667 = vrot.lane.b32.xlu0 %v1616, 32
      %v1668 = vpop.permute.xlu0 %1667
      %1669 = vrot.lane.b32.xlu0 %v1630, 32
      %v1670 = vpop.permute.xlu0 %1669
      %1671 = vrot.lane.b32.xlu0 %v1640, 32
      %v1672 = vpop.permute.xlu0 %1671
      %vm1689 = vcmask 322816
      %1690 = vst.msk [vmem:[#allocation3] sm:$0xf] %vm1689, %v1642
      %1691 = vst.msk [vmem:[#allocation3 + $0x4] sm:$0xf] %vm1689, %v1644
      %1692 = vst.msk [vmem:[#allocation3 + $0x8] sm:$0xf] %vm1689, %v1646
      %1693 = vst.msk [vmem:[#allocation3 + $0xc] sm:$0xf] %vm1689, %v1648
      %1694 = vst.msk [vmem:[#allocation3 + $0x10] sm:$0xf] %vm1689, %v1650
      %1695 = vst.msk [vmem:[#allocation3 + $0x14] sm:$0xf] %vm1689, %v1652
      %1696 = vst.msk [vmem:[#allocation3 + $0x18] sm:$0xf] %vm1689, %v1654
      %1697 = vst.msk [vmem:[#allocation3 + $0x1c] sm:$0xf] %vm1689, %v1656
      %1698 = vst.msk [vmem:[#allocation3 + $0x20] sm:$0xf] %vm1689, %v1658
      %1699 = vst.msk [vmem:[#allocation3 + $0x24] sm:$0xf] %vm1689, %v1660
      %1700 = vst.msk [vmem:[#allocation3 + $0x28] sm:$0xf] %vm1689, %v1662
      %1701 = vst.msk [vmem:[#allocation3 + $0x2c] sm:$0xf] %vm1689, %v1664
      %1702 = vst.msk [vmem:[#allocation3 + $0x30] sm:$0xf] %vm1689, %v1666
      %1703 = vst.msk [vmem:[#allocation3 + $0x34] sm:$0xf] %vm1689, %v1668
      %1704 = vst.msk [vmem:[#allocation3 + $0x38] sm:$0xf] %vm1689, %v1670
      %1705 = vst.msk [vmem:[#allocation3 + $0x3c] sm:$0xf] %vm1689, %v1672
      %v1706 = vld [vmem:[%s783] sm:$0xe]
      %v1707 = vld [vmem:[%s783 + $0x4] sm:$0xf]
      %v1708 = vld [vmem:[%s783 + $0x8] sm:$0x1]
      %v1709 = vld [vmem:[%s783 + $0xc] sm:$0xe]
      %v1710 = vld [vmem:[%s783 + $0x10] sm:$0xf]
      %v1711 = vld [vmem:[%s783 + $0x14] sm:$0x1]
      %v1712 = vld [vmem:[%s783 + $0x18] sm:$0xe]
      %v1713 = vld [vmem:[%s783 + $0x1c] sm:$0xf]
      %v1714 = vld [vmem:[%s783 + $0x20] sm:$0x1]
      %v1715 = vld [vmem:[%s783 + $0x24] sm:$0xe]
      %v1716 = vld [vmem:[%s783 + $0x28] sm:$0xf]
      %v1717 = vld [vmem:[%s783 + $0x2c] sm:$0x1]
      %v1718 = vld [vmem:[%s783 + $0x30] sm:$0xe]
      %v1719 = vld [vmem:[%s783 + $0x34] sm:$0xf]
      %v1720 = vld [vmem:[%s783 + $0x38] sm:$0x1]
      %v1721 = vld [vmem:[%s783 + $0x3c] sm:$0xe]
      %v1722 = vld [vmem:[%s783 + $0x40] sm:$0xf]
      %v1723 = vld [vmem:[%s783 + $0x44] sm:$0x1]
      %v1724 = vld [vmem:[%s783 + $0x48] sm:$0xe]
      %v1725 = vld [vmem:[%s783 + $0x4c] sm:$0xf]
      %v1726 = vld [vmem:[%s783 + $0x50] sm:$0x1]
      %v1727 = vld [vmem:[%s783 + $0x54] sm:$0xe]
      %v1728 = vld [vmem:[%s783 + $0x58] sm:$0xf]
      %v1729 = vld [vmem:[%s783 + $0x5c] sm:$0x1]
      %v1754 = vrot.slane %v1706, 5
      %v1755 = vrot.slane %v1754, 4
      %v1756 = vrot.slane %v1707, 5
      %v1757 = vsel %vm1206, %v1755, %v1756
      %v1758 = vrot.slane %v1756, 4
      %v1759 = vrot.slane %v1708, 5
      %v1760 = vsel %vm1206, %v1758, %v1759
      %v1761 = vrot.slane %v1709, 5
      %v1762 = vrot.slane %v1761, 4
      %v1763 = vrot.slane %v1710, 5
      %v1764 = vsel %vm1206, %v1762, %v1763
      %v1765 = vrot.slane %v1763, 4
      %v1766 = vrot.slane %v1711, 5
      %v1767 = vsel %vm1206, %v1765, %v1766
      %v1768 = vrot.slane %v1712, 5
      %v1769 = vrot.slane %v1768, 4
      %v1770 = vrot.slane %v1713, 5
      %v1771 = vsel %vm1206, %v1769, %v1770
      %v1772 = vrot.slane %v1770, 4
      %v1773 = vrot.slane %v1714, 5
      %v1774 = vsel %vm1206, %v1772, %v1773
      %v1775 = vrot.slane %v1715, 5
      %v1776 = vrot.slane %v1775, 4
      %v1777 = vrot.slane %v1716, 5
      %v1778 = vsel %vm1206, %v1776, %v1777
      %v1779 = vrot.slane %v1777, 4
      %v1780 = vrot.slane %v1717, 5
      %v1781 = vsel %vm1206, %v1779, %v1780
      %v1782 = vrot.slane %v1718, 5
      %v1783 = vrot.slane %v1782, 4
      %v1784 = vrot.slane %v1719, 5
      %v1785 = vsel %vm1206, %v1783, %v1784
      %v1786 = vrot.slane %v1784, 4
      %v1787 = vrot.slane %v1720, 5
      %v1788 = vsel %vm1206, %v1786, %v1787
      %v1789 = vrot.slane %v1721, 5
      %v1790 = vrot.slane %v1789, 4
      %v1791 = vrot.slane %v1722, 5
      %v1792 = vsel %vm1206, %v1790, %v1791
      %v1793 = vrot.slane %v1791, 4
      %v1794 = vrot.slane %v1723, 5
      %v1795 = vsel %vm1206, %v1793, %v1794
      %v1796 = vrot.slane %v1724, 5
      %v1797 = vrot.slane %v1796, 4
      %v1798 = vrot.slane %v1725, 5
      %v1799 = vsel %vm1206, %v1797, %v1798
      %v1800 = vrot.slane %v1798, 4
      %v1801 = vrot.slane %v1726, 5
      %v1802 = vsel %vm1206, %v1800, %v1801
      %v1803 = vrot.slane %v1727, 5
      %v1804 = vrot.slane %v1803, 4
      %v1805 = vrot.slane %v1728, 5
      %v1806 = vsel %vm1206, %v1804, %v1805
      %v1807 = vrot.slane %v1805, 4
      %v1808 = vrot.slane %v1729, 5
      %v1809 = vsel %vm1206, %v1807, %v1808
      %1810 = vrot.lane.b32.xlu0 %v1757, 40
      %v1811 = vpop.permute.xlu0 %1810
      %1812 = vrot.lane.b32.xlu0 %v1760, 40
      %v1813 = vpop.permute.xlu0 %1812
      %1814 = vrot.lane.b32.xlu0 %v1764, 40
      %v1815 = vpop.permute.xlu0 %1814
      %1816 = vrot.lane.b32.xlu0 %v1767, 40
      %v1817 = vpop.permute.xlu0 %1816
      %1818 = vrot.lane.b32.xlu0 %v1771, 40
      %v1819 = vpop.permute.xlu0 %1818
      %1820 = vrot.lane.b32.xlu0 %v1774, 40
      %v1821 = vpop.permute.xlu0 %1820
      %1822 = vrot.lane.b32.xlu0 %v1778, 40
      %v1823 = vpop.permute.xlu0 %1822
      %1824 = vrot.lane.b32.xlu0 %v1781, 40
      %v1825 = vpop.permute.xlu0 %1824
      %1826 = vrot.lane.b32.xlu0 %v1785, 40
      %v1827 = vpop.permute.xlu0 %1826
      %1828 = vrot.lane.b32.xlu0 %v1788, 40
      %v1829 = vpop.permute.xlu0 %1828
      %1830 = vrot.lane.b32.xlu0 %v1792, 40
      %v1831 = vpop.permute.xlu0 %1830
      %1832 = vrot.lane.b32.xlu0 %v1795, 40
      %v1833 = vpop.permute.xlu0 %1832
      %1834 = vrot.lane.b32.xlu0 %v1799, 40
      %v1835 = vpop.permute.xlu0 %1834
      %1836 = vrot.lane.b32.xlu0 %v1802, 40
      %v1837 = vpop.permute.xlu0 %1836
      %1838 = vrot.lane.b32.xlu0 %v1806, 40
      %v1839 = vpop.permute.xlu0 %1838
      %1840 = vrot.lane.b32.xlu0 %v1809, 40
      %v1841 = vpop.permute.xlu0 %1840
      %vm1858 = vcmask 388416
      %1859 = vst.msk [vmem:[#allocation3] sm:$0xf] %vm1858, %v1811
      %1860 = vst.msk [vmem:[#allocation3 + $0x4] sm:$0xf] %vm1858, %v1813
      %1861 = vst.msk [vmem:[#allocation3 + $0x8] sm:$0xf] %vm1858, %v1815
      %1862 = vst.msk [vmem:[#allocation3 + $0xc] sm:$0xf] %vm1858, %v1817
      %1863 = vst.msk [vmem:[#allocation3 + $0x10] sm:$0xf] %vm1858, %v1819
      %1864 = vst.msk [vmem:[#allocation3 + $0x14] sm:$0xf] %vm1858, %v1821
      %1865 = vst.msk [vmem:[#allocation3 + $0x18] sm:$0xf] %vm1858, %v1823
      %1866 = vst.msk [vmem:[#allocation3 + $0x1c] sm:$0xf] %vm1858, %v1825
      %1867 = vst.msk [vmem:[#allocation3 + $0x20] sm:$0xf] %vm1858, %v1827
      %1868 = vst.msk [vmem:[#allocation3 + $0x24] sm:$0xf] %vm1858, %v1829
      %1869 = vst.msk [vmem:[#allocation3 + $0x28] sm:$0xf] %vm1858, %v1831
      %1870 = vst.msk [vmem:[#allocation3 + $0x2c] sm:$0xf] %vm1858, %v1833
      %1871 = vst.msk [vmem:[#allocation3 + $0x30] sm:$0xf] %vm1858, %v1835
      %1872 = vst.msk [vmem:[#allocation3 + $0x34] sm:$0xf] %vm1858, %v1837
      %1873 = vst.msk [vmem:[#allocation3 + $0x38] sm:$0xf] %vm1858, %v1839
      %1874 = vst.msk [vmem:[#allocation3 + $0x3c] sm:$0xf] %vm1858, %v1841
      %s1875 = scalar_lea.vmem [#allocation2], 24
      %v1876 = vld [vmem:[%s1875] sm:$0xf]
      %v1877 = vld [vmem:[%s1875 + $0x4] sm:$0xf]
      %v1878 = vld [vmem:[%s1875 + $0xc] sm:$0xf]
      %v1879 = vld [vmem:[%s1875 + $0x10] sm:$0xf]
      %v1880 = vld [vmem:[%s1875 + $0x18] sm:$0xf]
      %v1881 = vld [vmem:[%s1875 + $0x1c] sm:$0xf]
      %v1882 = vld [vmem:[%s1875 + $0x24] sm:$0xf]
      %v1883 = vld [vmem:[%s1875 + $0x28] sm:$0xf]
      %v1884 = vld [vmem:[%s1875 + $0x30] sm:$0xf]
      %v1885 = vld [vmem:[%s1875 + $0x34] sm:$0xf]
      %v1886 = vld [vmem:[%s1875 + $0x3c] sm:$0xf]
      %v1887 = vld [vmem:[%s1875 + $0x40] sm:$0xf]
      %v1888 = vld [vmem:[%s1875 + $0x48] sm:$0xf]
      %v1889 = vld [vmem:[%s1875 + $0x4c] sm:$0xf]
      %v1890 = vld [vmem:[%s1875 + $0x54] sm:$0xf]
      %v1891 = vld [vmem:[%s1875 + $0x58] sm:$0xf]
      %1908 = vrot.lane.b32.xlu0 %v1876, 48
      %v1909 = vpop.permute.xlu0 %1908
      %1910 = vrot.lane.b32.xlu0 %v1877, 48
      %v1911 = vpop.permute.xlu0 %1910
      %1912 = vrot.lane.b32.xlu0 %v1878, 48
      %v1913 = vpop.permute.xlu0 %1912
      %1914 = vrot.lane.b32.xlu0 %v1879, 48
      %v1915 = vpop.permute.xlu0 %1914
      %1916 = vrot.lane.b32.xlu0 %v1880, 48
      %v1917 = vpop.permute.xlu0 %1916
      %1918 = vrot.lane.b32.xlu0 %v1881, 48
      %v1919 = vpop.permute.xlu0 %1918
      %1920 = vrot.lane.b32.xlu0 %v1882, 48
      %v1921 = vpop.permute.xlu0 %1920
      %1922 = vrot.lane.b32.xlu0 %v1883, 48
      %v1923 = vpop.permute.xlu0 %1922
      %1924 = vrot.lane.b32.xlu0 %v1884, 48
      %v1925 = vpop.permute.xlu0 %1924
      %1926 = vrot.lane.b32.xlu0 %v1885, 48
      %v1927 = vpop.permute.xlu0 %1926
      %1928 = vrot.lane.b32.xlu0 %v1886, 48
      %v1929 = vpop.permute.xlu0 %1928
      %1930 = vrot.lane.b32.xlu0 %v1887, 48
      %v1931 = vpop.permute.xlu0 %1930
      %1932 = vrot.lane.b32.xlu0 %v1888, 48
      %v1933 = vpop.permute.xlu0 %1932
      %1934 = vrot.lane.b32.xlu0 %v1889, 48
      %v1935 = vpop.permute.xlu0 %1934
      %1936 = vrot.lane.b32.xlu0 %v1890, 48
      %v1937 = vpop.permute.xlu0 %1936
      %1938 = vrot.lane.b32.xlu0 %v1891, 48
      %v1939 = vpop.permute.xlu0 %1938
      %vm1956 = vcmask 454016
      %1957 = vst.msk [vmem:[#allocation3] sm:$0xf] %vm1956, %v1909
      %1958 = vst.msk [vmem:[#allocation3 + $0x4] sm:$0xf] %vm1956, %v1911
      %1959 = vst.msk [vmem:[#allocation3 + $0x8] sm:$0xf] %vm1956, %v1913
      %1960 = vst.msk [vmem:[#allocation3 + $0xc] sm:$0xf] %vm1956, %v1915
      %1961 = vst.msk [vmem:[#allocation3 + $0x10] sm:$0xf] %vm1956, %v1917
      %1962 = vst.msk [vmem:[#allocation3 + $0x14] sm:$0xf] %vm1956, %v1919
      %1963 = vst.msk [vmem:[#allocation3 + $0x18] sm:$0xf] %vm1956, %v1921
      %1964 = vst.msk [vmem:[#allocation3 + $0x1c] sm:$0xf] %vm1956, %v1923
      %1965 = vst.msk [vmem:[#allocation3 + $0x20] sm:$0xf] %vm1956, %v1925
      %1966 = vst.msk [vmem:[#allocation3 + $0x24] sm:$0xf] %vm1956, %v1927
      %1967 = vst.msk [vmem:[#allocation3 + $0x28] sm:$0xf] %vm1956, %v1929
      %1968 = vst.msk [vmem:[#allocation3 + $0x2c] sm:$0xf] %vm1956, %v1931
      %1969 = vst.msk [vmem:[#allocation3 + $0x30] sm:$0xf] %vm1956, %v1933
      %1970 = vst.msk [vmem:[#allocation3 + $0x34] sm:$0xf] %vm1956, %v1935
      %1971 = vst.msk [vmem:[#allocation3 + $0x38] sm:$0xf] %vm1956, %v1937
      %1972 = vst.msk [vmem:[#allocation3 + $0x3c] sm:$0xf] %vm1956, %v1939
      %v1973 = vld [vmem:[%s1875] sm:$0xf]
      %v1974 = vld [vmem:[%s1875 + $0x4] sm:$0xf]
      %v1975 = vld [vmem:[%s1875 + $0x8] sm:$0x1]
      %v1976 = vld [vmem:[%s1875 + $0xc] sm:$0xf]
      %v1977 = vld [vmem:[%s1875 + $0x10] sm:$0xf]
      %v1978 = vld [vmem:[%s1875 + $0x14] sm:$0x1]
      %v1979 = vld [vmem:[%s1875 + $0x18] sm:$0xf]
      %v1980 = vld [vmem:[%s1875 + $0x1c] sm:$0xf]
      %v1981 = vld [vmem:[%s1875 + $0x20] sm:$0x1]
      %v1982 = vld [vmem:[%s1875 + $0x24] sm:$0xf]
      %v1983 = vld [vmem:[%s1875 + $0x28] sm:$0xf]
      %v1984 = vld [vmem:[%s1875 + $0x2c] sm:$0x1]
      %v1985 = vld [vmem:[%s1875 + $0x30] sm:$0xf]
      %v1986 = vld [vmem:[%s1875 + $0x34] sm:$0xf]
      %v1987 = vld [vmem:[%s1875 + $0x38] sm:$0x1]
      %v1988 = vld [vmem:[%s1875 + $0x3c] sm:$0xf]
      %v1989 = vld [vmem:[%s1875 + $0x40] sm:$0xf]
      %v1990 = vld [vmem:[%s1875 + $0x44] sm:$0x1]
      %v1991 = vld [vmem:[%s1875 + $0x48] sm:$0xf]
      %v1992 = vld [vmem:[%s1875 + $0x4c] sm:$0xf]
      %v1993 = vld [vmem:[%s1875 + $0x50] sm:$0x1]
      %v1994 = vld [vmem:[%s1875 + $0x54] sm:$0xf]
      %v1995 = vld [vmem:[%s1875 + $0x58] sm:$0xf]
      %v1996 = vld [vmem:[%s1875 + $0x5c] sm:$0x1]
      %v1998 = vshrl.u32 %v1973, 16
      %v2000 = vrot.slane %v1998, 4
      %v2001 = vshll.u32 %v1973, 16
      %v2003 = vrot.slane %v2001, 5
      %v2004 = vor.u32 %v2000, %v2003
      %v2005 = vrot.slane %v2004, 4
      %v2007 = vshll.u32 %v1974, 16
      %v2009 = vrot.slane %v2007, 5
      %v2010 = vsel %vm898, %v2005, %v2009
      %v2011 = vshrl.u32 %v1974, 16
      %v2013 = vrot.slane %v2011, 4
      %v2014 = vor.u32 %v2013, %v2009
      %v2015 = vrot.slane %v2014, 4
      %v2017 = vshll.u32 %v1975, 16
      %v2019 = vrot.slane %v2017, 5
      %v2020 = vsel %vm898, %v2015, %v2019
      %v2022 = vshrl.u32 %v1976, 16
      %v2024 = vrot.slane %v2022, 4
      %v2025 = vshll.u32 %v1976, 16
      %v2027 = vrot.slane %v2025, 5
      %v2028 = vor.u32 %v2024, %v2027
      %v2029 = vrot.slane %v2028, 4
      %v2031 = vshll.u32 %v1977, 16
      %v2033 = vrot.slane %v2031, 5
      %v2034 = vsel %vm898, %v2029, %v2033
      %v2035 = vshrl.u32 %v1977, 16
      %v2037 = vrot.slane %v2035, 4
      %v2038 = vor.u32 %v2037, %v2033
      %v2039 = vrot.slane %v2038, 4
      %v2041 = vshll.u32 %v1978, 16
      %v2043 = vrot.slane %v2041, 5
      %v2044 = vsel %vm898, %v2039, %v2043
      %v2046 = vshrl.u32 %v1979, 16
      %v2048 = vrot.slane %v2046, 4
      %v2049 = vshll.u32 %v1979, 16
      %v2051 = vrot.slane %v2049, 5
      %v2052 = vor.u32 %v2048, %v2051
      %v2053 = vrot.slane %v2052, 4
      %v2055 = vshll.u32 %v1980, 16
      %v2057 = vrot.slane %v2055, 5
      %v2058 = vsel %vm898, %v2053, %v2057
      %v2059 = vshrl.u32 %v1980, 16
      %v2061 = vrot.slane %v2059, 4
      %v2062 = vor.u32 %v2061, %v2057
      %v2063 = vrot.slane %v2062, 4
      %v2065 = vshll.u32 %v1981, 16
      %v2067 = vrot.slane %v2065, 5
      %v2068 = vsel %vm898, %v2063, %v2067
      %v2070 = vshrl.u32 %v1982, 16
      %v2072 = vrot.slane %v2070, 4
      %v2073 = vshll.u32 %v1982, 16
      %v2075 = vrot.slane %v2073, 5
      %v2076 = vor.u32 %v2072, %v2075
      %v2077 = vrot.slane %v2076, 4
      %v2079 = vshll.u32 %v1983, 16
      %v2081 = vrot.slane %v2079, 5
      %v2082 = vsel %vm898, %v2077, %v2081
      %v2083 = vshrl.u32 %v1983, 16
      %v2085 = vrot.slane %v2083, 4
      %v2086 = vor.u32 %v2085, %v2081
      %v2087 = vrot.slane %v2086, 4
      %v2089 = vshll.u32 %v1984, 16
      %v2091 = vrot.slane %v2089, 5
      %v2092 = vsel %vm898, %v2087, %v2091
      %v2094 = vshrl.u32 %v1985, 16
      %v2096 = vrot.slane %v2094, 4
      %v2097 = vshll.u32 %v1985, 16
      %v2099 = vrot.slane %v2097, 5
      %v2100 = vor.u32 %v2096, %v2099
      %v2101 = vrot.slane %v2100, 4
      %v2103 = vshll.u32 %v1986, 16
      %v2105 = vrot.slane %v2103, 5
      %v2106 = vsel %vm898, %v2101, %v2105
      %v2107 = vshrl.u32 %v1986, 16
      %v2109 = vrot.slane %v2107, 4
      %v2110 = vor.u32 %v2109, %v2105
      %v2111 = vrot.slane %v2110, 4
      %v2113 = vshll.u32 %v1987, 16
      %v2115 = vrot.slane %v2113, 5
      %v2116 = vsel %vm898, %v2111, %v2115
      %v2118 = vshrl.u32 %v1988, 16
      %v2120 = vrot.slane %v2118, 4
      %v2121 = vshll.u32 %v1988, 16
      %v2123 = vrot.slane %v2121, 5
      %v2124 = vor.u32 %v2120, %v2123
      %v2125 = vrot.slane %v2124, 4
      %v2127 = vshll.u32 %v1989, 16
      %v2129 = vrot.slane %v2127, 5
      %v2130 = vsel %vm898, %v2125, %v2129
      %v2131 = vshrl.u32 %v1989, 16
      %v2133 = vrot.slane %v2131, 4
      %v2134 = vor.u32 %v2133, %v2129
      %v2135 = vrot.slane %v2134, 4
      %v2137 = vshll.u32 %v1990, 16
      %v2139 = vrot.slane %v2137, 5
      %v2140 = vsel %vm898, %v2135, %v2139
      %v2142 = vshrl.u32 %v1991, 16
      %v2144 = vrot.slane %v2142, 4
      %v2145 = vshll.u32 %v1991, 16
      %v2147 = vrot.slane %v2145, 5
      %v2148 = vor.u32 %v2144, %v2147
      %v2149 = vrot.slane %v2148, 4
      %v2151 = vshll.u32 %v1992, 16
      %v2153 = vrot.slane %v2151, 5
      %v2154 = vsel %vm898, %v2149, %v2153
      %v2155 = vshrl.u32 %v1992, 16
      %v2157 = vrot.slane %v2155, 4
      %v2158 = vor.u32 %v2157, %v2153
      %v2159 = vrot.slane %v2158, 4
      %v2161 = vshll.u32 %v1993, 16
      %v2163 = vrot.slane %v2161, 5
      %v2164 = vsel %vm898, %v2159, %v2163
      %v2166 = vshrl.u32 %v1994, 16
      %v2168 = vrot.slane %v2166, 4
      %v2169 = vshll.u32 %v1994, 16
      %v2171 = vrot.slane %v2169, 5
      %v2172 = vor.u32 %v2168, %v2171
      %v2173 = vrot.slane %v2172, 4
      %v2175 = vshll.u32 %v1995, 16
      %v2177 = vrot.slane %v2175, 5
      %v2178 = vsel %vm898, %v2173, %v2177
      %v2179 = vshrl.u32 %v1995, 16
      %v2181 = vrot.slane %v2179, 4
      %v2182 = vor.u32 %v2181, %v2177
      %v2183 = vrot.slane %v2182, 4
      %v2185 = vshll.u32 %v1996, 16
      %v2187 = vrot.slane %v2185, 5
      %v2188 = vsel %vm898, %v2183, %v2187
      %2189 = vrot.lane.b32.xlu0 %v2010, 56
      %v2190 = vpop.permute.xlu0 %2189
      %2191 = vrot.lane.b32.xlu0 %v2020, 56
      %v2192 = vpop.permute.xlu0 %2191
      %2193 = vrot.lane.b32.xlu0 %v2034, 56
      %v2194 = vpop.permute.xlu0 %2193
      %2195 = vrot.lane.b32.xlu0 %v2044, 56
      %v2196 = vpop.permute.xlu0 %2195
      %2197 = vrot.lane.b32.xlu0 %v2058, 56
      %v2198 = vpop.permute.xlu0 %2197
      %2199 = vrot.lane.b32.xlu0 %v2068, 56
      %v2200 = vpop.permute.xlu0 %2199
      %2201 = vrot.lane.b32.xlu0 %v2082, 56
      %v2202 = vpop.permute.xlu0 %2201
      %2203 = vrot.lane.b32.xlu0 %v2092, 56
      %v2204 = vpop.permute.xlu0 %2203
      %2205 = vrot.lane.b32.xlu0 %v2106, 56
      %v2206 = vpop.permute.xlu0 %2205
      %2207 = vrot.lane.b32.xlu0 %v2116, 56
      %v2208 = vpop.permute.xlu0 %2207
      %2209 = vrot.lane.b32.xlu0 %v2130, 56
      %v2210 = vpop.permute.xlu0 %2209
      %2211 = vrot.lane.b32.xlu0 %v2140, 56
      %v2212 = vpop.permute.xlu0 %2211
      %2213 = vrot.lane.b32.xlu0 %v2154, 56
      %v2214 = vpop.permute.xlu0 %2213
      %2215 = vrot.lane.b32.xlu0 %v2164, 56
      %v2216 = vpop.permute.xlu0 %2215
      %2217 = vrot.lane.b32.xlu0 %v2178, 56
      %v2218 = vpop.permute.xlu0 %2217
      %2219 = vrot.lane.b32.xlu0 %v2188, 56
      %v2220 = vpop.permute.xlu0 %2219
      %vm2237 = vcmask 519616
      %2238 = vst.msk [vmem:[#allocation3] sm:$0xf] %vm2237, %v2190
      %2239 = vst.msk [vmem:[#allocation3 + $0x4] sm:$0xf] %vm2237, %v2192
      %2240 = vst.msk [vmem:[#allocation3 + $0x8] sm:$0xf] %vm2237, %v2194
      %2241 = vst.msk [vmem:[#allocation3 + $0xc] sm:$0xf] %vm2237, %v2196
      %2242 = vst.msk [vmem:[#allocation3 + $0x10] sm:$0xf] %vm2237, %v2198
      %2243 = vst.msk [vmem:[#allocation3 + $0x14] sm:$0xf] %vm2237, %v2200
      %2244 = vst.msk [vmem:[#allocation3 + $0x18] sm:$0xf] %vm2237, %v2202
      %2245 = vst.msk [vmem:[#allocation3 + $0x1c] sm:$0xf] %vm2237, %v2204
      %2246 = vst.msk [vmem:[#allocation3 + $0x20] sm:$0xf] %vm2237, %v2206
      %2247 = vst.msk [vmem:[#allocation3 + $0x24] sm:$0xf] %vm2237, %v2208
      %2248 = vst.msk [vmem:[#allocation3 + $0x28] sm:$0xf] %vm2237, %v2210
      %2249 = vst.msk [vmem:[#allocation3 + $0x2c] sm:$0xf] %vm2237, %v2212
      %2250 = vst.msk [vmem:[#allocation3 + $0x30] sm:$0xf] %vm2237, %v2214
      %2251 = vst.msk [vmem:[#allocation3 + $0x34] sm:$0xf] %vm2237, %v2216
      %2252 = vst.msk [vmem:[#allocation3 + $0x38] sm:$0xf] %vm2237, %v2218
      %2253 = vst.msk [vmem:[#allocation3 + $0x3c] sm:$0xf] %vm2237, %v2220
      %v2254 = vld [vmem:[%s1875] sm:$0xe]
      %v2255 = vld [vmem:[%s1875 + $0x4] sm:$0xf]
      %v2256 = vld [vmem:[%s1875 + $0x8] sm:$0x1]
      %v2257 = vld [vmem:[%s1875 + $0xc] sm:$0xe]
      %v2258 = vld [vmem:[%s1875 + $0x10] sm:$0xf]
      %v2259 = vld [vmem:[%s1875 + $0x14] sm:$0x1]
      %v2260 = vld [vmem:[%s1875 + $0x18] sm:$0xe]
      %v2261 = vld [vmem:[%s1875 + $0x1c] sm:$0xf]
      %v2262 = vld [vmem:[%s1875 + $0x20] sm:$0x1]
      %v2263 = vld [vmem:[%s1875 + $0x24] sm:$0xe]
      %v2264 = vld [vmem:[%s1875 + $0x28] sm:$0xf]
      %v2265 = vld [vmem:[%s1875 + $0x2c] sm:$0x1]
      %v2266 = vld [vmem:[%s1875 + $0x30] sm:$0xe]
      %v2267 = vld [vmem:[%s1875 + $0x34] sm:$0xf]
      %v2268 = vld [vmem:[%s1875 + $0x38] sm:$0x1]
      %v2269 = vld [vmem:[%s1875 + $0x3c] sm:$0xe]
      %v2270 = vld [vmem:[%s1875 + $0x40] sm:$0xf]
      %v2271 = vld [vmem:[%s1875 + $0x44] sm:$0x1]
      %v2272 = vld [vmem:[%s1875 + $0x48] sm:$0xe]
      %v2273 = vld [vmem:[%s1875 + $0x4c] sm:$0xf]
      %v2274 = vld [vmem:[%s1875 + $0x50] sm:$0x1]
      %v2275 = vld [vmem:[%s1875 + $0x54] sm:$0xe]
      %v2276 = vld [vmem:[%s1875 + $0x58] sm:$0xf]
      %v2277 = vld [vmem:[%s1875 + $0x5c] sm:$0x1]
      %v2302 = vrot.slane %v2254, 5
      %v2303 = vrot.slane %v2302, 4
      %v2304 = vrot.slane %v2255, 5
      %v2305 = vsel %vm1206, %v2303, %v2304
      %v2306 = vrot.slane %v2304, 4
      %v2307 = vrot.slane %v2256, 5
      %v2308 = vsel %vm1206, %v2306, %v2307
      %v2309 = vrot.slane %v2257, 5
      %v2310 = vrot.slane %v2309, 4
      %v2311 = vrot.slane %v2258, 5
      %v2312 = vsel %vm1206, %v2310, %v2311
      %v2313 = vrot.slane %v2311, 4
      %v2314 = vrot.slane %v2259, 5
      %v2315 = vsel %vm1206, %v2313, %v2314
      %v2316 = vrot.slane %v2260, 5
      %v2317 = vrot.slane %v2316, 4
      %v2318 = vrot.slane %v2261, 5
      %v2319 = vsel %vm1206, %v2317, %v2318
      %v2320 = vrot.slane %v2318, 4
      %v2321 = vrot.slane %v2262, 5
      %v2322 = vsel %vm1206, %v2320, %v2321
      %v2323 = vrot.slane %v2263, 5
      %v2324 = vrot.slane %v2323, 4
      %v2325 = vrot.slane %v2264, 5
      %v2326 = vsel %vm1206, %v2324, %v2325
      %v2327 = vrot.slane %v2325, 4
      %v2328 = vrot.slane %v2265, 5
      %v2329 = vsel %vm1206, %v2327, %v2328
      %v2330 = vrot.slane %v2266, 5
      %v2331 = vrot.slane %v2330, 4
      %v2332 = vrot.slane %v2267, 5
      %v2333 = vsel %vm1206, %v2331, %v2332
      %v2334 = vrot.slane %v2332, 4
      %v2335 = vrot.slane %v2268, 5
      %v2336 = vsel %vm1206, %v2334, %v2335
      %v2337 = vrot.slane %v2269, 5
      %v2338 = vrot.slane %v2337, 4
      %v2339 = vrot.slane %v2270, 5
      %v2340 = vsel %vm1206, %v2338, %v2339
      %v2341 = vrot.slane %v2339, 4
      %v2342 = vrot.slane %v2271, 5
      %v2343 = vsel %vm1206, %v2341, %v2342
      %v2344 = vrot.slane %v2272, 5
      %v2345 = vrot.slane %v2344, 4
      %v2346 = vrot.slane %v2273, 5
      %v2347 = vsel %vm1206, %v2345, %v2346
      %v2348 = vrot.slane %v2346, 4
      %v2349 = vrot.slane %v2274, 5
      %v2350 = vsel %vm1206, %v2348, %v2349
      %v2351 = vrot.slane %v2275, 5
      %v2352 = vrot.slane %v2351, 4
      %v2353 = vrot.slane %v2276, 5
      %v2354 = vsel %vm1206, %v2352, %v2353
      %v2355 = vrot.slane %v2353, 4
      %v2356 = vrot.slane %v2277, 5
      %v2357 = vsel %vm1206, %v2355, %v2356
      %2358 = vrot.lane.b32.xlu0 %v2305, 64
      %v2359 = vpop.permute.xlu0 %2358
      %2360 = vrot.lane.b32.xlu0 %v2308, 64
      %v2361 = vpop.permute.xlu0 %2360
      %2362 = vrot.lane.b32.xlu0 %v2312, 64
      %v2363 = vpop.permute.xlu0 %2362
      %2364 = vrot.lane.b32.xlu0 %v2315, 64
      %v2365 = vpop.permute.xlu0 %2364
      %2366 = vrot.lane.b32.xlu0 %v2319, 64
      %v2367 = vpop.permute.xlu0 %2366
      %2368 = vrot.lane.b32.xlu0 %v2322, 64
      %v2369 = vpop.permute.xlu0 %2368
      %2370 = vrot.lane.b32.xlu0 %v2326, 64
      %v2371 = vpop.permute.xlu0 %2370
      %2372 = vrot.lane.b32.xlu0 %v2329, 64
      %v2373 = vpop.permute.xlu0 %2372
      %2374 = vrot.lane.b32.xlu0 %v2333, 64
      %v2375 = vpop.permute.xlu0 %2374
      %2376 = vrot.lane.b32.xlu0 %v2336, 64
      %v2377 = vpop.permute.xlu0 %2376
      %2378 = vrot.lane.b32.xlu0 %v2340, 64
      %v2379 = vpop.permute.xlu0 %2378
      %2380 = vrot.lane.b32.xlu0 %v2343, 64
      %v2381 = vpop.permute.xlu0 %2380
      %2382 = vrot.lane.b32.xlu0 %v2347, 64
      %v2383 = vpop.permute.xlu0 %2382
      %2384 = vrot.lane.b32.xlu0 %v2350, 64
      %v2385 = vpop.permute.xlu0 %2384
      %2386 = vrot.lane.b32.xlu0 %v2354, 64
      %v2387 = vpop.permute.xlu0 %2386
      %2388 = vrot.lane.b32.xlu0 %v2357, 64
      %v2389 = vpop.permute.xlu0 %2388
      %vm2406 = vcmask 585216
      %2407 = vst.msk [vmem:[#allocation3] sm:$0xf] %vm2406, %v2359
      %2408 = vst.msk [vmem:[#allocation3 + $0x4] sm:$0xf] %vm2406, %v2361
      %2409 = vst.msk [vmem:[#allocation3 + $0x8] sm:$0xf] %vm2406, %v2363
      %2410 = vst.msk [vmem:[#allocation3 + $0xc] sm:$0xf] %vm2406, %v2365
      %2411 = vst.msk [vmem:[#allocation3 + $0x10] sm:$0xf] %vm2406, %v2367
      %2412 = vst.msk [vmem:[#allocation3 + $0x14] sm:$0xf] %vm2406, %v2369
      %2413 = vst.msk [vmem:[#allocation3 + $0x18] sm:$0xf] %vm2406, %v2371
      %2414 = vst.msk [vmem:[#allocation3 + $0x1c] sm:$0xf] %vm2406, %v2373
      %2415 = vst.msk [vmem:[#allocation3 + $0x20] sm:$0xf] %vm2406, %v2375
      %2416 = vst.msk [vmem:[#allocation3 + $0x24] sm:$0xf] %vm2406, %v2377
      %2417 = vst.msk [vmem:[#allocation3 + $0x28] sm:$0xf] %vm2406, %v2379
      %2418 = vst.msk [vmem:[#allocation3 + $0x2c] sm:$0xf] %vm2406, %v2381
      %2419 = vst.msk [vmem:[#allocation3 + $0x30] sm:$0xf] %vm2406, %v2383
      %2420 = vst.msk [vmem:[#allocation3 + $0x34] sm:$0xf] %vm2406, %v2385
      %2421 = vst.msk [vmem:[#allocation3 + $0x38] sm:$0xf] %vm2406, %v2387
      %2422 = vst.msk [vmem:[#allocation3 + $0x3c] sm:$0xf] %vm2406, %v2389
      %vm2423 = vcmask 1044032
      %2424 = vst.msk [vmem:[#allocation3] sm:$0xf] %vm2423, 0
      %2425 = vst.msk [vmem:[#allocation3 + $0x4] sm:$0xf] %vm2423, 0
      %2426 = vst.msk [vmem:[#allocation3 + $0x8] sm:$0xf] %vm2423, 0
      %2427 = vst.msk [vmem:[#allocation3 + $0xc] sm:$0xf] %vm2423, 0
      %2428 = vst.msk [vmem:[#allocation3 + $0x10] sm:$0xf] %vm2423, 0
      %2429 = vst.msk [vmem:[#allocation3 + $0x14] sm:$0xf] %vm2423, 0
      %2430 = vst.msk [vmem:[#allocation3 + $0x18] sm:$0xf] %vm2423, 0
      %2431 = vst.msk [vmem:[#allocation3 + $0x1c] sm:$0xf] %vm2423, 0
      %2432 = vst.msk [vmem:[#allocation3 + $0x20] sm:$0xf] %vm2423, 0
      %2433 = vst.msk [vmem:[#allocation3 + $0x24] sm:$0xf] %vm2423, 0
      %2434 = vst.msk [vmem:[#allocation3 + $0x28] sm:$0xf] %vm2423, 0
      %2435 = vst.msk [vmem:[#allocation3 + $0x2c] sm:$0xf] %vm2423, 0
      %2436 = vst.msk [vmem:[#allocation3 + $0x30] sm:$0xf] %vm2423, 0
      %2437 = vst.msk [vmem:[#allocation3 + $0x34] sm:$0xf] %vm2423, 0
      %2438 = vst.msk [vmem:[#allocation3 + $0x38] sm:$0xf] %vm2423, 0
      %2439 = vst.msk [vmem:[#allocation3 + $0x3c] sm:$0xf] %vm2423, 0
      %v2440 = vld [vmem:[#allocation3] sm:$0xf]
      %v2441 = vld [vmem:[#allocation3 + $0x4] sm:$0xf]
      %v2442 = vld [vmem:[#allocation3 + $0x8] sm:$0xf]
      %v2443 = vld [vmem:[#allocation3 + $0xc] sm:$0xf]
      %v2444 = vld [vmem:[#allocation3 + $0x10] sm:$0xf]
      %v2445 = vld [vmem:[#allocation3 + $0x14] sm:$0xf]
      %v2446 = vld [vmem:[#allocation3 + $0x18] sm:$0xf]
      %v2447 = vld [vmem:[#allocation3 + $0x1c] sm:$0xf]
      %v2448 = vld [vmem:[#allocation3 + $0x20] sm:$0xf]
      %v2449 = vld [vmem:[#allocation3 + $0x24] sm:$0xf]
      %v2450 = vld [vmem:[#allocation3 + $0x28] sm:$0xf]
      %v2451 = vld [vmem:[#allocation3 + $0x2c] sm:$0xf]
      %v2452 = vld [vmem:[#allocation3 + $0x30] sm:$0xf]
      %v2453 = vld [vmem:[#allocation3 + $0x34] sm:$0xf]
      %v2454 = vld [vmem:[#allocation3 + $0x38] sm:$0xf]
      %v2455 = vld [vmem:[#allocation3 + $0x3c] sm:$0xf]
      %v2456 = vld [vmem:[%s3] sm:$0xf]
      %v2457 = vld [vmem:[%s3 + $0x4] sm:$0xf]
      %v2458 = vld [vmem:[%s3 + $0x8] sm:$0xf]
      %v2459 = vld [vmem:[%s3 + $0xc] sm:$0xf]
      %v2460 = vld [vmem:[%s3 + $0x10] sm:$0xf]
      %v2461 = vld [vmem:[%s3 + $0x14] sm:$0xf]
      %v2462 = vld [vmem:[%s3 + $0x18] sm:$0xf]
      %v2463 = vld [vmem:[%s3 + $0x1c] sm:$0xf]
      %v2464 = vld [vmem:[%s3 + $0x20] sm:$0xf]
      %v2465 = vld [vmem:[%s3 + $0x24] sm:$0xf]
      %v2466 = vld [vmem:[%s3 + $0x28] sm:$0xf]
      %v2467 = vld [vmem:[%s3 + $0x2c] sm:$0xf]
      %v2468 = vld [vmem:[%s3 + $0x30] sm:$0xf]
      %v2469 = vld [vmem:[%s3 + $0x34] sm:$0xf]
      %v2470 = vld [vmem:[%s3 + $0x38] sm:$0xf]
      %v2471 = vld [vmem:[%s3 + $0x3c] sm:$0xf]
      %v2488 = vunpack.c.l.b16 %v2440
      %v2489 = vunpack.c.l.b16 %v2441
      %v2490 = vunpack.c.l.b16 %v2442
      %v2491 = vunpack.c.l.b16 %v2443
      %v2492 = vunpack.c.l.b16 %v2444
      %v2493 = vunpack.c.l.b16 %v2445
      %v2494 = vunpack.c.l.b16 %v2446
      %v2495 = vunpack.c.l.b16 %v2447
      %v2496 = vunpack.c.l.b16 %v2448
      %v2497 = vunpack.c.l.b16 %v2449
      %v2498 = vunpack.c.l.b16 %v2450
      %v2499 = vunpack.c.l.b16 %v2451
      %v2500 = vunpack.c.l.b16 %v2452
      %v2501 = vunpack.c.l.b16 %v2453
      %v2502 = vunpack.c.l.b16 %v2454
      %v2503 = vunpack.c.l.b16 %v2455
      %v2504 = vpack.c.b16 %v2489, %v2488
      %v2505 = vpack.c.b16 %v2491, %v2490
      %v2506 = vpack.c.b16 %v2493, %v2492
      %v2507 = vpack.c.b16 %v2495, %v2494
      %v2508 = vpack.c.b16 %v2497, %v2496
      %v2509 = vpack.c.b16 %v2499, %v2498
      %v2510 = vpack.c.b16 %v2501, %v2500
      %v2511 = vpack.c.b16 %v2503, %v2502
      %v2536 = vunpack.c.l.b16 %v2456
      %v2537 = vunpack.c.l.b16 %v2457
      %v2538 = vunpack.c.l.b16 %v2458
      %v2539 = vunpack.c.l.b16 %v2459
      %v2540 = vunpack.c.l.b16 %v2460
      %v2541 = vunpack.c.l.b16 %v2461
      %v2542 = vunpack.c.l.b16 %v2462
      %v2543 = vunpack.c.l.b16 %v2463
      %v2544 = vunpack.c.l.b16 %v2464
      %v2545 = vunpack.c.l.b16 %v2465
      %v2546 = vunpack.c.l.b16 %v2466
      %v2547 = vunpack.c.l.b16 %v2467
      %v2548 = vunpack.c.l.b16 %v2468
      %v2549 = vunpack.c.l.b16 %v2469
      %v2550 = vunpack.c.l.b16 %v2470
      %v2551 = vunpack.c.l.b16 %v2471
      %v2552 = vpack.c.b16 %v2537, %v2536
      %v2553 = vpack.c.b16 %v2539, %v2538
      %v2554 = vpack.c.b16 %v2541, %v2540
      %v2555 = vpack.c.b16 %v2543, %v2542
      %v2556 = vpack.c.b16 %v2545, %v2544
      %v2557 = vpack.c.b16 %v2547, %v2546
      %v2558 = vpack.c.b16 %v2549, %v2548
      %v2559 = vpack.c.b16 %v2551, %v2550
      %2568 = vmatpush.bf16.msra.mxu0 %v2559
      %2569 = vmatpush.bf16.msra.mxu0 %v2558
      %2570 = vmatpush.bf16.msra.mxu0 %v2557
      %2571 = vmatpush.bf16.msra.mxu0 %v2556
      %2572 = vmatpush.bf16.msra.mxu0 %v2555
      %2573 = vmatpush.bf16.msra.mxu0 %v2554
      %2574 = vmatpush.bf16.msra.mxu0 %v2553
      %2575 = vmatpush.bf16.msra.mxu0 %v2552
      %2576 = vmatmul.bf16.gmra.mxu0 %v2504
      %v2577 = vpop.f32.mrf.mxu0
      %v2578 = vadd.f32 0.0, %v2577
      %v2579 = vpop.f32.mrf.mxu0
      %v2580 = vadd.f32 0.0, %v2579
      %2581 = vmatmul.bf16.gmra.mxu0 %v2505
      %v2582 = vpop.f32.mrf.mxu0
      %v2583 = vadd.f32 0.0, %v2582
      %v2584 = vpop.f32.mrf.mxu0
      %v2585 = vadd.f32 0.0, %v2584
      %2586 = vmatmul.bf16.gmra.mxu0 %v2506
      %v2587 = vpop.f32.mrf.mxu0
      %v2588 = vadd.f32 0.0, %v2587
      %v2589 = vpop.f32.mrf.mxu0
      %v2590 = vadd.f32 0.0, %v2589
      %2591 = vmatmul.bf16.gmra.mxu0 %v2507
      %v2592 = vpop.f32.mrf.mxu0
      %v2593 = vadd.f32 0.0, %v2592
      %v2594 = vpop.f32.mrf.mxu0
      %v2595 = vadd.f32 0.0, %v2594
      %2596 = vmatmul.bf16.gmra.mxu0 %v2508
      %v2597 = vpop.f32.mrf.mxu0
      %v2598 = vadd.f32 0.0, %v2597
      %v2599 = vpop.f32.mrf.mxu0
      %v2600 = vadd.f32 0.0, %v2599
      %2601 = vmatmul.bf16.gmra.mxu0 %v2509
      %v2602 = vpop.f32.mrf.mxu0
      %v2603 = vadd.f32 0.0, %v2602
      %v2604 = vpop.f32.mrf.mxu0
      %v2605 = vadd.f32 0.0, %v2604
      %2606 = vmatmul.bf16.gmra.mxu0 %v2510
      %v2607 = vpop.f32.mrf.mxu0
      %v2608 = vadd.f32 0.0, %v2607
      %v2609 = vpop.f32.mrf.mxu0
      %v2610 = vadd.f32 0.0, %v2609
      %2611 = vmatmul.bf16.gmra.mxu0 %v2511
      %v2612 = vpop.f32.mrf.mxu0
      %v2613 = vadd.f32 0.0, %v2612
      %v2614 = vpop.f32.mrf.mxu0
      %v2615 = vadd.f32 0.0, %v2614
      %2616 = vdwg.mxu0
      %v2617 = vpack.c.bf16 %v2578, %v2578
      %v2618 = vpack.c.bf16 %v2580, %v2580
      %v2619 = vpack.c.bf16 %v2583, %v2583
      %v2620 = vpack.c.bf16 %v2585, %v2585
      %v2621 = vpack.c.bf16 %v2588, %v2588
      %v2622 = vpack.c.bf16 %v2590, %v2590
      %v2623 = vpack.c.bf16 %v2593, %v2593
      %v2624 = vpack.c.bf16 %v2595, %v2595
      %v2625 = vpack.c.bf16 %v2598, %v2598
      %v2626 = vpack.c.bf16 %v2600, %v2600
      %v2627 = vpack.c.bf16 %v2603, %v2603
      %v2628 = vpack.c.bf16 %v2605, %v2605
      %v2629 = vpack.c.bf16 %v2608, %v2608
      %v2630 = vpack.c.bf16 %v2610, %v2610
      %v2631 = vpack.c.bf16 %v2613, %v2613
      %v2632 = vpack.c.bf16 %v2615, %v2615
      %2633 = vst.msk [vmem:[%s441] sm:$0xf] %vm588, %v2617
      %2634 = vst.msk [vmem:[%s441 + $0x4] sm:$0xf] %vm588, %v2618
      %2635 = vst.msk [vmem:[%s441 + $0x8] sm:$0xf] %vm588, %v2619
      %2636 = vst.msk [vmem:[%s441 + $0xc] sm:$0xf] %vm588, %v2620
      %2637 = vst.msk [vmem:[%s441 + $0x10] sm:$0xf] %vm588, %v2621
      %2638 = vst.msk [vmem:[%s441 + $0x14] sm:$0xf] %vm588, %v2622
      %2639 = vst.msk [vmem:[%s441 + $0x18] sm:$0xf] %vm588, %v2623
      %2640 = vst.msk [vmem:[%s441 + $0x1c] sm:$0xf] %vm588, %v2624
      %2641 = vst.msk [vmem:[%s441 + $0x20] sm:$0xf] %vm588, %v2625
      %2642 = vst.msk [vmem:[%s441 + $0x24] sm:$0xf] %vm588, %v2626
      %2643 = vst.msk [vmem:[%s441 + $0x28] sm:$0xf] %vm588, %v2627
      %2644 = vst.msk [vmem:[%s441 + $0x2c] sm:$0xf] %vm588, %v2628
      %2645 = vst.msk [vmem:[%s441 + $0x30] sm:$0xf] %vm588, %v2629
      %2646 = vst.msk [vmem:[%s441 + $0x34] sm:$0xf] %vm588, %v2630
      %2647 = vst.msk [vmem:[%s441 + $0x38] sm:$0xf] %vm588, %v2631
      %2648 = vst.msk [vmem:[%s441 + $0x3c] sm:$0xf] %vm588, %v2632
      %v2649 = vadd.f32 %v2578, %v2580
      %v2650 = vadd.f32 %v2649, %v2583
      %v2651 = vadd.f32 %v2650, %v2585
      %v2652 = vadd.f32 %v2651, %v2588
      %v2653 = vadd.f32 %v2652, %v2590
      %v2654 = vadd.f32 %v2653, %v2593
      %v2655 = vadd.f32 %v2654, %v2595
      %v2656 = vadd.f32 %v2655, %v2598
      %v2657 = vadd.f32 %v2656, %v2600
      %v2658 = vadd.f32 %v2657, %v2603
      %v2659 = vadd.f32 %v2658, %v2605
      %v2660 = vadd.f32 %v2659, %v2608
      %v2661 = vadd.f32 %v2660, %v2610
      %v2662 = vadd.f32 %v2661, %v2613
      %v2663 = vadd.f32 %v2662, %v2615
      %v2664 = vrot.slane %v2663, 4
      %v2665 = vadd.f32 %v2663, %v2664
      %v2666 = vrot.slane %v2665, 2
      %v2667 = vadd.f32 %v2665, %v2666
      %v2668 = vrot.slane %v2667, 1
      %v2669 = vadd.f32 %v2667, %v2668
      %v2670 = vmul.f32 %v2669, 0.0078125
      %v2671 = vsub.f32 %v2578, %v2670
      %v2672 = vsub.f32 %v2580, %v2670
      %v2673 = vsub.f32 %v2583, %v2670
      %v2674 = vsub.f32 %v2585, %v2670
      %v2675 = vsub.f32 %v2588, %v2670
      %v2676 = vsub.f32 %v2590, %v2670
      %v2677 = vsub.f32 %v2593, %v2670
      %v2678 = vsub.f32 %v2595, %v2670
      %v2679 = vsub.f32 %v2598, %v2670
      %v2680 = vsub.f32 %v2600, %v2670
      %v2681 = vsub.f32 %v2603, %v2670
      %v2682 = vsub.f32 %v2605, %v2670
      %v2683 = vsub.f32 %v2608, %v2670
      %v2684 = vsub.f32 %v2610, %v2670
      %v2685 = vsub.f32 %v2613, %v2670
      %v2686 = vsub.f32 %v2615, %v2670
      %v2687 = vmul.f32 %v2671, %v2671
      %v2688 = vmul.f32 %v2672, %v2672
      %v2689 = vmul.f32 %v2673, %v2673
      %v2690 = vmul.f32 %v2674, %v2674
      %v2691 = vmul.f32 %v2675, %v2675
      %v2692 = vmul.f32 %v2676, %v2676
      %v2693 = vmul.f32 %v2677, %v2677
      %v2694 = vmul.f32 %v2678, %v2678
      %v2695 = vmul.f32 %v2679, %v2679
      %v2696 = vmul.f32 %v2680, %v2680
      %v2697 = vmul.f32 %v2681, %v2681
      %v2698 = vmul.f32 %v2682, %v2682
      %v2699 = vmul.f32 %v2683, %v2683
      %v2700 = vmul.f32 %v2684, %v2684
      %v2701 = vmul.f32 %v2685, %v2685
      %v2702 = vmul.f32 %v2686, %v2686
      %v2703 = vadd.f32 %v2687, %v2688
      %v2704 = vadd.f32 %v2703, %v2689
      %v2705 = vadd.f32 %v2704, %v2690
      %v2706 = vadd.f32 %v2705, %v2691
      %v2707 = vadd.f32 %v2706, %v2692
      %v2708 = vadd.f32 %v2707, %v2693
      %v2709 = vadd.f32 %v2708, %v2694
      %v2710 = vadd.f32 %v2709, %v2695
      %v2711 = vadd.f32 %v2710, %v2696
      %v2712 = vadd.f32 %v2711, %v2697
      %v2713 = vadd.f32 %v2712, %v2698
      %v2714 = vadd.f32 %v2713, %v2699
      %v2715 = vadd.f32 %v2714, %v2700
      %v2716 = vadd.f32 %v2715, %v2701
      %v2717 = vadd.f32 %v2716, %v2702
      %v2718 = vrot.slane %v2717, 4
      %v2719 = vadd.f32 %v2717, %v2718
      %v2720 = vrot.slane %v2719, 2
      %v2721 = vadd.f32 %v2719, %v2720
      %v2722 = vrot.slane %v2721, 1
      %v2723 = vadd.f32 %v2721, %v2722
      %2724 = vst [vmem:[%s449] sm:$0x1] %v2670
      %2725 = vst [vmem:[%s456] sm:$0x1] %v2723
      %s2726 = smul.u32 8, %s23
      %p2727 = scmp.lt.s32.totalorder %s22, 1
      %s2728 = scalar_select %p2727, %s22, 1
      %p2729 = scmp.lt.s32.totalorder %s2726, 15
      %s2730 = scalar_select %p2729, %s2726, 15
      %s2731 = smul.addr %s2730, 2
      %s2732 = smul.addr %s2728, 32
      %s2733 = sadd.s32 %s2731, %s2732
      %s2734 = smul.addr %s2733, 4
      %s2735 = scalar_lea.vmem %s4, %s2734
      %p2736 = scmp.lt.s32.totalorder %s22, 1
      %s2737 = scalar_select %p2736, %s22, 1
      %p2738 = scmp.lt.s32.totalorder %s23, 1
      %s2739 = scalar_select %p2738, %s23, 1
      %s2740 = smul.addr %s2737, 2
      %s2741 = sadd.s32 %s2739, %s2740
      %s2742 = scalar_lea.vmem %s5, %s2741
      %p2743 = scmp.lt.s32.totalorder %s22, 1
      %s2744 = scalar_select %p2743, %s22, 1
      %p2745 = scmp.lt.s32.totalorder %s23, 1
      %s2746 = scalar_select %p2745, %s23, 1
      %s2747 = smul.addr %s2744, 2
      %s2748 = sadd.s32 %s2746, %s2747
      %s2749 = scalar_lea.vmem %s6, %s2748
      // Predicated region
      $region37: #{basic_block_forward.3} parent=35 // pred_check
        %p2750 = pneg %p171
      $region38: #{basic_block_forward.3} parent=35 // pred_check_branch
        %2752 = sbr.rel (%p2750) target = $region40
      $region39: #{basic_block_forward.3} parent=35 // pred_region
        %s2753 = smul.u32 8, %s23
      $region40: #{basic_block_forward.3} parent=35 // pred_fallthru
        _
      // Predicated region
      $region41: #{basic_block_forward.3} parent=35 // pred_check
        %p2754 = pneg %p199
      $region42: #{basic_block_forward.3} parent=35 // pred_check_branch
        %2756 = sbr.rel (%p2754) target = $region44
      $region43: #{basic_block_forward.3} parent=35 // pred_region
        _
      $region44: #{basic_block_forward.3} parent=35 // pred_fallthru
        _
      // Predicated region
      $region45: #{basic_block_forward.3} parent=35 // pred_check
        %p2757 = pneg %p227
      $region46: #{basic_block_forward.3} parent=35 // pred_check_branch
        %2759 = sbr.rel (%p2757) target = $region48
      $region47: #{basic_block_forward.3} parent=35 // pred_region
        _
      $region48: #{basic_block_forward.3} parent=35 // pred_fallthru
        _
    $region36: #{basic_block_forward.3} parent=5 // pred_fallthru
      _
    %p2760 = scmp.le.s32.totalorder 2, %s13
    // Predicated region
    $region49: #{basic_block_forward.3} parent=5 // pred_check
      %p2761 = pneg %p2760
    $region50: #{basic_block_forward.3} parent=5 // pred_check_branch
      %2763 = sbr.rel (%p2761) target = $region52
    $region51: #{basic_block_forward.3} parent=5 // pred_region
      %s2764 = ssub.s32 %s13, 2
      // Predicated region
      $region53: #{basic_block_forward.3} parent=51 // pred_check
        %p2765 = pneg %p177
      $region54: #{basic_block_forward.3} parent=51 // pred_check_branch
        %2767 = sbr.rel (%p2765) target = $region56
      $region55: #{basic_block_forward.3} parent=51 // pred_region
        %s2768 = smul.u32 8, %s25
        %p2769 = scmp.lt.s32.totalorder %s24, 1
        %s2770 = scalar_select %p2769, %s24, 1
        %p2771 = scmp.lt.s32.totalorder %s2768, 15
        %s2772 = scalar_select %p2771, %s2768, 15
        %s2773 = smul.addr %s2772, 2
        %s2774 = smul.addr %s2770, 32
        %s2775 = sadd.s32 %s2773, %s2774
        %s2776 = smul.addr %s2775, 4
        %s2777 = scalar_lea.vmem %s4, %s2776
      $region56: #{basic_block_forward.3} parent=51 // pred_fallthru
        _
      // Predicated region
      $region57: #{basic_block_forward.3} parent=51 // pred_check
        %p2778 = pneg %p205
      $region58: #{basic_block_forward.3} parent=51 // pred_check_branch
        %2780 = sbr.rel (%p2778) target = $region60
      $region59: #{basic_block_forward.3} parent=51 // pred_region
        %p2781 = scmp.lt.s32.totalorder %s24, 1
        %s2782 = scalar_select %p2781, %s24, 1
        %p2783 = scmp.lt.s32.totalorder %s25, 1
        %s2784 = scalar_select %p2783, %s25, 1
        %s2785 = smul.addr %s2782, 2
        %s2786 = sadd.s32 %s2784, %s2785
        %s2787 = scalar_lea.vmem %s5, %s2786
      $region60: #{basic_block_forward.3} parent=51 // pred_fallthru
        _
      // Predicated region
      $region61: #{basic_block_forward.3} parent=51 // pred_check
        %p2788 = pneg %p233
      $region62: #{basic_block_forward.3} parent=51 // pred_check_branch
        %2790 = sbr.rel (%p2788) target = $region64
      $region63: #{basic_block_forward.3} parent=51 // pred_region
        %p2791 = scmp.lt.s32.totalorder %s24, 1
        %s2792 = scalar_select %p2791, %s24, 1
        %p2793 = scmp.lt.s32.totalorder %s25, 1
        %s2794 = scalar_select %p2793, %s25, 1
        %s2795 = smul.addr %s2792, 2
        %s2796 = sadd.s32 %s2794, %s2795
        %s2797 = scalar_lea.vmem %s6, %s2796
      $region64: #{basic_block_forward.3} parent=51 // pred_fallthru
        _
    $region52: #{basic_block_forward.3} parent=5 // pred_fallthru
      _
  $region6: #{basic_block_forward.3} parent=0 // loop_footer
    %s17 = sadd.s32 1, %s13
  $region7: #{basic_block_forward.3} parent=0 // loop_footer_branch
    %12 = sbr.rel target = $region3
  $region8: #{basic_block_forward.3} parent=0 // loop_exit
    _

</llo_original>
